<compile_context>
chip_gen: v6e
topology: v6e:2x2x1
jax: 0.10.0
libtpu: 0.0.40
codegen_flags: <defaults>
</compile_context>

<pallas_src>
import functools

import jax
import jax.numpy as jnp
import numpy as np
from jax.experimental import pallas as pl
from jax.experimental.pallas import tpu as pltpu

STATE_DIM = 6          # state width in the PyTorch module
ACTION_DIM = 2         # synthetic actor output width (hstack -> 8 == f input)
PAD_DIM = 8            # state carried 8 rows tall: rows 0..5 state, row 6 = 0, row 7 = 1.0
N_STEPS = 100
UNROLL = 10            # rollout recurrence unroll factor (fori_loop runs N_STEPS // UNROLL)
R_CHUNK = 33           # time steps per batched lane-dense reward pass (99 = 3 * 33)

assert N_STEPS % UNROLL == 0
assert (N_STEPS - 1) % R_CHUNK == 0


def _relu6(x):
    return jnp.minimum(jnp.maximum(x, 0.0), 6.0)


def _bdot(w, x):
    # Single-pass MXU matmul: bf16 operands (w pre-cast to bf16), f32 accumulation.
    return jnp.dot(w, x.astype(jnp.bfloat16), preferred_element_type=jnp.float32)


def worldnet_kernel(u_ref, wsa_ref, w1a_ref, w2_ref, b2_ref, w3_ref, b3_ref,
                    w4_ref, b4_ref, w5_ref, b5_ref, rw0_ref, rw1_ref,
                    x_ref, r_ref):
    """One batch tile, feature-major (features on sublanes, batch on lanes).

    x_ref : (N_STEPS, 8, TB)  x_t for t = 0..99 (rows 0..5 state, row 6 = 0, row 7 = 1)
    r_ref : (N_STEPS, TB)     reward_t = exp(-||mlp_reward(x_{t+1})||_2)
    """
    s0 = u_ref[...]                                   # (8, TB) f32

    # weights (bf16) loaded once; biases stay (N, 1) f32 and broadcast in the add
    w_sa = wsa_ref[...]                               # (24, 8): rows 0..1 actor (ab folded in col 7),
                                                      #          rows 8..23 f.0 state part (b1 in col 7)
    w1a = w1a_ref[...]                                # (16, 2)  f.0 action part
    w2, w3, w4 = w2_ref[...], w3_ref[...], w4_ref[...]
    w5 = w5_ref[...]                                  # (8, 8)   output rows 6,7 zero
    b2, b3, b4, b5 = b2_ref[...], b3_ref[...], b4_ref[...], b5_ref[...]

    def one_step(t, s):
        x_ref[t] = s                                  # unmasked lane-dense (8, TB) store
        t_sa = _bdot(w_sa, s)                         # one MXU push: [actor | f.0 state part]
        a = jnp.tanh(t_sa[0:ACTION_DIM])              # actor_network(x_t), ab already folded in
        h = _relu6(t_sa[8:24] + _bdot(w1a, a))        # f.0(hstack([x_t, a])), b1 already folded in
        h = _relu6(_bdot(w2, h) + b2)
        h = _relu6(_bdot(w3, h) + b3)
        h = _relu6(_bdot(w4, h) + b4)
        return s + _bdot(w5, h) + b5                  # x_{t+1}; rows 6 (=0) and 7 (=1) preserved

    def unrolled(j, s):
        t0 = j * UNROLL
        for k in range(UNROLL):
            s = one_step(t0 + k, s)
        return s

    s_final = jax.lax.fori_loop(0, N_STEPS // UNROLL, unrolled, s0)   # = x_100 (stays in vregs)

    # Hoisted, lane-dense reward head: reward_t = exp(-||rw^T x_{t+1} + rb||_2).
    # x_1..x_99 are read back from the state output block (no trajectory scratch);
    # rb is folded into row 7 of rw because state row 7 is a constant 1.0.
    rw0 = rw0_ref[...]                                # (8, 1) f32
    rw1 = rw1_ref[...]                                # (8, 1) f32
    for c in range(0, N_STEPS - 1, R_CHUNK):
        xs = x_ref[pl.ds(1 + c, R_CHUNK)]             # (R_CHUNK, 8, TB) = x_{c+1 .. c+R_CHUNK}
        r0 = jnp.sum(xs * rw0[None, :, :], axis=1)    # (R_CHUNK, TB)  lane-dense
        r1 = jnp.sum(xs * rw1[None, :, :], axis=1)
        r_ref[pl.ds(c, R_CHUNK)] = jnp.exp(-jnp.sqrt(r0 * r0 + r1 * r1))
    f0 = jnp.sum(s_final * rw0, axis=0, keepdims=True)                # (1, TB)
    f1 = jnp.sum(s_final * rw1, axis=0, keepdims=True)
    r_ref[pl.ds(N_STEPS - 1, 1)] = jnp.exp(-jnp.sqrt(f0 * f0 + f1 * f1))


def _pallas_rollout(u8, weights, tile_b):
    pB = u8.shape[1]
    grid = (pB // tile_b,)
    w_specs = [pl.BlockSpec(w.shape, lambda i: (0, 0)) for w in weights]
    return pl.pallas_call(
        worldnet_kernel,
        out_shape=(jax.ShapeDtypeStruct((N_STEPS, PAD_DIM, pB), jnp.float32),
                   jax.ShapeDtypeStruct((N_STEPS, pB), jnp.float32)),
        grid=grid,
        in_specs=[pl.BlockSpec((PAD_DIM, tile_b), lambda i: (0, i))] + w_specs,
        out_specs=(pl.BlockSpec((N_STEPS, PAD_DIM, tile_b), lambda i: (0, 0, i)),
                   pl.BlockSpec((N_STEPS, tile_b), lambda i: (0, i))),
        compiler_params=pltpu.CompilerParams(
            # batch tiles are fully independent -> megacore-shardable on v7x.
            dimension_semantics=("parallel",)),
        # Per-tile VMEM footprint at tile_b=256: state block (100,8,256) f32 x2
        # buffers (~1.6 MiB) + reward block x2 (~0.2 MiB) + weights + reward-pass
        # temporaries  =>  ~2.5 MiB, well inside the default scoped VMEM budget on
        # v5e/v6e/v7x, so no vmem_limit_bytes override is requested.
    )(u8, *weights)


@functools.partial(jax.jit, static_argnames=("tile_b",))
def worldnet_forward(u, params, *, tile_b=None):
    """u: (B, 6) initial states -> (B, N_STEPS, 7) = [states, reward]."""
    aw, ab, w1, b1, w2, b2, w3, b3, w4, b4, w5, b5, rw, rb = params
    B = u.shape[0]
    f32, bf16 = jnp.float32, jnp.bfloat16

    if tile_b is None:
        # >=128 lanes (dense stores / full MXU columns); 256 for large batches so
        # the grid keeps >=2 tiles (v7x megacore) with a small per-tile footprint.
        tile_b = 128 if B <= 256 else 256
    assert tile_b % 128 == 0

    # --- one-time weight fusion / transposition to feature-major (out, in) ---
    # Fused [actor | f.0 state rows] weight; actor bias ab and f.0 bias b1 are
    # folded into input column 7 because state row 7 is carried as constant 1.0.
    wsa = jnp.zeros((24, PAD_DIM), f32)
    wsa = wsa.at[0:ACTION_DIM, :STATE_DIM].set(aw.T)
    wsa = wsa.at[0:ACTION_DIM, 7].set(ab[0])
    wsa = wsa.at[8:24, :STATE_DIM].set(w1[:STATE_DIM].T)
    wsa = wsa.at[8:24, 7].set(b1[0])
    w1aT = w1[STATE_DIM:].T                                                  # (16, 2)
    w5T = jnp.zeros((PAD_DIM, PAD_DIM), f32).at[:STATE_DIM, :].set(w5.T)     # (8, 8), rows 6,7 = 0
    b5c = jnp.zeros((PAD_DIM, 1), f32).at[:STATE_DIM, 0].set(b5[0])          # (8, 1), rows 6,7 = 0
    # mlp_reward columns, zero-padded to 8 rows, with rb folded into row 7.
    rw0 = jnp.zeros((PAD_DIM, 1), f32).at[:STATE_DIM, 0].set(rw[:, 0]).at[7, 0].set(rb[0, 0])
    rw1 = jnp.zeros((PAD_DIM, 1), f32).at[:STATE_DIM, 0].set(rw[:, 1]).at[7, 0].set(rb[0, 1])

    # matmul operands go in as bf16 (single-pass MXU); biases / reward vectors stay f32.
    weights = (wsa.astype(bf16), w1aT.astype(bf16),
               w2.T.astype(bf16), b2.reshape(-1, 1),
               w3.T.astype(bf16), b3.reshape(-1, 1),
               w4.T.astype(bf16), b4.reshape(-1, 1),
               w5T.astype(bf16), b5c, rw0, rw1)

    # --- pad batch to a multiple of the lane tile; feature-major initial state ---
    pB = ((B + tile_b - 1) // tile_b) * tile_b
    u8 = jnp.zeros((PAD_DIM, pB), f32).at[:STATE_DIM, :B].set(u.T).at[7, :].set(1.0)

    x_out, r_out = _pallas_rollout(u8, weights, tile_b)   # (100, 8, pB), (100, pB)
    # batch-major + strip padding: one cheap XLA transpose outside the kernel.
    states = jnp.transpose(x_out[:, :STATE_DIM, :B], (2, 0, 1))        # (B, 100, 6)
    reward = jnp.transpose(r_out[:, :B], (1, 0))[:, :, None]           # (B, 100, 1)
    return jnp.concatenate([states, reward], axis=2)                   # (B, 100, 7)


def init_params(key):
    """Deterministic synthetic weights (Linear stored as (in, out) + bias (1, out))."""
    def linear(k, din, dout):
        kw, kb = jax.random.split(k)
        scale = 1.0 / np.sqrt(din)
        w = scale * jax.random.normal(kw, (din, dout), jnp.float32)
        b = scale * jax.random.normal(kb, (1, dout), jnp.float32)
        return w, b

    keys = jax.random.split(key, 7)
    aw, ab = linear(keys[0], STATE_DIM, ACTION_DIM)     # synthetic actor_network
    w1, b1 = linear(keys[1], 8, 16)
    w2, b2 = linear(keys[2], 16, 32)
    w3, b3 = linear(keys[3], 32, 16)
    w4, b4 = linear(keys[4], 16, 8)
    w5, b5 = linear(keys[5], 8, 6)
    rw, rb = linear(keys[6], 6, 2)                      # mlp_reward
    return (aw, ab, w1, b1, w2, b2, w3, b3, w4, b4, w5, b5, rw, rb)


def worldnet_reference(u, params):
    """Pure-JAX replica of the PyTorch forward.

    Matmuls use the same bf16-operand / f32-accumulate arithmetic as the kernel's
    single-pass MXU dots (and ab/b1 are rounded to bf16 since the kernel folds
    them into the fused bf16 weight), so the 100-step recurrence comparison is
    apples-to-apples.  The reward head is computed in f32, matching the kernel's
    f32 VPU multiply-reduce.
    """
    aw, ab, w1, b1, w2, b2, w3, b3, w4, b4, w5, b5, rw, rb = params
    bf16, f32 = jnp.bfloat16, jnp.float32

    def dot(x, w):
        return jnp.dot(x.astype(bf16), w.astype(bf16), preferred_element_type=f32)

    ab_r = ab.astype(bf16).astype(f32)
    b1_r = b1.astype(bf16).astype(f32)

    def f_net(h):
        h = jnp.clip(dot(h, w1) + b1_r, 0.0, 6.0)
        h = jnp.clip(dot(h, w2) + b2, 0.0, 6.0)
        h = jnp.clip(dot(h, w3) + b3, 0.0, 6.0)
        h = jnp.clip(dot(h, w4) + b4, 0.0, 6.0)
        return dot(h, w5) + b5

    xs = [u]
    s = u
    for _ in range(N_STEPS):
        a = jnp.tanh(dot(s, aw) + ab_r)                              # actor_network
        s = s + f_net(jnp.concatenate([s, a], axis=1))               # torch.hstack
        xs.append(s)
    x = jnp.stack(xs, axis=1)                                        # (B, 101, 6)
    r = jnp.sum(x[:, 1:, :, None] * rw[None, None, :, :], axis=2) + rb   # (B, 100, 2) f32
    rew = jnp.exp(-jnp.sqrt(jnp.sum(r ** 2, axis=2, keepdims=True)))
    return jnp.concatenate([x[:, :-1, :], rew], axis=2)              # (B, 100, 7)


if __name__ == "__main__":
    key = jax.random.PRNGKey(0)
    k_u, k_p = jax.random.split(key)
    B = 4
    u = jax.random.normal(k_u, (B, STATE_DIM), jnp.float32)
    params = init_params(k_p)

    out = worldnet_forward(u, params)
    jax.block_until_ready(out)
    assert out.shape == (B, N_STEPS, STATE_DIM + 1)

    ref = worldnet_reference(u, params)
    # Tolerance sized for a 100-step recurrent rollout through a bf16-operand
    # matmul path (tiny rounding/order differences can be amplified by the dynamics).
    np.testing.assert_allclose(np.asarray(out), np.asarray(ref), rtol=1e-2, atol=1e-2)

    print("KERNEL_OK")
</pallas_src>

<mosaic_0001>
module attributes {stable_mosaic.version = 11 : i64} {
  func.func @worldnet_kernel(%arg0: i32, %arg1: memref<8x128xf32, #tpu.memory_space<vmem>>, %arg2: memref<24x8xbf16, #tpu.memory_space<vmem>>, %arg3: memref<16x2xbf16, #tpu.memory_space<vmem>>, %arg4: memref<32x16xbf16, #tpu.memory_space<vmem>>, %arg5: memref<32x1xf32, #tpu.memory_space<vmem>>, %arg6: memref<16x32xbf16, #tpu.memory_space<vmem>>, %arg7: memref<16x1xf32, #tpu.memory_space<vmem>>, %arg8: memref<8x16xbf16, #tpu.memory_space<vmem>>, %arg9: memref<8x1xf32, #tpu.memory_space<vmem>>, %arg10: memref<8x8xbf16, #tpu.memory_space<vmem>>, %arg11: memref<8x1xf32, #tpu.memory_space<vmem>>, %arg12: memref<8x1xf32, #tpu.memory_space<vmem>>, %arg13: memref<8x1xf32, #tpu.memory_space<vmem>>, %arg14: memref<100x8x128xf32, #tpu.memory_space<vmem>>, %arg15: memref<100x128xf32, #tpu.memory_space<vmem>>) attributes {dimension_semantics = [#tpu.dimension_semantics<parallel>], iteration_bounds = array<i64: 1>, scalar_prefetch = 0 : i64, scratch_operands = 0 : i64, tpu.core_type = #tpu.core_type<tc>, window_params = [{transform_indices = @transform_0, window_bounds = array<i64: 8, 128>}, {pipeline_mode = #tpu.pipeline_mode<synchronous>, transform_indices = @transform_1, window_bounds = array<i64: 24, 8>}, {pipeline_mode = #tpu.pipeline_mode<synchronous>, transform_indices = @transform_2, window_bounds = array<i64: 16, 2>}, {pipeline_mode = #tpu.pipeline_mode<synchronous>, transform_indices = @transform_3, window_bounds = array<i64: 32, 16>}, {pipeline_mode = #tpu.pipeline_mode<synchronous>, transform_indices = @transform_4, window_bounds = array<i64: 32, 1>}, {pipeline_mode = #tpu.pipeline_mode<synchronous>, transform_indices = @transform_5, window_bounds = array<i64: 16, 32>}, {pipeline_mode = #tpu.pipeline_mode<synchronous>, transform_indices = @transform_6, window_bounds = array<i64: 16, 1>}, {pipeline_mode = #tpu.pipeline_mode<synchronous>, transform_indices = @transform_7, window_bounds = array<i64: 8, 16>}, {pipeline_mode = #tpu.pipeline_mode<synchronous>, transform_indices = @transform_8, window_bounds = array<i64: 8, 1>}, {pipeline_mode = #tpu.pipeline_mode<synchronous>, transform_indices = @transform_9, window_bounds = array<i64: 8, 8>}, {pipeline_mode = #tpu.pipeline_mode<synchronous>, transform_indices = @transform_10, window_bounds = array<i64: 8, 1>}, {pipeline_mode = #tpu.pipeline_mode<synchronous>, transform_indices = @transform_11, window_bounds = array<i64: 8, 1>}, {pipeline_mode = #tpu.pipeline_mode<synchronous>, transform_indices = @transform_12, window_bounds = array<i64: 8, 1>}, {transform_indices = @transform_13, window_bounds = array<i64: 100, 8, 128>}, {transform_indices = @transform_14, window_bounds = array<i64: 100, 128>}]} {
    %c0 = arith.constant 0 : index
    %c0_0 = arith.constant 0 : index
    %0 = vector.load %arg1[%c0, %c0_0] : memref<8x128xf32, #tpu.memory_space<vmem>>, vector<8x128xf32>
    %c0_1 = arith.constant 0 : index
    %c0_2 = arith.constant 0 : index
    %1 = vector.load %arg2[%c0_1, %c0_2] : memref<24x8xbf16, #tpu.memory_space<vmem>>, vector<24x8xbf16>
    %c0_3 = arith.constant 0 : index
    %c0_4 = arith.constant 0 : index
    %2 = vector.load %arg3[%c0_3, %c0_4] : memref<16x2xbf16, #tpu.memory_space<vmem>>, vector<16x2xbf16>
    %c0_5 = arith.constant 0 : index
    %c0_6 = arith.constant 0 : index
    %3 = vector.load %arg4[%c0_5, %c0_6] : memref<32x16xbf16, #tpu.memory_space<vmem>>, vector<32x16xbf16>
    %c0_7 = arith.constant 0 : index
    %c0_8 = arith.constant 0 : index
    %4 = vector.load %arg6[%c0_7, %c0_8] : memref<16x32xbf16, #tpu.memory_space<vmem>>, vector<16x32xbf16>
    %c0_9 = arith.constant 0 : index
    %c0_10 = arith.constant 0 : index
    %5 = vector.load %arg8[%c0_9, %c0_10] : memref<8x16xbf16, #tpu.memory_space<vmem>>, vector<8x16xbf16>
    %c0_11 = arith.constant 0 : index
    %c0_12 = arith.constant 0 : index
    %6 = vector.load %arg10[%c0_11, %c0_12] : memref<8x8xbf16, #tpu.memory_space<vmem>>, vector<8x8xbf16>
    %c0_13 = arith.constant 0 : index
    %c0_14 = arith.constant 0 : index
    %7 = vector.load %arg5[%c0_13, %c0_14] : memref<32x1xf32, #tpu.memory_space<vmem>>, vector<32x1xf32>
    %c0_15 = arith.constant 0 : index
    %c0_16 = arith.constant 0 : index
    %8 = vector.load %arg7[%c0_15, %c0_16] : memref<16x1xf32, #tpu.memory_space<vmem>>, vector<16x1xf32>
    %c0_17 = arith.constant 0 : index
    %c0_18 = arith.constant 0 : index
    %9 = vector.load %arg9[%c0_17, %c0_18] : memref<8x1xf32, #tpu.memory_space<vmem>>, vector<8x1xf32>
    %c0_19 = arith.constant 0 : index
    %c0_20 = arith.constant 0 : index
    %10 = vector.load %arg11[%c0_19, %c0_20] : memref<8x1xf32, #tpu.memory_space<vmem>>, vector<8x1xf32>
    %c0_i32 = arith.constant 0 : i32
    %c10_i32 = arith.constant 10 : i32
    %11 = arith.addi %c0_i32, %c10_i32 : i32
    %c1_i32 = arith.constant 1 : i32
    %12 = scf.for %arg16 = %c0_i32 to %11 step %c1_i32 iter_args(%arg17 = %0) -> (vector<8x128xf32>)  : i32 {
      %c10_i32_48 = arith.constant 10 : i32
      %82 = arith.muli %arg16, %c10_i32_48 : i32
      %c0_i32_49 = arith.constant 0 : i32
      %83 = arith.addi %82, %c0_i32_49 : i32
      %84 = arith.index_cast %83 : i32 to index
      %c0_50 = arith.constant 0 : index
      %c0_51 = arith.constant 0 : index
      %85 = vector.load %arg14[%84, %c0_50, %c0_51] : memref<100x8x128xf32, #tpu.memory_space<vmem>>, vector<1x8x128xf32>
      %86 = vector.shape_cast %85 : vector<1x8x128xf32> to vector<8x128xf32>
      %87 = vector.shape_cast %arg17 : vector<8x128xf32> to vector<1x8x128xf32>
      tpu.vector_store %arg14[%84, %c0_50, %c0_51], %87 {strides = array<i32>} : memref<100x8x128xf32, #tpu.memory_space<vmem>>, vector<1x8x128xf32>,
      %88 = arith.truncf %arg17 : vector<8x128xf32> to vector<8x128xbf16>
      %cst_52 = arith.constant dense<0.000000e+00> : vector<24x128xf32>
      %89 = tpu.matmul %1, %88, %cst_52 {dimension_numbers = #tpu.dot_dimension_numbers<[1], [0], [0], [1], [0, 0, 1, 1], [], []>} : vector<24x8xbf16>, vector<8x128xbf16>, vector<24x128xf32> -> vector<24x128xf32>
      %90 = vector.extract_strided_slice %89 {offsets = [0, 0], sizes = [2, 128], strides = [1, 1]} : vector<24x128xf32> to vector<2x128xf32>
      %91 = math.tanh %90 : vector<2x128xf32>
      %92 = vector.extract_strided_slice %89 {offsets = [8, 0], sizes = [16, 128], strides = [1, 1]} : vector<24x128xf32> to vector<16x128xf32>
      %93 = arith.truncf %91 : vector<2x128xf32> to vector<2x128xbf16>
      %cst_53 = arith.constant dense<0.000000e+00> : vector<16x128xf32>
      %94 = tpu.matmul %2, %93, %cst_53 {dimension_numbers = #tpu.dot_dimension_numbers<[1], [0], [0], [1], [0, 0, 1, 1], [], []>} : vector<16x2xbf16>, vector<2x128xbf16>, vector<16x128xf32> -> vector<16x128xf32>
      %95 = arith.addf %92, %94 : vector<16x128xf32>
      %cst_54 = arith.constant 0.000000e+00 : f32
      %96 = vector.broadcast %cst_54 : f32 to vector<16x128xf32>
      %97 = arith.maximumf %95, %96 : vector<16x128xf32>
      %cst_55 = arith.constant 6.000000e+00 : f32
      %98 = vector.broadcast %cst_55 : f32 to vector<16x128xf32>
      %99 = arith.minimumf %97, %98 : vector<16x128xf32>
      %100 = arith.truncf %99 : vector<16x128xf32> to vector<16x128xbf16>
      %cst_56 = arith.constant dense<0.000000e+00> : vector<32x128xf32>
      %101 = tpu.matmul %3, %100, %cst_56 {dimension_numbers = #tpu.dot_dimension_numbers<[1], [0], [0], [1], [0, 0, 1, 1], [], []>} : vector<32x16xbf16>, vector<16x128xbf16>, vector<32x128xf32> -> vector<32x128xf32>
      %102 = vector.broadcast %7 : vector<32x1xf32> to vector<32x128xf32>
      %103 = arith.addf %101, %102 : vector<32x128xf32>
      %cst_57 = arith.constant 0.000000e+00 : f32
      %104 = vector.broadcast %cst_57 : f32 to vector<32x128xf32>
      %105 = arith.maximumf %103, %104 : vector<32x128xf32>
      %cst_58 = arith.constant 6.000000e+00 : f32
      %106 = vector.broadcast %cst_58 : f32 to vector<32x128xf32>
      %107 = arith.minimumf %105, %106 : vector<32x128xf32>
      %108 = arith.truncf %107 : vector<32x128xf32> to vector<32x128xbf16>
      %cst_59 = arith.constant dense<0.000000e+00> : vector<16x128xf32>
      %109 = tpu.matmul %4, %108, %cst_59 {dimension_numbers = #tpu.dot_dimension_numbers<[1], [0], [0], [1], [0, 0, 1, 1], [], []>} : vector<16x32xbf16>, vector<32x128xbf16>, vector<16x128xf32> -> vector<16x128xf32>
      %110 = vector.broadcast %8 : vector<16x1xf32> to vector<16x128xf32>
      %111 = arith.addf %109, %110 : vector<16x128xf32>
      %cst_60 = arith.constant 0.000000e+00 : f32
      %112 = vector.broadcast %cst_60 : f32 to vector<16x128xf32>
      %113 = arith.maximumf %111, %112 : vector<16x128xf32>
      %cst_61 = arith.constant 6.000000e+00 : f32
      %114 = vector.broadcast %cst_61 : f32 to vector<16x128xf32>
      %115 = arith.minimumf %113, %114 : vector<16x128xf32>
      %116 = arith.truncf %115 : vector<16x128xf32> to vector<16x128xbf16>
      %cst_62 = arith.constant dense<0.000000e+00> : vector<8x128xf32>
      %117 = tpu.matmul %5, %116, %cst_62 {dimension_numbers = #tpu.dot_dimension_numbers<[1], [0], [0], [1], [0, 0, 1, 1], [], []>} : vector<8x16xbf16>, vector<16x128xbf16>, vector<8x128xf32> -> vector<8x128xf32>
      %118 = vector.broadcast %9 : vector<8x1xf32> to vector<8x128xf32>
      %119 = arith.addf %117, %118 : vector<8x128xf32>
      %cst_63 = arith.constant 0.000000e+00 : f32
      %120 = vector.broadcast %cst_63 : f32 to vector<8x128xf32>
      %121 = arith.maximumf %119, %120 : vector<8x128xf32>
      %cst_64 = arith.constant 6.000000e+00 : f32
      %122 = vector.broadcast %cst_64 : f32 to vector<8x128xf32>
      %123 = arith.minimumf %121, %122 : vector<8x128xf32>
      %124 = arith.truncf %123 : vector<8x128xf32> to vector<8x128xbf16>
      %cst_65 = arith.constant dense<0.000000e+00> : vector<8x128xf32>
      %125 = tpu.matmul %6, %124, %cst_65 {dimension_numbers = #tpu.dot_dimension_numbers<[1], [0], [0], [1], [0, 0, 1, 1], [], []>} : vector<8x8xbf16>, vector<8x128xbf16>, vector<8x128xf32> -> vector<8x128xf32>
      %126 = arith.addf %arg17, %125 : vector<8x128xf32>
      %127 = vector.broadcast %10 : vector<8x1xf32> to vector<8x128xf32>
      %128 = arith.addf %126, %127 : vector<8x128xf32>
      %c1_i32_66 = arith.constant 1 : i32
      %129 = arith.addi %82, %c1_i32_66 : i32
      %130 = arith.index_cast %129 : i32 to index
      %c0_67 = arith.constant 0 : index
      %c0_68 = arith.constant 0 : index
      %131 = vector.load %arg14[%130, %c0_67, %c0_68] : memref<100x8x128xf32, #tpu.memory_space<vmem>>, vector<1x8x128xf32>
      %132 = vector.shape_cast %131 : vector<1x8x128xf32> to vector<8x128xf32>
      %133 = vector.shape_cast %128 : vector<8x128xf32> to vector<1x8x128xf32>
      tpu.vector_store %arg14[%130, %c0_67, %c0_68], %133 {strides = array<i32>} : memref<100x8x128xf32, #tpu.memory_space<vmem>>, vector<1x8x128xf32>,
      %134 = arith.truncf %128 : vector<8x128xf32> to vector<8x128xbf16>
      %cst_69 = arith.constant dense<0.000000e+00> : vector<24x128xf32>
      %135 = tpu.matmul %1, %134, %cst_69 {dimension_numbers = #tpu.dot_dimension_numbers<[1], [0], [0], [1], [0, 0, 1, 1], [], []>} : vector<24x8xbf16>, vector<8x128xbf16>, vector<24x128xf32> -> vector<24x128xf32>
      %136 = vector.extract_strided_slice %135 {offsets = [0, 0], sizes = [2, 128], strides = [1, 1]} : vector<24x128xf32> to vector<2x128xf32>
      %137 = math.tanh %136 : vector<2x128xf32>
      %138 = vector.extract_strided_slice %135 {offsets = [8, 0], sizes = [16, 128], strides = [1, 1]} : vector<24x128xf32> to vector<16x128xf32>
      %139 = arith.truncf %137 : vector<2x128xf32> to vector<2x128xbf16>
      %cst_70 = arith.constant dense<0.000000e+00> : vector<16x128xf32>
      %140 = tpu.matmul %2, %139, %cst_70 {dimension_numbers = #tpu.dot_dimension_numbers<[1], [0], [0], [1], [0, 0, 1, 1], [], []>} : vector<16x2xbf16>, vector<2x128xbf16>, vector<16x128xf32> -> vector<16x128xf32>
      %141 = arith.addf %138, %140 : vector<16x128xf32>
      %cst_71 = arith.constant 0.000000e+00 : f32
      %142 = vector.broadcast %cst_71 : f32 to vector<16x128xf32>
      %143 = arith.maximumf %141, %142 : vector<16x128xf32>
      %cst_72 = arith.constant 6.000000e+00 : f32
      %144 = vector.broadcast %cst_72 : f32 to vector<16x128xf32>
      %145 = arith.minimumf %143, %144 : vector<16x128xf32>
      %146 = arith.truncf %145 : vector<16x128xf32> to vector<16x128xbf16>
      %cst_73 = arith.constant dense<0.000000e+00> : vector<32x128xf32>
      %147 = tpu.matmul %3, %146, %cst_73 {dimension_numbers = #tpu.dot_dimension_numbers<[1], [0], [0], [1], [0, 0, 1, 1], [], []>} : vector<32x16xbf16>, vector<16x128xbf16>, vector<32x128xf32> -> vector<32x128xf32>
      %148 = vector.broadcast %7 : vector<32x1xf32> to vector<32x128xf32>
      %149 = arith.addf %147, %148 : vector<32x128xf32>
      %cst_74 = arith.constant 0.000000e+00 : f32
      %150 = vector.broadcast %cst_74 : f32 to vector<32x128xf32>
      %151 = arith.maximumf %149, %150 : vector<32x128xf32>
      %cst_75 = arith.constant 6.000000e+00 : f32
      %152 = vector.broadcast %cst_75 : f32 to vector<32x128xf32>
      %153 = arith.minimumf %151, %152 : vector<32x128xf32>
      %154 = arith.truncf %153 : vector<32x128xf32> to vector<32x128xbf16>
      %cst_76 = arith.constant dense<0.000000e+00> : vector<16x128xf32>
      %155 = tpu.matmul %4, %154, %cst_76 {dimension_numbers = #tpu.dot_dimension_numbers<[1], [0], [0], [1], [0, 0, 1, 1], [], []>} : vector<16x32xbf16>, vector<32x128xbf16>, vector<16x128xf32> -> vector<16x128xf32>
      %156 = vector.broadcast %8 : vector<16x1xf32> to vector<16x128xf32>
      %157 = arith.addf %155, %156 : vector<16x128xf32>
      %cst_77 = arith.constant 0.000000e+00 : f32
      %158 = vector.broadcast %cst_77 : f32 to vector<16x128xf32>
      %159 = arith.maximumf %157, %158 : vector<16x128xf32>
      %cst_78 = arith.constant 6.000000e+00 : f32
      %160 = vector.broadcast %cst_78 : f32 to vector<16x128xf32>
      %161 = arith.minimumf %159, %160 : vector<16x128xf32>
      %162 = arith.truncf %161 : vector<16x128xf32> to vector<16x128xbf16>
      %cst_79 = arith.constant dense<0.000000e+00> : vector<8x128xf32>
      %163 = tpu.matmul %5, %162, %cst_79 {dimension_numbers = #tpu.dot_dimension_numbers<[1], [0], [0], [1], [0, 0, 1, 1], [], []>} : vector<8x16xbf16>, vector<16x128xbf16>, vector<8x128xf32> -> vector<8x128xf32>
      %164 = vector.broadcast %9 : vector<8x1xf32> to vector<8x128xf32>
      %165 = arith.addf %163, %164 : vector<8x128xf32>
      %cst_80 = arith.constant 0.000000e+00 : f32
      %166 = vector.broadcast %cst_80 : f32 to vector<8x128xf32>
      %167 = arith.maximumf %165, %166 : vector<8x128xf32>
      %cst_81 = arith.constant 6.000000e+00 : f32
      %168 = vector.broadcast %cst_81 : f32 to vector<8x128xf32>
      %169 = arith.minimumf %167, %168 : vector<8x128xf32>
      %170 = arith.truncf %169 : vector<8x128xf32> to vector<8x128xbf16>
      %cst_82 = arith.constant dense<0.000000e+00> : vector<8x128xf32>
      %171 = tpu.matmul %6, %170, %cst_82 {dimension_numbers = #tpu.dot_dimension_numbers<[1], [0], [0], [1], [0, 0, 1, 1], [], []>} : vector<8x8xbf16>, vector<8x128xbf16>, vector<8x128xf32> -> vector<8x128xf32>
      %172 = arith.addf %128, %171 : vector<8x128xf32>
      %173 = vector.broadcast %10 : vector<8x1xf32> to vector<8x128xf32>
      %174 = arith.addf %172, %173 : vector<8x128xf32>
      %c2_i32 = arith.constant 2 : i32
      %175 = arith.addi %82, %c2_i32 : i32
      %176 = arith.index_cast %175 : i32 to index
      %c0_83 = arith.constant 0 : index
      %c0_84 = arith.constant 0 : index
      %177 = vector.load %arg14[%176, %c0_83, %c0_84] : memref<100x8x128xf32, #tpu.memory_space<vmem>>, vector<1x8x128xf32>
      %178 = vector.shape_cast %177 : vector<1x8x128xf32> to vector<8x128xf32>
      %179 = vector.shape_cast %174 : vector<8x128xf32> to vector<1x8x128xf32>
      tpu.vector_store %arg14[%176, %c0_83, %c0_84], %179 {strides = array<i32>} : memref<100x8x128xf32, #tpu.memory_space<vmem>>, vector<1x8x128xf32>,
      %180 = arith.truncf %174 : vector<8x128xf32> to vector<8x128xbf16>
      %cst_85 = arith.constant dense<0.000000e+00> : vector<24x128xf32>
      %181 = tpu.matmul %1, %180, %cst_85 {dimension_numbers = #tpu.dot_dimension_numbers<[1], [0], [0], [1], [0, 0, 1, 1], [], []>} : vector<24x8xbf16>, vector<8x128xbf16>, vector<24x128xf32> -> vector<24x128xf32>
      %182 = vector.extract_strided_slice %181 {offsets = [0, 0], sizes = [2, 128], strides = [1, 1]} : vector<24x128xf32> to vector<2x128xf32>
      %183 = math.tanh %182 : vector<2x128xf32>
      %184 = vector.extract_strided_slice %181 {offsets = [8, 0], sizes = [16, 128], strides = [1, 1]} : vector<24x128xf32> to vector<16x128xf32>
      %185 = arith.truncf %183 : vector<2x128xf32> to vector<2x128xbf16>
      %cst_86 = arith.constant dense<0.000000e+00> : vector<16x128xf32>
      %186 = tpu.matmul %2, %185, %cst_86 {dimension_numbers = #tpu.dot_dimension_numbers<[1], [0], [0], [1], [0, 0, 1, 1], [], []>} : vector<16x2xbf16>, vector<2x128xbf16>, vector<16x128xf32> -> vector<16x128xf32>
      %187 = arith.addf %184, %186 : vector<16x128xf32>
      %cst_87 = arith.constant 0.000000e+00 : f32
      %188 = vector.broadcast %cst_87 : f32 to vector<16x128xf32>
      %189 = arith.maximumf %187, %188 : vector<16x128xf32>
      %cst_88 = arith.constant 6.000000e+00 : f32
      %190 = vector.broadcast %cst_88 : f32 to vector<16x128xf32>
      %191 = arith.minimumf %189, %190 : vector<16x128xf32>
      %192 = arith.truncf %191 : vector<16x128xf32> to vector<16x128xbf16>
      %cst_89 = arith.constant dense<0.000000e+00> : vector<32x128xf32>
      %193 = tpu.matmul %3, %192, %cst_89 {dimension_numbers = #tpu.dot_dimension_numbers<[1], [0], [0], [1], [0, 0, 1, 1], [], []>} : vector<32x16xbf16>, vector<16x128xbf16>, vector<32x128xf32> -> vector<32x128xf32>
      %194 = vector.broadcast %7 : vector<32x1xf32> to vector<32x128xf32>
      %195 = arith.addf %193, %194 : vector<32x128xf32>
      %cst_90 = arith.constant 0.000000e+00 : f32
      %196 = vector.broadcast %cst_90 : f32 to vector<32x128xf32>
      %197 = arith.maximumf %195, %196 : vector<32x128xf32>
      %cst_91 = arith.constant 6.000000e+00 : f32
      %198 = vector.broadcast %cst_91 : f32 to vector<32x128xf32>
      %199 = arith.minimumf %197, %198 : vector<32x128xf32>
      %200 = arith.truncf %199 : vector<32x128xf32> to vector<32x128xbf16>
      %cst_92 = arith.constant dense<0.000000e+00> : vector<16x128xf32>
      %201 = tpu.matmul %4, %200, %cst_92 {dimension_numbers = #tpu.dot_dimension_numbers<[1], [0], [0], [1], [0, 0, 1, 1], [], []>} : vector<16x32xbf16>, vector<32x128xbf16>, vector<16x128xf32> -> vector<16x128xf32>
      %202 = vector.broadcast %8 : vector<16x1xf32> to vector<16x128xf32>
      %203 = arith.addf %201, %202 : vector<16x128xf32>
      %cst_93 = arith.constant 0.000000e+00 : f32
      %204 = vector.broadcast %cst_93 : f32 to vector<16x128xf32>
      %205 = arith.maximumf %203, %204 : vector<16x128xf32>
      %cst_94 = arith.constant 6.000000e+00 : f32
      %206 = vector.broadcast %cst_94 : f32 to vector<16x128xf32>
      %207 = arith.minimumf %205, %206 : vector<16x128xf32>
      %208 = arith.truncf %207 : vector<16x128xf32> to vector<16x128xbf16>
      %cst_95 = arith.constant dense<0.000000e+00> : vector<8x128xf32>
      %209 = tpu.matmul %5, %208, %cst_95 {dimension_numbers = #tpu.dot_dimension_numbers<[1], [0], [0], [1], [0, 0, 1, 1], [], []>} : vector<8x16xbf16>, vector<16x128xbf16>, vector<8x128xf32> -> vector<8x128xf32>
      %210 = vector.broadcast %9 : vector<8x1xf32> to vector<8x128xf32>
      %211 = arith.addf %209, %210 : vector<8x128xf32>
      %cst_96 = arith.constant 0.000000e+00 : f32
      %212 = vector.broadcast %cst_96 : f32 to vector<8x128xf32>
      %213 = arith.maximumf %211, %212 : vector<8x128xf32>
      %cst_97 = arith.constant 6.000000e+00 : f32
      %214 = vector.broadcast %cst_97 : f32 to vector<8x128xf32>
      %215 = arith.minimumf %213, %214 : vector<8x128xf32>
      %216 = arith.truncf %215 : vector<8x128xf32> to vector<8x128xbf16>
      %cst_98 = arith.constant dense<0.000000e+00> : vector<8x128xf32>
      %217 = tpu.matmul %6, %216, %cst_98 {dimension_numbers = #tpu.dot_dimension_numbers<[1], [0], [0], [1], [0, 0, 1, 1], [], []>} : vector<8x8xbf16>, vector<8x128xbf16>, vector<8x128xf32> -> vector<8x128xf32>
      %218 = arith.addf %174, %217 : vector<8x128xf32>
      %219 = vector.broadcast %10 : vector<8x1xf32> to vector<8x128xf32>
      %220 = arith.addf %218, %219 : vector<8x128xf32>
      %c3_i32 = arith.constant 3 : i32
      %221 = arith.addi %82, %c3_i32 : i32
      %222 = arith.index_cast %221 : i32 to index
      %c0_99 = arith.constant 0 : index
      %c0_100 = arith.constant 0 : index
      %223 = vector.load %arg14[%222, %c0_99, %c0_100] : memref<100x8x128xf32, #tpu.memory_space<vmem>>, vector<1x8x128xf32>
      %224 = vector.shape_cast %223 : vector<1x8x128xf32> to vector<8x128xf32>
      %225 = vector.shape_cast %220 : vector<8x128xf32> to vector<1x8x128xf32>
      tpu.vector_store %arg14[%222, %c0_99, %c0_100], %225 {strides = array<i32>} : memref<100x8x128xf32, #tpu.memory_space<vmem>>, vector<1x8x128xf32>,
      %226 = arith.truncf %220 : vector<8x128xf32> to vector<8x128xbf16>
      %cst_101 = arith.constant dense<0.000000e+00> : vector<24x128xf32>
      %227 = tpu.matmul %1, %226, %cst_101 {dimension_numbers = #tpu.dot_dimension_numbers<[1], [0], [0], [1], [0, 0, 1, 1], [], []>} : vector<24x8xbf16>, vector<8x128xbf16>, vector<24x128xf32> -> vector<24x128xf32>
      %228 = vector.extract_strided_slice %227 {offsets = [0, 0], sizes = [2, 128], strides = [1, 1]} : vector<24x128xf32> to vector<2x128xf32>
      %229 = math.tanh %228 : vector<2x128xf32>
      %230 = vector.extract_strided_slice %227 {offsets = [8, 0], sizes = [16, 128], strides = [1, 1]} : vector<24x128xf32> to vector<16x128xf32>
      %231 = arith.truncf %229 : vector<2x128xf32> to vector<2x128xbf16>
      %cst_102 = arith.constant dense<0.000000e+00> : vector<16x128xf32>
      %232 = tpu.matmul %2, %231, %cst_102 {dimension_numbers = #tpu.dot_dimension_numbers<[1], [0], [0], [1], [0, 0, 1, 1], [], []>} : vector<16x2xbf16>, vector<2x128xbf16>, vector<16x128xf32> -> vector<16x128xf32>
      %233 = arith.addf %230, %232 : vector<16x128xf32>
      %cst_103 = arith.constant 0.000000e+00 : f32
      %234 = vector.broadcast %cst_103 : f32 to vector<16x128xf32>
      %235 = arith.maximumf %233, %234 : vector<16x128xf32>
      %cst_104 = arith.constant 6.000000e+00 : f32
      %236 = vector.broadcast %cst_104 : f32 to vector<16x128xf32>
      %237 = arith.minimumf %235, %236 : vector<16x128xf32>
      %238 = arith.truncf %237 : vector<16x128xf32> to vector<16x128xbf16>
      %cst_105 = arith.constant dense<0.000000e+00> : vector<32x128xf32>
      %239 = tpu.matmul %3, %238, %cst_105 {dimension_numbers = #tpu.dot_dimension_numbers<[1], [0], [0], [1], [0, 0, 1, 1], [], []>} : vector<32x16xbf16>, vector<16x128xbf16>, vector<32x128xf32> -> vector<32x128xf32>
      %240 = vector.broadcast %7 : vector<32x1xf32> to vector<32x128xf32>
      %241 = arith.addf %239, %240 : vector<32x128xf32>
      %cst_106 = arith.constant 0.000000e+00 : f32
      %242 = vector.broadcast %cst_106 : f32 to vector<32x128xf32>
      %243 = arith.maximumf %241, %242 : vector<32x128xf32>
      %cst_107 = arith.constant 6.000000e+00 : f32
      %244 = vector.broadcast %cst_107 : f32 to vector<32x128xf32>
      %245 = arith.minimumf %243, %244 : vector<32x128xf32>
      %246 = arith.truncf %245 : vector<32x128xf32> to vector<32x128xbf16>
      %cst_108 = arith.constant dense<0.000000e+00> : vector<16x128xf32>
      %247 = tpu.matmul %4, %246, %cst_108 {dimension_numbers = #tpu.dot_dimension_numbers<[1], [0], [0], [1], [0, 0, 1, 1], [], []>} : vector<16x32xbf16>, vector<32x128xbf16>, vector<16x128xf32> -> vector<16x128xf32>
      %248 = vector.broadcast %8 : vector<16x1xf32> to vector<16x128xf32>
      %249 = arith.addf %247, %248 : vector<16x128xf32>
      %cst_109 = arith.constant 0.000000e+00 : f32
      %250 = vector.broadcast %cst_109 : f32 to vector<16x128xf32>
      %251 = arith.maximumf %249, %250 : vector<16x128xf32>
      %cst_110 = arith.constant 6.000000e+00 : f32
      %252 = vector.broadcast %cst_110 : f32 to vector<16x128xf32>
      %253 = arith.minimumf %251, %252 : vector<16x128xf32>
      %254 = arith.truncf %253 : vector<16x128xf32> to vector<16x128xbf16>
      %cst_111 = arith.constant dense<0.000000e+00> : vector<8x128xf32>
      %255 = tpu.matmul %5, %254, %cst_111 {dimension_numbers = #tpu.dot_dimension_numbers<[1], [0], [0], [1], [0, 0, 1, 1], [], []>} : vector<8x16xbf16>, vector<16x128xbf16>, vector<8x128xf32> -> vector<8x128xf32>
      %256 = vector.broadcast %9 : vector<8x1xf32> to vector<8x128xf32>
      %257 = arith.addf %255, %256 : vector<8x128xf32>
      %cst_112 = arith.constant 0.000000e+00 : f32
      %258 = vector.broadcast %cst_112 : f32 to vector<8x128xf32>
      %259 = arith.maximumf %257, %258 : vector<8x128xf32>
      %cst_113 = arith.constant 6.000000e+00 : f32
      %260 = vector.broadcast %cst_113 : f32 to vector<8x128xf32>
      %261 = arith.minimumf %259, %260 : vector<8x128xf32>
      %262 = arith.truncf %261 : vector<8x128xf32> to vector<8x128xbf16>
      %cst_114 = arith.constant dense<0.000000e+00> : vector<8x128xf32>
      %263 = tpu.matmul %6, %262, %cst_114 {dimension_numbers = #tpu.dot_dimension_numbers<[1], [0], [0], [1], [0, 0, 1, 1], [], []>} : vector<8x8xbf16>, vector<8x128xbf16>, vector<8x128xf32> -> vector<8x128xf32>
      %264 = arith.addf %220, %263 : vector<8x128xf32>
      %265 = vector.broadcast %10 : vector<8x1xf32> to vector<8x128xf32>
      %266 = arith.addf %264, %265 : vector<8x128xf32>
      %c4_i32 = arith.constant 4 : i32
      %267 = arith.addi %82, %c4_i32 : i32
      %268 = arith.index_cast %267 : i32 to index
      %c0_115 = arith.constant 0 : index
      %c0_116 = arith.constant 0 : index
      %269 = vector.load %arg14[%268, %c0_115, %c0_116] : memref<100x8x128xf32, #tpu.memory_space<vmem>>, vector<1x8x128xf32>
      %270 = vector.shape_cast %269 : vector<1x8x128xf32> to vector<8x128xf32>
      %271 = vector.shape_cast %266 : vector<8x128xf32> to vector<1x8x128xf32>
      tpu.vector_store %arg14[%268, %c0_115, %c0_116], %271 {strides = array<i32>} : memref<100x8x128xf32, #tpu.memory_space<vmem>>, vector<1x8x128xf32>,
      %272 = arith.truncf %266 : vector<8x128xf32> to vector<8x128xbf16>
      %cst_117 = arith.constant dense<0.000000e+00> : vector<24x128xf32>
      %273 = tpu.matmul %1, %272, %cst_117 {dimension_numbers = #tpu.dot_dimension_numbers<[1], [0], [0], [1], [0, 0, 1, 1], [], []>} : vector<24x8xbf16>, vector<8x128xbf16>, vector<24x128xf32> -> vector<24x128xf32>
      %274 = vector.extract_strided_slice %273 {offsets = [0, 0], sizes = [2, 128], strides = [1, 1]} : vector<24x128xf32> to vector<2x128xf32>
      %275 = math.tanh %274 : vector<2x128xf32>
      %276 = vector.extract_strided_slice %273 {offsets = [8, 0], sizes = [16, 128], strides = [1, 1]} : vector<24x128xf32> to vector<16x128xf32>
      %277 = arith.truncf %275 : vector<2x128xf32> to vector<2x128xbf16>
      %cst_118 = arith.constant dense<0.000000e+00> : vector<16x128xf32>
      %278 = tpu.matmul %2, %277, %cst_118 {dimension_numbers = #tpu.dot_dimension_numbers<[1], [0], [0], [1], [0, 0, 1, 1], [], []>} : vector<16x2xbf16>, vector<2x128xbf16>, vector<16x128xf32> -> vector<16x128xf32>
      %279 = arith.addf %276, %278 : vector<16x128xf32>
      %cst_119 = arith.constant 0.000000e+00 : f32
      %280 = vector.broadcast %cst_119 : f32 to vector<16x128xf32>
      %281 = arith.maximumf %279, %280 : vector<16x128xf32>
      %cst_120 = arith.constant 6.000000e+00 : f32
      %282 = vector.broadcast %cst_120 : f32 to vector<16x128xf32>
      %283 = arith.minimumf %281, %282 : vector<16x128xf32>
      %284 = arith.truncf %283 : vector<16x128xf32> to vector<16x128xbf16>
      %cst_121 = arith.constant dense<0.000000e+00> : vector<32x128xf32>
      %285 = tpu.matmul %3, %284, %cst_121 {dimension_numbers = #tpu.dot_dimension_numbers<[1], [0], [0], [1], [0, 0, 1, 1], [], []>} : vector<32x16xbf16>, vector<16x128xbf16>, vector<32x128xf32> -> vector<32x128xf32>
      %286 = vector.broadcast %7 : vector<32x1xf32> to vector<32x128xf32>
      %287 = arith.addf %285, %286 : vector<32x128xf32>
      %cst_122 = arith.constant 0.000000e+00 : f32
      %288 = vector.broadcast %cst_122 : f32 to vector<32x128xf32>
      %289 = arith.maximumf %287, %288 : vector<32x128xf32>
      %cst_123 = arith.constant 6.000000e+00 : f32
      %290 = vector.broadcast %cst_123 : f32 to vector<32x128xf32>
      %291 = arith.minimumf %289, %290 : vector<32x128xf32>
      %292 = arith.truncf %291 : vector<32x128xf32> to vector<32x128xbf16>
      %cst_124 = arith.constant dense<0.000000e+00> : vector<16x128xf32>
      %293 = tpu.matmul %4, %292, %cst_124 {dimension_numbers = #tpu.dot_dimension_numbers<[1], [0], [0], [1], [0, 0, 1, 1], [], []>} : vector<16x32xbf16>, vector<32x128xbf16>, vector<16x128xf32> -> vector<16x128xf32>
      %294 = vector.broadcast %8 : vector<16x1xf32> to vector<16x128xf32>
      %295 = arith.addf %293, %294 : vector<16x128xf32>
      %cst_125 = arith.constant 0.000000e+00 : f32
      %296 = vector.broadcast %cst_125 : f32 to vector<16x128xf32>
      %297 = arith.maximumf %295, %296 : vector<16x128xf32>
      %cst_126 = arith.constant 6.000000e+00 : f32
      %298 = vector.broadcast %cst_126 : f32 to vector<16x128xf32>
      %299 = arith.minimumf %297, %298 : vector<16x128xf32>
      %300 = arith.truncf %299 : vector<16x128xf32> to vector<16x128xbf16>
      %cst_127 = arith.constant dense<0.000000e+00> : vector<8x128xf32>
      %301 = tpu.matmul %5, %300, %cst_127 {dimension_numbers = #tpu.dot_dimension_numbers<[1], [0], [0], [1], [0, 0, 1, 1], [], []>} : vector<8x16xbf16>, vector<16x128xbf16>, vector<8x128xf32> -> vector<8x128xf32>
      %302 = vector.broadcast %9 : vector<8x1xf32> to vector<8x128xf32>
      %303 = arith.addf %301, %302 : vector<8x128xf32>
      %cst_128 = arith.constant 0.000000e+00 : f32
      %304 = vector.broadcast %cst_128 : f32 to vector<8x128xf32>
      %305 = arith.maximumf %303, %304 : vector<8x128xf32>
      %cst_129 = arith.constant 6.000000e+00 : f32
      %306 = vector.broadcast %cst_129 : f32 to vector<8x128xf32>
      %307 = arith.minimumf %305, %306 : vector<8x128xf32>
      %308 = arith.truncf %307 : vector<8x128xf32> to vector<8x128xbf16>
      %cst_130 = arith.constant dense<0.000000e+00> : vector<8x128xf32>
      %309 = tpu.matmul %6, %308, %cst_130 {dimension_numbers = #tpu.dot_dimension_numbers<[1], [0], [0], [1], [0, 0, 1, 1], [], []>} : vector<8x8xbf16>, vector<8x128xbf16>, vector<8x128xf32> -> vector<8x128xf32>
      %310 = arith.addf %266, %309 : vector<8x128xf32>
      %311 = vector.broadcast %10 : vector<8x1xf32> to vector<8x128xf32>
      %312 = arith.addf %310, %311 : vector<8x128xf32>
      %c5_i32 = arith.constant 5 : i32
      %313 = arith.addi %82, %c5_i32 : i32
      %314 = arith.index_cast %313 : i32 to index
      %c0_131 = arith.constant 0 : index
      %c0_132 = arith.constant 0 : index
      %315 = vector.load %arg14[%314, %c0_131, %c0_132] : memref<100x8x128xf32, #tpu.memory_space<vmem>>, vector<1x8x128xf32>
      %316 = vector.shape_cast %315 : vector<1x8x128xf32> to vector<8x128xf32>
      %317 = vector.shape_cast %312 : vector<8x128xf32> to vector<1x8x128xf32>
      tpu.vector_store %arg14[%314, %c0_131, %c0_132], %317 {strides = array<i32>} : memref<100x8x128xf32, #tpu.memory_space<vmem>>, vector<1x8x128xf32>,
      %318 = arith.truncf %312 : vector<8x128xf32> to vector<8x128xbf16>
      %cst_133 = arith.constant dense<0.000000e+00> : vector<24x128xf32>
      %319 = tpu.matmul %1, %318, %cst_133 {dimension_numbers = #tpu.dot_dimension_numbers<[1], [0], [0], [1], [0, 0, 1, 1], [], []>} : vector<24x8xbf16>, vector<8x128xbf16>, vector<24x128xf32> -> vector<24x128xf32>
      %320 = vector.extract_strided_slice %319 {offsets = [0, 0], sizes = [2, 128], strides = [1, 1]} : vector<24x128xf32> to vector<2x128xf32>
      %321 = math.tanh %320 : vector<2x128xf32>
      %322 = vector.extract_strided_slice %319 {offsets = [8, 0], sizes = [16, 128], strides = [1, 1]} : vector<24x128xf32> to vector<16x128xf32>
      %323 = arith.truncf %321 : vector<2x128xf32> to vector<2x128xbf16>
      %cst_134 = arith.constant dense<0.000000e+00> : vector<16x128xf32>
      %324 = tpu.matmul %2, %323, %cst_134 {dimension_numbers = #tpu.dot_dimension_numbers<[1], [0], [0], [1], [0, 0, 1, 1], [], []>} : vector<16x2xbf16>, vector<2x128xbf16>, vector<16x128xf32> -> vector<16x128xf32>
      %325 = arith.addf %322, %324 : vector<16x128xf32>
      %cst_135 = arith.constant 0.000000e+00 : f32
      %326 = vector.broadcast %cst_135 : f32 to vector<16x128xf32>
      %327 = arith.maximumf %325, %326 : vector<16x128xf32>
      %cst_136 = arith.constant 6.000000e+00 : f32
      %328 = vector.broadcast %cst_136 : f32 to vector<16x128xf32>
      %329 = arith.minimumf %327, %328 : vector<16x128xf32>
      %330 = arith.truncf %329 : vector<16x128xf32> to vector<16x128xbf16>
      %cst_137 = arith.constant dense<0.000000e+00> : vector<32x128xf32>
      %331 = tpu.matmul %3, %330, %cst_137 {dimension_numbers = #tpu.dot_dimension_numbers<[1], [0], [0], [1], [0, 0, 1, 1], [], []>} : vector<32x16xbf16>, vector<16x128xbf16>, vector<32x128xf32> -> vector<32x128xf32>
      %332 = vector.broadcast %7 : vector<32x1xf32> to vector<32x128xf32>
      %333 = arith.addf %331, %332 : vector<32x128xf32>
      %cst_138 = arith.constant 0.000000e+00 : f32
      %334 = vector.broadcast %cst_138 : f32 to vector<32x128xf32>
      %335 = arith.maximumf %333, %334 : vector<32x128xf32>
      %cst_139 = arith.constant 6.000000e+00 : f32
      %336 = vector.broadcast %cst_139 : f32 to vector<32x128xf32>
      %337 = arith.minimumf %335, %336 : vector<32x128xf32>
      %338 = arith.truncf %337 : vector<32x128xf32> to vector<32x128xbf16>
      %cst_140 = arith.constant dense<0.000000e+00> : vector<16x128xf32>
      %339 = tpu.matmul %4, %338, %cst_140 {dimension_numbers = #tpu.dot_dimension_numbers<[1], [0], [0], [1], [0, 0, 1, 1], [], []>} : vector<16x32xbf16>, vector<32x128xbf16>, vector<16x128xf32> -> vector<16x128xf32>
      %340 = vector.broadcast %8 : vector<16x1xf32> to vector<16x128xf32>
      %341 = arith.addf %339, %340 : vector<16x128xf32>
      %cst_141 = arith.constant 0.000000e+00 : f32
      %342 = vector.broadcast %cst_141 : f32 to vector<16x128xf32>
      %343 = arith.maximumf %341, %342 : vector<16x128xf32>
      %cst_142 = arith.constant 6.000000e+00 : f32
      %344 = vector.broadcast %cst_142 : f32 to vector<16x128xf32>
      %345 = arith.minimumf %343, %344 : vector<16x128xf32>
      %346 = arith.truncf %345 : vector<16x128xf32> to vector<16x128xbf16>
      %cst_143 = arith.constant dense<0.000000e+00> : vector<8x128xf32>
      %347 = tpu.matmul %5, %346, %cst_143 {dimension_numbers = #tpu.dot_dimension_numbers<[1], [0], [0], [1], [0, 0, 1, 1], [], []>} : vector<8x16xbf16>, vector<16x128xbf16>, vector<8x128xf32> -> vector<8x128xf32>
      %348 = vector.broadcast %9 : vector<8x1xf32> to vector<8x128xf32>
      %349 = arith.addf %347, %348 : vector<8x128xf32>
      %cst_144 = arith.constant 0.000000e+00 : f32
      %350 = vector.broadcast %cst_144 : f32 to vector<8x128xf32>
      %351 = arith.maximumf %349, %350 : vector<8x128xf32>
      %cst_145 = arith.constant 6.000000e+00 : f32
      %352 = vector.broadcast %cst_145 : f32 to vector<8x128xf32>
      %353 = arith.minimumf %351, %352 : vector<8x128xf32>
      %354 = arith.truncf %353 : vector<8x128xf32> to vector<8x128xbf16>
      %cst_146 = arith.constant dense<0.000000e+00> : vector<8x128xf32>
      %355 = tpu.matmul %6, %354, %cst_146 {dimension_numbers = #tpu.dot_dimension_numbers<[1], [0], [0], [1], [0, 0, 1, 1], [], []>} : vector<8x8xbf16>, vector<8x128xbf16>, vector<8x128xf32> -> vector<8x128xf32>
      %356 = arith.addf %312, %355 : vector<8x128xf32>
      %357 = vector.broadcast %10 : vector<8x1xf32> to vector<8x128xf32>
      %358 = arith.addf %356, %357 : vector<8x128xf32>
      %c6_i32 = arith.constant 6 : i32
      %359 = arith.addi %82, %c6_i32 : i32
      %360 = arith.index_cast %359 : i32 to index
      %c0_147 = arith.constant 0 : index
      %c0_148 = arith.constant 0 : index
      %361 = vector.load %arg14[%360, %c0_147, %c0_148] : memref<100x8x128xf32, #tpu.memory_space<vmem>>, vector<1x8x128xf32>
      %362 = vector.shape_cast %361 : vector<1x8x128xf32> to vector<8x128xf32>
      %363 = vector.shape_cast %358 : vector<8x128xf32> to vector<1x8x128xf32>
      tpu.vector_store %arg14[%360, %c0_147, %c0_148], %363 {strides = array<i32>} : memref<100x8x128xf32, #tpu.memory_space<vmem>>, vector<1x8x128xf32>,
      %364 = arith.truncf %358 : vector<8x128xf32> to vector<8x128xbf16>
      %cst_149 = arith.constant dense<0.000000e+00> : vector<24x128xf32>
      %365 = tpu.matmul %1, %364, %cst_149 {dimension_numbers = #tpu.dot_dimension_numbers<[1], [0], [0], [1], [0, 0, 1, 1], [], []>} : vector<24x8xbf16>, vector<8x128xbf16>, vector<24x128xf32> -> vector<24x128xf32>
      %366 = vector.extract_strided_slice %365 {offsets = [0, 0], sizes = [2, 128], strides = [1, 1]} : vector<24x128xf32> to vector<2x128xf32>
      %367 = math.tanh %366 : vector<2x128xf32>
      %368 = vector.extract_strided_slice %365 {offsets = [8, 0], sizes = [16, 128], strides = [1, 1]} : vector<24x128xf32> to vector<16x128xf32>
      %369 = arith.truncf %367 : vector<2x128xf32> to vector<2x128xbf16>
      %cst_150 = arith.constant dense<0.000000e+00> : vector<16x128xf32>
      %370 = tpu.matmul %2, %369, %cst_150 {dimension_numbers = #tpu.dot_dimension_numbers<[1], [0], [0], [1], [0, 0, 1, 1], [], []>} : vector<16x2xbf16>, vector<2x128xbf16>, vector<16x128xf32> -> vector<16x128xf32>
      %371 = arith.addf %368, %370 : vector<16x128xf32>
      %cst_151 = arith.constant 0.000000e+00 : f32
      %372 = vector.broadcast %cst_151 : f32 to vector<16x128xf32>
      %373 = arith.maximumf %371, %372 : vector<16x128xf32>
      %cst_152 = arith.constant 6.000000e+00 : f32
      %374 = vector.broadcast %cst_152 : f32 to vector<16x128xf32>
      %375 = arith.minimumf %373, %374 : vector<16x128xf32>
      %376 = arith.truncf %375 : vector<16x128xf32> to vector<16x128xbf16>
      %cst_153 = arith.constant dense<0.000000e+00> : vector<32x128xf32>
      %377 = tpu.matmul %3, %376, %cst_153 {dimension_numbers = #tpu.dot_dimension_numbers<[1], [0], [0], [1], [0, 0, 1, 1], [], []>} : vector<32x16xbf16>, vector<16x128xbf16>, vector<32x128xf32> -> vector<32x128xf32>
      %378 = vector.broadcast %7 : vector<32x1xf32> to vector<32x128xf32>
      %379 = arith.addf %377, %378 : vector<32x128xf32>
      %cst_154 = arith.constant 0.000000e+00 : f32
      %380 = vector.broadcast %cst_154 : f32 to vector<32x128xf32>
      %381 = arith.maximumf %379, %380 : vector<32x128xf32>
      %cst_155 = arith.constant 6.000000e+00 : f32
      %382 = vector.broadcast %cst_155 : f32 to vector<32x128xf32>
      %383 = arith.minimumf %381, %382 : vector<32x128xf32>
      %384 = arith.truncf %383 : vector<32x128xf32> to vector<32x128xbf16>
      %cst_156 = arith.constant dense<0.000000e+00> : vector<16x128xf32>
      %385 = tpu.matmul %4, %384, %cst_156 {dimension_numbers = #tpu.dot_dimension_numbers<[1], [0], [0], [1], [0, 0, 1, 1], [], []>} : vector<16x32xbf16>, vector<32x128xbf16>, vector<16x128xf32> -> vector<16x128xf32>
      %386 = vector.broadcast %8 : vector<16x1xf32> to vector<16x128xf32>
      %387 = arith.addf %385, %386 : vector<16x128xf32>
      %cst_157 = arith.constant 0.000000e+00 : f32
      %388 = vector.broadcast %cst_157 : f32 to vector<16x128xf32>
      %389 = arith.maximumf %387, %388 : vector<16x128xf32>
      %cst_158 = arith.constant 6.000000e+00 : f32
      %390 = vector.broadcast %cst_158 : f32 to vector<16x128xf32>
      %391 = arith.minimumf %389, %390 : vector<16x128xf32>
      %392 = arith.truncf %391 : vector<16x128xf32> to vector<16x128xbf16>
      %cst_159 = arith.constant dense<0.000000e+00> : vector<8x128xf32>
      %393 = tpu.matmul %5, %392, %cst_159 {dimension_numbers = #tpu.dot_dimension_numbers<[1], [0], [0], [1], [0, 0, 1, 1], [], []>} : vector<8x16xbf16>, vector<16x128xbf16>, vector<8x128xf32> -> vector<8x128xf32>
      %394 = vector.broadcast %9 : vector<8x1xf32> to vector<8x128xf32>
      %395 = arith.addf %393, %394 : vector<8x128xf32>
      %cst_160 = arith.constant 0.000000e+00 : f32
      %396 = vector.broadcast %cst_160 : f32 to vector<8x128xf32>
      %397 = arith.maximumf %395, %396 : vector<8x128xf32>
      %cst_161 = arith.constant 6.000000e+00 : f32
      %398 = vector.broadcast %cst_161 : f32 to vector<8x128xf32>
      %399 = arith.minimumf %397, %398 : vector<8x128xf32>
      %400 = arith.truncf %399 : vector<8x128xf32> to vector<8x128xbf16>
      %cst_162 = arith.constant dense<0.000000e+00> : vector<8x128xf32>
      %401 = tpu.matmul %6, %400, %cst_162 {dimension_numbers = #tpu.dot_dimension_numbers<[1], [0], [0], [1], [0, 0, 1, 1], [], []>} : vector<8x8xbf16>, vector<8x128xbf16>, vector<8x128xf32> -> vector<8x128xf32>
      %402 = arith.addf %358, %401 : vector<8x128xf32>
      %403 = vector.broadcast %10 : vector<8x1xf32> to vector<8x128xf32>
      %404 = arith.addf %402, %403 : vector<8x128xf32>
      %c7_i32 = arith.constant 7 : i32
      %405 = arith.addi %82, %c7_i32 : i32
      %406 = arith.index_cast %405 : i32 to index
      %c0_163 = arith.constant 0 : index
      %c0_164 = arith.constant 0 : index
      %407 = vector.load %arg14[%406, %c0_163, %c0_164] : memref<100x8x128xf32, #tpu.memory_space<vmem>>, vector<1x8x128xf32>
      %408 = vector.shape_cast %407 : vector<1x8x128xf32> to vector<8x128xf32>
      %409 = vector.shape_cast %404 : vector<8x128xf32> to vector<1x8x128xf32>
      tpu.vector_store %arg14[%406, %c0_163, %c0_164], %409 {strides = array<i32>} : memref<100x8x128xf32, #tpu.memory_space<vmem>>, vector<1x8x128xf32>,
      %410 = arith.truncf %404 : vector<8x128xf32> to vector<8x128xbf16>
      %cst_165 = arith.constant dense<0.000000e+00> : vector<24x128xf32>
      %411 = tpu.matmul %1, %410, %cst_165 {dimension_numbers = #tpu.dot_dimension_numbers<[1], [0], [0], [1], [0, 0, 1, 1], [], []>} : vector<24x8xbf16>, vector<8x128xbf16>, vector<24x128xf32> -> vector<24x128xf32>
      %412 = vector.extract_strided_slice %411 {offsets = [0, 0], sizes = [2, 128], strides = [1, 1]} : vector<24x128xf32> to vector<2x128xf32>
      %413 = math.tanh %412 : vector<2x128xf32>
      %414 = vector.extract_strided_slice %411 {offsets = [8, 0], sizes = [16, 128], strides = [1, 1]} : vector<24x128xf32> to vector<16x128xf32>
      %415 = arith.truncf %413 : vector<2x128xf32> to vector<2x128xbf16>
      %cst_166 = arith.constant dense<0.000000e+00> : vector<16x128xf32>
      %416 = tpu.matmul %2, %415, %cst_166 {dimension_numbers = #tpu.dot_dimension_numbers<[1], [0], [0], [1], [0, 0, 1, 1], [], []>} : vector<16x2xbf16>, vector<2x128xbf16>, vector<16x128xf32> -> vector<16x128xf32>
      %417 = arith.addf %414, %416 : vector<16x128xf32>
      %cst_167 = arith.constant 0.000000e+00 : f32
      %418 = vector.broadcast %cst_167 : f32 to vector<16x128xf32>
      %419 = arith.maximumf %417, %418 : vector<16x128xf32>
      %cst_168 = arith.constant 6.000000e+00 : f32
      %420 = vector.broadcast %cst_168 : f32 to vector<16x128xf32>
      %421 = arith.minimumf %419, %420 : vector<16x128xf32>
      %422 = arith.truncf %421 : vector<16x128xf32> to vector<16x128xbf16>
      %cst_169 = arith.constant dense<0.000000e+00> : vector<32x128xf32>
      %423 = tpu.matmul %3, %422, %cst_169 {dimension_numbers = #tpu.dot_dimension_numbers<[1], [0], [0], [1], [0, 0, 1, 1], [], []>} : vector<32x16xbf16>, vector<16x128xbf16>, vector<32x128xf32> -> vector<32x128xf32>
      %424 = vector.broadcast %7 : vector<32x1xf32> to vector<32x128xf32>
      %425 = arith.addf %423, %424 : vector<32x128xf32>
      %cst_170 = arith.constant 0.000000e+00 : f32
      %426 = vector.broadcast %cst_170 : f32 to vector<32x128xf32>
      %427 = arith.maximumf %425, %426 : vector<32x128xf32>
      %cst_171 = arith.constant 6.000000e+00 : f32
      %428 = vector.broadcast %cst_171 : f32 to vector<32x128xf32>
      %429 = arith.minimumf %427, %428 : vector<32x128xf32>
      %430 = arith.truncf %429 : vector<32x128xf32> to vector<32x128xbf16>
      %cst_172 = arith.constant dense<0.000000e+00> : vector<16x128xf32>
      %431 = tpu.matmul %4, %430, %cst_172 {dimension_numbers = #tpu.dot_dimension_numbers<[1], [0], [0], [1], [0, 0, 1, 1], [], []>} : vector<16x32xbf16>, vector<32x128xbf16>, vector<16x128xf32> -> vector<16x128xf32>
      %432 = vector.broadcast %8 : vector<16x1xf32> to vector<16x128xf32>
      %433 = arith.addf %431, %432 : vector<16x128xf32>
      %cst_173 = arith.constant 0.000000e+00 : f32
      %434 = vector.broadcast %cst_173 : f32 to vector<16x128xf32>
      %435 = arith.maximumf %433, %434 : vector<16x128xf32>
      %cst_174 = arith.constant 6.000000e+00 : f32
      %436 = vector.broadcast %cst_174 : f32 to vector<16x128xf32>
      %437 = arith.minimumf %435, %436 : vector<16x128xf32>
      %438 = arith.truncf %437 : vector<16x128xf32> to vector<16x128xbf16>
      %cst_175 = arith.constant dense<0.000000e+00> : vector<8x128xf32>
      %439 = tpu.matmul %5, %438, %cst_175 {dimension_numbers = #tpu.dot_dimension_numbers<[1], [0], [0], [1], [0, 0, 1, 1], [], []>} : vector<8x16xbf16>, vector<16x128xbf16>, vector<8x128xf32> -> vector<8x128xf32>
      %440 = vector.broadcast %9 : vector<8x1xf32> to vector<8x128xf32>
      %441 = arith.addf %439, %440 : vector<8x128xf32>
      %cst_176 = arith.constant 0.000000e+00 : f32
      %442 = vector.broadcast %cst_176 : f32 to vector<8x128xf32>
      %443 = arith.maximumf %441, %442 : vector<8x128xf32>
      %cst_177 = arith.constant 6.000000e+00 : f32
      %444 = vector.broadcast %cst_177 : f32 to vector<8x128xf32>
      %445 = arith.minimumf %443, %444 : vector<8x128xf32>
      %446 = arith.truncf %445 : vector<8x128xf32> to vector<8x128xbf16>
      %cst_178 = arith.constant dense<0.000000e+00> : vector<8x128xf32>
      %447 = tpu.matmul %6, %446, %cst_178 {dimension_numbers = #tpu.dot_dimension_numbers<[1], [0], [0], [1], [0, 0, 1, 1], [], []>} : vector<8x8xbf16>, vector<8x128xbf16>, vector<8x128xf32> -> vector<8x128xf32>
      %448 = arith.addf %404, %447 : vector<8x128xf32>
      %449 = vector.broadcast %10 : vector<8x1xf32> to vector<8x128xf32>
      %450 = arith.addf %448, %449 : vector<8x128xf32>
      %c8_i32 = arith.constant 8 : i32
      %451 = arith.addi %82, %c8_i32 : i32
      %452 = arith.index_cast %451 : i32 to index
      %c0_179 = arith.constant 0 : index
      %c0_180 = arith.constant 0 : index
      %453 = vector.load %arg14[%452, %c0_179, %c0_180] : memref<100x8x128xf32, #tpu.memory_space<vmem>>, vector<1x8x128xf32>
      %454 = vector.shape_cast %453 : vector<1x8x128xf32> to vector<8x128xf32>
      %455 = vector.shape_cast %450 : vector<8x128xf32> to vector<1x8x128xf32>
      tpu.vector_store %arg14[%452, %c0_179, %c0_180], %455 {strides = array<i32>} : memref<100x8x128xf32, #tpu.memory_space<vmem>>, vector<1x8x128xf32>,
      %456 = arith.truncf %450 : vector<8x128xf32> to vector<8x128xbf16>
      %cst_181 = arith.constant dense<0.000000e+00> : vector<24x128xf32>
      %457 = tpu.matmul %1, %456, %cst_181 {dimension_numbers = #tpu.dot_dimension_numbers<[1], [0], [0], [1], [0, 0, 1, 1], [], []>} : vector<24x8xbf16>, vector<8x128xbf16>, vector<24x128xf32> -> vector<24x128xf32>
      %458 = vector.extract_strided_slice %457 {offsets = [0, 0], sizes = [2, 128], strides = [1, 1]} : vector<24x128xf32> to vector<2x128xf32>
      %459 = math.tanh %458 : vector<2x128xf32>
      %460 = vector.extract_strided_slice %457 {offsets = [8, 0], sizes = [16, 128], strides = [1, 1]} : vector<24x128xf32> to vector<16x128xf32>
      %461 = arith.truncf %459 : vector<2x128xf32> to vector<2x128xbf16>
      %cst_182 = arith.constant dense<0.000000e+00> : vector<16x128xf32>
      %462 = tpu.matmul %2, %461, %cst_182 {dimension_numbers = #tpu.dot_dimension_numbers<[1], [0], [0], [1], [0, 0, 1, 1], [], []>} : vector<16x2xbf16>, vector<2x128xbf16>, vector<16x128xf32> -> vector<16x128xf32>
      %463 = arith.addf %460, %462 : vector<16x128xf32>
      %cst_183 = arith.constant 0.000000e+00 : f32
      %464 = vector.broadcast %cst_183 : f32 to vector<16x128xf32>
      %465 = arith.maximumf %463, %464 : vector<16x128xf32>
      %cst_184 = arith.constant 6.000000e+00 : f32
      %466 = vector.broadcast %cst_184 : f32 to vector<16x128xf32>
      %467 = arith.minimumf %465, %466 : vector<16x128xf32>
      %468 = arith.truncf %467 : vector<16x128xf32> to vector<16x128xbf16>
      %cst_185 = arith.constant dense<0.000000e+00> : vector<32x128xf32>
      %469 = tpu.matmul %3, %468, %cst_185 {dimension_numbers = #tpu.dot_dimension_numbers<[1], [0], [0], [1], [0, 0, 1, 1], [], []>} : vector<32x16xbf16>, vector<16x128xbf16>, vector<32x128xf32> -> vector<32x128xf32>
      %470 = vector.broadcast %7 : vector<32x1xf32> to vector<32x128xf32>
      %471 = arith.addf %469, %470 : vector<32x128xf32>
      %cst_186 = arith.constant 0.000000e+00 : f32
      %472 = vector.broadcast %cst_186 : f32 to vector<32x128xf32>
      %473 = arith.maximumf %471, %472 : vector<32x128xf32>
      %cst_187 = arith.constant 6.000000e+00 : f32
      %474 = vector.broadcast %cst_187 : f32 to vector<32x128xf32>
      %475 = arith.minimumf %473, %474 : vector<32x128xf32>
      %476 = arith.truncf %475 : vector<32x128xf32> to vector<32x128xbf16>
      %cst_188 = arith.constant dense<0.000000e+00> : vector<16x128xf32>
      %477 = tpu.matmul %4, %476, %cst_188 {dimension_numbers = #tpu.dot_dimension_numbers<[1], [0], [0], [1], [0, 0, 1, 1], [], []>} : vector<16x32xbf16>, vector<32x128xbf16>, vector<16x128xf32> -> vector<16x128xf32>
      %478 = vector.broadcast %8 : vector<16x1xf32> to vector<16x128xf32>
      %479 = arith.addf %477, %478 : vector<16x128xf32>
      %cst_189 = arith.constant 0.000000e+00 : f32
      %480 = vector.broadcast %cst_189 : f32 to vector<16x128xf32>
      %481 = arith.maximumf %479, %480 : vector<16x128xf32>
      %cst_190 = arith.constant 6.000000e+00 : f32
      %482 = vector.broadcast %cst_190 : f32 to vector<16x128xf32>
      %483 = arith.minimumf %481, %482 : vector<16x128xf32>
      %484 = arith.truncf %483 : vector<16x128xf32> to vector<16x128xbf16>
      %cst_191 = arith.constant dense<0.000000e+00> : vector<8x128xf32>
      %485 = tpu.matmul %5, %484, %cst_191 {dimension_numbers = #tpu.dot_dimension_numbers<[1], [0], [0], [1], [0, 0, 1, 1], [], []>} : vector<8x16xbf16>, vector<16x128xbf16>, vector<8x128xf32> -> vector<8x128xf32>
      %486 = vector.broadcast %9 : vector<8x1xf32> to vector<8x128xf32>
      %487 = arith.addf %485, %486 : vector<8x128xf32>
      %cst_192 = arith.constant 0.000000e+00 : f32
      %488 = vector.broadcast %cst_192 : f32 to vector<8x128xf32>
      %489 = arith.maximumf %487, %488 : vector<8x128xf32>
      %cst_193 = arith.constant 6.000000e+00 : f32
      %490 = vector.broadcast %cst_193 : f32 to vector<8x128xf32>
      %491 = arith.minimumf %489, %490 : vector<8x128xf32>
      %492 = arith.truncf %491 : vector<8x128xf32> to vector<8x128xbf16>
      %cst_194 = arith.constant dense<0.000000e+00> : vector<8x128xf32>
      %493 = tpu.matmul %6, %492, %cst_194 {dimension_numbers = #tpu.dot_dimension_numbers<[1], [0], [0], [1], [0, 0, 1, 1], [], []>} : vector<8x8xbf16>, vector<8x128xbf16>, vector<8x128xf32> -> vector<8x128xf32>
      %494 = arith.addf %450, %493 : vector<8x128xf32>
      %495 = vector.broadcast %10 : vector<8x1xf32> to vector<8x128xf32>
      %496 = arith.addf %494, %495 : vector<8x128xf32>
      %c9_i32 = arith.constant 9 : i32
      %497 = arith.addi %82, %c9_i32 : i32
      %498 = arith.index_cast %497 : i32 to index
      %c0_195 = arith.constant 0 : index
      %c0_196 = arith.constant 0 : index
      %499 = vector.load %arg14[%498, %c0_195, %c0_196] : memref<100x8x128xf32, #tpu.memory_space<vmem>>, vector<1x8x128xf32>
      %500 = vector.shape_cast %499 : vector<1x8x128xf32> to vector<8x128xf32>
      %501 = vector.shape_cast %496 : vector<8x128xf32> to vector<1x8x128xf32>
      tpu.vector_store %arg14[%498, %c0_195, %c0_196], %501 {strides = array<i32>} : memref<100x8x128xf32, #tpu.memory_space<vmem>>, vector<1x8x128xf32>,
      %502 = arith.truncf %496 : vector<8x128xf32> to vector<8x128xbf16>
      %cst_197 = arith.constant dense<0.000000e+00> : vector<24x128xf32>
      %503 = tpu.matmul %1, %502, %cst_197 {dimension_numbers = #tpu.dot_dimension_numbers<[1], [0], [0], [1], [0, 0, 1, 1], [], []>} : vector<24x8xbf16>, vector<8x128xbf16>, vector<24x128xf32> -> vector<24x128xf32>
      %504 = vector.extract_strided_slice %503 {offsets = [0, 0], sizes = [2, 128], strides = [1, 1]} : vector<24x128xf32> to vector<2x128xf32>
      %505 = math.tanh %504 : vector<2x128xf32>
      %506 = vector.extract_strided_slice %503 {offsets = [8, 0], sizes = [16, 128], strides = [1, 1]} : vector<24x128xf32> to vector<16x128xf32>
      %507 = arith.truncf %505 : vector<2x128xf32> to vector<2x128xbf16>
      %cst_198 = arith.constant dense<0.000000e+00> : vector<16x128xf32>
      %508 = tpu.matmul %2, %507, %cst_198 {dimension_numbers = #tpu.dot_dimension_numbers<[1], [0], [0], [1], [0, 0, 1, 1], [], []>} : vector<16x2xbf16>, vector<2x128xbf16>, vector<16x128xf32> -> vector<16x128xf32>
      %509 = arith.addf %506, %508 : vector<16x128xf32>
      %cst_199 = arith.constant 0.000000e+00 : f32
      %510 = vector.broadcast %cst_199 : f32 to vector<16x128xf32>
      %511 = arith.maximumf %509, %510 : vector<16x128xf32>
      %cst_200 = arith.constant 6.000000e+00 : f32
      %512 = vector.broadcast %cst_200 : f32 to vector<16x128xf32>
      %513 = arith.minimumf %511, %512 : vector<16x128xf32>
      %514 = arith.truncf %513 : vector<16x128xf32> to vector<16x128xbf16>
      %cst_201 = arith.constant dense<0.000000e+00> : vector<32x128xf32>
      %515 = tpu.matmul %3, %514, %cst_201 {dimension_numbers = #tpu.dot_dimension_numbers<[1], [0], [0], [1], [0, 0, 1, 1], [], []>} : vector<32x16xbf16>, vector<16x128xbf16>, vector<32x128xf32> -> vector<32x128xf32>
      %516 = vector.broadcast %7 : vector<32x1xf32> to vector<32x128xf32>
      %517 = arith.addf %515, %516 : vector<32x128xf32>
      %cst_202 = arith.constant 0.000000e+00 : f32
      %518 = vector.broadcast %cst_202 : f32 to vector<32x128xf32>
      %519 = arith.maximumf %517, %518 : vector<32x128xf32>
      %cst_203 = arith.constant 6.000000e+00 : f32
      %520 = vector.broadcast %cst_203 : f32 to vector<32x128xf32>
      %521 = arith.minimumf %519, %520 : vector<32x128xf32>
      %522 = arith.truncf %521 : vector<32x128xf32> to vector<32x128xbf16>
      %cst_204 = arith.constant dense<0.000000e+00> : vector<16x128xf32>
      %523 = tpu.matmul %4, %522, %cst_204 {dimension_numbers = #tpu.dot_dimension_numbers<[1], [0], [0], [1], [0, 0, 1, 1], [], []>} : vector<16x32xbf16>, vector<32x128xbf16>, vector<16x128xf32> -> vector<16x128xf32>
      %524 = vector.broadcast %8 : vector<16x1xf32> to vector<16x128xf32>
      %525 = arith.addf %523, %524 : vector<16x128xf32>
      %cst_205 = arith.constant 0.000000e+00 : f32
      %526 = vector.broadcast %cst_205 : f32 to vector<16x128xf32>
      %527 = arith.maximumf %525, %526 : vector<16x128xf32>
      %cst_206 = arith.constant 6.000000e+00 : f32
      %528 = vector.broadcast %cst_206 : f32 to vector<16x128xf32>
      %529 = arith.minimumf %527, %528 : vector<16x128xf32>
      %530 = arith.truncf %529 : vector<16x128xf32> to vector<16x128xbf16>
      %cst_207 = arith.constant dense<0.000000e+00> : vector<8x128xf32>
      %531 = tpu.matmul %5, %530, %cst_207 {dimension_numbers = #tpu.dot_dimension_numbers<[1], [0], [0], [1], [0, 0, 1, 1], [], []>} : vector<8x16xbf16>, vector<16x128xbf16>, vector<8x128xf32> -> vector<8x128xf32>
      %532 = vector.broadcast %9 : vector<8x1xf32> to vector<8x128xf32>
      %533 = arith.addf %531, %532 : vector<8x128xf32>
      %cst_208 = arith.constant 0.000000e+00 : f32
      %534 = vector.broadcast %cst_208 : f32 to vector<8x128xf32>
      %535 = arith.maximumf %533, %534 : vector<8x128xf32>
      %cst_209 = arith.constant 6.000000e+00 : f32
      %536 = vector.broadcast %cst_209 : f32 to vector<8x128xf32>
      %537 = arith.minimumf %535, %536 : vector<8x128xf32>
      %538 = arith.truncf %537 : vector<8x128xf32> to vector<8x128xbf16>
      %cst_210 = arith.constant dense<0.000000e+00> : vector<8x128xf32>
      %539 = tpu.matmul %6, %538, %cst_210 {dimension_numbers = #tpu.dot_dimension_numbers<[1], [0], [0], [1], [0, 0, 1, 1], [], []>} : vector<8x8xbf16>, vector<8x128xbf16>, vector<8x128xf32> -> vector<8x128xf32>
      %540 = arith.addf %496, %539 : vector<8x128xf32>
      %541 = vector.broadcast %10 : vector<8x1xf32> to vector<8x128xf32>
      %542 = arith.addf %540, %541 : vector<8x128xf32>
      scf.yield %542 : vector<8x128xf32>
    }
    %c10_i32_21 = arith.constant 10 : i32
    %c0_22 = arith.constant 0 : index
    %c0_23 = arith.constant 0 : index
    %13 = vector.load %arg12[%c0_22, %c0_23] : memref<8x1xf32, #tpu.memory_space<vmem>>, vector<8x1xf32>
    %c0_24 = arith.constant 0 : index
    %c0_25 = arith.constant 0 : index
    %14 = vector.load %arg13[%c0_24, %c0_25] : memref<8x1xf32, #tpu.memory_space<vmem>>, vector<8x1xf32>
    %c1 = arith.constant 1 : index
    %c0_26 = arith.constant 0 : index
    %c0_27 = arith.constant 0 : index
    %15 = vector.load %arg14[%c1, %c0_26, %c0_27] : memref<100x8x128xf32, #tpu.memory_space<vmem>>, vector<33x8x128xf32>
    %16 = vector.shape_cast %13 : vector<8x1xf32> to vector<1x8x1xf32>
    %17 = vector.broadcast %16 : vector<1x8x1xf32> to vector<33x8x128xf32>
    %18 = arith.mulf %15, %17 : vector<33x8x128xf32>
    %cst = arith.constant dense<0.000000e+00> : vector<33x128xf32>
    %19 = vector.multi_reduction <add>, %18, %cst [1] : vector<33x8x128xf32> to vector<33x128xf32>
    %20 = vector.shape_cast %14 : vector<8x1xf32> to vector<1x8x1xf32>
    %21 = vector.broadcast %20 : vector<1x8x1xf32> to vector<33x8x128xf32>
    %22 = arith.mulf %15, %21 : vector<33x8x128xf32>
    %cst_28 = arith.constant dense<0.000000e+00> : vector<33x128xf32>
    %23 = vector.multi_reduction <add>, %22, %cst_28 [1] : vector<33x8x128xf32> to vector<33x128xf32>
    %24 = arith.mulf %19, %19 : vector<33x128xf32>
    %25 = arith.mulf %23, %23 : vector<33x128xf32>
    %26 = arith.addf %24, %25 : vector<33x128xf32>
    %27 = math.sqrt %26 : vector<33x128xf32>
    %cst_29 = arith.constant 0.000000e+00 : f32
    %28 = vector.broadcast %cst_29 : f32 to vector<33x128xf32>
    %29 = arith.subf %28, %27 : vector<33x128xf32>
    %30 = math.exp %29 : vector<33x128xf32>
    %c0_30 = arith.constant 0 : index
    %c0_31 = arith.constant 0 : index
    %31 = vector.load %arg15[%c0_30, %c0_31] : memref<100x128xf32, #tpu.memory_space<vmem>>, vector<33x128xf32>
    tpu.vector_store %arg15[%c0_30, %c0_31], %30 {strides = array<i32>} : memref<100x128xf32, #tpu.memory_space<vmem>>, vector<33x128xf32>,
    %c34 = arith.constant 34 : index
    %c0_32 = arith.constant 0 : index
    %c0_33 = arith.constant 0 : index
    %32 = vector.load %arg14[%c34, %c0_32, %c0_33] : memref<100x8x128xf32, #tpu.memory_space<vmem>>, vector<33x8x128xf32>
    %33 = vector.shape_cast %13 : vector<8x1xf32> to vector<1x8x1xf32>
    %34 = vector.broadcast %33 : vector<1x8x1xf32> to vector<33x8x128xf32>
    %35 = arith.mulf %32, %34 : vector<33x8x128xf32>
    %cst_34 = arith.constant dense<0.000000e+00> : vector<33x128xf32>
    %36 = vector.multi_reduction <add>, %35, %cst_34 [1] : vector<33x8x128xf32> to vector<33x128xf32>
    %37 = vector.shape_cast %14 : vector<8x1xf32> to vector<1x8x1xf32>
    %38 = vector.broadcast %37 : vector<1x8x1xf32> to vector<33x8x128xf32>
    %39 = arith.mulf %32, %38 : vector<33x8x128xf32>
    %cst_35 = arith.constant dense<0.000000e+00> : vector<33x128xf32>
    %40 = vector.multi_reduction <add>, %39, %cst_35 [1] : vector<33x8x128xf32> to vector<33x128xf32>
    %41 = arith.mulf %36, %36 : vector<33x128xf32>
    %42 = arith.mulf %40, %40 : vector<33x128xf32>
    %43 = arith.addf %41, %42 : vector<33x128xf32>
    %44 = math.sqrt %43 : vector<33x128xf32>
    %cst_36 = arith.constant 0.000000e+00 : f32
    %45 = vector.broadcast %cst_36 : f32 to vector<33x128xf32>
    %46 = arith.subf %45, %44 : vector<33x128xf32>
    %47 = math.exp %46 : vector<33x128xf32>
    %c33 = arith.constant 33 : index
    %c0_37 = arith.constant 0 : index
    %48 = vector.load %arg15[%c33, %c0_37] : memref<100x128xf32, #tpu.memory_space<vmem>>, vector<33x128xf32>
    tpu.vector_store %arg15[%c33, %c0_37], %47 {strides = array<i32>} : memref<100x128xf32, #tpu.memory_space<vmem>>, vector<33x128xf32>,
    %c67 = arith.constant 67 : index
    %c0_38 = arith.constant 0 : index
    %c0_39 = arith.constant 0 : index
    %49 = vector.load %arg14[%c67, %c0_38, %c0_39] : memref<100x8x128xf32, #tpu.memory_space<vmem>>, vector<33x8x128xf32>
    %50 = vector.shape_cast %13 : vector<8x1xf32> to vector<1x8x1xf32>
    %51 = vector.broadcast %50 : vector<1x8x1xf32> to vector<33x8x128xf32>
    %52 = arith.mulf %49, %51 : vector<33x8x128xf32>
    %cst_40 = arith.constant dense<0.000000e+00> : vector<33x128xf32>
    %53 = vector.multi_reduction <add>, %52, %cst_40 [1] : vector<33x8x128xf32> to vector<33x128xf32>
    %54 = vector.shape_cast %14 : vector<8x1xf32> to vector<1x8x1xf32>
    %55 = vector.broadcast %54 : vector<1x8x1xf32> to vector<33x8x128xf32>
    %56 = arith.mulf %49, %55 : vector<33x8x128xf32>
    %cst_41 = arith.constant dense<0.000000e+00> : vector<33x128xf32>
    %57 = vector.multi_reduction <add>, %56, %cst_41 [1] : vector<33x8x128xf32> to vector<33x128xf32>
    %58 = arith.mulf %53, %53 : vector<33x128xf32>
    %59 = arith.mulf %57, %57 : vector<33x128xf32>
    %60 = arith.addf %58, %59 : vector<33x128xf32>
    %61 = math.sqrt %60 : vector<33x128xf32>
    %cst_42 = arith.constant 0.000000e+00 : f32
    %62 = vector.broadcast %cst_42 : f32 to vector<33x128xf32>
    %63 = arith.subf %62, %61 : vector<33x128xf32>
    %64 = math.exp %63 : vector<33x128xf32>
    %c66 = arith.constant 66 : index
    %c0_43 = arith.constant 0 : index
    %65 = vector.load %arg15[%c66, %c0_43] : memref<100x128xf32, #tpu.memory_space<vmem>>, vector<33x128xf32>
    tpu.vector_store %arg15[%c66, %c0_43], %64 {strides = array<i32>} : memref<100x128xf32, #tpu.memory_space<vmem>>, vector<33x128xf32>,
    %66 = vector.broadcast %13 : vector<8x1xf32> to vector<8x128xf32>
    %67 = arith.mulf %12, %66 : vector<8x128xf32>
    %cst_44 = arith.constant dense<0.000000e+00> : vector<128xf32>
    %68 = vector.multi_reduction <add>, %67, %cst_44 [0] : vector<8x128xf32> to vector<128xf32>
    %69 = vector.shape_cast %68 : vector<128xf32> to vector<1x128xf32>
    %70 = vector.broadcast %14 : vector<8x1xf32> to vector<8x128xf32>
    %71 = arith.mulf %12, %70 : vector<8x128xf32>
    %cst_45 = arith.constant dense<0.000000e+00> : vector<128xf32>
    %72 = vector.multi_reduction <add>, %71, %cst_45 [0] : vector<8x128xf32> to vector<128xf32>
    %73 = vector.shape_cast %72 : vector<128xf32> to vector<1x128xf32>
    %74 = arith.mulf %69, %69 : vector<1x128xf32>
    %75 = arith.mulf %73, %73 : vector<1x128xf32>
    %76 = arith.addf %74, %75 : vector<1x128xf32>
    %77 = math.sqrt %76 : vector<1x128xf32>
    %cst_46 = arith.constant 0.000000e+00 : f32
    %78 = vector.broadcast %cst_46 : f32 to vector<1x128xf32>
    %79 = arith.subf %78, %77 : vector<1x128xf32>
    %80 = math.exp %79 : vector<1x128xf32>
    %c99 = arith.constant 99 : index
    %c0_47 = arith.constant 0 : index
    %81 = vector.load %arg15[%c99, %c0_47] : memref<100x128xf32, #tpu.memory_space<vmem>>, vector<1x128xf32>
    tpu.vector_store %arg15[%c99, %c0_47], %80 {strides = array<i32>} : memref<100x128xf32, #tpu.memory_space<vmem>>, vector<1x128xf32>,
    return
  }
  func.func @transform_0(%arg0: i32) -> (i32, i32) {
    %c0_i32 = arith.constant 0 : i32
    %c0_i32_0 = arith.constant 0 : i32
    return %c0_i32, %arg0 : i32, i32
  }
  func.func @transform_1(%arg0: i32) -> (i32, i32) {
    %c0_i32 = arith.constant 0 : i32
    %c0_i32_0 = arith.constant 0 : i32
    %c0_i32_1 = arith.constant 0 : i32
    return %c0_i32, %c0_i32_0 : i32, i32
  }
  func.func @transform_2(%arg0: i32) -> (i32, i32) {
    %c0_i32 = arith.constant 0 : i32
    %c0_i32_0 = arith.constant 0 : i32
    %c0_i32_1 = arith.constant 0 : i32
    return %c0_i32, %c0_i32_0 : i32, i32
  }
  func.func @transform_3(%arg0: i32) -> (i32, i32) {
    %c0_i32 = arith.constant 0 : i32
    %c0_i32_0 = arith.constant 0 : i32
    %c0_i32_1 = arith.constant 0 : i32
    return %c0_i32, %c0_i32_0 : i32, i32
  }
  func.func @transform_4(%arg0: i32) -> (i32, i32) {
    %c0_i32 = arith.constant 0 : i32
    %c0_i32_0 = arith.constant 0 : i32
    %c0_i32_1 = arith.constant 0 : i32
    return %c0_i32, %c0_i32_0 : i32, i32
  }
  func.func @transform_5(%arg0: i32) -> (i32, i32) {
    %c0_i32 = arith.constant 0 : i32
    %c0_i32_0 = arith.constant 0 : i32
    %c0_i32_1 = arith.constant 0 : i32
    return %c0_i32, %c0_i32_0 : i32, i32
  }
  func.func @transform_6(%arg0: i32) -> (i32, i32) {
    %c0_i32 = arith.constant 0 : i32
    %c0_i32_0 = arith.constant 0 : i32
    %c0_i32_1 = arith.constant 0 : i32
    return %c0_i32, %c0_i32_0 : i32, i32
  }
  func.func @transform_7(%arg0: i32) -> (i32, i32) {
    %c0_i32 = arith.constant 0 : i32
    %c0_i32_0 = arith.constant 0 : i32
    %c0_i32_1 = arith.constant 0 : i32
    return %c0_i32, %c0_i32_0 : i32, i32
  }
  func.func @transform_8(%arg0: i32) -> (i32, i32) {
    %c0_i32 = arith.constant 0 : i32
    %c0_i32_0 = arith.constant 0 : i32
    %c0_i32_1 = arith.constant 0 : i32
    return %c0_i32, %c0_i32_0 : i32, i32
  }
  func.func @transform_9(%arg0: i32) -> (i32, i32) {
    %c0_i32 = arith.constant 0 : i32
    %c0_i32_0 = arith.constant 0 : i32
    %c0_i32_1 = arith.constant 0 : i32
    return %c0_i32, %c0_i32_0 : i32, i32
  }
  func.func @transform_10(%arg0: i32) -> (i32, i32) {
    %c0_i32 = arith.constant 0 : i32
    %c0_i32_0 = arith.constant 0 : i32
    %c0_i32_1 = arith.constant 0 : i32
    return %c0_i32, %c0_i32_0 : i32, i32
  }
  func.func @transform_11(%arg0: i32) -> (i32, i32) {
    %c0_i32 = arith.constant 0 : i32
    %c0_i32_0 = arith.constant 0 : i32
    %c0_i32_1 = arith.constant 0 : i32
    return %c0_i32, %c0_i32_0 : i32, i32
  }
  func.func @transform_12(%arg0: i32) -> (i32, i32) {
    %c0_i32 = arith.constant 0 : i32
    %c0_i32_0 = arith.constant 0 : i32
    %c0_i32_1 = arith.constant 0 : i32
    return %c0_i32, %c0_i32_0 : i32, i32
  }
  func.func @transform_13(%arg0: i32) -> (i32, i32, i32) {
    %c0_i32 = arith.constant 0 : i32
    %c0_i32_0 = arith.constant 0 : i32
    %c0_i32_1 = arith.constant 0 : i32
    return %c0_i32, %c0_i32_0, %arg0 : i32, i32, i32
  }
  func.func @transform_14(%arg0: i32) -> (i32, i32) {
    %c0_i32 = arith.constant 0 : i32
    %c0_i32_0 = arith.constant 0 : i32
    return %c0_i32, %arg0 : i32, i32
  }
}

</mosaic_0001>

<llo_original>
// kernel: worldnet_forward.1
$region0: #{worldnet_forward.1}
  #allocation0 [shape = 'u32[]', space=smem, size = 0x4, offset = 0x4, fixed_abs, tag = 'smem constant byte address 0x4 - core index']
  #allocation1 [shape = 'u32[144,128]{1,0:T(1,128)}', space=vmem, size = 0x12000, scoped, tag = 'internal scratch']
  %s0 = inlined_call_operand.vmem [shape: f32[8,128], index: 0, kind: input, shape index: {}]
  %s1 = inlined_call_operand.vmem [shape: bf16[24,8], index: 1, kind: input, shape index: {}]
  %s2 = inlined_call_operand.vmem [shape: bf16[16,2], index: 2, kind: input, shape index: {}]
  %s3 = inlined_call_operand.vmem [shape: bf16[32,16], index: 3, kind: input, shape index: {}]
  %s4 = inlined_call_operand.vmem [shape: f32[32,1], index: 4, kind: input, shape index: {}]
  %s5 = inlined_call_operand.vmem [shape: bf16[16,32], index: 5, kind: input, shape index: {}]
  %s6 = inlined_call_operand.vmem [shape: f32[16,1], index: 6, kind: input, shape index: {}]
  %s7 = inlined_call_operand.vmem [shape: bf16[8,16], index: 7, kind: input, shape index: {}]
  %s8 = inlined_call_operand.vmem [shape: f32[8,1], index: 8, kind: input, shape index: {}]
  %s9 = inlined_call_operand.vmem [shape: bf16[8,8], index: 9, kind: input, shape index: {}]
  %s10 = inlined_call_operand.vmem [shape: f32[8,1], index: 10, kind: input, shape index: {}]
  %s11 = inlined_call_operand.vmem [shape: f32[8,1], index: 11, kind: input, shape index: {}]
  %s12 = inlined_call_operand.vmem [shape: f32[8,1], index: 12, kind: input, shape index: {}]
  %s13 = inlined_call_operand.vmem [shape: f32[100,8,128], index: 13, kind: output, shape index: {0}]
  %s14 = inlined_call_operand.vmem [shape: f32[100,128], index: 14, kind: output, shape index: {1}]
  %15 = xla_tuple %s13, %s14
  %s16 = sld [smem:[#allocation0]]
  $region77: #{worldnet_forward.1} parent=0
    _
  %s18 = ssub.s32 1, %s16
  %s19 = scalar_select 0, %s18, %s16
  // Predicated region
  $region2: #{worldnet_forward.1} parent=0 // pred_check
    _
  $region3: #{worldnet_forward.1} parent=0 // pred_check_branch
    %21 = sbr.rel (0) target = $region5
  $region4: #{worldnet_forward.1} parent=0 // pred_region
    _
  $region5: #{worldnet_forward.1} parent=0 // pred_fallthru
    _
  // Predicated region
  $region6: #{worldnet_forward.1} parent=0 // pred_check
    _
  $region7: #{worldnet_forward.1} parent=0 // pred_check_branch
    %23 = sbr.rel (0) target = $region9
  $region8: #{worldnet_forward.1} parent=0 // pred_region
    _
  $region9: #{worldnet_forward.1} parent=0 // pred_fallthru
    _
  // Predicated region
  $region10: #{worldnet_forward.1} parent=0 // pred_check
    _
  $region11: #{worldnet_forward.1} parent=0 // pred_check_branch
    %25 = sbr.rel (0) target = $region13
  $region12: #{worldnet_forward.1} parent=0 // pred_region
    _
  $region13: #{worldnet_forward.1} parent=0 // pred_fallthru
    _
  // Predicated region
  $region14: #{worldnet_forward.1} parent=0 // pred_check
    _
  $region15: #{worldnet_forward.1} parent=0 // pred_check_branch
    %27 = sbr.rel (0) target = $region17
  $region16: #{worldnet_forward.1} parent=0 // pred_region
    _
  $region17: #{worldnet_forward.1} parent=0 // pred_fallthru
    _
  // Predicated region
  $region18: #{worldnet_forward.1} parent=0 // pred_check
    _
  $region19: #{worldnet_forward.1} parent=0 // pred_check_branch
    %29 = sbr.rel (0) target = $region21
  $region20: #{worldnet_forward.1} parent=0 // pred_region
    _
  $region21: #{worldnet_forward.1} parent=0 // pred_fallthru
    _
  // Predicated region
  $region22: #{worldnet_forward.1} parent=0 // pred_check
    _
  $region23: #{worldnet_forward.1} parent=0 // pred_check_branch
    %31 = sbr.rel (0) target = $region25
  $region24: #{worldnet_forward.1} parent=0 // pred_region
    _
  $region25: #{worldnet_forward.1} parent=0 // pred_fallthru
    _
  // Predicated region
  $region26: #{worldnet_forward.1} parent=0 // pred_check
    _
  $region27: #{worldnet_forward.1} parent=0 // pred_check_branch
    %33 = sbr.rel (0) target = $region29
  $region28: #{worldnet_forward.1} parent=0 // pred_region
    _
  $region29: #{worldnet_forward.1} parent=0 // pred_fallthru
    _
  // Predicated region
  $region30: #{worldnet_forward.1} parent=0 // pred_check
    _
  $region31: #{worldnet_forward.1} parent=0 // pred_check_branch
    %35 = sbr.rel (0) target = $region33
  $region32: #{worldnet_forward.1} parent=0 // pred_region
    _
  $region33: #{worldnet_forward.1} parent=0 // pred_fallthru
    _
  // Predicated region
  $region34: #{worldnet_forward.1} parent=0 // pred_check
    _
  $region35: #{worldnet_forward.1} parent=0 // pred_check_branch
    %37 = sbr.rel (0) target = $region37
  $region36: #{worldnet_forward.1} parent=0 // pred_region
    _
  $region37: #{worldnet_forward.1} parent=0 // pred_fallthru
    _
  // Predicated region
  $region38: #{worldnet_forward.1} parent=0 // pred_check
    _
  $region39: #{worldnet_forward.1} parent=0 // pred_check_branch
    %39 = sbr.rel (0) target = $region41
  $region40: #{worldnet_forward.1} parent=0 // pred_region
    _
  $region41: #{worldnet_forward.1} parent=0 // pred_fallthru
    _
  // Predicated region
  $region42: #{worldnet_forward.1} parent=0 // pred_check
    _
  $region43: #{worldnet_forward.1} parent=0 // pred_check_branch
    %41 = sbr.rel (0) target = $region45
  $region44: #{worldnet_forward.1} parent=0 // pred_region
    _
  $region45: #{worldnet_forward.1} parent=0 // pred_fallthru
    _
  // Predicated region
  $region46: #{worldnet_forward.1} parent=0 // pred_check
    _
  $region47: #{worldnet_forward.1} parent=0 // pred_check_branch
    %43 = sbr.rel (0) target = $region49
  $region48: #{worldnet_forward.1} parent=0 // pred_region
    _
  $region49: #{worldnet_forward.1} parent=0 // pred_fallthru
    _
  // Predicated region
  $region50: #{worldnet_forward.1} parent=0 // pred_check
    _
  $region51: #{worldnet_forward.1} parent=0 // pred_check_branch
    %45 = sbr.rel (0) target = $region53
  $region52: #{worldnet_forward.1} parent=0 // pred_region
    _
  $region53: #{worldnet_forward.1} parent=0 // pred_fallthru
    _
  %v47 = vld [vmem:[%s0] sm:$0xff]
  %v48 = vld [vmem:[%s1] sm:$0xf]
  %v49 = vld [vmem:[%s1 + $0x4] sm:$0xf]
  %v50 = vld [vmem:[%s1 + $0x8] sm:$0xf]
  %v51 = vld [vmem:[%s2] sm:$0xf]
  %v52 = vld [vmem:[%s2 + $0x4] sm:$0xf]
  %v53 = vld [vmem:[%s3] sm:$0xf]
  %v54 = vld [vmem:[%s3 + $0x4] sm:$0xf]
  %v55 = vld [vmem:[%s3 + $0x8] sm:$0xf]
  %v56 = vld [vmem:[%s3 + $0xc] sm:$0xf]
  %v57 = vld [vmem:[%s5] sm:$0xf]
  %v58 = vld [vmem:[%s5 + $0x4] sm:$0xf]
  %v59 = vld [vmem:[%s7] sm:$0xf]
  %v60 = vld [vmem:[%s9] sm:$0xf]
  %v61 = vld [vmem:[%s4] sm:$0xff]
  %v62 = vld [vmem:[%s4 + $0x8] sm:$0xff]
  %v63 = vld [vmem:[%s4 + $0x10] sm:$0xff]
  %v64 = vld [vmem:[%s4 + $0x18] sm:$0xff]
  %v65 = vld [vmem:[%s6] sm:$0xff]
  %v66 = vld [vmem:[%s6 + $0x8] sm:$0xff]
  %v67 = vld [vmem:[%s8] sm:$0xff]
  %v68 = vld [vmem:[%s10] sm:$0xff]
  loop: start=0, step=1, limit=10
  $region54: #{worldnet_forward.1} parent=0 // loop_pre_header
    _
  $region55: #{worldnet_forward.1} parent=0 // loop_header
    %s70 = sphi 0, %s74
    %p71 = scmp.ge.s32.totalorder %s70, 10
    %v75 = vphi %v47, %v3193
  $region56: #{worldnet_forward.1} parent=0 // loop_header_branch
    %73 = sbr.rel (%p71) target = $region60
  $region57: #{worldnet_forward.1} parent=0 // loop_body
    %s76 = smul.u32 %s70, 10
    %s77 = smul.u32 %s76, 8
    %s78 = scalar_lea.vmem %s13, %s77
    %79 = vst [vmem:[%s78] sm:$0xff] %v75
    %v80 = vpack.c.bf16 %v75, %v75
    %v84 = vunpack.c.l.b16 %v48
    %v85 = vunpack.c.l.b16 %v49
    %v86 = vunpack.c.l.b16 %v50
    %v87 = vpack.c.b16 %v85, %v84
    %v88 = vpack.c.b16 %v86, %v86
    %vm89 = vcmask 64512
    %v91 = vsel %vm89, %v87, 0
    %v94 = vsel %vm89, %v88, 0
    %vm96 = vcmask 1043456
    %v98 = vsel %vm96, %v80, 0
    %100 = vmatprep.subr.bf16.mxu0 0
    %101 = vmatpush1.bf16.msra.mxu0 0
    %102 = vmatprep.subr.bf16.mxu0 0
    %103 = vmatpush1.bf16.msra.mxu0 0
    %104 = vmatprep.subr.bf16.mxu0 0
    %105 = vmatpush1.bf16.msra.mxu0 0
    %106 = vmatprep.subr.bf16.mxu0 0
    %107 = vmatpush1.bf16.msra.mxu0 0
    %108 = vmatprep.subr.bf16.mxu0 0
    %109 = vmatpush1.bf16.msra.mxu0 0
    %110 = vmatprep.subr.bf16.mxu0 0
    %111 = vmatpush1.bf16.msra.mxu0 0
    %112 = vmatprep.subr.bf16.mxu0 0
    %113 = vmatpush1.bf16.msra.mxu0 0
    %114 = vmatprep.subr.bf16.mxu0 0
    %115 = vmatpush1.bf16.msra.mxu0 %v98
    %116 = vmatprep.subr.bf16.mxu0 0
    %117 = vmatpush2.bf16.msra.mxu0 0
    %118 = vmatprep.subr.bf16.mxu0 0
    %119 = vmatpush2.bf16.msra.mxu0 0
    %120 = vmatprep.subr.bf16.mxu0 0
    %121 = vmatpush2.bf16.msra.mxu0 0
    %122 = vmatprep.subr.bf16.mxu0 0
    %123 = vmatpush2.bf16.msra.mxu0 0
    %124 = vmatprep.subr.bf16.mxu0 0
    %125 = vmatpush2.bf16.msra.mxu0 0
    %126 = vmatprep.subr.bf16.mxu0 0
    %127 = vmatpush2.bf16.msra.mxu0 0
    %128 = vmatprep.subr.bf16.mxu0 0
    %129 = vmatpush2.bf16.msra.mxu0 0
    %130 = vmatprep.subr.bf16.mxu0 0
    %131 = vmatpush2.bf16.msra.mxu0 0
    %132 = vmatprep.mubr.bf16.mxu0 0
    %133 = vmatmul.mubr.bf16.gmra.mxu0 %v91
    %v134 = vpop.f32.mrf.mxu0
    %v135 = vadd.f32 0.0, %v134
    %v136 = vpop.f32.mrf.mxu0
    %v137 = vpop.f32.mrf.mxu0
    %v138 = vadd.f32 0.0, %v137
    %v139 = vpop.f32.mrf.mxu0
    %140 = vmatprep.mubr.bf16.mxu0 0
    %141 = vmatmul.mubr.bf16.gmra.mxu0 %v94
    %v142 = vpop.f32.mrf.mxu0
    %v143 = vadd.f32 0.0, %v142
    %v144 = vpop.f32.mrf.mxu0
    %v145 = vpop.f32.mrf.mxu0
    %v146 = vpop.f32.mrf.mxu0
    %147 = vdwg.mxu0
    %v148 = vtanh.pop %v135
    %v149 = vpack.c.bf16 %v148, %v148
    %v152 = vunpack.c.l.b16 %v51
    %v153 = vunpack.c.l.b16 %v52
    %v154 = vpack.c.b16 %v153, %v152
    %vm155 = vcmask 15360
    %v157 = vsel %vm155, %v154, 0
    %vm159 = vcmask 1040384
    %v161 = vsel %vm159, %v149, 0
    %163 = vmatprep.subr.bf16.mxu0 0
    %164 = vmatpush1.bf16.msra.mxu0 0
    %165 = vmatprep.subr.bf16.mxu0 0
    %166 = vmatpush1.bf16.msra.mxu0 0
    %167 = vmatprep.subr.bf16.mxu0 0
    %168 = vmatpush1.bf16.msra.mxu0 0
    %169 = vmatprep.subr.bf16.mxu0 0
    %170 = vmatpush1.bf16.msra.mxu0 0
    %171 = vmatprep.subr.bf16.mxu0 0
    %172 = vmatpush1.bf16.msra.mxu0 0
    %173 = vmatprep.subr.bf16.mxu0 0
    %174 = vmatpush1.bf16.msra.mxu0 0
    %175 = vmatprep.subr.bf16.mxu0 0
    %176 = vmatpush1.bf16.msra.mxu0 0
    %177 = vmatprep.subr.bf16.mxu0 0
    %178 = vmatpush1.bf16.msra.mxu0 %v161
    %179 = vmatprep.subr.bf16.mxu0 0
    %180 = vmatpush2.bf16.msra.mxu0 0
    %181 = vmatprep.subr.bf16.mxu0 0
    %182 = vmatpush2.bf16.msra.mxu0 0
    %183 = vmatprep.subr.bf16.mxu0 0
    %184 = vmatpush2.bf16.msra.mxu0 0
    %185 = vmatprep.subr.bf16.mxu0 0
    %186 = vmatpush2.bf16.msra.mxu0 0
    %187 = vmatprep.subr.bf16.mxu0 0
    %188 = vmatpush2.bf16.msra.mxu0 0
    %189 = vmatprep.subr.bf16.mxu0 0
    %190 = vmatpush2.bf16.msra.mxu0 0
    %191 = vmatprep.subr.bf16.mxu0 0
    %192 = vmatpush2.bf16.msra.mxu0 0
    %193 = vmatprep.subr.bf16.mxu0 0
    %194 = vmatpush2.bf16.msra.mxu0 0
    %195 = vmatprep.mubr.bf16.mxu0 0
    %196 = vmatmul.mubr.bf16.gmra.mxu0 %v157
    %v197 = vpop.f32.mrf.mxu0
    %v198 = vadd.f32 0.0, %v197
    %v199 = vpop.f32.mrf.mxu0
    %v200 = vpop.f32.mrf.mxu0
    %v201 = vadd.f32 0.0, %v200
    %v202 = vpop.f32.mrf.mxu0
    %203 = vdwg.mxu0
    %v204 = vadd.f32 %v138, %v198
    %v205 = vadd.f32 %v143, %v201
    %v206 = vmax.f32 %v204, 0.0
    %v207 = vmax.f32 %v205, 0.0
    %v208 = vmin.f32 %v206, 6.0
    %v209 = vmin.f32 %v207, 6.0
    %v210 = vpack.c.bf16 %v209, %v208
    %212 = vset.pattern.permute.xlu0 0
    %213 = vperm.xlu0 %212, %v61
    %v214 = vpop.permute.xlu0 %213
    %217 = vset.pattern.permute.xlu0 0
    %218 = vperm.xlu0 %217, %v62
    %v219 = vpop.permute.xlu0 %218
    %222 = vset.pattern.permute.xlu0 0
    %223 = vperm.xlu0 %222, %v63
    %v224 = vpop.permute.xlu0 %223
    %227 = vset.pattern.permute.xlu0 0
    %228 = vperm.xlu0 %227, %v64
    %v229 = vpop.permute.xlu0 %228
    %v235 = vunpack.c.l.b16 %v53
    %v236 = vunpack.c.l.b16 %v54
    %v237 = vunpack.c.l.b16 %v55
    %v238 = vunpack.c.l.b16 %v56
    %v239 = vpack.c.b16 %v236, %v235
    %v240 = vpack.c.b16 %v238, %v237
    %vm241 = vcmask 130048
    %v243 = vsel %vm241, %v239, 0
    %v246 = vsel %vm241, %v240, 0
    %248 = vmatprep.subr.bf16.mxu0 0
    %249 = vmatpush1.bf16.msra.mxu0 0
    %250 = vmatprep.subr.bf16.mxu0 0
    %251 = vmatpush1.bf16.msra.mxu0 0
    %252 = vmatprep.subr.bf16.mxu0 0
    %253 = vmatpush1.bf16.msra.mxu0 0
    %254 = vmatprep.subr.bf16.mxu0 0
    %255 = vmatpush1.bf16.msra.mxu0 0
    %256 = vmatprep.subr.bf16.mxu0 0
    %257 = vmatpush1.bf16.msra.mxu0 0
    %258 = vmatprep.subr.bf16.mxu0 0
    %259 = vmatpush1.bf16.msra.mxu0 0
    %260 = vmatprep.subr.bf16.mxu0 0
    %261 = vmatpush1.bf16.msra.mxu0 0
    %262 = vmatprep.subr.bf16.mxu0 0
    %263 = vmatpush1.bf16.msra.mxu0 %v210
    %264 = vmatprep.subr.bf16.mxu0 0
    %265 = vmatpush2.bf16.msra.mxu0 0
    %266 = vmatprep.subr.bf16.mxu0 0
    %267 = vmatpush2.bf16.msra.mxu0 0
    %268 = vmatprep.subr.bf16.mxu0 0
    %269 = vmatpush2.bf16.msra.mxu0 0
    %270 = vmatprep.subr.bf16.mxu0 0
    %271 = vmatpush2.bf16.msra.mxu0 0
    %272 = vmatprep.subr.bf16.mxu0 0
    %273 = vmatpush2.bf16.msra.mxu0 0
    %274 = vmatprep.subr.bf16.mxu0 0
    %275 = vmatpush2.bf16.msra.mxu0 0
    %276 = vmatprep.subr.bf16.mxu0 0
    %277 = vmatpush2.bf16.msra.mxu0 0
    %278 = vmatprep.subr.bf16.mxu0 0
    %279 = vmatpush2.bf16.msra.mxu0 0
    %280 = vmatprep.mubr.bf16.mxu0 0
    %281 = vmatmul.mubr.bf16.gmra.mxu0 %v243
    %v282 = vpop.f32.mrf.mxu0
    %v283 = vadd.f32 %v214, %v282
    %v284 = vpop.f32.mrf.mxu0
    %v285 = vpop.f32.mrf.mxu0
    %v286 = vadd.f32 %v219, %v285
    %v287 = vpop.f32.mrf.mxu0
    %288 = vmatprep.mubr.bf16.mxu0 0
    %289 = vmatmul.mubr.bf16.gmra.mxu0 %v246
    %v290 = vpop.f32.mrf.mxu0
    %v291 = vadd.f32 %v224, %v290
    %v292 = vpop.f32.mrf.mxu0
    %v293 = vpop.f32.mrf.mxu0
    %v294 = vadd.f32 %v229, %v293
    %v295 = vpop.f32.mrf.mxu0
    %296 = vdwg.mxu0
    %v297 = vmax.f32 %v283, 0.0
    %v298 = vmax.f32 %v286, 0.0
    %v299 = vmax.f32 %v291, 0.0
    %v300 = vmax.f32 %v294, 0.0
    %v301 = vmin.f32 %v297, 6.0
    %v302 = vmin.f32 %v298, 6.0
    %v303 = vmin.f32 %v299, 6.0
    %v304 = vmin.f32 %v300, 6.0
    %v305 = vpack.c.bf16 %v302, %v301
    %v306 = vpack.c.bf16 %v304, %v303
    %308 = vset.pattern.permute.xlu0 0
    %309 = vperm.xlu0 %308, %v65
    %v310 = vpop.permute.xlu0 %309
    %313 = vset.pattern.permute.xlu0 0
    %314 = vperm.xlu0 %313, %v66
    %v315 = vpop.permute.xlu0 %314
    %v319 = vunpack.c.l.b16 %v57
    %v320 = vunpack.c.l.b16 %v58
    %v321 = vpack.c.b16 %v320, %v319
    %vm322 = vcmask 261120
    %v324 = vsel %vm322, %v321, 0
    %326 = vmatprep.subr.bf16.mxu0 0
    %327 = vmatpush1.bf16.msra.mxu0 0
    %328 = vmatprep.subr.bf16.mxu0 0
    %329 = vmatpush1.bf16.msra.mxu0 0
    %330 = vmatprep.subr.bf16.mxu0 0
    %331 = vmatpush1.bf16.msra.mxu0 0
    %332 = vmatprep.subr.bf16.mxu0 0
    %333 = vmatpush1.bf16.msra.mxu0 0
    %334 = vmatprep.subr.bf16.mxu0 0
    %335 = vmatpush1.bf16.msra.mxu0 0
    %336 = vmatprep.subr.bf16.mxu0 0
    %337 = vmatpush1.bf16.msra.mxu0 0
    %338 = vmatprep.subr.bf16.mxu0 0
    %339 = vmatpush1.bf16.msra.mxu0 %v306
    %340 = vmatprep.subr.bf16.mxu0 0
    %341 = vmatpush1.bf16.msra.mxu0 %v305
    %342 = vmatprep.subr.bf16.mxu0 0
    %343 = vmatpush2.bf16.msra.mxu0 0
    %344 = vmatprep.subr.bf16.mxu0 0
    %345 = vmatpush2.bf16.msra.mxu0 0
    %346 = vmatprep.subr.bf16.mxu0 0
    %347 = vmatpush2.bf16.msra.mxu0 0
    %348 = vmatprep.subr.bf16.mxu0 0
    %349 = vmatpush2.bf16.msra.mxu0 0
    %350 = vmatprep.subr.bf16.mxu0 0
    %351 = vmatpush2.bf16.msra.mxu0 0
    %352 = vmatprep.subr.bf16.mxu0 0
    %353 = vmatpush2.bf16.msra.mxu0 0
    %354 = vmatprep.subr.bf16.mxu0 0
    %355 = vmatpush2.bf16.msra.mxu0 0
    %356 = vmatprep.subr.bf16.mxu0 0
    %357 = vmatpush2.bf16.msra.mxu0 0
    %358 = vmatprep.mubr.bf16.mxu0 0
    %359 = vmatmul.mubr.bf16.gmra.mxu0 %v324
    %v360 = vpop.f32.mrf.mxu0
    %v361 = vadd.f32 %v310, %v360
    %v362 = vpop.f32.mrf.mxu0
    %v363 = vpop.f32.mrf.mxu0
    %v364 = vadd.f32 %v315, %v363
    %v365 = vpop.f32.mrf.mxu0
    %366 = vdwg.mxu0
    %v367 = vmax.f32 %v361, 0.0
    %v368 = vmax.f32 %v364, 0.0
    %v369 = vmin.f32 %v367, 6.0
    %v370 = vmin.f32 %v368, 6.0
    %v371 = vpack.c.bf16 %v370, %v369
    %373 = vset.pattern.permute.xlu0 0
    %374 = vperm.xlu0 %373, %v67
    %v375 = vpop.permute.xlu0 %374
    %v378 = vsel %vm241, %v59, 0
    %380 = vmatprep.subr.bf16.mxu0 0
    %381 = vmatpush1.bf16.msra.mxu0 0
    %382 = vmatprep.subr.bf16.mxu0 0
    %383 = vmatpush1.bf16.msra.mxu0 0
    %384 = vmatprep.subr.bf16.mxu0 0
    %385 = vmatpush1.bf16.msra.mxu0 0
    %386 = vmatprep.subr.bf16.mxu0 0
    %387 = vmatpush1.bf16.msra.mxu0 0
    %388 = vmatprep.subr.bf16.mxu0 0
    %389 = vmatpush1.bf16.msra.mxu0 0
    %390 = vmatprep.subr.bf16.mxu0 0
    %391 = vmatpush1.bf16.msra.mxu0 0
    %392 = vmatprep.subr.bf16.mxu0 0
    %393 = vmatpush1.bf16.msra.mxu0 0
    %394 = vmatprep.subr.bf16.mxu0 0
    %395 = vmatpush1.bf16.msra.mxu0 %v371
    %396 = vmatprep.subr.bf16.mxu0 0
    %397 = vmatpush2.bf16.msra.mxu0 0
    %398 = vmatprep.subr.bf16.mxu0 0
    %399 = vmatpush2.bf16.msra.mxu0 0
    %400 = vmatprep.subr.bf16.mxu0 0
    %401 = vmatpush2.bf16.msra.mxu0 0
    %402 = vmatprep.subr.bf16.mxu0 0
    %403 = vmatpush2.bf16.msra.mxu0 0
    %404 = vmatprep.subr.bf16.mxu0 0
    %405 = vmatpush2.bf16.msra.mxu0 0
    %406 = vmatprep.subr.bf16.mxu0 0
    %407 = vmatpush2.bf16.msra.mxu0 0
    %408 = vmatprep.subr.bf16.mxu0 0
    %409 = vmatpush2.bf16.msra.mxu0 0
    %410 = vmatprep.subr.bf16.mxu0 0
    %411 = vmatpush2.bf16.msra.mxu0 0
    %412 = vmatprep.mubr.bf16.mxu0 0
    %413 = vmatmul.mubr.bf16.gmra.mxu0 %v378
    %v414 = vpop.f32.mrf.mxu0
    %v415 = vadd.f32 %v375, %v414
    %v416 = vpop.f32.mrf.mxu0
    %v417 = vpop.f32.mrf.mxu0
    %v418 = vpop.f32.mrf.mxu0
    %419 = vdwg.mxu0
    %v420 = vmax.f32 %v415, 0.0
    %v421 = vmin.f32 %v420, 6.0
    %v422 = vpack.c.bf16 %v421, %v421
    %v424 = vsel %vm89, %v60, 0
    %v427 = vsel %vm96, %v422, 0
    %429 = vmatprep.subr.bf16.mxu0 0
    %430 = vmatpush1.bf16.msra.mxu0 0
    %431 = vmatprep.subr.bf16.mxu0 0
    %432 = vmatpush1.bf16.msra.mxu0 0
    %433 = vmatprep.subr.bf16.mxu0 0
    %434 = vmatpush1.bf16.msra.mxu0 0
    %435 = vmatprep.subr.bf16.mxu0 0
    %436 = vmatpush1.bf16.msra.mxu0 0
    %437 = vmatprep.subr.bf16.mxu0 0
    %438 = vmatpush1.bf16.msra.mxu0 0
    %439 = vmatprep.subr.bf16.mxu0 0
    %440 = vmatpush1.bf16.msra.mxu0 0
    %441 = vmatprep.subr.bf16.mxu0 0
    %442 = vmatpush1.bf16.msra.mxu0 0
    %443 = vmatprep.subr.bf16.mxu0 0
    %444 = vmatpush1.bf16.msra.mxu0 %v427
    %445 = vmatprep.subr.bf16.mxu0 0
    %446 = vmatpush2.bf16.msra.mxu0 0
    %447 = vmatprep.subr.bf16.mxu0 0
    %448 = vmatpush2.bf16.msra.mxu0 0
    %449 = vmatprep.subr.bf16.mxu0 0
    %450 = vmatpush2.bf16.msra.mxu0 0
    %451 = vmatprep.subr.bf16.mxu0 0
    %452 = vmatpush2.bf16.msra.mxu0 0
    %453 = vmatprep.subr.bf16.mxu0 0
    %454 = vmatpush2.bf16.msra.mxu0 0
    %455 = vmatprep.subr.bf16.mxu0 0
    %456 = vmatpush2.bf16.msra.mxu0 0
    %457 = vmatprep.subr.bf16.mxu0 0
    %458 = vmatpush2.bf16.msra.mxu0 0
    %459 = vmatprep.subr.bf16.mxu0 0
    %460 = vmatpush2.bf16.msra.mxu0 0
    %461 = vmatprep.mubr.bf16.mxu0 0
    %462 = vmatmul.mubr.bf16.gmra.mxu0 %v424
    %v463 = vpop.f32.mrf.mxu0
    %v464 = vadd.f32 0.0, %v463
    %v465 = vpop.f32.mrf.mxu0
    %v466 = vpop.f32.mrf.mxu0
    %v467 = vpop.f32.mrf.mxu0
    %468 = vdwg.mxu0
    %v469 = vadd.f32 %v75, %v464
    %471 = vset.pattern.permute.xlu0 0
    %472 = vperm.xlu0 %471, %v68
    %v473 = vpop.permute.xlu0 %472
    %v475 = vadd.f32 %v469, %v473
    %s476 = sadd.s32 %s76, 1
    %s477 = smul.u32 %s476, 8
    %s478 = scalar_lea.vmem %s13, %s477
    %479 = vst [vmem:[%s478] sm:$0xff] %v475
    %v480 = vpack.c.bf16 %v475, %v475
    %v482 = vsel %vm96, %v480, 0
    %484 = vmatprep.subr.bf16.mxu0 0
    %485 = vmatpush1.bf16.msra.mxu0 0
    %486 = vmatprep.subr.bf16.mxu0 0
    %487 = vmatpush1.bf16.msra.mxu0 0
    %488 = vmatprep.subr.bf16.mxu0 0
    %489 = vmatpush1.bf16.msra.mxu0 0
    %490 = vmatprep.subr.bf16.mxu0 0
    %491 = vmatpush1.bf16.msra.mxu0 0
    %492 = vmatprep.subr.bf16.mxu0 0
    %493 = vmatpush1.bf16.msra.mxu0 0
    %494 = vmatprep.subr.bf16.mxu0 0
    %495 = vmatpush1.bf16.msra.mxu0 0
    %496 = vmatprep.subr.bf16.mxu0 0
    %497 = vmatpush1.bf16.msra.mxu0 0
    %498 = vmatprep.subr.bf16.mxu0 0
    %499 = vmatpush1.bf16.msra.mxu0 %v482
    %500 = vmatprep.subr.bf16.mxu0 0
    %501 = vmatpush2.bf16.msra.mxu0 0
    %502 = vmatprep.subr.bf16.mxu0 0
    %503 = vmatpush2.bf16.msra.mxu0 0
    %504 = vmatprep.subr.bf16.mxu0 0
    %505 = vmatpush2.bf16.msra.mxu0 0
    %506 = vmatprep.subr.bf16.mxu0 0
    %507 = vmatpush2.bf16.msra.mxu0 0
    %508 = vmatprep.subr.bf16.mxu0 0
    %509 = vmatpush2.bf16.msra.mxu0 0
    %510 = vmatprep.subr.bf16.mxu0 0
    %511 = vmatpush2.bf16.msra.mxu0 0
    %512 = vmatprep.subr.bf16.mxu0 0
    %513 = vmatpush2.bf16.msra.mxu0 0
    %514 = vmatprep.subr.bf16.mxu0 0
    %515 = vmatpush2.bf16.msra.mxu0 0
    %516 = vmatprep.mubr.bf16.mxu0 0
    %517 = vmatmul.mubr.bf16.gmra.mxu0 %v91
    %v518 = vpop.f32.mrf.mxu0
    %v519 = vadd.f32 0.0, %v518
    %v520 = vpop.f32.mrf.mxu0
    %v521 = vpop.f32.mrf.mxu0
    %v522 = vadd.f32 0.0, %v521
    %v523 = vpop.f32.mrf.mxu0
    %524 = vmatprep.mubr.bf16.mxu0 0
    %525 = vmatmul.mubr.bf16.gmra.mxu0 %v94
    %v526 = vpop.f32.mrf.mxu0
    %v527 = vadd.f32 0.0, %v526
    %v528 = vpop.f32.mrf.mxu0
    %v529 = vpop.f32.mrf.mxu0
    %v530 = vpop.f32.mrf.mxu0
    %531 = vdwg.mxu0
    %v532 = vtanh.pop %v519
    %v533 = vpack.c.bf16 %v532, %v532
    %v535 = vsel %vm159, %v533, 0
    %537 = vmatprep.subr.bf16.mxu0 0
    %538 = vmatpush1.bf16.msra.mxu0 0
    %539 = vmatprep.subr.bf16.mxu0 0
    %540 = vmatpush1.bf16.msra.mxu0 0
    %541 = vmatprep.subr.bf16.mxu0 0
    %542 = vmatpush1.bf16.msra.mxu0 0
    %543 = vmatprep.subr.bf16.mxu0 0
    %544 = vmatpush1.bf16.msra.mxu0 0
    %545 = vmatprep.subr.bf16.mxu0 0
    %546 = vmatpush1.bf16.msra.mxu0 0
    %547 = vmatprep.subr.bf16.mxu0 0
    %548 = vmatpush1.bf16.msra.mxu0 0
    %549 = vmatprep.subr.bf16.mxu0 0
    %550 = vmatpush1.bf16.msra.mxu0 0
    %551 = vmatprep.subr.bf16.mxu0 0
    %552 = vmatpush1.bf16.msra.mxu0 %v535
    %553 = vmatprep.subr.bf16.mxu0 0
    %554 = vmatpush2.bf16.msra.mxu0 0
    %555 = vmatprep.subr.bf16.mxu0 0
    %556 = vmatpush2.bf16.msra.mxu0 0
    %557 = vmatprep.subr.bf16.mxu0 0
    %558 = vmatpush2.bf16.msra.mxu0 0
    %559 = vmatprep.subr.bf16.mxu0 0
    %560 = vmatpush2.bf16.msra.mxu0 0
    %561 = vmatprep.subr.bf16.mxu0 0
    %562 = vmatpush2.bf16.msra.mxu0 0
    %563 = vmatprep.subr.bf16.mxu0 0
    %564 = vmatpush2.bf16.msra.mxu0 0
    %565 = vmatprep.subr.bf16.mxu0 0
    %566 = vmatpush2.bf16.msra.mxu0 0
    %567 = vmatprep.subr.bf16.mxu0 0
    %568 = vmatpush2.bf16.msra.mxu0 0
    %569 = vmatprep.mubr.bf16.mxu0 0
    %570 = vmatmul.mubr.bf16.gmra.mxu0 %v157
    %v571 = vpop.f32.mrf.mxu0
    %v572 = vadd.f32 0.0, %v571
    %v573 = vpop.f32.mrf.mxu0
    %v574 = vpop.f32.mrf.mxu0
    %v575 = vadd.f32 0.0, %v574
    %v576 = vpop.f32.mrf.mxu0
    %577 = vdwg.mxu0
    %v578 = vadd.f32 %v522, %v572
    %v579 = vadd.f32 %v527, %v575
    %v580 = vmax.f32 %v578, 0.0
    %v581 = vmax.f32 %v579, 0.0
    %v582 = vmin.f32 %v580, 6.0
    %v583 = vmin.f32 %v581, 6.0
    %v584 = vpack.c.bf16 %v583, %v582
    %585 = vmatprep.subr.bf16.mxu0 0
    %586 = vmatpush1.bf16.msra.mxu0 0
    %587 = vmatprep.subr.bf16.mxu0 0
    %588 = vmatpush1.bf16.msra.mxu0 0
    %589 = vmatprep.subr.bf16.mxu0 0
    %590 = vmatpush1.bf16.msra.mxu0 0
    %591 = vmatprep.subr.bf16.mxu0 0
    %592 = vmatpush1.bf16.msra.mxu0 0
    %593 = vmatprep.subr.bf16.mxu0 0
    %594 = vmatpush1.bf16.msra.mxu0 0
    %595 = vmatprep.subr.bf16.mxu0 0
    %596 = vmatpush1.bf16.msra.mxu0 0
    %597 = vmatprep.subr.bf16.mxu0 0
    %598 = vmatpush1.bf16.msra.mxu0 0
    %599 = vmatprep.subr.bf16.mxu0 0
    %600 = vmatpush1.bf16.msra.mxu0 %v584
    %601 = vmatprep.subr.bf16.mxu0 0
    %602 = vmatpush2.bf16.msra.mxu0 0
    %603 = vmatprep.subr.bf16.mxu0 0
    %604 = vmatpush2.bf16.msra.mxu0 0
    %605 = vmatprep.subr.bf16.mxu0 0
    %606 = vmatpush2.bf16.msra.mxu0 0
    %607 = vmatprep.subr.bf16.mxu0 0
    %608 = vmatpush2.bf16.msra.mxu0 0
    %609 = vmatprep.subr.bf16.mxu0 0
    %610 = vmatpush2.bf16.msra.mxu0 0
    %611 = vmatprep.subr.bf16.mxu0 0
    %612 = vmatpush2.bf16.msra.mxu0 0
    %613 = vmatprep.subr.bf16.mxu0 0
    %614 = vmatpush2.bf16.msra.mxu0 0
    %615 = vmatprep.subr.bf16.mxu0 0
    %616 = vmatpush2.bf16.msra.mxu0 0
    %617 = vmatprep.mubr.bf16.mxu0 0
    %618 = vmatmul.mubr.bf16.gmra.mxu0 %v243
    %v619 = vpop.f32.mrf.mxu0
    %v620 = vadd.f32 %v214, %v619
    %v621 = vpop.f32.mrf.mxu0
    %v622 = vpop.f32.mrf.mxu0
    %v623 = vadd.f32 %v219, %v622
    %v624 = vpop.f32.mrf.mxu0
    %625 = vmatprep.mubr.bf16.mxu0 0
    %626 = vmatmul.mubr.bf16.gmra.mxu0 %v246
    %v627 = vpop.f32.mrf.mxu0
    %v628 = vadd.f32 %v224, %v627
    %v629 = vpop.f32.mrf.mxu0
    %v630 = vpop.f32.mrf.mxu0
    %v631 = vadd.f32 %v229, %v630
    %v632 = vpop.f32.mrf.mxu0
    %633 = vdwg.mxu0
    %v634 = vmax.f32 %v620, 0.0
    %v635 = vmax.f32 %v623, 0.0
    %v636 = vmax.f32 %v628, 0.0
    %v637 = vmax.f32 %v631, 0.0
    %v638 = vmin.f32 %v634, 6.0
    %v639 = vmin.f32 %v635, 6.0
    %v640 = vmin.f32 %v636, 6.0
    %v641 = vmin.f32 %v637, 6.0
    %v642 = vpack.c.bf16 %v639, %v638
    %v643 = vpack.c.bf16 %v641, %v640
    %644 = vmatprep.subr.bf16.mxu0 0
    %645 = vmatpush1.bf16.msra.mxu0 0
    %646 = vmatprep.subr.bf16.mxu0 0
    %647 = vmatpush1.bf16.msra.mxu0 0
    %648 = vmatprep.subr.bf16.mxu0 0
    %649 = vmatpush1.bf16.msra.mxu0 0
    %650 = vmatprep.subr.bf16.mxu0 0
    %651 = vmatpush1.bf16.msra.mxu0 0
    %652 = vmatprep.subr.bf16.mxu0 0
    %653 = vmatpush1.bf16.msra.mxu0 0
    %654 = vmatprep.subr.bf16.mxu0 0
    %655 = vmatpush1.bf16.msra.mxu0 0
    %656 = vmatprep.subr.bf16.mxu0 0
    %657 = vmatpush1.bf16.msra.mxu0 %v643
    %658 = vmatprep.subr.bf16.mxu0 0
    %659 = vmatpush1.bf16.msra.mxu0 %v642
    %660 = vmatprep.subr.bf16.mxu0 0
    %661 = vmatpush2.bf16.msra.mxu0 0
    %662 = vmatprep.subr.bf16.mxu0 0
    %663 = vmatpush2.bf16.msra.mxu0 0
    %664 = vmatprep.subr.bf16.mxu0 0
    %665 = vmatpush2.bf16.msra.mxu0 0
    %666 = vmatprep.subr.bf16.mxu0 0
    %667 = vmatpush2.bf16.msra.mxu0 0
    %668 = vmatprep.subr.bf16.mxu0 0
    %669 = vmatpush2.bf16.msra.mxu0 0
    %670 = vmatprep.subr.bf16.mxu0 0
    %671 = vmatpush2.bf16.msra.mxu0 0
    %672 = vmatprep.subr.bf16.mxu0 0
    %673 = vmatpush2.bf16.msra.mxu0 0
    %674 = vmatprep.subr.bf16.mxu0 0
    %675 = vmatpush2.bf16.msra.mxu0 0
    %676 = vmatprep.mubr.bf16.mxu0 0
    %677 = vmatmul.mubr.bf16.gmra.mxu0 %v324
    %v678 = vpop.f32.mrf.mxu0
    %v679 = vadd.f32 %v310, %v678
    %v680 = vpop.f32.mrf.mxu0
    %v681 = vpop.f32.mrf.mxu0
    %v682 = vadd.f32 %v315, %v681
    %v683 = vpop.f32.mrf.mxu0
    %684 = vdwg.mxu0
    %v685 = vmax.f32 %v679, 0.0
    %v686 = vmax.f32 %v682, 0.0
    %v687 = vmin.f32 %v685, 6.0
    %v688 = vmin.f32 %v686, 6.0
    %v689 = vpack.c.bf16 %v688, %v687
    %690 = vmatprep.subr.bf16.mxu0 0
    %691 = vmatpush1.bf16.msra.mxu0 0
    %692 = vmatprep.subr.bf16.mxu0 0
    %693 = vmatpush1.bf16.msra.mxu0 0
    %694 = vmatprep.subr.bf16.mxu0 0
    %695 = vmatpush1.bf16.msra.mxu0 0
    %696 = vmatprep.subr.bf16.mxu0 0
    %697 = vmatpush1.bf16.msra.mxu0 0
    %698 = vmatprep.subr.bf16.mxu0 0
    %699 = vmatpush1.bf16.msra.mxu0 0
    %700 = vmatprep.subr.bf16.mxu0 0
    %701 = vmatpush1.bf16.msra.mxu0 0
    %702 = vmatprep.subr.bf16.mxu0 0
    %703 = vmatpush1.bf16.msra.mxu0 0
    %704 = vmatprep.subr.bf16.mxu0 0
    %705 = vmatpush1.bf16.msra.mxu0 %v689
    %706 = vmatprep.subr.bf16.mxu0 0
    %707 = vmatpush2.bf16.msra.mxu0 0
    %708 = vmatprep.subr.bf16.mxu0 0
    %709 = vmatpush2.bf16.msra.mxu0 0
    %710 = vmatprep.subr.bf16.mxu0 0
    %711 = vmatpush2.bf16.msra.mxu0 0
    %712 = vmatprep.subr.bf16.mxu0 0
    %713 = vmatpush2.bf16.msra.mxu0 0
    %714 = vmatprep.subr.bf16.mxu0 0
    %715 = vmatpush2.bf16.msra.mxu0 0
    %716 = vmatprep.subr.bf16.mxu0 0
    %717 = vmatpush2.bf16.msra.mxu0 0
    %718 = vmatprep.subr.bf16.mxu0 0
    %719 = vmatpush2.bf16.msra.mxu0 0
    %720 = vmatprep.subr.bf16.mxu0 0
    %721 = vmatpush2.bf16.msra.mxu0 0
    %722 = vmatprep.mubr.bf16.mxu0 0
    %723 = vmatmul.mubr.bf16.gmra.mxu0 %v378
    %v724 = vpop.f32.mrf.mxu0
    %v725 = vadd.f32 %v375, %v724
    %v726 = vpop.f32.mrf.mxu0
    %v727 = vpop.f32.mrf.mxu0
    %v728 = vpop.f32.mrf.mxu0
    %729 = vdwg.mxu0
    %v730 = vmax.f32 %v725, 0.0
    %v731 = vmin.f32 %v730, 6.0
    %v732 = vpack.c.bf16 %v731, %v731
    %v734 = vsel %vm96, %v732, 0
    %736 = vmatprep.subr.bf16.mxu0 0
    %737 = vmatpush1.bf16.msra.mxu0 0
    %738 = vmatprep.subr.bf16.mxu0 0
    %739 = vmatpush1.bf16.msra.mxu0 0
    %740 = vmatprep.subr.bf16.mxu0 0
    %741 = vmatpush1.bf16.msra.mxu0 0
    %742 = vmatprep.subr.bf16.mxu0 0
    %743 = vmatpush1.bf16.msra.mxu0 0
    %744 = vmatprep.subr.bf16.mxu0 0
    %745 = vmatpush1.bf16.msra.mxu0 0
    %746 = vmatprep.subr.bf16.mxu0 0
    %747 = vmatpush1.bf16.msra.mxu0 0
    %748 = vmatprep.subr.bf16.mxu0 0
    %749 = vmatpush1.bf16.msra.mxu0 0
    %750 = vmatprep.subr.bf16.mxu0 0
    %751 = vmatpush1.bf16.msra.mxu0 %v734
    %752 = vmatprep.subr.bf16.mxu0 0
    %753 = vmatpush2.bf16.msra.mxu0 0
    %754 = vmatprep.subr.bf16.mxu0 0
    %755 = vmatpush2.bf16.msra.mxu0 0
    %756 = vmatprep.subr.bf16.mxu0 0
    %757 = vmatpush2.bf16.msra.mxu0 0
    %758 = vmatprep.subr.bf16.mxu0 0
    %759 = vmatpush2.bf16.msra.mxu0 0
    %760 = vmatprep.subr.bf16.mxu0 0
    %761 = vmatpush2.bf16.msra.mxu0 0
    %762 = vmatprep.subr.bf16.mxu0 0
    %763 = vmatpush2.bf16.msra.mxu0 0
    %764 = vmatprep.subr.bf16.mxu0 0
    %765 = vmatpush2.bf16.msra.mxu0 0
    %766 = vmatprep.subr.bf16.mxu0 0
    %767 = vmatpush2.bf16.msra.mxu0 0
    %768 = vmatprep.mubr.bf16.mxu0 0
    %769 = vmatmul.mubr.bf16.gmra.mxu0 %v424
    %v770 = vpop.f32.mrf.mxu0
    %v771 = vadd.f32 0.0, %v770
    %v772 = vpop.f32.mrf.mxu0
    %v773 = vpop.f32.mrf.mxu0
    %v774 = vpop.f32.mrf.mxu0
    %775 = vdwg.mxu0
    %v776 = vadd.f32 %v475, %v771
    %v777 = vadd.f32 %v776, %v473
    %s778 = sadd.s32 %s76, 2
    %s779 = smul.u32 %s778, 8
    %s780 = scalar_lea.vmem %s13, %s779
    %781 = vst [vmem:[%s780] sm:$0xff] %v777
    %v782 = vpack.c.bf16 %v777, %v777
    %v784 = vsel %vm96, %v782, 0
    %786 = vmatprep.subr.bf16.mxu0 0
    %787 = vmatpush1.bf16.msra.mxu0 0
    %788 = vmatprep.subr.bf16.mxu0 0
    %789 = vmatpush1.bf16.msra.mxu0 0
    %790 = vmatprep.subr.bf16.mxu0 0
    %791 = vmatpush1.bf16.msra.mxu0 0
    %792 = vmatprep.subr.bf16.mxu0 0
    %793 = vmatpush1.bf16.msra.mxu0 0
    %794 = vmatprep.subr.bf16.mxu0 0
    %795 = vmatpush1.bf16.msra.mxu0 0
    %796 = vmatprep.subr.bf16.mxu0 0
    %797 = vmatpush1.bf16.msra.mxu0 0
    %798 = vmatprep.subr.bf16.mxu0 0
    %799 = vmatpush1.bf16.msra.mxu0 0
    %800 = vmatprep.subr.bf16.mxu0 0
    %801 = vmatpush1.bf16.msra.mxu0 %v784
    %802 = vmatprep.subr.bf16.mxu0 0
    %803 = vmatpush2.bf16.msra.mxu0 0
    %804 = vmatprep.subr.bf16.mxu0 0
    %805 = vmatpush2.bf16.msra.mxu0 0
    %806 = vmatprep.subr.bf16.mxu0 0
    %807 = vmatpush2.bf16.msra.mxu0 0
    %808 = vmatprep.subr.bf16.mxu0 0
    %809 = vmatpush2.bf16.msra.mxu0 0
    %810 = vmatprep.subr.bf16.mxu0 0
    %811 = vmatpush2.bf16.msra.mxu0 0
    %812 = vmatprep.subr.bf16.mxu0 0
    %813 = vmatpush2.bf16.msra.mxu0 0
    %814 = vmatprep.subr.bf16.mxu0 0
    %815 = vmatpush2.bf16.msra.mxu0 0
    %816 = vmatprep.subr.bf16.mxu0 0
    %817 = vmatpush2.bf16.msra.mxu0 0
    %818 = vmatprep.mubr.bf16.mxu0 0
    %819 = vmatmul.mubr.bf16.gmra.mxu0 %v91
    %v820 = vpop.f32.mrf.mxu0
    %v821 = vadd.f32 0.0, %v820
    %v822 = vpop.f32.mrf.mxu0
    %v823 = vpop.f32.mrf.mxu0
    %v824 = vadd.f32 0.0, %v823
    %v825 = vpop.f32.mrf.mxu0
    %826 = vmatprep.mubr.bf16.mxu0 0
    %827 = vmatmul.mubr.bf16.gmra.mxu0 %v94
    %v828 = vpop.f32.mrf.mxu0
    %v829 = vadd.f32 0.0, %v828
    %v830 = vpop.f32.mrf.mxu0
    %v831 = vpop.f32.mrf.mxu0
    %v832 = vpop.f32.mrf.mxu0
    %833 = vdwg.mxu0
    %v834 = vtanh.pop %v821
    %v835 = vpack.c.bf16 %v834, %v834
    %v837 = vsel %vm159, %v835, 0
    %839 = vmatprep.subr.bf16.mxu0 0
    %840 = vmatpush1.bf16.msra.mxu0 0
    %841 = vmatprep.subr.bf16.mxu0 0
    %842 = vmatpush1.bf16.msra.mxu0 0
    %843 = vmatprep.subr.bf16.mxu0 0
    %844 = vmatpush1.bf16.msra.mxu0 0
    %845 = vmatprep.subr.bf16.mxu0 0
    %846 = vmatpush1.bf16.msra.mxu0 0
    %847 = vmatprep.subr.bf16.mxu0 0
    %848 = vmatpush1.bf16.msra.mxu0 0
    %849 = vmatprep.subr.bf16.mxu0 0
    %850 = vmatpush1.bf16.msra.mxu0 0
    %851 = vmatprep.subr.bf16.mxu0 0
    %852 = vmatpush1.bf16.msra.mxu0 0
    %853 = vmatprep.subr.bf16.mxu0 0
    %854 = vmatpush1.bf16.msra.mxu0 %v837
    %855 = vmatprep.subr.bf16.mxu0 0
    %856 = vmatpush2.bf16.msra.mxu0 0
    %857 = vmatprep.subr.bf16.mxu0 0
    %858 = vmatpush2.bf16.msra.mxu0 0
    %859 = vmatprep.subr.bf16.mxu0 0
    %860 = vmatpush2.bf16.msra.mxu0 0
    %861 = vmatprep.subr.bf16.mxu0 0
    %862 = vmatpush2.bf16.msra.mxu0 0
    %863 = vmatprep.subr.bf16.mxu0 0
    %864 = vmatpush2.bf16.msra.mxu0 0
    %865 = vmatprep.subr.bf16.mxu0 0
    %866 = vmatpush2.bf16.msra.mxu0 0
    %867 = vmatprep.subr.bf16.mxu0 0
    %868 = vmatpush2.bf16.msra.mxu0 0
    %869 = vmatprep.subr.bf16.mxu0 0
    %870 = vmatpush2.bf16.msra.mxu0 0
    %871 = vmatprep.mubr.bf16.mxu0 0
    %872 = vmatmul.mubr.bf16.gmra.mxu0 %v157
    %v873 = vpop.f32.mrf.mxu0
    %v874 = vadd.f32 0.0, %v873
    %v875 = vpop.f32.mrf.mxu0
    %v876 = vpop.f32.mrf.mxu0
    %v877 = vadd.f32 0.0, %v876
    %v878 = vpop.f32.mrf.mxu0
    %879 = vdwg.mxu0
    %v880 = vadd.f32 %v824, %v874
    %v881 = vadd.f32 %v829, %v877
    %v882 = vmax.f32 %v880, 0.0
    %v883 = vmax.f32 %v881, 0.0
    %v884 = vmin.f32 %v882, 6.0
    %v885 = vmin.f32 %v883, 6.0
    %v886 = vpack.c.bf16 %v885, %v884
    %887 = vmatprep.subr.bf16.mxu0 0
    %888 = vmatpush1.bf16.msra.mxu0 0
    %889 = vmatprep.subr.bf16.mxu0 0
    %890 = vmatpush1.bf16.msra.mxu0 0
    %891 = vmatprep.subr.bf16.mxu0 0
    %892 = vmatpush1.bf16.msra.mxu0 0
    %893 = vmatprep.subr.bf16.mxu0 0
    %894 = vmatpush1.bf16.msra.mxu0 0
    %895 = vmatprep.subr.bf16.mxu0 0
    %896 = vmatpush1.bf16.msra.mxu0 0
    %897 = vmatprep.subr.bf16.mxu0 0
    %898 = vmatpush1.bf16.msra.mxu0 0
    %899 = vmatprep.subr.bf16.mxu0 0
    %900 = vmatpush1.bf16.msra.mxu0 0
    %901 = vmatprep.subr.bf16.mxu0 0
    %902 = vmatpush1.bf16.msra.mxu0 %v886
    %903 = vmatprep.subr.bf16.mxu0 0
    %904 = vmatpush2.bf16.msra.mxu0 0
    %905 = vmatprep.subr.bf16.mxu0 0
    %906 = vmatpush2.bf16.msra.mxu0 0
    %907 = vmatprep.subr.bf16.mxu0 0
    %908 = vmatpush2.bf16.msra.mxu0 0
    %909 = vmatprep.subr.bf16.mxu0 0
    %910 = vmatpush2.bf16.msra.mxu0 0
    %911 = vmatprep.subr.bf16.mxu0 0
    %912 = vmatpush2.bf16.msra.mxu0 0
    %913 = vmatprep.subr.bf16.mxu0 0
    %914 = vmatpush2.bf16.msra.mxu0 0
    %915 = vmatprep.subr.bf16.mxu0 0
    %916 = vmatpush2.bf16.msra.mxu0 0
    %917 = vmatprep.subr.bf16.mxu0 0
    %918 = vmatpush2.bf16.msra.mxu0 0
    %919 = vmatprep.mubr.bf16.mxu0 0
    %920 = vmatmul.mubr.bf16.gmra.mxu0 %v243
    %v921 = vpop.f32.mrf.mxu0
    %v922 = vadd.f32 %v214, %v921
    %v923 = vpop.f32.mrf.mxu0
    %v924 = vpop.f32.mrf.mxu0
    %v925 = vadd.f32 %v219, %v924
    %v926 = vpop.f32.mrf.mxu0
    %927 = vmatprep.mubr.bf16.mxu0 0
    %928 = vmatmul.mubr.bf16.gmra.mxu0 %v246
    %v929 = vpop.f32.mrf.mxu0
    %v930 = vadd.f32 %v224, %v929
    %v931 = vpop.f32.mrf.mxu0
    %v932 = vpop.f32.mrf.mxu0
    %v933 = vadd.f32 %v229, %v932
    %v934 = vpop.f32.mrf.mxu0
    %935 = vdwg.mxu0
    %v936 = vmax.f32 %v922, 0.0
    %v937 = vmax.f32 %v925, 0.0
    %v938 = vmax.f32 %v930, 0.0
    %v939 = vmax.f32 %v933, 0.0
    %v940 = vmin.f32 %v936, 6.0
    %v941 = vmin.f32 %v937, 6.0
    %v942 = vmin.f32 %v938, 6.0
    %v943 = vmin.f32 %v939, 6.0
    %v944 = vpack.c.bf16 %v941, %v940
    %v945 = vpack.c.bf16 %v943, %v942
    %946 = vmatprep.subr.bf16.mxu0 0
    %947 = vmatpush1.bf16.msra.mxu0 0
    %948 = vmatprep.subr.bf16.mxu0 0
    %949 = vmatpush1.bf16.msra.mxu0 0
    %950 = vmatprep.subr.bf16.mxu0 0
    %951 = vmatpush1.bf16.msra.mxu0 0
    %952 = vmatprep.subr.bf16.mxu0 0
    %953 = vmatpush1.bf16.msra.mxu0 0
    %954 = vmatprep.subr.bf16.mxu0 0
    %955 = vmatpush1.bf16.msra.mxu0 0
    %956 = vmatprep.subr.bf16.mxu0 0
    %957 = vmatpush1.bf16.msra.mxu0 0
    %958 = vmatprep.subr.bf16.mxu0 0
    %959 = vmatpush1.bf16.msra.mxu0 %v945
    %960 = vmatprep.subr.bf16.mxu0 0
    %961 = vmatpush1.bf16.msra.mxu0 %v944
    %962 = vmatprep.subr.bf16.mxu0 0
    %963 = vmatpush2.bf16.msra.mxu0 0
    %964 = vmatprep.subr.bf16.mxu0 0
    %965 = vmatpush2.bf16.msra.mxu0 0
    %966 = vmatprep.subr.bf16.mxu0 0
    %967 = vmatpush2.bf16.msra.mxu0 0
    %968 = vmatprep.subr.bf16.mxu0 0
    %969 = vmatpush2.bf16.msra.mxu0 0
    %970 = vmatprep.subr.bf16.mxu0 0
    %971 = vmatpush2.bf16.msra.mxu0 0
    %972 = vmatprep.subr.bf16.mxu0 0
    %973 = vmatpush2.bf16.msra.mxu0 0
    %974 = vmatprep.subr.bf16.mxu0 0
    %975 = vmatpush2.bf16.msra.mxu0 0
    %976 = vmatprep.subr.bf16.mxu0 0
    %977 = vmatpush2.bf16.msra.mxu0 0
    %978 = vmatprep.mubr.bf16.mxu0 0
    %979 = vmatmul.mubr.bf16.gmra.mxu0 %v324
    %v980 = vpop.f32.mrf.mxu0
    %v981 = vadd.f32 %v310, %v980
    %v982 = vpop.f32.mrf.mxu0
    %v983 = vpop.f32.mrf.mxu0
    %v984 = vadd.f32 %v315, %v983
    %v985 = vpop.f32.mrf.mxu0
    %986 = vdwg.mxu0
    %v987 = vmax.f32 %v981, 0.0
    %v988 = vmax.f32 %v984, 0.0
    %v989 = vmin.f32 %v987, 6.0
    %v990 = vmin.f32 %v988, 6.0
    %v991 = vpack.c.bf16 %v990, %v989
    %992 = vmatprep.subr.bf16.mxu0 0
    %993 = vmatpush1.bf16.msra.mxu0 0
    %994 = vmatprep.subr.bf16.mxu0 0
    %995 = vmatpush1.bf16.msra.mxu0 0
    %996 = vmatprep.subr.bf16.mxu0 0
    %997 = vmatpush1.bf16.msra.mxu0 0
    %998 = vmatprep.subr.bf16.mxu0 0
    %999 = vmatpush1.bf16.msra.mxu0 0
    %1000 = vmatprep.subr.bf16.mxu0 0
    %1001 = vmatpush1.bf16.msra.mxu0 0
    %1002 = vmatprep.subr.bf16.mxu0 0
    %1003 = vmatpush1.bf16.msra.mxu0 0
    %1004 = vmatprep.subr.bf16.mxu0 0
    %1005 = vmatpush1.bf16.msra.mxu0 0
    %1006 = vmatprep.subr.bf16.mxu0 0
    %1007 = vmatpush1.bf16.msra.mxu0 %v991
    %1008 = vmatprep.subr.bf16.mxu0 0
    %1009 = vmatpush2.bf16.msra.mxu0 0
    %1010 = vmatprep.subr.bf16.mxu0 0
    %1011 = vmatpush2.bf16.msra.mxu0 0
    %1012 = vmatprep.subr.bf16.mxu0 0
    %1013 = vmatpush2.bf16.msra.mxu0 0
    %1014 = vmatprep.subr.bf16.mxu0 0
    %1015 = vmatpush2.bf16.msra.mxu0 0
    %1016 = vmatprep.subr.bf16.mxu0 0
    %1017 = vmatpush2.bf16.msra.mxu0 0
    %1018 = vmatprep.subr.bf16.mxu0 0
    %1019 = vmatpush2.bf16.msra.mxu0 0
    %1020 = vmatprep.subr.bf16.mxu0 0
    %1021 = vmatpush2.bf16.msra.mxu0 0
    %1022 = vmatprep.subr.bf16.mxu0 0
    %1023 = vmatpush2.bf16.msra.mxu0 0
    %1024 = vmatprep.mubr.bf16.mxu0 0
    %1025 = vmatmul.mubr.bf16.gmra.mxu0 %v378
    %v1026 = vpop.f32.mrf.mxu0
    %v1027 = vadd.f32 %v375, %v1026
    %v1028 = vpop.f32.mrf.mxu0
    %v1029 = vpop.f32.mrf.mxu0
    %v1030 = vpop.f32.mrf.mxu0
    %1031 = vdwg.mxu0
    %v1032 = vmax.f32 %v1027, 0.0
    %v1033 = vmin.f32 %v1032, 6.0
    %v1034 = vpack.c.bf16 %v1033, %v1033
    %v1036 = vsel %vm96, %v1034, 0
    %1038 = vmatprep.subr.bf16.mxu0 0
    %1039 = vmatpush1.bf16.msra.mxu0 0
    %1040 = vmatprep.subr.bf16.mxu0 0
    %1041 = vmatpush1.bf16.msra.mxu0 0
    %1042 = vmatprep.subr.bf16.mxu0 0
    %1043 = vmatpush1.bf16.msra.mxu0 0
    %1044 = vmatprep.subr.bf16.mxu0 0
    %1045 = vmatpush1.bf16.msra.mxu0 0
    %1046 = vmatprep.subr.bf16.mxu0 0
    %1047 = vmatpush1.bf16.msra.mxu0 0
    %1048 = vmatprep.subr.bf16.mxu0 0
    %1049 = vmatpush1.bf16.msra.mxu0 0
    %1050 = vmatprep.subr.bf16.mxu0 0
    %1051 = vmatpush1.bf16.msra.mxu0 0
    %1052 = vmatprep.subr.bf16.mxu0 0
    %1053 = vmatpush1.bf16.msra.mxu0 %v1036
    %1054 = vmatprep.subr.bf16.mxu0 0
    %1055 = vmatpush2.bf16.msra.mxu0 0
    %1056 = vmatprep.subr.bf16.mxu0 0
    %1057 = vmatpush2.bf16.msra.mxu0 0
    %1058 = vmatprep.subr.bf16.mxu0 0
    %1059 = vmatpush2.bf16.msra.mxu0 0
    %1060 = vmatprep.subr.bf16.mxu0 0
    %1061 = vmatpush2.bf16.msra.mxu0 0
    %1062 = vmatprep.subr.bf16.mxu0 0
    %1063 = vmatpush2.bf16.msra.mxu0 0
    %1064 = vmatprep.subr.bf16.mxu0 0
    %1065 = vmatpush2.bf16.msra.mxu0 0
    %1066 = vmatprep.subr.bf16.mxu0 0
    %1067 = vmatpush2.bf16.msra.mxu0 0
    %1068 = vmatprep.subr.bf16.mxu0 0
    %1069 = vmatpush2.bf16.msra.mxu0 0
    %1070 = vmatprep.mubr.bf16.mxu0 0
    %1071 = vmatmul.mubr.bf16.gmra.mxu0 %v424
    %v1072 = vpop.f32.mrf.mxu0
    %v1073 = vadd.f32 0.0, %v1072
    %v1074 = vpop.f32.mrf.mxu0
    %v1075 = vpop.f32.mrf.mxu0
    %v1076 = vpop.f32.mrf.mxu0
    %1077 = vdwg.mxu0
    %v1078 = vadd.f32 %v777, %v1073
    %v1079 = vadd.f32 %v1078, %v473
    %s1080 = sadd.s32 %s76, 3
    %s1081 = smul.u32 %s1080, 8
    %s1082 = scalar_lea.vmem %s13, %s1081
    %1083 = vst [vmem:[%s1082] sm:$0xff] %v1079
    %v1084 = vpack.c.bf16 %v1079, %v1079
    %v1086 = vsel %vm96, %v1084, 0
    %1088 = vmatprep.subr.bf16.mxu0 0
    %1089 = vmatpush1.bf16.msra.mxu0 0
    %1090 = vmatprep.subr.bf16.mxu0 0
    %1091 = vmatpush1.bf16.msra.mxu0 0
    %1092 = vmatprep.subr.bf16.mxu0 0
    %1093 = vmatpush1.bf16.msra.mxu0 0
    %1094 = vmatprep.subr.bf16.mxu0 0
    %1095 = vmatpush1.bf16.msra.mxu0 0
    %1096 = vmatprep.subr.bf16.mxu0 0
    %1097 = vmatpush1.bf16.msra.mxu0 0
    %1098 = vmatprep.subr.bf16.mxu0 0
    %1099 = vmatpush1.bf16.msra.mxu0 0
    %1100 = vmatprep.subr.bf16.mxu0 0
    %1101 = vmatpush1.bf16.msra.mxu0 0
    %1102 = vmatprep.subr.bf16.mxu0 0
    %1103 = vmatpush1.bf16.msra.mxu0 %v1086
    %1104 = vmatprep.subr.bf16.mxu0 0
    %1105 = vmatpush2.bf16.msra.mxu0 0
    %1106 = vmatprep.subr.bf16.mxu0 0
    %1107 = vmatpush2.bf16.msra.mxu0 0
    %1108 = vmatprep.subr.bf16.mxu0 0
    %1109 = vmatpush2.bf16.msra.mxu0 0
    %1110 = vmatprep.subr.bf16.mxu0 0
    %1111 = vmatpush2.bf16.msra.mxu0 0
    %1112 = vmatprep.subr.bf16.mxu0 0
    %1113 = vmatpush2.bf16.msra.mxu0 0
    %1114 = vmatprep.subr.bf16.mxu0 0
    %1115 = vmatpush2.bf16.msra.mxu0 0
    %1116 = vmatprep.subr.bf16.mxu0 0
    %1117 = vmatpush2.bf16.msra.mxu0 0
    %1118 = vmatprep.subr.bf16.mxu0 0
    %1119 = vmatpush2.bf16.msra.mxu0 0
    %1120 = vmatprep.mubr.bf16.mxu0 0
    %1121 = vmatmul.mubr.bf16.gmra.mxu0 %v91
    %v1122 = vpop.f32.mrf.mxu0
    %v1123 = vadd.f32 0.0, %v1122
    %v1124 = vpop.f32.mrf.mxu0
    %v1125 = vpop.f32.mrf.mxu0
    %v1126 = vadd.f32 0.0, %v1125
    %v1127 = vpop.f32.mrf.mxu0
    %1128 = vmatprep.mubr.bf16.mxu0 0
    %1129 = vmatmul.mubr.bf16.gmra.mxu0 %v94
    %v1130 = vpop.f32.mrf.mxu0
    %v1131 = vadd.f32 0.0, %v1130
    %v1132 = vpop.f32.mrf.mxu0
    %v1133 = vpop.f32.mrf.mxu0
    %v1134 = vpop.f32.mrf.mxu0
    %1135 = vdwg.mxu0
    %v1136 = vtanh.pop %v1123
    %v1137 = vpack.c.bf16 %v1136, %v1136
    %v1139 = vsel %vm159, %v1137, 0
    %1141 = vmatprep.subr.bf16.mxu0 0
    %1142 = vmatpush1.bf16.msra.mxu0 0
    %1143 = vmatprep.subr.bf16.mxu0 0
    %1144 = vmatpush1.bf16.msra.mxu0 0
    %1145 = vmatprep.subr.bf16.mxu0 0
    %1146 = vmatpush1.bf16.msra.mxu0 0
    %1147 = vmatprep.subr.bf16.mxu0 0
    %1148 = vmatpush1.bf16.msra.mxu0 0
    %1149 = vmatprep.subr.bf16.mxu0 0
    %1150 = vmatpush1.bf16.msra.mxu0 0
    %1151 = vmatprep.subr.bf16.mxu0 0
    %1152 = vmatpush1.bf16.msra.mxu0 0
    %1153 = vmatprep.subr.bf16.mxu0 0
    %1154 = vmatpush1.bf16.msra.mxu0 0
    %1155 = vmatprep.subr.bf16.mxu0 0
    %1156 = vmatpush1.bf16.msra.mxu0 %v1139
    %1157 = vmatprep.subr.bf16.mxu0 0
    %1158 = vmatpush2.bf16.msra.mxu0 0
    %1159 = vmatprep.subr.bf16.mxu0 0
    %1160 = vmatpush2.bf16.msra.mxu0 0
    %1161 = vmatprep.subr.bf16.mxu0 0
    %1162 = vmatpush2.bf16.msra.mxu0 0
    %1163 = vmatprep.subr.bf16.mxu0 0
    %1164 = vmatpush2.bf16.msra.mxu0 0
    %1165 = vmatprep.subr.bf16.mxu0 0
    %1166 = vmatpush2.bf16.msra.mxu0 0
    %1167 = vmatprep.subr.bf16.mxu0 0
    %1168 = vmatpush2.bf16.msra.mxu0 0
    %1169 = vmatprep.subr.bf16.mxu0 0
    %1170 = vmatpush2.bf16.msra.mxu0 0
    %1171 = vmatprep.subr.bf16.mxu0 0
    %1172 = vmatpush2.bf16.msra.mxu0 0
    %1173 = vmatprep.mubr.bf16.mxu0 0
    %1174 = vmatmul.mubr.bf16.gmra.mxu0 %v157
    %v1175 = vpop.f32.mrf.mxu0
    %v1176 = vadd.f32 0.0, %v1175
    %v1177 = vpop.f32.mrf.mxu0
    %v1178 = vpop.f32.mrf.mxu0
    %v1179 = vadd.f32 0.0, %v1178
    %v1180 = vpop.f32.mrf.mxu0
    %1181 = vdwg.mxu0
    %v1182 = vadd.f32 %v1126, %v1176
    %v1183 = vadd.f32 %v1131, %v1179
    %v1184 = vmax.f32 %v1182, 0.0
    %v1185 = vmax.f32 %v1183, 0.0
    %v1186 = vmin.f32 %v1184, 6.0
    %v1187 = vmin.f32 %v1185, 6.0
    %v1188 = vpack.c.bf16 %v1187, %v1186
    %1189 = vmatprep.subr.bf16.mxu0 0
    %1190 = vmatpush1.bf16.msra.mxu0 0
    %1191 = vmatprep.subr.bf16.mxu0 0
    %1192 = vmatpush1.bf16.msra.mxu0 0
    %1193 = vmatprep.subr.bf16.mxu0 0
    %1194 = vmatpush1.bf16.msra.mxu0 0
    %1195 = vmatprep.subr.bf16.mxu0 0
    %1196 = vmatpush1.bf16.msra.mxu0 0
    %1197 = vmatprep.subr.bf16.mxu0 0
    %1198 = vmatpush1.bf16.msra.mxu0 0
    %1199 = vmatprep.subr.bf16.mxu0 0
    %1200 = vmatpush1.bf16.msra.mxu0 0
    %1201 = vmatprep.subr.bf16.mxu0 0
    %1202 = vmatpush1.bf16.msra.mxu0 0
    %1203 = vmatprep.subr.bf16.mxu0 0
    %1204 = vmatpush1.bf16.msra.mxu0 %v1188
    %1205 = vmatprep.subr.bf16.mxu0 0
    %1206 = vmatpush2.bf16.msra.mxu0 0
    %1207 = vmatprep.subr.bf16.mxu0 0
    %1208 = vmatpush2.bf16.msra.mxu0 0
    %1209 = vmatprep.subr.bf16.mxu0 0
    %1210 = vmatpush2.bf16.msra.mxu0 0
    %1211 = vmatprep.subr.bf16.mxu0 0
    %1212 = vmatpush2.bf16.msra.mxu0 0
    %1213 = vmatprep.subr.bf16.mxu0 0
    %1214 = vmatpush2.bf16.msra.mxu0 0
    %1215 = vmatprep.subr.bf16.mxu0 0
    %1216 = vmatpush2.bf16.msra.mxu0 0
    %1217 = vmatprep.subr.bf16.mxu0 0
    %1218 = vmatpush2.bf16.msra.mxu0 0
    %1219 = vmatprep.subr.bf16.mxu0 0
    %1220 = vmatpush2.bf16.msra.mxu0 0
    %1221 = vmatprep.mubr.bf16.mxu0 0
    %1222 = vmatmul.mubr.bf16.gmra.mxu0 %v243
    %v1223 = vpop.f32.mrf.mxu0
    %v1224 = vadd.f32 %v214, %v1223
    %v1225 = vpop.f32.mrf.mxu0
    %v1226 = vpop.f32.mrf.mxu0
    %v1227 = vadd.f32 %v219, %v1226
    %v1228 = vpop.f32.mrf.mxu0
    %1229 = vmatprep.mubr.bf16.mxu0 0
    %1230 = vmatmul.mubr.bf16.gmra.mxu0 %v246
    %v1231 = vpop.f32.mrf.mxu0
    %v1232 = vadd.f32 %v224, %v1231
    %v1233 = vpop.f32.mrf.mxu0
    %v1234 = vpop.f32.mrf.mxu0
    %v1235 = vadd.f32 %v229, %v1234
    %v1236 = vpop.f32.mrf.mxu0
    %1237 = vdwg.mxu0
    %v1238 = vmax.f32 %v1224, 0.0
    %v1239 = vmax.f32 %v1227, 0.0
    %v1240 = vmax.f32 %v1232, 0.0
    %v1241 = vmax.f32 %v1235, 0.0
    %v1242 = vmin.f32 %v1238, 6.0
    %v1243 = vmin.f32 %v1239, 6.0
    %v1244 = vmin.f32 %v1240, 6.0
    %v1245 = vmin.f32 %v1241, 6.0
    %v1246 = vpack.c.bf16 %v1243, %v1242
    %v1247 = vpack.c.bf16 %v1245, %v1244
    %1248 = vmatprep.subr.bf16.mxu0 0
    %1249 = vmatpush1.bf16.msra.mxu0 0
    %1250 = vmatprep.subr.bf16.mxu0 0
    %1251 = vmatpush1.bf16.msra.mxu0 0
    %1252 = vmatprep.subr.bf16.mxu0 0
    %1253 = vmatpush1.bf16.msra.mxu0 0
    %1254 = vmatprep.subr.bf16.mxu0 0
    %1255 = vmatpush1.bf16.msra.mxu0 0
    %1256 = vmatprep.subr.bf16.mxu0 0
    %1257 = vmatpush1.bf16.msra.mxu0 0
    %1258 = vmatprep.subr.bf16.mxu0 0
    %1259 = vmatpush1.bf16.msra.mxu0 0
    %1260 = vmatprep.subr.bf16.mxu0 0
    %1261 = vmatpush1.bf16.msra.mxu0 %v1247
    %1262 = vmatprep.subr.bf16.mxu0 0
    %1263 = vmatpush1.bf16.msra.mxu0 %v1246
    %1264 = vmatprep.subr.bf16.mxu0 0
    %1265 = vmatpush2.bf16.msra.mxu0 0
    %1266 = vmatprep.subr.bf16.mxu0 0
    %1267 = vmatpush2.bf16.msra.mxu0 0
    %1268 = vmatprep.subr.bf16.mxu0 0
    %1269 = vmatpush2.bf16.msra.mxu0 0
    %1270 = vmatprep.subr.bf16.mxu0 0
    %1271 = vmatpush2.bf16.msra.mxu0 0
    %1272 = vmatprep.subr.bf16.mxu0 0
    %1273 = vmatpush2.bf16.msra.mxu0 0
    %1274 = vmatprep.subr.bf16.mxu0 0
    %1275 = vmatpush2.bf16.msra.mxu0 0
    %1276 = vmatprep.subr.bf16.mxu0 0
    %1277 = vmatpush2.bf16.msra.mxu0 0
    %1278 = vmatprep.subr.bf16.mxu0 0
    %1279 = vmatpush2.bf16.msra.mxu0 0
    %1280 = vmatprep.mubr.bf16.mxu0 0
    %1281 = vmatmul.mubr.bf16.gmra.mxu0 %v324
    %v1282 = vpop.f32.mrf.mxu0
    %v1283 = vadd.f32 %v310, %v1282
    %v1284 = vpop.f32.mrf.mxu0
    %v1285 = vpop.f32.mrf.mxu0
    %v1286 = vadd.f32 %v315, %v1285
    %v1287 = vpop.f32.mrf.mxu0
    %1288 = vdwg.mxu0
    %v1289 = vmax.f32 %v1283, 0.0
    %v1290 = vmax.f32 %v1286, 0.0
    %v1291 = vmin.f32 %v1289, 6.0
    %v1292 = vmin.f32 %v1290, 6.0
    %v1293 = vpack.c.bf16 %v1292, %v1291
    %1294 = vmatprep.subr.bf16.mxu0 0
    %1295 = vmatpush1.bf16.msra.mxu0 0
    %1296 = vmatprep.subr.bf16.mxu0 0
    %1297 = vmatpush1.bf16.msra.mxu0 0
    %1298 = vmatprep.subr.bf16.mxu0 0
    %1299 = vmatpush1.bf16.msra.mxu0 0
    %1300 = vmatprep.subr.bf16.mxu0 0
    %1301 = vmatpush1.bf16.msra.mxu0 0
    %1302 = vmatprep.subr.bf16.mxu0 0
    %1303 = vmatpush1.bf16.msra.mxu0 0
    %1304 = vmatprep.subr.bf16.mxu0 0
    %1305 = vmatpush1.bf16.msra.mxu0 0
    %1306 = vmatprep.subr.bf16.mxu0 0
    %1307 = vmatpush1.bf16.msra.mxu0 0
    %1308 = vmatprep.subr.bf16.mxu0 0
    %1309 = vmatpush1.bf16.msra.mxu0 %v1293
    %1310 = vmatprep.subr.bf16.mxu0 0
    %1311 = vmatpush2.bf16.msra.mxu0 0
    %1312 = vmatprep.subr.bf16.mxu0 0
    %1313 = vmatpush2.bf16.msra.mxu0 0
    %1314 = vmatprep.subr.bf16.mxu0 0
    %1315 = vmatpush2.bf16.msra.mxu0 0
    %1316 = vmatprep.subr.bf16.mxu0 0
    %1317 = vmatpush2.bf16.msra.mxu0 0
    %1318 = vmatprep.subr.bf16.mxu0 0
    %1319 = vmatpush2.bf16.msra.mxu0 0
    %1320 = vmatprep.subr.bf16.mxu0 0
    %1321 = vmatpush2.bf16.msra.mxu0 0
    %1322 = vmatprep.subr.bf16.mxu0 0
    %1323 = vmatpush2.bf16.msra.mxu0 0
    %1324 = vmatprep.subr.bf16.mxu0 0
    %1325 = vmatpush2.bf16.msra.mxu0 0
    %1326 = vmatprep.mubr.bf16.mxu0 0
    %1327 = vmatmul.mubr.bf16.gmra.mxu0 %v378
    %v1328 = vpop.f32.mrf.mxu0
    %v1329 = vadd.f32 %v375, %v1328
    %v1330 = vpop.f32.mrf.mxu0
    %v1331 = vpop.f32.mrf.mxu0
    %v1332 = vpop.f32.mrf.mxu0
    %1333 = vdwg.mxu0
    %v1334 = vmax.f32 %v1329, 0.0
    %v1335 = vmin.f32 %v1334, 6.0
    %v1336 = vpack.c.bf16 %v1335, %v1335
    %v1338 = vsel %vm96, %v1336, 0
    %1340 = vmatprep.subr.bf16.mxu0 0
    %1341 = vmatpush1.bf16.msra.mxu0 0
    %1342 = vmatprep.subr.bf16.mxu0 0
    %1343 = vmatpush1.bf16.msra.mxu0 0
    %1344 = vmatprep.subr.bf16.mxu0 0
    %1345 = vmatpush1.bf16.msra.mxu0 0
    %1346 = vmatprep.subr.bf16.mxu0 0
    %1347 = vmatpush1.bf16.msra.mxu0 0
    %1348 = vmatprep.subr.bf16.mxu0 0
    %1349 = vmatpush1.bf16.msra.mxu0 0
    %1350 = vmatprep.subr.bf16.mxu0 0
    %1351 = vmatpush1.bf16.msra.mxu0 0
    %1352 = vmatprep.subr.bf16.mxu0 0
    %1353 = vmatpush1.bf16.msra.mxu0 0
    %1354 = vmatprep.subr.bf16.mxu0 0
    %1355 = vmatpush1.bf16.msra.mxu0 %v1338
    %1356 = vmatprep.subr.bf16.mxu0 0
    %1357 = vmatpush2.bf16.msra.mxu0 0
    %1358 = vmatprep.subr.bf16.mxu0 0
    %1359 = vmatpush2.bf16.msra.mxu0 0
    %1360 = vmatprep.subr.bf16.mxu0 0
    %1361 = vmatpush2.bf16.msra.mxu0 0
    %1362 = vmatprep.subr.bf16.mxu0 0
    %1363 = vmatpush2.bf16.msra.mxu0 0
    %1364 = vmatprep.subr.bf16.mxu0 0
    %1365 = vmatpush2.bf16.msra.mxu0 0
    %1366 = vmatprep.subr.bf16.mxu0 0
    %1367 = vmatpush2.bf16.msra.mxu0 0
    %1368 = vmatprep.subr.bf16.mxu0 0
    %1369 = vmatpush2.bf16.msra.mxu0 0
    %1370 = vmatprep.subr.bf16.mxu0 0
    %1371 = vmatpush2.bf16.msra.mxu0 0
    %1372 = vmatprep.mubr.bf16.mxu0 0
    %1373 = vmatmul.mubr.bf16.gmra.mxu0 %v424
    %v1374 = vpop.f32.mrf.mxu0
    %v1375 = vadd.f32 0.0, %v1374
    %v1376 = vpop.f32.mrf.mxu0
    %v1377 = vpop.f32.mrf.mxu0
    %v1378 = vpop.f32.mrf.mxu0
    %1379 = vdwg.mxu0
    %v1380 = vadd.f32 %v1079, %v1375
    %v1381 = vadd.f32 %v1380, %v473
    %s1382 = sadd.s32 %s76, 4
    %s1383 = smul.u32 %s1382, 8
    %s1384 = scalar_lea.vmem %s13, %s1383
    %1385 = vst [vmem:[%s1384] sm:$0xff] %v1381
    %v1386 = vpack.c.bf16 %v1381, %v1381
    %v1388 = vsel %vm96, %v1386, 0
    %1390 = vmatprep.subr.bf16.mxu0 0
    %1391 = vmatpush1.bf16.msra.mxu0 0
    %1392 = vmatprep.subr.bf16.mxu0 0
    %1393 = vmatpush1.bf16.msra.mxu0 0
    %1394 = vmatprep.subr.bf16.mxu0 0
    %1395 = vmatpush1.bf16.msra.mxu0 0
    %1396 = vmatprep.subr.bf16.mxu0 0
    %1397 = vmatpush1.bf16.msra.mxu0 0
    %1398 = vmatprep.subr.bf16.mxu0 0
    %1399 = vmatpush1.bf16.msra.mxu0 0
    %1400 = vmatprep.subr.bf16.mxu0 0
    %1401 = vmatpush1.bf16.msra.mxu0 0
    %1402 = vmatprep.subr.bf16.mxu0 0
    %1403 = vmatpush1.bf16.msra.mxu0 0
    %1404 = vmatprep.subr.bf16.mxu0 0
    %1405 = vmatpush1.bf16.msra.mxu0 %v1388
    %1406 = vmatprep.subr.bf16.mxu0 0
    %1407 = vmatpush2.bf16.msra.mxu0 0
    %1408 = vmatprep.subr.bf16.mxu0 0
    %1409 = vmatpush2.bf16.msra.mxu0 0
    %1410 = vmatprep.subr.bf16.mxu0 0
    %1411 = vmatpush2.bf16.msra.mxu0 0
    %1412 = vmatprep.subr.bf16.mxu0 0
    %1413 = vmatpush2.bf16.msra.mxu0 0
    %1414 = vmatprep.subr.bf16.mxu0 0
    %1415 = vmatpush2.bf16.msra.mxu0 0
    %1416 = vmatprep.subr.bf16.mxu0 0
    %1417 = vmatpush2.bf16.msra.mxu0 0
    %1418 = vmatprep.subr.bf16.mxu0 0
    %1419 = vmatpush2.bf16.msra.mxu0 0
    %1420 = vmatprep.subr.bf16.mxu0 0
    %1421 = vmatpush2.bf16.msra.mxu0 0
    %1422 = vmatprep.mubr.bf16.mxu0 0
    %1423 = vmatmul.mubr.bf16.gmra.mxu0 %v91
    %v1424 = vpop.f32.mrf.mxu0
    %v1425 = vadd.f32 0.0, %v1424
    %v1426 = vpop.f32.mrf.mxu0
    %v1427 = vpop.f32.mrf.mxu0
    %v1428 = vadd.f32 0.0, %v1427
    %v1429 = vpop.f32.mrf.mxu0
    %1430 = vmatprep.mubr.bf16.mxu0 0
    %1431 = vmatmul.mubr.bf16.gmra.mxu0 %v94
    %v1432 = vpop.f32.mrf.mxu0
    %v1433 = vadd.f32 0.0, %v1432
    %v1434 = vpop.f32.mrf.mxu0
    %v1435 = vpop.f32.mrf.mxu0
    %v1436 = vpop.f32.mrf.mxu0
    %1437 = vdwg.mxu0
    %v1438 = vtanh.pop %v1425
    %v1439 = vpack.c.bf16 %v1438, %v1438
    %v1441 = vsel %vm159, %v1439, 0
    %1443 = vmatprep.subr.bf16.mxu0 0
    %1444 = vmatpush1.bf16.msra.mxu0 0
    %1445 = vmatprep.subr.bf16.mxu0 0
    %1446 = vmatpush1.bf16.msra.mxu0 0
    %1447 = vmatprep.subr.bf16.mxu0 0
    %1448 = vmatpush1.bf16.msra.mxu0 0
    %1449 = vmatprep.subr.bf16.mxu0 0
    %1450 = vmatpush1.bf16.msra.mxu0 0
    %1451 = vmatprep.subr.bf16.mxu0 0
    %1452 = vmatpush1.bf16.msra.mxu0 0
    %1453 = vmatprep.subr.bf16.mxu0 0
    %1454 = vmatpush1.bf16.msra.mxu0 0
    %1455 = vmatprep.subr.bf16.mxu0 0
    %1456 = vmatpush1.bf16.msra.mxu0 0
    %1457 = vmatprep.subr.bf16.mxu0 0
    %1458 = vmatpush1.bf16.msra.mxu0 %v1441
    %1459 = vmatprep.subr.bf16.mxu0 0
    %1460 = vmatpush2.bf16.msra.mxu0 0
    %1461 = vmatprep.subr.bf16.mxu0 0
    %1462 = vmatpush2.bf16.msra.mxu0 0
    %1463 = vmatprep.subr.bf16.mxu0 0
    %1464 = vmatpush2.bf16.msra.mxu0 0
    %1465 = vmatprep.subr.bf16.mxu0 0
    %1466 = vmatpush2.bf16.msra.mxu0 0
    %1467 = vmatprep.subr.bf16.mxu0 0
    %1468 = vmatpush2.bf16.msra.mxu0 0
    %1469 = vmatprep.subr.bf16.mxu0 0
    %1470 = vmatpush2.bf16.msra.mxu0 0
    %1471 = vmatprep.subr.bf16.mxu0 0
    %1472 = vmatpush2.bf16.msra.mxu0 0
    %1473 = vmatprep.subr.bf16.mxu0 0
    %1474 = vmatpush2.bf16.msra.mxu0 0
    %1475 = vmatprep.mubr.bf16.mxu0 0
    %1476 = vmatmul.mubr.bf16.gmra.mxu0 %v157
    %v1477 = vpop.f32.mrf.mxu0
    %v1478 = vadd.f32 0.0, %v1477
    %v1479 = vpop.f32.mrf.mxu0
    %v1480 = vpop.f32.mrf.mxu0
    %v1481 = vadd.f32 0.0, %v1480
    %v1482 = vpop.f32.mrf.mxu0
    %1483 = vdwg.mxu0
    %v1484 = vadd.f32 %v1428, %v1478
    %v1485 = vadd.f32 %v1433, %v1481
    %v1486 = vmax.f32 %v1484, 0.0
    %v1487 = vmax.f32 %v1485, 0.0
    %v1488 = vmin.f32 %v1486, 6.0
    %v1489 = vmin.f32 %v1487, 6.0
    %v1490 = vpack.c.bf16 %v1489, %v1488
    %1491 = vmatprep.subr.bf16.mxu0 0
    %1492 = vmatpush1.bf16.msra.mxu0 0
    %1493 = vmatprep.subr.bf16.mxu0 0
    %1494 = vmatpush1.bf16.msra.mxu0 0
    %1495 = vmatprep.subr.bf16.mxu0 0
    %1496 = vmatpush1.bf16.msra.mxu0 0
    %1497 = vmatprep.subr.bf16.mxu0 0
    %1498 = vmatpush1.bf16.msra.mxu0 0
    %1499 = vmatprep.subr.bf16.mxu0 0
    %1500 = vmatpush1.bf16.msra.mxu0 0
    %1501 = vmatprep.subr.bf16.mxu0 0
    %1502 = vmatpush1.bf16.msra.mxu0 0
    %1503 = vmatprep.subr.bf16.mxu0 0
    %1504 = vmatpush1.bf16.msra.mxu0 0
    %1505 = vmatprep.subr.bf16.mxu0 0
    %1506 = vmatpush1.bf16.msra.mxu0 %v1490
    %1507 = vmatprep.subr.bf16.mxu0 0
    %1508 = vmatpush2.bf16.msra.mxu0 0
    %1509 = vmatprep.subr.bf16.mxu0 0
    %1510 = vmatpush2.bf16.msra.mxu0 0
    %1511 = vmatprep.subr.bf16.mxu0 0
    %1512 = vmatpush2.bf16.msra.mxu0 0
    %1513 = vmatprep.subr.bf16.mxu0 0
    %1514 = vmatpush2.bf16.msra.mxu0 0
    %1515 = vmatprep.subr.bf16.mxu0 0
    %1516 = vmatpush2.bf16.msra.mxu0 0
    %1517 = vmatprep.subr.bf16.mxu0 0
    %1518 = vmatpush2.bf16.msra.mxu0 0
    %1519 = vmatprep.subr.bf16.mxu0 0
    %1520 = vmatpush2.bf16.msra.mxu0 0
    %1521 = vmatprep.subr.bf16.mxu0 0
    %1522 = vmatpush2.bf16.msra.mxu0 0
    %1523 = vmatprep.mubr.bf16.mxu0 0
    %1524 = vmatmul.mubr.bf16.gmra.mxu0 %v243
    %v1525 = vpop.f32.mrf.mxu0
    %v1526 = vadd.f32 %v214, %v1525
    %v1527 = vpop.f32.mrf.mxu0
    %v1528 = vpop.f32.mrf.mxu0
    %v1529 = vadd.f32 %v219, %v1528
    %v1530 = vpop.f32.mrf.mxu0
    %1531 = vmatprep.mubr.bf16.mxu0 0
    %1532 = vmatmul.mubr.bf16.gmra.mxu0 %v246
    %v1533 = vpop.f32.mrf.mxu0
    %v1534 = vadd.f32 %v224, %v1533
    %v1535 = vpop.f32.mrf.mxu0
    %v1536 = vpop.f32.mrf.mxu0
    %v1537 = vadd.f32 %v229, %v1536
    %v1538 = vpop.f32.mrf.mxu0
    %1539 = vdwg.mxu0
    %v1540 = vmax.f32 %v1526, 0.0
    %v1541 = vmax.f32 %v1529, 0.0
    %v1542 = vmax.f32 %v1534, 0.0
    %v1543 = vmax.f32 %v1537, 0.0
    %v1544 = vmin.f32 %v1540, 6.0
    %v1545 = vmin.f32 %v1541, 6.0
    %v1546 = vmin.f32 %v1542, 6.0
    %v1547 = vmin.f32 %v1543, 6.0
    %v1548 = vpack.c.bf16 %v1545, %v1544
    %v1549 = vpack.c.bf16 %v1547, %v1546
    %1550 = vmatprep.subr.bf16.mxu0 0
    %1551 = vmatpush1.bf16.msra.mxu0 0
    %1552 = vmatprep.subr.bf16.mxu0 0
    %1553 = vmatpush1.bf16.msra.mxu0 0
    %1554 = vmatprep.subr.bf16.mxu0 0
    %1555 = vmatpush1.bf16.msra.mxu0 0
    %1556 = vmatprep.subr.bf16.mxu0 0
    %1557 = vmatpush1.bf16.msra.mxu0 0
    %1558 = vmatprep.subr.bf16.mxu0 0
    %1559 = vmatpush1.bf16.msra.mxu0 0
    %1560 = vmatprep.subr.bf16.mxu0 0
    %1561 = vmatpush1.bf16.msra.mxu0 0
    %1562 = vmatprep.subr.bf16.mxu0 0
    %1563 = vmatpush1.bf16.msra.mxu0 %v1549
    %1564 = vmatprep.subr.bf16.mxu0 0
    %1565 = vmatpush1.bf16.msra.mxu0 %v1548
    %1566 = vmatprep.subr.bf16.mxu0 0
    %1567 = vmatpush2.bf16.msra.mxu0 0
    %1568 = vmatprep.subr.bf16.mxu0 0
    %1569 = vmatpush2.bf16.msra.mxu0 0
    %1570 = vmatprep.subr.bf16.mxu0 0
    %1571 = vmatpush2.bf16.msra.mxu0 0
    %1572 = vmatprep.subr.bf16.mxu0 0
    %1573 = vmatpush2.bf16.msra.mxu0 0
    %1574 = vmatprep.subr.bf16.mxu0 0
    %1575 = vmatpush2.bf16.msra.mxu0 0
    %1576 = vmatprep.subr.bf16.mxu0 0
    %1577 = vmatpush2.bf16.msra.mxu0 0
    %1578 = vmatprep.subr.bf16.mxu0 0
    %1579 = vmatpush2.bf16.msra.mxu0 0
    %1580 = vmatprep.subr.bf16.mxu0 0
    %1581 = vmatpush2.bf16.msra.mxu0 0
    %1582 = vmatprep.mubr.bf16.mxu0 0
    %1583 = vmatmul.mubr.bf16.gmra.mxu0 %v324
    %v1584 = vpop.f32.mrf.mxu0
    %v1585 = vadd.f32 %v310, %v1584
    %v1586 = vpop.f32.mrf.mxu0
    %v1587 = vpop.f32.mrf.mxu0
    %v1588 = vadd.f32 %v315, %v1587
    %v1589 = vpop.f32.mrf.mxu0
    %1590 = vdwg.mxu0
    %v1591 = vmax.f32 %v1585, 0.0
    %v1592 = vmax.f32 %v1588, 0.0
    %v1593 = vmin.f32 %v1591, 6.0
    %v1594 = vmin.f32 %v1592, 6.0
    %v1595 = vpack.c.bf16 %v1594, %v1593
    %1596 = vmatprep.subr.bf16.mxu0 0
    %1597 = vmatpush1.bf16.msra.mxu0 0
    %1598 = vmatprep.subr.bf16.mxu0 0
    %1599 = vmatpush1.bf16.msra.mxu0 0
    %1600 = vmatprep.subr.bf16.mxu0 0
    %1601 = vmatpush1.bf16.msra.mxu0 0
    %1602 = vmatprep.subr.bf16.mxu0 0
    %1603 = vmatpush1.bf16.msra.mxu0 0
    %1604 = vmatprep.subr.bf16.mxu0 0
    %1605 = vmatpush1.bf16.msra.mxu0 0
    %1606 = vmatprep.subr.bf16.mxu0 0
    %1607 = vmatpush1.bf16.msra.mxu0 0
    %1608 = vmatprep.subr.bf16.mxu0 0
    %1609 = vmatpush1.bf16.msra.mxu0 0
    %1610 = vmatprep.subr.bf16.mxu0 0
    %1611 = vmatpush1.bf16.msra.mxu0 %v1595
    %1612 = vmatprep.subr.bf16.mxu0 0
    %1613 = vmatpush2.bf16.msra.mxu0 0
    %1614 = vmatprep.subr.bf16.mxu0 0
    %1615 = vmatpush2.bf16.msra.mxu0 0
    %1616 = vmatprep.subr.bf16.mxu0 0
    %1617 = vmatpush2.bf16.msra.mxu0 0
    %1618 = vmatprep.subr.bf16.mxu0 0
    %1619 = vmatpush2.bf16.msra.mxu0 0
    %1620 = vmatprep.subr.bf16.mxu0 0
    %1621 = vmatpush2.bf16.msra.mxu0 0
    %1622 = vmatprep.subr.bf16.mxu0 0
    %1623 = vmatpush2.bf16.msra.mxu0 0
    %1624 = vmatprep.subr.bf16.mxu0 0
    %1625 = vmatpush2.bf16.msra.mxu0 0
    %1626 = vmatprep.subr.bf16.mxu0 0
    %1627 = vmatpush2.bf16.msra.mxu0 0
    %1628 = vmatprep.mubr.bf16.mxu0 0
    %1629 = vmatmul.mubr.bf16.gmra.mxu0 %v378
    %v1630 = vpop.f32.mrf.mxu0
    %v1631 = vadd.f32 %v375, %v1630
    %v1632 = vpop.f32.mrf.mxu0
    %v1633 = vpop.f32.mrf.mxu0
    %v1634 = vpop.f32.mrf.mxu0
    %1635 = vdwg.mxu0
    %v1636 = vmax.f32 %v1631, 0.0
    %v1637 = vmin.f32 %v1636, 6.0
    %v1638 = vpack.c.bf16 %v1637, %v1637
    %v1640 = vsel %vm96, %v1638, 0
    %1642 = vmatprep.subr.bf16.mxu0 0
    %1643 = vmatpush1.bf16.msra.mxu0 0
    %1644 = vmatprep.subr.bf16.mxu0 0
    %1645 = vmatpush1.bf16.msra.mxu0 0
    %1646 = vmatprep.subr.bf16.mxu0 0
    %1647 = vmatpush1.bf16.msra.mxu0 0
    %1648 = vmatprep.subr.bf16.mxu0 0
    %1649 = vmatpush1.bf16.msra.mxu0 0
    %1650 = vmatprep.subr.bf16.mxu0 0
    %1651 = vmatpush1.bf16.msra.mxu0 0
    %1652 = vmatprep.subr.bf16.mxu0 0
    %1653 = vmatpush1.bf16.msra.mxu0 0
    %1654 = vmatprep.subr.bf16.mxu0 0
    %1655 = vmatpush1.bf16.msra.mxu0 0
    %1656 = vmatprep.subr.bf16.mxu0 0
    %1657 = vmatpush1.bf16.msra.mxu0 %v1640
    %1658 = vmatprep.subr.bf16.mxu0 0
    %1659 = vmatpush2.bf16.msra.mxu0 0
    %1660 = vmatprep.subr.bf16.mxu0 0
    %1661 = vmatpush2.bf16.msra.mxu0 0
    %1662 = vmatprep.subr.bf16.mxu0 0
    %1663 = vmatpush2.bf16.msra.mxu0 0
    %1664 = vmatprep.subr.bf16.mxu0 0
    %1665 = vmatpush2.bf16.msra.mxu0 0
    %1666 = vmatprep.subr.bf16.mxu0 0
    %1667 = vmatpush2.bf16.msra.mxu0 0
    %1668 = vmatprep.subr.bf16.mxu0 0
    %1669 = vmatpush2.bf16.msra.mxu0 0
    %1670 = vmatprep.subr.bf16.mxu0 0
    %1671 = vmatpush2.bf16.msra.mxu0 0
    %1672 = vmatprep.subr.bf16.mxu0 0
    %1673 = vmatpush2.bf16.msra.mxu0 0
    %1674 = vmatprep.mubr.bf16.mxu0 0
    %1675 = vmatmul.mubr.bf16.gmra.mxu0 %v424
    %v1676 = vpop.f32.mrf.mxu0
    %v1677 = vadd.f32 0.0, %v1676
    %v1678 = vpop.f32.mrf.mxu0
    %v1679 = vpop.f32.mrf.mxu0
    %v1680 = vpop.f32.mrf.mxu0
    %1681 = vdwg.mxu0
    %v1682 = vadd.f32 %v1381, %v1677
    %v1683 = vadd.f32 %v1682, %v473
    %s1684 = sadd.s32 %s76, 5
    %s1685 = smul.u32 %s1684, 8
    %s1686 = scalar_lea.vmem %s13, %s1685
    %1687 = vst [vmem:[%s1686] sm:$0xff] %v1683
    %v1688 = vpack.c.bf16 %v1683, %v1683
    %v1690 = vsel %vm96, %v1688, 0
    %1692 = vmatprep.subr.bf16.mxu0 0
    %1693 = vmatpush1.bf16.msra.mxu0 0
    %1694 = vmatprep.subr.bf16.mxu0 0
    %1695 = vmatpush1.bf16.msra.mxu0 0
    %1696 = vmatprep.subr.bf16.mxu0 0
    %1697 = vmatpush1.bf16.msra.mxu0 0
    %1698 = vmatprep.subr.bf16.mxu0 0
    %1699 = vmatpush1.bf16.msra.mxu0 0
    %1700 = vmatprep.subr.bf16.mxu0 0
    %1701 = vmatpush1.bf16.msra.mxu0 0
    %1702 = vmatprep.subr.bf16.mxu0 0
    %1703 = vmatpush1.bf16.msra.mxu0 0
    %1704 = vmatprep.subr.bf16.mxu0 0
    %1705 = vmatpush1.bf16.msra.mxu0 0
    %1706 = vmatprep.subr.bf16.mxu0 0
    %1707 = vmatpush1.bf16.msra.mxu0 %v1690
    %1708 = vmatprep.subr.bf16.mxu0 0
    %1709 = vmatpush2.bf16.msra.mxu0 0
    %1710 = vmatprep.subr.bf16.mxu0 0
    %1711 = vmatpush2.bf16.msra.mxu0 0
    %1712 = vmatprep.subr.bf16.mxu0 0
    %1713 = vmatpush2.bf16.msra.mxu0 0
    %1714 = vmatprep.subr.bf16.mxu0 0
    %1715 = vmatpush2.bf16.msra.mxu0 0
    %1716 = vmatprep.subr.bf16.mxu0 0
    %1717 = vmatpush2.bf16.msra.mxu0 0
    %1718 = vmatprep.subr.bf16.mxu0 0
    %1719 = vmatpush2.bf16.msra.mxu0 0
    %1720 = vmatprep.subr.bf16.mxu0 0
    %1721 = vmatpush2.bf16.msra.mxu0 0
    %1722 = vmatprep.subr.bf16.mxu0 0
    %1723 = vmatpush2.bf16.msra.mxu0 0
    %1724 = vmatprep.mubr.bf16.mxu0 0
    %1725 = vmatmul.mubr.bf16.gmra.mxu0 %v91
    %v1726 = vpop.f32.mrf.mxu0
    %v1727 = vadd.f32 0.0, %v1726
    %v1728 = vpop.f32.mrf.mxu0
    %v1729 = vpop.f32.mrf.mxu0
    %v1730 = vadd.f32 0.0, %v1729
    %v1731 = vpop.f32.mrf.mxu0
    %1732 = vmatprep.mubr.bf16.mxu0 0
    %1733 = vmatmul.mubr.bf16.gmra.mxu0 %v94
    %v1734 = vpop.f32.mrf.mxu0
    %v1735 = vadd.f32 0.0, %v1734
    %v1736 = vpop.f32.mrf.mxu0
    %v1737 = vpop.f32.mrf.mxu0
    %v1738 = vpop.f32.mrf.mxu0
    %1739 = vdwg.mxu0
    %v1740 = vtanh.pop %v1727
    %v1741 = vpack.c.bf16 %v1740, %v1740
    %v1743 = vsel %vm159, %v1741, 0
    %1745 = vmatprep.subr.bf16.mxu0 0
    %1746 = vmatpush1.bf16.msra.mxu0 0
    %1747 = vmatprep.subr.bf16.mxu0 0
    %1748 = vmatpush1.bf16.msra.mxu0 0
    %1749 = vmatprep.subr.bf16.mxu0 0
    %1750 = vmatpush1.bf16.msra.mxu0 0
    %1751 = vmatprep.subr.bf16.mxu0 0
    %1752 = vmatpush1.bf16.msra.mxu0 0
    %1753 = vmatprep.subr.bf16.mxu0 0
    %1754 = vmatpush1.bf16.msra.mxu0 0
    %1755 = vmatprep.subr.bf16.mxu0 0
    %1756 = vmatpush1.bf16.msra.mxu0 0
    %1757 = vmatprep.subr.bf16.mxu0 0
    %1758 = vmatpush1.bf16.msra.mxu0 0
    %1759 = vmatprep.subr.bf16.mxu0 0
    %1760 = vmatpush1.bf16.msra.mxu0 %v1743
    %1761 = vmatprep.subr.bf16.mxu0 0
    %1762 = vmatpush2.bf16.msra.mxu0 0
    %1763 = vmatprep.subr.bf16.mxu0 0
    %1764 = vmatpush2.bf16.msra.mxu0 0
    %1765 = vmatprep.subr.bf16.mxu0 0
    %1766 = vmatpush2.bf16.msra.mxu0 0
    %1767 = vmatprep.subr.bf16.mxu0 0
    %1768 = vmatpush2.bf16.msra.mxu0 0
    %1769 = vmatprep.subr.bf16.mxu0 0
    %1770 = vmatpush2.bf16.msra.mxu0 0
    %1771 = vmatprep.subr.bf16.mxu0 0
    %1772 = vmatpush2.bf16.msra.mxu0 0
    %1773 = vmatprep.subr.bf16.mxu0 0
    %1774 = vmatpush2.bf16.msra.mxu0 0
    %1775 = vmatprep.subr.bf16.mxu0 0
    %1776 = vmatpush2.bf16.msra.mxu0 0
    %1777 = vmatprep.mubr.bf16.mxu0 0
    %1778 = vmatmul.mubr.bf16.gmra.mxu0 %v157
    %v1779 = vpop.f32.mrf.mxu0
    %v1780 = vadd.f32 0.0, %v1779
    %v1781 = vpop.f32.mrf.mxu0
    %v1782 = vpop.f32.mrf.mxu0
    %v1783 = vadd.f32 0.0, %v1782
    %v1784 = vpop.f32.mrf.mxu0
    %1785 = vdwg.mxu0
    %v1786 = vadd.f32 %v1730, %v1780
    %v1787 = vadd.f32 %v1735, %v1783
    %v1788 = vmax.f32 %v1786, 0.0
    %v1789 = vmax.f32 %v1787, 0.0
    %v1790 = vmin.f32 %v1788, 6.0
    %v1791 = vmin.f32 %v1789, 6.0
    %v1792 = vpack.c.bf16 %v1791, %v1790
    %1793 = vmatprep.subr.bf16.mxu0 0
    %1794 = vmatpush1.bf16.msra.mxu0 0
    %1795 = vmatprep.subr.bf16.mxu0 0
    %1796 = vmatpush1.bf16.msra.mxu0 0
    %1797 = vmatprep.subr.bf16.mxu0 0
    %1798 = vmatpush1.bf16.msra.mxu0 0
    %1799 = vmatprep.subr.bf16.mxu0 0
    %1800 = vmatpush1.bf16.msra.mxu0 0
    %1801 = vmatprep.subr.bf16.mxu0 0
    %1802 = vmatpush1.bf16.msra.mxu0 0
    %1803 = vmatprep.subr.bf16.mxu0 0
    %1804 = vmatpush1.bf16.msra.mxu0 0
    %1805 = vmatprep.subr.bf16.mxu0 0
    %1806 = vmatpush1.bf16.msra.mxu0 0
    %1807 = vmatprep.subr.bf16.mxu0 0
    %1808 = vmatpush1.bf16.msra.mxu0 %v1792
    %1809 = vmatprep.subr.bf16.mxu0 0
    %1810 = vmatpush2.bf16.msra.mxu0 0
    %1811 = vmatprep.subr.bf16.mxu0 0
    %1812 = vmatpush2.bf16.msra.mxu0 0
    %1813 = vmatprep.subr.bf16.mxu0 0
    %1814 = vmatpush2.bf16.msra.mxu0 0
    %1815 = vmatprep.subr.bf16.mxu0 0
    %1816 = vmatpush2.bf16.msra.mxu0 0
    %1817 = vmatprep.subr.bf16.mxu0 0
    %1818 = vmatpush2.bf16.msra.mxu0 0
    %1819 = vmatprep.subr.bf16.mxu0 0
    %1820 = vmatpush2.bf16.msra.mxu0 0
    %1821 = vmatprep.subr.bf16.mxu0 0
    %1822 = vmatpush2.bf16.msra.mxu0 0
    %1823 = vmatprep.subr.bf16.mxu0 0
    %1824 = vmatpush2.bf16.msra.mxu0 0
    %1825 = vmatprep.mubr.bf16.mxu0 0
    %1826 = vmatmul.mubr.bf16.gmra.mxu0 %v243
    %v1827 = vpop.f32.mrf.mxu0
    %v1828 = vadd.f32 %v214, %v1827
    %v1829 = vpop.f32.mrf.mxu0
    %v1830 = vpop.f32.mrf.mxu0
    %v1831 = vadd.f32 %v219, %v1830
    %v1832 = vpop.f32.mrf.mxu0
    %1833 = vmatprep.mubr.bf16.mxu0 0
    %1834 = vmatmul.mubr.bf16.gmra.mxu0 %v246
    %v1835 = vpop.f32.mrf.mxu0
    %v1836 = vadd.f32 %v224, %v1835
    %v1837 = vpop.f32.mrf.mxu0
    %v1838 = vpop.f32.mrf.mxu0
    %v1839 = vadd.f32 %v229, %v1838
    %v1840 = vpop.f32.mrf.mxu0
    %1841 = vdwg.mxu0
    %v1842 = vmax.f32 %v1828, 0.0
    %v1843 = vmax.f32 %v1831, 0.0
    %v1844 = vmax.f32 %v1836, 0.0
    %v1845 = vmax.f32 %v1839, 0.0
    %v1846 = vmin.f32 %v1842, 6.0
    %v1847 = vmin.f32 %v1843, 6.0
    %v1848 = vmin.f32 %v1844, 6.0
    %v1849 = vmin.f32 %v1845, 6.0
    %v1850 = vpack.c.bf16 %v1847, %v1846
    %v1851 = vpack.c.bf16 %v1849, %v1848
    %1852 = vmatprep.subr.bf16.mxu0 0
    %1853 = vmatpush1.bf16.msra.mxu0 0
    %1854 = vmatprep.subr.bf16.mxu0 0
    %1855 = vmatpush1.bf16.msra.mxu0 0
    %1856 = vmatprep.subr.bf16.mxu0 0
    %1857 = vmatpush1.bf16.msra.mxu0 0
    %1858 = vmatprep.subr.bf16.mxu0 0
    %1859 = vmatpush1.bf16.msra.mxu0 0
    %1860 = vmatprep.subr.bf16.mxu0 0
    %1861 = vmatpush1.bf16.msra.mxu0 0
    %1862 = vmatprep.subr.bf16.mxu0 0
    %1863 = vmatpush1.bf16.msra.mxu0 0
    %1864 = vmatprep.subr.bf16.mxu0 0
    %1865 = vmatpush1.bf16.msra.mxu0 %v1851
    %1866 = vmatprep.subr.bf16.mxu0 0
    %1867 = vmatpush1.bf16.msra.mxu0 %v1850
    %1868 = vmatprep.subr.bf16.mxu0 0
    %1869 = vmatpush2.bf16.msra.mxu0 0
    %1870 = vmatprep.subr.bf16.mxu0 0
    %1871 = vmatpush2.bf16.msra.mxu0 0
    %1872 = vmatprep.subr.bf16.mxu0 0
    %1873 = vmatpush2.bf16.msra.mxu0 0
    %1874 = vmatprep.subr.bf16.mxu0 0
    %1875 = vmatpush2.bf16.msra.mxu0 0
    %1876 = vmatprep.subr.bf16.mxu0 0
    %1877 = vmatpush2.bf16.msra.mxu0 0
    %1878 = vmatprep.subr.bf16.mxu0 0
    %1879 = vmatpush2.bf16.msra.mxu0 0
    %1880 = vmatprep.subr.bf16.mxu0 0
    %1881 = vmatpush2.bf16.msra.mxu0 0
    %1882 = vmatprep.subr.bf16.mxu0 0
    %1883 = vmatpush2.bf16.msra.mxu0 0
    %1884 = vmatprep.mubr.bf16.mxu0 0
    %1885 = vmatmul.mubr.bf16.gmra.mxu0 %v324
    %v1886 = vpop.f32.mrf.mxu0
    %v1887 = vadd.f32 %v310, %v1886
    %v1888 = vpop.f32.mrf.mxu0
    %v1889 = vpop.f32.mrf.mxu0
    %v1890 = vadd.f32 %v315, %v1889
    %v1891 = vpop.f32.mrf.mxu0
    %1892 = vdwg.mxu0
    %v1893 = vmax.f32 %v1887, 0.0
    %v1894 = vmax.f32 %v1890, 0.0
    %v1895 = vmin.f32 %v1893, 6.0
    %v1896 = vmin.f32 %v1894, 6.0
    %v1897 = vpack.c.bf16 %v1896, %v1895
    %1898 = vmatprep.subr.bf16.mxu0 0
    %1899 = vmatpush1.bf16.msra.mxu0 0
    %1900 = vmatprep.subr.bf16.mxu0 0
    %1901 = vmatpush1.bf16.msra.mxu0 0
    %1902 = vmatprep.subr.bf16.mxu0 0
    %1903 = vmatpush1.bf16.msra.mxu0 0
    %1904 = vmatprep.subr.bf16.mxu0 0
    %1905 = vmatpush1.bf16.msra.mxu0 0
    %1906 = vmatprep.subr.bf16.mxu0 0
    %1907 = vmatpush1.bf16.msra.mxu0 0
    %1908 = vmatprep.subr.bf16.mxu0 0
    %1909 = vmatpush1.bf16.msra.mxu0 0
    %1910 = vmatprep.subr.bf16.mxu0 0
    %1911 = vmatpush1.bf16.msra.mxu0 0
    %1912 = vmatprep.subr.bf16.mxu0 0
    %1913 = vmatpush1.bf16.msra.mxu0 %v1897
    %1914 = vmatprep.subr.bf16.mxu0 0
    %1915 = vmatpush2.bf16.msra.mxu0 0
    %1916 = vmatprep.subr.bf16.mxu0 0
    %1917 = vmatpush2.bf16.msra.mxu0 0
    %1918 = vmatprep.subr.bf16.mxu0 0
    %1919 = vmatpush2.bf16.msra.mxu0 0
    %1920 = vmatprep.subr.bf16.mxu0 0
    %1921 = vmatpush2.bf16.msra.mxu0 0
    %1922 = vmatprep.subr.bf16.mxu0 0
    %1923 = vmatpush2.bf16.msra.mxu0 0
    %1924 = vmatprep.subr.bf16.mxu0 0
    %1925 = vmatpush2.bf16.msra.mxu0 0
    %1926 = vmatprep.subr.bf16.mxu0 0
    %1927 = vmatpush2.bf16.msra.mxu0 0
    %1928 = vmatprep.subr.bf16.mxu0 0
    %1929 = vmatpush2.bf16.msra.mxu0 0
    %1930 = vmatprep.mubr.bf16.mxu0 0
    %1931 = vmatmul.mubr.bf16.gmra.mxu0 %v378
    %v1932 = vpop.f32.mrf.mxu0
    %v1933 = vadd.f32 %v375, %v1932
    %v1934 = vpop.f32.mrf.mxu0
    %v1935 = vpop.f32.mrf.mxu0
    %v1936 = vpop.f32.mrf.mxu0
    %1937 = vdwg.mxu0
    %v1938 = vmax.f32 %v1933, 0.0
    %v1939 = vmin.f32 %v1938, 6.0
    %v1940 = vpack.c.bf16 %v1939, %v1939
    %v1942 = vsel %vm96, %v1940, 0
    %1944 = vmatprep.subr.bf16.mxu0 0
    %1945 = vmatpush1.bf16.msra.mxu0 0
    %1946 = vmatprep.subr.bf16.mxu0 0
    %1947 = vmatpush1.bf16.msra.mxu0 0
    %1948 = vmatprep.subr.bf16.mxu0 0
    %1949 = vmatpush1.bf16.msra.mxu0 0
    %1950 = vmatprep.subr.bf16.mxu0 0
    %1951 = vmatpush1.bf16.msra.mxu0 0
    %1952 = vmatprep.subr.bf16.mxu0 0
    %1953 = vmatpush1.bf16.msra.mxu0 0
    %1954 = vmatprep.subr.bf16.mxu0 0
    %1955 = vmatpush1.bf16.msra.mxu0 0
    %1956 = vmatprep.subr.bf16.mxu0 0
    %1957 = vmatpush1.bf16.msra.mxu0 0
    %1958 = vmatprep.subr.bf16.mxu0 0
    %1959 = vmatpush1.bf16.msra.mxu0 %v1942
    %1960 = vmatprep.subr.bf16.mxu0 0
    %1961 = vmatpush2.bf16.msra.mxu0 0
    %1962 = vmatprep.subr.bf16.mxu0 0
    %1963 = vmatpush2.bf16.msra.mxu0 0
    %1964 = vmatprep.subr.bf16.mxu0 0
    %1965 = vmatpush2.bf16.msra.mxu0 0
    %1966 = vmatprep.subr.bf16.mxu0 0
    %1967 = vmatpush2.bf16.msra.mxu0 0
    %1968 = vmatprep.subr.bf16.mxu0 0
    %1969 = vmatpush2.bf16.msra.mxu0 0
    %1970 = vmatprep.subr.bf16.mxu0 0
    %1971 = vmatpush2.bf16.msra.mxu0 0
    %1972 = vmatprep.subr.bf16.mxu0 0
    %1973 = vmatpush2.bf16.msra.mxu0 0
    %1974 = vmatprep.subr.bf16.mxu0 0
    %1975 = vmatpush2.bf16.msra.mxu0 0
    %1976 = vmatprep.mubr.bf16.mxu0 0
    %1977 = vmatmul.mubr.bf16.gmra.mxu0 %v424
    %v1978 = vpop.f32.mrf.mxu0
    %v1979 = vadd.f32 0.0, %v1978
    %v1980 = vpop.f32.mrf.mxu0
    %v1981 = vpop.f32.mrf.mxu0
    %v1982 = vpop.f32.mrf.mxu0
    %1983 = vdwg.mxu0
    %v1984 = vadd.f32 %v1683, %v1979
    %v1985 = vadd.f32 %v1984, %v473
    %s1986 = sadd.s32 %s76, 6
    %s1987 = smul.u32 %s1986, 8
    %s1988 = scalar_lea.vmem %s13, %s1987
    %1989 = vst [vmem:[%s1988] sm:$0xff] %v1985
    %v1990 = vpack.c.bf16 %v1985, %v1985
    %v1992 = vsel %vm96, %v1990, 0
    %1994 = vmatprep.subr.bf16.mxu0 0
    %1995 = vmatpush1.bf16.msra.mxu0 0
    %1996 = vmatprep.subr.bf16.mxu0 0
    %1997 = vmatpush1.bf16.msra.mxu0 0
    %1998 = vmatprep.subr.bf16.mxu0 0
    %1999 = vmatpush1.bf16.msra.mxu0 0
    %2000 = vmatprep.subr.bf16.mxu0 0
    %2001 = vmatpush1.bf16.msra.mxu0 0
    %2002 = vmatprep.subr.bf16.mxu0 0
    %2003 = vmatpush1.bf16.msra.mxu0 0
    %2004 = vmatprep.subr.bf16.mxu0 0
    %2005 = vmatpush1.bf16.msra.mxu0 0
    %2006 = vmatprep.subr.bf16.mxu0 0
    %2007 = vmatpush1.bf16.msra.mxu0 0
    %2008 = vmatprep.subr.bf16.mxu0 0
    %2009 = vmatpush1.bf16.msra.mxu0 %v1992
    %2010 = vmatprep.subr.bf16.mxu0 0
    %2011 = vmatpush2.bf16.msra.mxu0 0
    %2012 = vmatprep.subr.bf16.mxu0 0
    %2013 = vmatpush2.bf16.msra.mxu0 0
    %2014 = vmatprep.subr.bf16.mxu0 0
    %2015 = vmatpush2.bf16.msra.mxu0 0
    %2016 = vmatprep.subr.bf16.mxu0 0
    %2017 = vmatpush2.bf16.msra.mxu0 0
    %2018 = vmatprep.subr.bf16.mxu0 0
    %2019 = vmatpush2.bf16.msra.mxu0 0
    %2020 = vmatprep.subr.bf16.mxu0 0
    %2021 = vmatpush2.bf16.msra.mxu0 0
    %2022 = vmatprep.subr.bf16.mxu0 0
    %2023 = vmatpush2.bf16.msra.mxu0 0
    %2024 = vmatprep.subr.bf16.mxu0 0
    %2025 = vmatpush2.bf16.msra.mxu0 0
    %2026 = vmatprep.mubr.bf16.mxu0 0
    %2027 = vmatmul.mubr.bf16.gmra.mxu0 %v91
    %v2028 = vpop.f32.mrf.mxu0
    %v2029 = vadd.f32 0.0, %v2028
    %v2030 = vpop.f32.mrf.mxu0
    %v2031 = vpop.f32.mrf.mxu0
    %v2032 = vadd.f32 0.0, %v2031
    %v2033 = vpop.f32.mrf.mxu0
    %2034 = vmatprep.mubr.bf16.mxu0 0
    %2035 = vmatmul.mubr.bf16.gmra.mxu0 %v94
    %v2036 = vpop.f32.mrf.mxu0
    %v2037 = vadd.f32 0.0, %v2036
    %v2038 = vpop.f32.mrf.mxu0
    %v2039 = vpop.f32.mrf.mxu0
    %v2040 = vpop.f32.mrf.mxu0
    %2041 = vdwg.mxu0
    %v2042 = vtanh.pop %v2029
    %v2043 = vpack.c.bf16 %v2042, %v2042
    %v2045 = vsel %vm159, %v2043, 0
    %2047 = vmatprep.subr.bf16.mxu0 0
    %2048 = vmatpush1.bf16.msra.mxu0 0
    %2049 = vmatprep.subr.bf16.mxu0 0
    %2050 = vmatpush1.bf16.msra.mxu0 0
    %2051 = vmatprep.subr.bf16.mxu0 0
    %2052 = vmatpush1.bf16.msra.mxu0 0
    %2053 = vmatprep.subr.bf16.mxu0 0
    %2054 = vmatpush1.bf16.msra.mxu0 0
    %2055 = vmatprep.subr.bf16.mxu0 0
    %2056 = vmatpush1.bf16.msra.mxu0 0
    %2057 = vmatprep.subr.bf16.mxu0 0
    %2058 = vmatpush1.bf16.msra.mxu0 0
    %2059 = vmatprep.subr.bf16.mxu0 0
    %2060 = vmatpush1.bf16.msra.mxu0 0
    %2061 = vmatprep.subr.bf16.mxu0 0
    %2062 = vmatpush1.bf16.msra.mxu0 %v2045
    %2063 = vmatprep.subr.bf16.mxu0 0
    %2064 = vmatpush2.bf16.msra.mxu0 0
    %2065 = vmatprep.subr.bf16.mxu0 0
    %2066 = vmatpush2.bf16.msra.mxu0 0
    %2067 = vmatprep.subr.bf16.mxu0 0
    %2068 = vmatpush2.bf16.msra.mxu0 0
    %2069 = vmatprep.subr.bf16.mxu0 0
    %2070 = vmatpush2.bf16.msra.mxu0 0
    %2071 = vmatprep.subr.bf16.mxu0 0
    %2072 = vmatpush2.bf16.msra.mxu0 0
    %2073 = vmatprep.subr.bf16.mxu0 0
    %2074 = vmatpush2.bf16.msra.mxu0 0
    %2075 = vmatprep.subr.bf16.mxu0 0
    %2076 = vmatpush2.bf16.msra.mxu0 0
    %2077 = vmatprep.subr.bf16.mxu0 0
    %2078 = vmatpush2.bf16.msra.mxu0 0
    %2079 = vmatprep.mubr.bf16.mxu0 0
    %2080 = vmatmul.mubr.bf16.gmra.mxu0 %v157
    %v2081 = vpop.f32.mrf.mxu0
    %v2082 = vadd.f32 0.0, %v2081
    %v2083 = vpop.f32.mrf.mxu0
    %v2084 = vpop.f32.mrf.mxu0
    %v2085 = vadd.f32 0.0, %v2084
    %v2086 = vpop.f32.mrf.mxu0
    %2087 = vdwg.mxu0
    %v2088 = vadd.f32 %v2032, %v2082
    %v2089 = vadd.f32 %v2037, %v2085
    %v2090 = vmax.f32 %v2088, 0.0
    %v2091 = vmax.f32 %v2089, 0.0
    %v2092 = vmin.f32 %v2090, 6.0
    %v2093 = vmin.f32 %v2091, 6.0
    %v2094 = vpack.c.bf16 %v2093, %v2092
    %2095 = vmatprep.subr.bf16.mxu0 0
    %2096 = vmatpush1.bf16.msra.mxu0 0
    %2097 = vmatprep.subr.bf16.mxu0 0
    %2098 = vmatpush1.bf16.msra.mxu0 0
    %2099 = vmatprep.subr.bf16.mxu0 0
    %2100 = vmatpush1.bf16.msra.mxu0 0
    %2101 = vmatprep.subr.bf16.mxu0 0
    %2102 = vmatpush1.bf16.msra.mxu0 0
    %2103 = vmatprep.subr.bf16.mxu0 0
    %2104 = vmatpush1.bf16.msra.mxu0 0
    %2105 = vmatprep.subr.bf16.mxu0 0
    %2106 = vmatpush1.bf16.msra.mxu0 0
    %2107 = vmatprep.subr.bf16.mxu0 0
    %2108 = vmatpush1.bf16.msra.mxu0 0
    %2109 = vmatprep.subr.bf16.mxu0 0
    %2110 = vmatpush1.bf16.msra.mxu0 %v2094
    %2111 = vmatprep.subr.bf16.mxu0 0
    %2112 = vmatpush2.bf16.msra.mxu0 0
    %2113 = vmatprep.subr.bf16.mxu0 0
    %2114 = vmatpush2.bf16.msra.mxu0 0
    %2115 = vmatprep.subr.bf16.mxu0 0
    %2116 = vmatpush2.bf16.msra.mxu0 0
    %2117 = vmatprep.subr.bf16.mxu0 0
    %2118 = vmatpush2.bf16.msra.mxu0 0
    %2119 = vmatprep.subr.bf16.mxu0 0
    %2120 = vmatpush2.bf16.msra.mxu0 0
    %2121 = vmatprep.subr.bf16.mxu0 0
    %2122 = vmatpush2.bf16.msra.mxu0 0
    %2123 = vmatprep.subr.bf16.mxu0 0
    %2124 = vmatpush2.bf16.msra.mxu0 0
    %2125 = vmatprep.subr.bf16.mxu0 0
    %2126 = vmatpush2.bf16.msra.mxu0 0
    %2127 = vmatprep.mubr.bf16.mxu0 0
    %2128 = vmatmul.mubr.bf16.gmra.mxu0 %v243
    %v2129 = vpop.f32.mrf.mxu0
    %v2130 = vadd.f32 %v214, %v2129
    %v2131 = vpop.f32.mrf.mxu0
    %v2132 = vpop.f32.mrf.mxu0
    %v2133 = vadd.f32 %v219, %v2132
    %v2134 = vpop.f32.mrf.mxu0
    %2135 = vmatprep.mubr.bf16.mxu0 0
    %2136 = vmatmul.mubr.bf16.gmra.mxu0 %v246
    %v2137 = vpop.f32.mrf.mxu0
    %v2138 = vadd.f32 %v224, %v2137
    %v2139 = vpop.f32.mrf.mxu0
    %v2140 = vpop.f32.mrf.mxu0
    %v2141 = vadd.f32 %v229, %v2140
    %v2142 = vpop.f32.mrf.mxu0
    %2143 = vdwg.mxu0
    %v2144 = vmax.f32 %v2130, 0.0
    %v2145 = vmax.f32 %v2133, 0.0
    %v2146 = vmax.f32 %v2138, 0.0
    %v2147 = vmax.f32 %v2141, 0.0
    %v2148 = vmin.f32 %v2144, 6.0
    %v2149 = vmin.f32 %v2145, 6.0
    %v2150 = vmin.f32 %v2146, 6.0
    %v2151 = vmin.f32 %v2147, 6.0
    %v2152 = vpack.c.bf16 %v2149, %v2148
    %v2153 = vpack.c.bf16 %v2151, %v2150
    %2154 = vmatprep.subr.bf16.mxu0 0
    %2155 = vmatpush1.bf16.msra.mxu0 0
    %2156 = vmatprep.subr.bf16.mxu0 0
    %2157 = vmatpush1.bf16.msra.mxu0 0
    %2158 = vmatprep.subr.bf16.mxu0 0
    %2159 = vmatpush1.bf16.msra.mxu0 0
    %2160 = vmatprep.subr.bf16.mxu0 0
    %2161 = vmatpush1.bf16.msra.mxu0 0
    %2162 = vmatprep.subr.bf16.mxu0 0
    %2163 = vmatpush1.bf16.msra.mxu0 0
    %2164 = vmatprep.subr.bf16.mxu0 0
    %2165 = vmatpush1.bf16.msra.mxu0 0
    %2166 = vmatprep.subr.bf16.mxu0 0
    %2167 = vmatpush1.bf16.msra.mxu0 %v2153
    %2168 = vmatprep.subr.bf16.mxu0 0
    %2169 = vmatpush1.bf16.msra.mxu0 %v2152
    %2170 = vmatprep.subr.bf16.mxu0 0
    %2171 = vmatpush2.bf16.msra.mxu0 0
    %2172 = vmatprep.subr.bf16.mxu0 0
    %2173 = vmatpush2.bf16.msra.mxu0 0
    %2174 = vmatprep.subr.bf16.mxu0 0
    %2175 = vmatpush2.bf16.msra.mxu0 0
    %2176 = vmatprep.subr.bf16.mxu0 0
    %2177 = vmatpush2.bf16.msra.mxu0 0
    %2178 = vmatprep.subr.bf16.mxu0 0
    %2179 = vmatpush2.bf16.msra.mxu0 0
    %2180 = vmatprep.subr.bf16.mxu0 0
    %2181 = vmatpush2.bf16.msra.mxu0 0
    %2182 = vmatprep.subr.bf16.mxu0 0
    %2183 = vmatpush2.bf16.msra.mxu0 0
    %2184 = vmatprep.subr.bf16.mxu0 0
    %2185 = vmatpush2.bf16.msra.mxu0 0
    %2186 = vmatprep.mubr.bf16.mxu0 0
    %2187 = vmatmul.mubr.bf16.gmra.mxu0 %v324
    %v2188 = vpop.f32.mrf.mxu0
    %v2189 = vadd.f32 %v310, %v2188
    %v2190 = vpop.f32.mrf.mxu0
    %v2191 = vpop.f32.mrf.mxu0
    %v2192 = vadd.f32 %v315, %v2191
    %v2193 = vpop.f32.mrf.mxu0
    %2194 = vdwg.mxu0
    %v2195 = vmax.f32 %v2189, 0.0
    %v2196 = vmax.f32 %v2192, 0.0
    %v2197 = vmin.f32 %v2195, 6.0
    %v2198 = vmin.f32 %v2196, 6.0
    %v2199 = vpack.c.bf16 %v2198, %v2197
    %2200 = vmatprep.subr.bf16.mxu0 0
    %2201 = vmatpush1.bf16.msra.mxu0 0
    %2202 = vmatprep.subr.bf16.mxu0 0
    %2203 = vmatpush1.bf16.msra.mxu0 0
    %2204 = vmatprep.subr.bf16.mxu0 0
    %2205 = vmatpush1.bf16.msra.mxu0 0
    %2206 = vmatprep.subr.bf16.mxu0 0
    %2207 = vmatpush1.bf16.msra.mxu0 0
    %2208 = vmatprep.subr.bf16.mxu0 0
    %2209 = vmatpush1.bf16.msra.mxu0 0
    %2210 = vmatprep.subr.bf16.mxu0 0
    %2211 = vmatpush1.bf16.msra.mxu0 0
    %2212 = vmatprep.subr.bf16.mxu0 0
    %2213 = vmatpush1.bf16.msra.mxu0 0
    %2214 = vmatprep.subr.bf16.mxu0 0
    %2215 = vmatpush1.bf16.msra.mxu0 %v2199
    %2216 = vmatprep.subr.bf16.mxu0 0
    %2217 = vmatpush2.bf16.msra.mxu0 0
    %2218 = vmatprep.subr.bf16.mxu0 0
    %2219 = vmatpush2.bf16.msra.mxu0 0
    %2220 = vmatprep.subr.bf16.mxu0 0
    %2221 = vmatpush2.bf16.msra.mxu0 0
    %2222 = vmatprep.subr.bf16.mxu0 0
    %2223 = vmatpush2.bf16.msra.mxu0 0
    %2224 = vmatprep.subr.bf16.mxu0 0
    %2225 = vmatpush2.bf16.msra.mxu0 0
    %2226 = vmatprep.subr.bf16.mxu0 0
    %2227 = vmatpush2.bf16.msra.mxu0 0
    %2228 = vmatprep.subr.bf16.mxu0 0
    %2229 = vmatpush2.bf16.msra.mxu0 0
    %2230 = vmatprep.subr.bf16.mxu0 0
    %2231 = vmatpush2.bf16.msra.mxu0 0
    %2232 = vmatprep.mubr.bf16.mxu0 0
    %2233 = vmatmul.mubr.bf16.gmra.mxu0 %v378
    %v2234 = vpop.f32.mrf.mxu0
    %v2235 = vadd.f32 %v375, %v2234
    %v2236 = vpop.f32.mrf.mxu0
    %v2237 = vpop.f32.mrf.mxu0
    %v2238 = vpop.f32.mrf.mxu0
    %2239 = vdwg.mxu0
    %v2240 = vmax.f32 %v2235, 0.0
    %v2241 = vmin.f32 %v2240, 6.0
    %v2242 = vpack.c.bf16 %v2241, %v2241
    %v2244 = vsel %vm96, %v2242, 0
    %2246 = vmatprep.subr.bf16.mxu0 0
    %2247 = vmatpush1.bf16.msra.mxu0 0
    %2248 = vmatprep.subr.bf16.mxu0 0
    %2249 = vmatpush1.bf16.msra.mxu0 0
    %2250 = vmatprep.subr.bf16.mxu0 0
    %2251 = vmatpush1.bf16.msra.mxu0 0
    %2252 = vmatprep.subr.bf16.mxu0 0
    %2253 = vmatpush1.bf16.msra.mxu0 0
    %2254 = vmatprep.subr.bf16.mxu0 0
    %2255 = vmatpush1.bf16.msra.mxu0 0
    %2256 = vmatprep.subr.bf16.mxu0 0
    %2257 = vmatpush1.bf16.msra.mxu0 0
    %2258 = vmatprep.subr.bf16.mxu0 0
    %2259 = vmatpush1.bf16.msra.mxu0 0
    %2260 = vmatprep.subr.bf16.mxu0 0
    %2261 = vmatpush1.bf16.msra.mxu0 %v2244
    %2262 = vmatprep.subr.bf16.mxu0 0
    %2263 = vmatpush2.bf16.msra.mxu0 0
    %2264 = vmatprep.subr.bf16.mxu0 0
    %2265 = vmatpush2.bf16.msra.mxu0 0
    %2266 = vmatprep.subr.bf16.mxu0 0
    %2267 = vmatpush2.bf16.msra.mxu0 0
    %2268 = vmatprep.subr.bf16.mxu0 0
    %2269 = vmatpush2.bf16.msra.mxu0 0
    %2270 = vmatprep.subr.bf16.mxu0 0
    %2271 = vmatpush2.bf16.msra.mxu0 0
    %2272 = vmatprep.subr.bf16.mxu0 0
    %2273 = vmatpush2.bf16.msra.mxu0 0
    %2274 = vmatprep.subr.bf16.mxu0 0
    %2275 = vmatpush2.bf16.msra.mxu0 0
    %2276 = vmatprep.subr.bf16.mxu0 0
    %2277 = vmatpush2.bf16.msra.mxu0 0
    %2278 = vmatprep.mubr.bf16.mxu0 0
    %2279 = vmatmul.mubr.bf16.gmra.mxu0 %v424
    %v2280 = vpop.f32.mrf.mxu0
    %v2281 = vadd.f32 0.0, %v2280
    %v2282 = vpop.f32.mrf.mxu0
    %v2283 = vpop.f32.mrf.mxu0
    %v2284 = vpop.f32.mrf.mxu0
    %2285 = vdwg.mxu0
    %v2286 = vadd.f32 %v1985, %v2281
    %v2287 = vadd.f32 %v2286, %v473
    %s2288 = sadd.s32 %s76, 7
    %s2289 = smul.u32 %s2288, 8
    %s2290 = scalar_lea.vmem %s13, %s2289
    %2291 = vst [vmem:[%s2290] sm:$0xff] %v2287
    %v2292 = vpack.c.bf16 %v2287, %v2287
    %v2294 = vsel %vm96, %v2292, 0
    %2296 = vmatprep.subr.bf16.mxu0 0
    %2297 = vmatpush1.bf16.msra.mxu0 0
    %2298 = vmatprep.subr.bf16.mxu0 0
    %2299 = vmatpush1.bf16.msra.mxu0 0
    %2300 = vmatprep.subr.bf16.mxu0 0
    %2301 = vmatpush1.bf16.msra.mxu0 0
    %2302 = vmatprep.subr.bf16.mxu0 0
    %2303 = vmatpush1.bf16.msra.mxu0 0
    %2304 = vmatprep.subr.bf16.mxu0 0
    %2305 = vmatpush1.bf16.msra.mxu0 0
    %2306 = vmatprep.subr.bf16.mxu0 0
    %2307 = vmatpush1.bf16.msra.mxu0 0
    %2308 = vmatprep.subr.bf16.mxu0 0
    %2309 = vmatpush1.bf16.msra.mxu0 0
    %2310 = vmatprep.subr.bf16.mxu0 0
    %2311 = vmatpush1.bf16.msra.mxu0 %v2294
    %2312 = vmatprep.subr.bf16.mxu0 0
    %2313 = vmatpush2.bf16.msra.mxu0 0
    %2314 = vmatprep.subr.bf16.mxu0 0
    %2315 = vmatpush2.bf16.msra.mxu0 0
    %2316 = vmatprep.subr.bf16.mxu0 0
    %2317 = vmatpush2.bf16.msra.mxu0 0
    %2318 = vmatprep.subr.bf16.mxu0 0
    %2319 = vmatpush2.bf16.msra.mxu0 0
    %2320 = vmatprep.subr.bf16.mxu0 0
    %2321 = vmatpush2.bf16.msra.mxu0 0
    %2322 = vmatprep.subr.bf16.mxu0 0
    %2323 = vmatpush2.bf16.msra.mxu0 0
    %2324 = vmatprep.subr.bf16.mxu0 0
    %2325 = vmatpush2.bf16.msra.mxu0 0
    %2326 = vmatprep.subr.bf16.mxu0 0
    %2327 = vmatpush2.bf16.msra.mxu0 0
    %2328 = vmatprep.mubr.bf16.mxu0 0
    %2329 = vmatmul.mubr.bf16.gmra.mxu0 %v91
    %v2330 = vpop.f32.mrf.mxu0
    %v2331 = vadd.f32 0.0, %v2330
    %v2332 = vpop.f32.mrf.mxu0
    %v2333 = vpop.f32.mrf.mxu0
    %v2334 = vadd.f32 0.0, %v2333
    %v2335 = vpop.f32.mrf.mxu0
    %2336 = vmatprep.mubr.bf16.mxu0 0
    %2337 = vmatmul.mubr.bf16.gmra.mxu0 %v94
    %v2338 = vpop.f32.mrf.mxu0
    %v2339 = vadd.f32 0.0, %v2338
    %v2340 = vpop.f32.mrf.mxu0
    %v2341 = vpop.f32.mrf.mxu0
    %v2342 = vpop.f32.mrf.mxu0
    %2343 = vdwg.mxu0
    %v2344 = vtanh.pop %v2331
    %v2345 = vpack.c.bf16 %v2344, %v2344
    %v2347 = vsel %vm159, %v2345, 0
    %2349 = vmatprep.subr.bf16.mxu0 0
    %2350 = vmatpush1.bf16.msra.mxu0 0
    %2351 = vmatprep.subr.bf16.mxu0 0
    %2352 = vmatpush1.bf16.msra.mxu0 0
    %2353 = vmatprep.subr.bf16.mxu0 0
    %2354 = vmatpush1.bf16.msra.mxu0 0
    %2355 = vmatprep.subr.bf16.mxu0 0
    %2356 = vmatpush1.bf16.msra.mxu0 0
    %2357 = vmatprep.subr.bf16.mxu0 0
    %2358 = vmatpush1.bf16.msra.mxu0 0
    %2359 = vmatprep.subr.bf16.mxu0 0
    %2360 = vmatpush1.bf16.msra.mxu0 0
    %2361 = vmatprep.subr.bf16.mxu0 0
    %2362 = vmatpush1.bf16.msra.mxu0 0
    %2363 = vmatprep.subr.bf16.mxu0 0
    %2364 = vmatpush1.bf16.msra.mxu0 %v2347
    %2365 = vmatprep.subr.bf16.mxu0 0
    %2366 = vmatpush2.bf16.msra.mxu0 0
    %2367 = vmatprep.subr.bf16.mxu0 0
    %2368 = vmatpush2.bf16.msra.mxu0 0
    %2369 = vmatprep.subr.bf16.mxu0 0
    %2370 = vmatpush2.bf16.msra.mxu0 0
    %2371 = vmatprep.subr.bf16.mxu0 0
    %2372 = vmatpush2.bf16.msra.mxu0 0
    %2373 = vmatprep.subr.bf16.mxu0 0
    %2374 = vmatpush2.bf16.msra.mxu0 0
    %2375 = vmatprep.subr.bf16.mxu0 0
    %2376 = vmatpush2.bf16.msra.mxu0 0
    %2377 = vmatprep.subr.bf16.mxu0 0
    %2378 = vmatpush2.bf16.msra.mxu0 0
    %2379 = vmatprep.subr.bf16.mxu0 0
    %2380 = vmatpush2.bf16.msra.mxu0 0
    %2381 = vmatprep.mubr.bf16.mxu0 0
    %2382 = vmatmul.mubr.bf16.gmra.mxu0 %v157
    %v2383 = vpop.f32.mrf.mxu0
    %v2384 = vadd.f32 0.0, %v2383
    %v2385 = vpop.f32.mrf.mxu0
    %v2386 = vpop.f32.mrf.mxu0
    %v2387 = vadd.f32 0.0, %v2386
    %v2388 = vpop.f32.mrf.mxu0
    %2389 = vdwg.mxu0
    %v2390 = vadd.f32 %v2334, %v2384
    %v2391 = vadd.f32 %v2339, %v2387
    %v2392 = vmax.f32 %v2390, 0.0
    %v2393 = vmax.f32 %v2391, 0.0
    %v2394 = vmin.f32 %v2392, 6.0
    %v2395 = vmin.f32 %v2393, 6.0
    %v2396 = vpack.c.bf16 %v2395, %v2394
    %2397 = vmatprep.subr.bf16.mxu0 0
    %2398 = vmatpush1.bf16.msra.mxu0 0
    %2399 = vmatprep.subr.bf16.mxu0 0
    %2400 = vmatpush1.bf16.msra.mxu0 0
    %2401 = vmatprep.subr.bf16.mxu0 0
    %2402 = vmatpush1.bf16.msra.mxu0 0
    %2403 = vmatprep.subr.bf16.mxu0 0
    %2404 = vmatpush1.bf16.msra.mxu0 0
    %2405 = vmatprep.subr.bf16.mxu0 0
    %2406 = vmatpush1.bf16.msra.mxu0 0
    %2407 = vmatprep.subr.bf16.mxu0 0
    %2408 = vmatpush1.bf16.msra.mxu0 0
    %2409 = vmatprep.subr.bf16.mxu0 0
    %2410 = vmatpush1.bf16.msra.mxu0 0
    %2411 = vmatprep.subr.bf16.mxu0 0
    %2412 = vmatpush1.bf16.msra.mxu0 %v2396
    %2413 = vmatprep.subr.bf16.mxu0 0
    %2414 = vmatpush2.bf16.msra.mxu0 0
    %2415 = vmatprep.subr.bf16.mxu0 0
    %2416 = vmatpush2.bf16.msra.mxu0 0
    %2417 = vmatprep.subr.bf16.mxu0 0
    %2418 = vmatpush2.bf16.msra.mxu0 0
    %2419 = vmatprep.subr.bf16.mxu0 0
    %2420 = vmatpush2.bf16.msra.mxu0 0
    %2421 = vmatprep.subr.bf16.mxu0 0
    %2422 = vmatpush2.bf16.msra.mxu0 0
    %2423 = vmatprep.subr.bf16.mxu0 0
    %2424 = vmatpush2.bf16.msra.mxu0 0
    %2425 = vmatprep.subr.bf16.mxu0 0
    %2426 = vmatpush2.bf16.msra.mxu0 0
    %2427 = vmatprep.subr.bf16.mxu0 0
    %2428 = vmatpush2.bf16.msra.mxu0 0
    %2429 = vmatprep.mubr.bf16.mxu0 0
    %2430 = vmatmul.mubr.bf16.gmra.mxu0 %v243
    %v2431 = vpop.f32.mrf.mxu0
    %v2432 = vadd.f32 %v214, %v2431
    %v2433 = vpop.f32.mrf.mxu0
    %v2434 = vpop.f32.mrf.mxu0
    %v2435 = vadd.f32 %v219, %v2434
    %v2436 = vpop.f32.mrf.mxu0
    %2437 = vmatprep.mubr.bf16.mxu0 0
    %2438 = vmatmul.mubr.bf16.gmra.mxu0 %v246
    %v2439 = vpop.f32.mrf.mxu0
    %v2440 = vadd.f32 %v224, %v2439
    %v2441 = vpop.f32.mrf.mxu0
    %v2442 = vpop.f32.mrf.mxu0
    %v2443 = vadd.f32 %v229, %v2442
    %v2444 = vpop.f32.mrf.mxu0
    %2445 = vdwg.mxu0
    %v2446 = vmax.f32 %v2432, 0.0
    %v2447 = vmax.f32 %v2435, 0.0
    %v2448 = vmax.f32 %v2440, 0.0
    %v2449 = vmax.f32 %v2443, 0.0
    %v2450 = vmin.f32 %v2446, 6.0
    %v2451 = vmin.f32 %v2447, 6.0
    %v2452 = vmin.f32 %v2448, 6.0
    %v2453 = vmin.f32 %v2449, 6.0
    %v2454 = vpack.c.bf16 %v2451, %v2450
    %v2455 = vpack.c.bf16 %v2453, %v2452
    %2456 = vmatprep.subr.bf16.mxu0 0
    %2457 = vmatpush1.bf16.msra.mxu0 0
    %2458 = vmatprep.subr.bf16.mxu0 0
    %2459 = vmatpush1.bf16.msra.mxu0 0
    %2460 = vmatprep.subr.bf16.mxu0 0
    %2461 = vmatpush1.bf16.msra.mxu0 0
    %2462 = vmatprep.subr.bf16.mxu0 0
    %2463 = vmatpush1.bf16.msra.mxu0 0
    %2464 = vmatprep.subr.bf16.mxu0 0
    %2465 = vmatpush1.bf16.msra.mxu0 0
    %2466 = vmatprep.subr.bf16.mxu0 0
    %2467 = vmatpush1.bf16.msra.mxu0 0
    %2468 = vmatprep.subr.bf16.mxu0 0
    %2469 = vmatpush1.bf16.msra.mxu0 %v2455
    %2470 = vmatprep.subr.bf16.mxu0 0
    %2471 = vmatpush1.bf16.msra.mxu0 %v2454
    %2472 = vmatprep.subr.bf16.mxu0 0
    %2473 = vmatpush2.bf16.msra.mxu0 0
    %2474 = vmatprep.subr.bf16.mxu0 0
    %2475 = vmatpush2.bf16.msra.mxu0 0
    %2476 = vmatprep.subr.bf16.mxu0 0
    %2477 = vmatpush2.bf16.msra.mxu0 0
    %2478 = vmatprep.subr.bf16.mxu0 0
    %2479 = vmatpush2.bf16.msra.mxu0 0
    %2480 = vmatprep.subr.bf16.mxu0 0
    %2481 = vmatpush2.bf16.msra.mxu0 0
    %2482 = vmatprep.subr.bf16.mxu0 0
    %2483 = vmatpush2.bf16.msra.mxu0 0
    %2484 = vmatprep.subr.bf16.mxu0 0
    %2485 = vmatpush2.bf16.msra.mxu0 0
    %2486 = vmatprep.subr.bf16.mxu0 0
    %2487 = vmatpush2.bf16.msra.mxu0 0
    %2488 = vmatprep.mubr.bf16.mxu0 0
    %2489 = vmatmul.mubr.bf16.gmra.mxu0 %v324
    %v2490 = vpop.f32.mrf.mxu0
    %v2491 = vadd.f32 %v310, %v2490
    %v2492 = vpop.f32.mrf.mxu0
    %v2493 = vpop.f32.mrf.mxu0
    %v2494 = vadd.f32 %v315, %v2493
    %v2495 = vpop.f32.mrf.mxu0
    %2496 = vdwg.mxu0
    %v2497 = vmax.f32 %v2491, 0.0
    %v2498 = vmax.f32 %v2494, 0.0
    %v2499 = vmin.f32 %v2497, 6.0
    %v2500 = vmin.f32 %v2498, 6.0
    %v2501 = vpack.c.bf16 %v2500, %v2499
    %2502 = vmatprep.subr.bf16.mxu0 0
    %2503 = vmatpush1.bf16.msra.mxu0 0
    %2504 = vmatprep.subr.bf16.mxu0 0
    %2505 = vmatpush1.bf16.msra.mxu0 0
    %2506 = vmatprep.subr.bf16.mxu0 0
    %2507 = vmatpush1.bf16.msra.mxu0 0
    %2508 = vmatprep.subr.bf16.mxu0 0
    %2509 = vmatpush1.bf16.msra.mxu0 0
    %2510 = vmatprep.subr.bf16.mxu0 0
    %2511 = vmatpush1.bf16.msra.mxu0 0
    %2512 = vmatprep.subr.bf16.mxu0 0
    %2513 = vmatpush1.bf16.msra.mxu0 0
    %2514 = vmatprep.subr.bf16.mxu0 0
    %2515 = vmatpush1.bf16.msra.mxu0 0
    %2516 = vmatprep.subr.bf16.mxu0 0
    %2517 = vmatpush1.bf16.msra.mxu0 %v2501
    %2518 = vmatprep.subr.bf16.mxu0 0
    %2519 = vmatpush2.bf16.msra.mxu0 0
    %2520 = vmatprep.subr.bf16.mxu0 0
    %2521 = vmatpush2.bf16.msra.mxu0 0
    %2522 = vmatprep.subr.bf16.mxu0 0
    %2523 = vmatpush2.bf16.msra.mxu0 0
    %2524 = vmatprep.subr.bf16.mxu0 0
    %2525 = vmatpush2.bf16.msra.mxu0 0
    %2526 = vmatprep.subr.bf16.mxu0 0
    %2527 = vmatpush2.bf16.msra.mxu0 0
    %2528 = vmatprep.subr.bf16.mxu0 0
    %2529 = vmatpush2.bf16.msra.mxu0 0
    %2530 = vmatprep.subr.bf16.mxu0 0
    %2531 = vmatpush2.bf16.msra.mxu0 0
    %2532 = vmatprep.subr.bf16.mxu0 0
    %2533 = vmatpush2.bf16.msra.mxu0 0
    %2534 = vmatprep.mubr.bf16.mxu0 0
    %2535 = vmatmul.mubr.bf16.gmra.mxu0 %v378
    %v2536 = vpop.f32.mrf.mxu0
    %v2537 = vadd.f32 %v375, %v2536
    %v2538 = vpop.f32.mrf.mxu0
    %v2539 = vpop.f32.mrf.mxu0
    %v2540 = vpop.f32.mrf.mxu0
    %2541 = vdwg.mxu0
    %v2542 = vmax.f32 %v2537, 0.0
    %v2543 = vmin.f32 %v2542, 6.0
    %v2544 = vpack.c.bf16 %v2543, %v2543
    %v2546 = vsel %vm96, %v2544, 0
    %2548 = vmatprep.subr.bf16.mxu0 0
    %2549 = vmatpush1.bf16.msra.mxu0 0
    %2550 = vmatprep.subr.bf16.mxu0 0
    %2551 = vmatpush1.bf16.msra.mxu0 0
    %2552 = vmatprep.subr.bf16.mxu0 0
    %2553 = vmatpush1.bf16.msra.mxu0 0
    %2554 = vmatprep.subr.bf16.mxu0 0
    %2555 = vmatpush1.bf16.msra.mxu0 0
    %2556 = vmatprep.subr.bf16.mxu0 0
    %2557 = vmatpush1.bf16.msra.mxu0 0
    %2558 = vmatprep.subr.bf16.mxu0 0
    %2559 = vmatpush1.bf16.msra.mxu0 0
    %2560 = vmatprep.subr.bf16.mxu0 0
    %2561 = vmatpush1.bf16.msra.mxu0 0
    %2562 = vmatprep.subr.bf16.mxu0 0
    %2563 = vmatpush1.bf16.msra.mxu0 %v2546
    %2564 = vmatprep.subr.bf16.mxu0 0
    %2565 = vmatpush2.bf16.msra.mxu0 0
    %2566 = vmatprep.subr.bf16.mxu0 0
    %2567 = vmatpush2.bf16.msra.mxu0 0
    %2568 = vmatprep.subr.bf16.mxu0 0
    %2569 = vmatpush2.bf16.msra.mxu0 0
    %2570 = vmatprep.subr.bf16.mxu0 0
    %2571 = vmatpush2.bf16.msra.mxu0 0
    %2572 = vmatprep.subr.bf16.mxu0 0
    %2573 = vmatpush2.bf16.msra.mxu0 0
    %2574 = vmatprep.subr.bf16.mxu0 0
    %2575 = vmatpush2.bf16.msra.mxu0 0
    %2576 = vmatprep.subr.bf16.mxu0 0
    %2577 = vmatpush2.bf16.msra.mxu0 0
    %2578 = vmatprep.subr.bf16.mxu0 0
    %2579 = vmatpush2.bf16.msra.mxu0 0
    %2580 = vmatprep.mubr.bf16.mxu0 0
    %2581 = vmatmul.mubr.bf16.gmra.mxu0 %v424
    %v2582 = vpop.f32.mrf.mxu0
    %v2583 = vadd.f32 0.0, %v2582
    %v2584 = vpop.f32.mrf.mxu0
    %v2585 = vpop.f32.mrf.mxu0
    %v2586 = vpop.f32.mrf.mxu0
    %2587 = vdwg.mxu0
    %v2588 = vadd.f32 %v2287, %v2583
    %v2589 = vadd.f32 %v2588, %v473
    %s2590 = sadd.s32 %s76, 8
    %s2591 = smul.u32 %s2590, 8
    %s2592 = scalar_lea.vmem %s13, %s2591
    %2593 = vst [vmem:[%s2592] sm:$0xff] %v2589
    %v2594 = vpack.c.bf16 %v2589, %v2589
    %v2596 = vsel %vm96, %v2594, 0
    %2598 = vmatprep.subr.bf16.mxu0 0
    %2599 = vmatpush1.bf16.msra.mxu0 0
    %2600 = vmatprep.subr.bf16.mxu0 0
    %2601 = vmatpush1.bf16.msra.mxu0 0
    %2602 = vmatprep.subr.bf16.mxu0 0
    %2603 = vmatpush1.bf16.msra.mxu0 0
    %2604 = vmatprep.subr.bf16.mxu0 0
    %2605 = vmatpush1.bf16.msra.mxu0 0
    %2606 = vmatprep.subr.bf16.mxu0 0
    %2607 = vmatpush1.bf16.msra.mxu0 0
    %2608 = vmatprep.subr.bf16.mxu0 0
    %2609 = vmatpush1.bf16.msra.mxu0 0
    %2610 = vmatprep.subr.bf16.mxu0 0
    %2611 = vmatpush1.bf16.msra.mxu0 0
    %2612 = vmatprep.subr.bf16.mxu0 0
    %2613 = vmatpush1.bf16.msra.mxu0 %v2596
    %2614 = vmatprep.subr.bf16.mxu0 0
    %2615 = vmatpush2.bf16.msra.mxu0 0
    %2616 = vmatprep.subr.bf16.mxu0 0
    %2617 = vmatpush2.bf16.msra.mxu0 0
    %2618 = vmatprep.subr.bf16.mxu0 0
    %2619 = vmatpush2.bf16.msra.mxu0 0
    %2620 = vmatprep.subr.bf16.mxu0 0
    %2621 = vmatpush2.bf16.msra.mxu0 0
    %2622 = vmatprep.subr.bf16.mxu0 0
    %2623 = vmatpush2.bf16.msra.mxu0 0
    %2624 = vmatprep.subr.bf16.mxu0 0
    %2625 = vmatpush2.bf16.msra.mxu0 0
    %2626 = vmatprep.subr.bf16.mxu0 0
    %2627 = vmatpush2.bf16.msra.mxu0 0
    %2628 = vmatprep.subr.bf16.mxu0 0
    %2629 = vmatpush2.bf16.msra.mxu0 0
    %2630 = vmatprep.mubr.bf16.mxu0 0
    %2631 = vmatmul.mubr.bf16.gmra.mxu0 %v91
    %v2632 = vpop.f32.mrf.mxu0
    %v2633 = vadd.f32 0.0, %v2632
    %v2634 = vpop.f32.mrf.mxu0
    %v2635 = vpop.f32.mrf.mxu0
    %v2636 = vadd.f32 0.0, %v2635
    %v2637 = vpop.f32.mrf.mxu0
    %2638 = vmatprep.mubr.bf16.mxu0 0
    %2639 = vmatmul.mubr.bf16.gmra.mxu0 %v94
    %v2640 = vpop.f32.mrf.mxu0
    %v2641 = vadd.f32 0.0, %v2640
    %v2642 = vpop.f32.mrf.mxu0
    %v2643 = vpop.f32.mrf.mxu0
    %v2644 = vpop.f32.mrf.mxu0
    %2645 = vdwg.mxu0
    %v2646 = vtanh.pop %v2633
    %v2647 = vpack.c.bf16 %v2646, %v2646
    %v2649 = vsel %vm159, %v2647, 0
    %2651 = vmatprep.subr.bf16.mxu0 0
    %2652 = vmatpush1.bf16.msra.mxu0 0
    %2653 = vmatprep.subr.bf16.mxu0 0
    %2654 = vmatpush1.bf16.msra.mxu0 0
    %2655 = vmatprep.subr.bf16.mxu0 0
    %2656 = vmatpush1.bf16.msra.mxu0 0
    %2657 = vmatprep.subr.bf16.mxu0 0
    %2658 = vmatpush1.bf16.msra.mxu0 0
    %2659 = vmatprep.subr.bf16.mxu0 0
    %2660 = vmatpush1.bf16.msra.mxu0 0
    %2661 = vmatprep.subr.bf16.mxu0 0
    %2662 = vmatpush1.bf16.msra.mxu0 0
    %2663 = vmatprep.subr.bf16.mxu0 0
    %2664 = vmatpush1.bf16.msra.mxu0 0
    %2665 = vmatprep.subr.bf16.mxu0 0
    %2666 = vmatpush1.bf16.msra.mxu0 %v2649
    %2667 = vmatprep.subr.bf16.mxu0 0
    %2668 = vmatpush2.bf16.msra.mxu0 0
    %2669 = vmatprep.subr.bf16.mxu0 0
    %2670 = vmatpush2.bf16.msra.mxu0 0
    %2671 = vmatprep.subr.bf16.mxu0 0
    %2672 = vmatpush2.bf16.msra.mxu0 0
    %2673 = vmatprep.subr.bf16.mxu0 0
    %2674 = vmatpush2.bf16.msra.mxu0 0
    %2675 = vmatprep.subr.bf16.mxu0 0
    %2676 = vmatpush2.bf16.msra.mxu0 0
    %2677 = vmatprep.subr.bf16.mxu0 0
    %2678 = vmatpush2.bf16.msra.mxu0 0
    %2679 = vmatprep.subr.bf16.mxu0 0
    %2680 = vmatpush2.bf16.msra.mxu0 0
    %2681 = vmatprep.subr.bf16.mxu0 0
    %2682 = vmatpush2.bf16.msra.mxu0 0
    %2683 = vmatprep.mubr.bf16.mxu0 0
    %2684 = vmatmul.mubr.bf16.gmra.mxu0 %v157
    %v2685 = vpop.f32.mrf.mxu0
    %v2686 = vadd.f32 0.0, %v2685
    %v2687 = vpop.f32.mrf.mxu0
    %v2688 = vpop.f32.mrf.mxu0
    %v2689 = vadd.f32 0.0, %v2688
    %v2690 = vpop.f32.mrf.mxu0
    %2691 = vdwg.mxu0
    %v2692 = vadd.f32 %v2636, %v2686
    %v2693 = vadd.f32 %v2641, %v2689
    %v2694 = vmax.f32 %v2692, 0.0
    %v2695 = vmax.f32 %v2693, 0.0
    %v2696 = vmin.f32 %v2694, 6.0
    %v2697 = vmin.f32 %v2695, 6.0
    %v2698 = vpack.c.bf16 %v2697, %v2696
    %2699 = vmatprep.subr.bf16.mxu0 0
    %2700 = vmatpush1.bf16.msra.mxu0 0
    %2701 = vmatprep.subr.bf16.mxu0 0
    %2702 = vmatpush1.bf16.msra.mxu0 0
    %2703 = vmatprep.subr.bf16.mxu0 0
    %2704 = vmatpush1.bf16.msra.mxu0 0
    %2705 = vmatprep.subr.bf16.mxu0 0
    %2706 = vmatpush1.bf16.msra.mxu0 0
    %2707 = vmatprep.subr.bf16.mxu0 0
    %2708 = vmatpush1.bf16.msra.mxu0 0
    %2709 = vmatprep.subr.bf16.mxu0 0
    %2710 = vmatpush1.bf16.msra.mxu0 0
    %2711 = vmatprep.subr.bf16.mxu0 0
    %2712 = vmatpush1.bf16.msra.mxu0 0
    %2713 = vmatprep.subr.bf16.mxu0 0
    %2714 = vmatpush1.bf16.msra.mxu0 %v2698
    %2715 = vmatprep.subr.bf16.mxu0 0
    %2716 = vmatpush2.bf16.msra.mxu0 0
    %2717 = vmatprep.subr.bf16.mxu0 0
    %2718 = vmatpush2.bf16.msra.mxu0 0
    %2719 = vmatprep.subr.bf16.mxu0 0
    %2720 = vmatpush2.bf16.msra.mxu0 0
    %2721 = vmatprep.subr.bf16.mxu0 0
    %2722 = vmatpush2.bf16.msra.mxu0 0
    %2723 = vmatprep.subr.bf16.mxu0 0
    %2724 = vmatpush2.bf16.msra.mxu0 0
    %2725 = vmatprep.subr.bf16.mxu0 0
    %2726 = vmatpush2.bf16.msra.mxu0 0
    %2727 = vmatprep.subr.bf16.mxu0 0
    %2728 = vmatpush2.bf16.msra.mxu0 0
    %2729 = vmatprep.subr.bf16.mxu0 0
    %2730 = vmatpush2.bf16.msra.mxu0 0
    %2731 = vmatprep.mubr.bf16.mxu0 0
    %2732 = vmatmul.mubr.bf16.gmra.mxu0 %v243
    %v2733 = vpop.f32.mrf.mxu0
    %v2734 = vadd.f32 %v214, %v2733
    %v2735 = vpop.f32.mrf.mxu0
    %v2736 = vpop.f32.mrf.mxu0
    %v2737 = vadd.f32 %v219, %v2736
    %v2738 = vpop.f32.mrf.mxu0
    %2739 = vmatprep.mubr.bf16.mxu0 0
    %2740 = vmatmul.mubr.bf16.gmra.mxu0 %v246
    %v2741 = vpop.f32.mrf.mxu0
    %v2742 = vadd.f32 %v224, %v2741
    %v2743 = vpop.f32.mrf.mxu0
    %v2744 = vpop.f32.mrf.mxu0
    %v2745 = vadd.f32 %v229, %v2744
    %v2746 = vpop.f32.mrf.mxu0
    %2747 = vdwg.mxu0
    %v2748 = vmax.f32 %v2734, 0.0
    %v2749 = vmax.f32 %v2737, 0.0
    %v2750 = vmax.f32 %v2742, 0.0
    %v2751 = vmax.f32 %v2745, 0.0
    %v2752 = vmin.f32 %v2748, 6.0
    %v2753 = vmin.f32 %v2749, 6.0
    %v2754 = vmin.f32 %v2750, 6.0
    %v2755 = vmin.f32 %v2751, 6.0
    %v2756 = vpack.c.bf16 %v2753, %v2752
    %v2757 = vpack.c.bf16 %v2755, %v2754
    %2758 = vmatprep.subr.bf16.mxu0 0
    %2759 = vmatpush1.bf16.msra.mxu0 0
    %2760 = vmatprep.subr.bf16.mxu0 0
    %2761 = vmatpush1.bf16.msra.mxu0 0
    %2762 = vmatprep.subr.bf16.mxu0 0
    %2763 = vmatpush1.bf16.msra.mxu0 0
    %2764 = vmatprep.subr.bf16.mxu0 0
    %2765 = vmatpush1.bf16.msra.mxu0 0
    %2766 = vmatprep.subr.bf16.mxu0 0
    %2767 = vmatpush1.bf16.msra.mxu0 0
    %2768 = vmatprep.subr.bf16.mxu0 0
    %2769 = vmatpush1.bf16.msra.mxu0 0
    %2770 = vmatprep.subr.bf16.mxu0 0
    %2771 = vmatpush1.bf16.msra.mxu0 %v2757
    %2772 = vmatprep.subr.bf16.mxu0 0
    %2773 = vmatpush1.bf16.msra.mxu0 %v2756
    %2774 = vmatprep.subr.bf16.mxu0 0
    %2775 = vmatpush2.bf16.msra.mxu0 0
    %2776 = vmatprep.subr.bf16.mxu0 0
    %2777 = vmatpush2.bf16.msra.mxu0 0
    %2778 = vmatprep.subr.bf16.mxu0 0
    %2779 = vmatpush2.bf16.msra.mxu0 0
    %2780 = vmatprep.subr.bf16.mxu0 0
    %2781 = vmatpush2.bf16.msra.mxu0 0
    %2782 = vmatprep.subr.bf16.mxu0 0
    %2783 = vmatpush2.bf16.msra.mxu0 0
    %2784 = vmatprep.subr.bf16.mxu0 0
    %2785 = vmatpush2.bf16.msra.mxu0 0
    %2786 = vmatprep.subr.bf16.mxu0 0
    %2787 = vmatpush2.bf16.msra.mxu0 0
    %2788 = vmatprep.subr.bf16.mxu0 0
    %2789 = vmatpush2.bf16.msra.mxu0 0
    %2790 = vmatprep.mubr.bf16.mxu0 0
    %2791 = vmatmul.mubr.bf16.gmra.mxu0 %v324
    %v2792 = vpop.f32.mrf.mxu0
    %v2793 = vadd.f32 %v310, %v2792
    %v2794 = vpop.f32.mrf.mxu0
    %v2795 = vpop.f32.mrf.mxu0
    %v2796 = vadd.f32 %v315, %v2795
    %v2797 = vpop.f32.mrf.mxu0
    %2798 = vdwg.mxu0
    %v2799 = vmax.f32 %v2793, 0.0
    %v2800 = vmax.f32 %v2796, 0.0
    %v2801 = vmin.f32 %v2799, 6.0
    %v2802 = vmin.f32 %v2800, 6.0
    %v2803 = vpack.c.bf16 %v2802, %v2801
    %2804 = vmatprep.subr.bf16.mxu0 0
    %2805 = vmatpush1.bf16.msra.mxu0 0
    %2806 = vmatprep.subr.bf16.mxu0 0
    %2807 = vmatpush1.bf16.msra.mxu0 0
    %2808 = vmatprep.subr.bf16.mxu0 0
    %2809 = vmatpush1.bf16.msra.mxu0 0
    %2810 = vmatprep.subr.bf16.mxu0 0
    %2811 = vmatpush1.bf16.msra.mxu0 0
    %2812 = vmatprep.subr.bf16.mxu0 0
    %2813 = vmatpush1.bf16.msra.mxu0 0
    %2814 = vmatprep.subr.bf16.mxu0 0
    %2815 = vmatpush1.bf16.msra.mxu0 0
    %2816 = vmatprep.subr.bf16.mxu0 0
    %2817 = vmatpush1.bf16.msra.mxu0 0
    %2818 = vmatprep.subr.bf16.mxu0 0
    %2819 = vmatpush1.bf16.msra.mxu0 %v2803
    %2820 = vmatprep.subr.bf16.mxu0 0
    %2821 = vmatpush2.bf16.msra.mxu0 0
    %2822 = vmatprep.subr.bf16.mxu0 0
    %2823 = vmatpush2.bf16.msra.mxu0 0
    %2824 = vmatprep.subr.bf16.mxu0 0
    %2825 = vmatpush2.bf16.msra.mxu0 0
    %2826 = vmatprep.subr.bf16.mxu0 0
    %2827 = vmatpush2.bf16.msra.mxu0 0
    %2828 = vmatprep.subr.bf16.mxu0 0
    %2829 = vmatpush2.bf16.msra.mxu0 0
    %2830 = vmatprep.subr.bf16.mxu0 0
    %2831 = vmatpush2.bf16.msra.mxu0 0
    %2832 = vmatprep.subr.bf16.mxu0 0
    %2833 = vmatpush2.bf16.msra.mxu0 0
    %2834 = vmatprep.subr.bf16.mxu0 0
    %2835 = vmatpush2.bf16.msra.mxu0 0
    %2836 = vmatprep.mubr.bf16.mxu0 0
    %2837 = vmatmul.mubr.bf16.gmra.mxu0 %v378
    %v2838 = vpop.f32.mrf.mxu0
    %v2839 = vadd.f32 %v375, %v2838
    %v2840 = vpop.f32.mrf.mxu0
    %v2841 = vpop.f32.mrf.mxu0
    %v2842 = vpop.f32.mrf.mxu0
    %2843 = vdwg.mxu0
    %v2844 = vmax.f32 %v2839, 0.0
    %v2845 = vmin.f32 %v2844, 6.0
    %v2846 = vpack.c.bf16 %v2845, %v2845
    %v2848 = vsel %vm96, %v2846, 0
    %2850 = vmatprep.subr.bf16.mxu0 0
    %2851 = vmatpush1.bf16.msra.mxu0 0
    %2852 = vmatprep.subr.bf16.mxu0 0
    %2853 = vmatpush1.bf16.msra.mxu0 0
    %2854 = vmatprep.subr.bf16.mxu0 0
    %2855 = vmatpush1.bf16.msra.mxu0 0
    %2856 = vmatprep.subr.bf16.mxu0 0
    %2857 = vmatpush1.bf16.msra.mxu0 0
    %2858 = vmatprep.subr.bf16.mxu0 0
    %2859 = vmatpush1.bf16.msra.mxu0 0
    %2860 = vmatprep.subr.bf16.mxu0 0
    %2861 = vmatpush1.bf16.msra.mxu0 0
    %2862 = vmatprep.subr.bf16.mxu0 0
    %2863 = vmatpush1.bf16.msra.mxu0 0
    %2864 = vmatprep.subr.bf16.mxu0 0
    %2865 = vmatpush1.bf16.msra.mxu0 %v2848
    %2866 = vmatprep.subr.bf16.mxu0 0
    %2867 = vmatpush2.bf16.msra.mxu0 0
    %2868 = vmatprep.subr.bf16.mxu0 0
    %2869 = vmatpush2.bf16.msra.mxu0 0
    %2870 = vmatprep.subr.bf16.mxu0 0
    %2871 = vmatpush2.bf16.msra.mxu0 0
    %2872 = vmatprep.subr.bf16.mxu0 0
    %2873 = vmatpush2.bf16.msra.mxu0 0
    %2874 = vmatprep.subr.bf16.mxu0 0
    %2875 = vmatpush2.bf16.msra.mxu0 0
    %2876 = vmatprep.subr.bf16.mxu0 0
    %2877 = vmatpush2.bf16.msra.mxu0 0
    %2878 = vmatprep.subr.bf16.mxu0 0
    %2879 = vmatpush2.bf16.msra.mxu0 0
    %2880 = vmatprep.subr.bf16.mxu0 0
    %2881 = vmatpush2.bf16.msra.mxu0 0
    %2882 = vmatprep.mubr.bf16.mxu0 0
    %2883 = vmatmul.mubr.bf16.gmra.mxu0 %v424
    %v2884 = vpop.f32.mrf.mxu0
    %v2885 = vadd.f32 0.0, %v2884
    %v2886 = vpop.f32.mrf.mxu0
    %v2887 = vpop.f32.mrf.mxu0
    %v2888 = vpop.f32.mrf.mxu0
    %2889 = vdwg.mxu0
    %v2890 = vadd.f32 %v2589, %v2885
    %v2891 = vadd.f32 %v2890, %v473
    %s2892 = sadd.s32 %s76, 9
    %s2893 = smul.u32 %s2892, 8
    %s2894 = scalar_lea.vmem %s13, %s2893
    %2895 = vst [vmem:[%s2894] sm:$0xff] %v2891
    %v2896 = vpack.c.bf16 %v2891, %v2891
    %v2898 = vsel %vm96, %v2896, 0
    %2900 = vmatprep.subr.bf16.mxu0 0
    %2901 = vmatpush1.bf16.msra.mxu0 0
    %2902 = vmatprep.subr.bf16.mxu0 0
    %2903 = vmatpush1.bf16.msra.mxu0 0
    %2904 = vmatprep.subr.bf16.mxu0 0
    %2905 = vmatpush1.bf16.msra.mxu0 0
    %2906 = vmatprep.subr.bf16.mxu0 0
    %2907 = vmatpush1.bf16.msra.mxu0 0
    %2908 = vmatprep.subr.bf16.mxu0 0
    %2909 = vmatpush1.bf16.msra.mxu0 0
    %2910 = vmatprep.subr.bf16.mxu0 0
    %2911 = vmatpush1.bf16.msra.mxu0 0
    %2912 = vmatprep.subr.bf16.mxu0 0
    %2913 = vmatpush1.bf16.msra.mxu0 0
    %2914 = vmatprep.subr.bf16.mxu0 0
    %2915 = vmatpush1.bf16.msra.mxu0 %v2898
    %2916 = vmatprep.subr.bf16.mxu0 0
    %2917 = vmatpush2.bf16.msra.mxu0 0
    %2918 = vmatprep.subr.bf16.mxu0 0
    %2919 = vmatpush2.bf16.msra.mxu0 0
    %2920 = vmatprep.subr.bf16.mxu0 0
    %2921 = vmatpush2.bf16.msra.mxu0 0
    %2922 = vmatprep.subr.bf16.mxu0 0
    %2923 = vmatpush2.bf16.msra.mxu0 0
    %2924 = vmatprep.subr.bf16.mxu0 0
    %2925 = vmatpush2.bf16.msra.mxu0 0
    %2926 = vmatprep.subr.bf16.mxu0 0
    %2927 = vmatpush2.bf16.msra.mxu0 0
    %2928 = vmatprep.subr.bf16.mxu0 0
    %2929 = vmatpush2.bf16.msra.mxu0 0
    %2930 = vmatprep.subr.bf16.mxu0 0
    %2931 = vmatpush2.bf16.msra.mxu0 0
    %2932 = vmatprep.mubr.bf16.mxu0 0
    %2933 = vmatmul.mubr.bf16.gmra.mxu0 %v91
    %v2934 = vpop.f32.mrf.mxu0
    %v2935 = vadd.f32 0.0, %v2934
    %v2936 = vpop.f32.mrf.mxu0
    %v2937 = vpop.f32.mrf.mxu0
    %v2938 = vadd.f32 0.0, %v2937
    %v2939 = vpop.f32.mrf.mxu0
    %2940 = vmatprep.mubr.bf16.mxu0 0
    %2941 = vmatmul.mubr.bf16.gmra.mxu0 %v94
    %v2942 = vpop.f32.mrf.mxu0
    %v2943 = vadd.f32 0.0, %v2942
    %v2944 = vpop.f32.mrf.mxu0
    %v2945 = vpop.f32.mrf.mxu0
    %v2946 = vpop.f32.mrf.mxu0
    %2947 = vdwg.mxu0
    %v2948 = vtanh.pop %v2935
    %v2949 = vpack.c.bf16 %v2948, %v2948
    %v2951 = vsel %vm159, %v2949, 0
    %2953 = vmatprep.subr.bf16.mxu0 0
    %2954 = vmatpush1.bf16.msra.mxu0 0
    %2955 = vmatprep.subr.bf16.mxu0 0
    %2956 = vmatpush1.bf16.msra.mxu0 0
    %2957 = vmatprep.subr.bf16.mxu0 0
    %2958 = vmatpush1.bf16.msra.mxu0 0
    %2959 = vmatprep.subr.bf16.mxu0 0
    %2960 = vmatpush1.bf16.msra.mxu0 0
    %2961 = vmatprep.subr.bf16.mxu0 0
    %2962 = vmatpush1.bf16.msra.mxu0 0
    %2963 = vmatprep.subr.bf16.mxu0 0
    %2964 = vmatpush1.bf16.msra.mxu0 0
    %2965 = vmatprep.subr.bf16.mxu0 0
    %2966 = vmatpush1.bf16.msra.mxu0 0
    %2967 = vmatprep.subr.bf16.mxu0 0
    %2968 = vmatpush1.bf16.msra.mxu0 %v2951
    %2969 = vmatprep.subr.bf16.mxu0 0
    %2970 = vmatpush2.bf16.msra.mxu0 0
    %2971 = vmatprep.subr.bf16.mxu0 0
    %2972 = vmatpush2.bf16.msra.mxu0 0
    %2973 = vmatprep.subr.bf16.mxu0 0
    %2974 = vmatpush2.bf16.msra.mxu0 0
    %2975 = vmatprep.subr.bf16.mxu0 0
    %2976 = vmatpush2.bf16.msra.mxu0 0
    %2977 = vmatprep.subr.bf16.mxu0 0
    %2978 = vmatpush2.bf16.msra.mxu0 0
    %2979 = vmatprep.subr.bf16.mxu0 0
    %2980 = vmatpush2.bf16.msra.mxu0 0
    %2981 = vmatprep.subr.bf16.mxu0 0
    %2982 = vmatpush2.bf16.msra.mxu0 0
    %2983 = vmatprep.subr.bf16.mxu0 0
    %2984 = vmatpush2.bf16.msra.mxu0 0
    %2985 = vmatprep.mubr.bf16.mxu0 0
    %2986 = vmatmul.mubr.bf16.gmra.mxu0 %v157
    %v2987 = vpop.f32.mrf.mxu0
    %v2988 = vadd.f32 0.0, %v2987
    %v2989 = vpop.f32.mrf.mxu0
    %v2990 = vpop.f32.mrf.mxu0
    %v2991 = vadd.f32 0.0, %v2990
    %v2992 = vpop.f32.mrf.mxu0
    %2993 = vdwg.mxu0
    %v2994 = vadd.f32 %v2938, %v2988
    %v2995 = vadd.f32 %v2943, %v2991
    %v2996 = vmax.f32 %v2994, 0.0
    %v2997 = vmax.f32 %v2995, 0.0
    %v2998 = vmin.f32 %v2996, 6.0
    %v2999 = vmin.f32 %v2997, 6.0
    %v3000 = vpack.c.bf16 %v2999, %v2998
    %3001 = vmatprep.subr.bf16.mxu0 0
    %3002 = vmatpush1.bf16.msra.mxu0 0
    %3003 = vmatprep.subr.bf16.mxu0 0
    %3004 = vmatpush1.bf16.msra.mxu0 0
    %3005 = vmatprep.subr.bf16.mxu0 0
    %3006 = vmatpush1.bf16.msra.mxu0 0
    %3007 = vmatprep.subr.bf16.mxu0 0
    %3008 = vmatpush1.bf16.msra.mxu0 0
    %3009 = vmatprep.subr.bf16.mxu0 0
    %3010 = vmatpush1.bf16.msra.mxu0 0
    %3011 = vmatprep.subr.bf16.mxu0 0
    %3012 = vmatpush1.bf16.msra.mxu0 0
    %3013 = vmatprep.subr.bf16.mxu0 0
    %3014 = vmatpush1.bf16.msra.mxu0 0
    %3015 = vmatprep.subr.bf16.mxu0 0
    %3016 = vmatpush1.bf16.msra.mxu0 %v3000
    %3017 = vmatprep.subr.bf16.mxu0 0
    %3018 = vmatpush2.bf16.msra.mxu0 0
    %3019 = vmatprep.subr.bf16.mxu0 0
    %3020 = vmatpush2.bf16.msra.mxu0 0
    %3021 = vmatprep.subr.bf16.mxu0 0
    %3022 = vmatpush2.bf16.msra.mxu0 0
    %3023 = vmatprep.subr.bf16.mxu0 0
    %3024 = vmatpush2.bf16.msra.mxu0 0
    %3025 = vmatprep.subr.bf16.mxu0 0
    %3026 = vmatpush2.bf16.msra.mxu0 0
    %3027 = vmatprep.subr.bf16.mxu0 0
    %3028 = vmatpush2.bf16.msra.mxu0 0
    %3029 = vmatprep.subr.bf16.mxu0 0
    %3030 = vmatpush2.bf16.msra.mxu0 0
    %3031 = vmatprep.subr.bf16.mxu0 0
    %3032 = vmatpush2.bf16.msra.mxu0 0
    %3033 = vmatprep.mubr.bf16.mxu0 0
    %3034 = vmatmul.mubr.bf16.gmra.mxu0 %v243
    %v3035 = vpop.f32.mrf.mxu0
    %v3036 = vadd.f32 %v214, %v3035
    %v3037 = vpop.f32.mrf.mxu0
    %v3038 = vpop.f32.mrf.mxu0
    %v3039 = vadd.f32 %v219, %v3038
    %v3040 = vpop.f32.mrf.mxu0
    %3041 = vmatprep.mubr.bf16.mxu0 0
    %3042 = vmatmul.mubr.bf16.gmra.mxu0 %v246
    %v3043 = vpop.f32.mrf.mxu0
    %v3044 = vadd.f32 %v224, %v3043
    %v3045 = vpop.f32.mrf.mxu0
    %v3046 = vpop.f32.mrf.mxu0
    %v3047 = vadd.f32 %v229, %v3046
    %v3048 = vpop.f32.mrf.mxu0
    %3049 = vdwg.mxu0
    %v3050 = vmax.f32 %v3036, 0.0
    %v3051 = vmax.f32 %v3039, 0.0
    %v3052 = vmax.f32 %v3044, 0.0
    %v3053 = vmax.f32 %v3047, 0.0
    %v3054 = vmin.f32 %v3050, 6.0
    %v3055 = vmin.f32 %v3051, 6.0
    %v3056 = vmin.f32 %v3052, 6.0
    %v3057 = vmin.f32 %v3053, 6.0
    %v3058 = vpack.c.bf16 %v3055, %v3054
    %v3059 = vpack.c.bf16 %v3057, %v3056
    %3060 = vmatprep.subr.bf16.mxu0 0
    %3061 = vmatpush1.bf16.msra.mxu0 0
    %3062 = vmatprep.subr.bf16.mxu0 0
    %3063 = vmatpush1.bf16.msra.mxu0 0
    %3064 = vmatprep.subr.bf16.mxu0 0
    %3065 = vmatpush1.bf16.msra.mxu0 0
    %3066 = vmatprep.subr.bf16.mxu0 0
    %3067 = vmatpush1.bf16.msra.mxu0 0
    %3068 = vmatprep.subr.bf16.mxu0 0
    %3069 = vmatpush1.bf16.msra.mxu0 0
    %3070 = vmatprep.subr.bf16.mxu0 0
    %3071 = vmatpush1.bf16.msra.mxu0 0
    %3072 = vmatprep.subr.bf16.mxu0 0
    %3073 = vmatpush1.bf16.msra.mxu0 %v3059
    %3074 = vmatprep.subr.bf16.mxu0 0
    %3075 = vmatpush1.bf16.msra.mxu0 %v3058
    %3076 = vmatprep.subr.bf16.mxu0 0
    %3077 = vmatpush2.bf16.msra.mxu0 0
    %3078 = vmatprep.subr.bf16.mxu0 0
    %3079 = vmatpush2.bf16.msra.mxu0 0
    %3080 = vmatprep.subr.bf16.mxu0 0
    %3081 = vmatpush2.bf16.msra.mxu0 0
    %3082 = vmatprep.subr.bf16.mxu0 0
    %3083 = vmatpush2.bf16.msra.mxu0 0
    %3084 = vmatprep.subr.bf16.mxu0 0
    %3085 = vmatpush2.bf16.msra.mxu0 0
    %3086 = vmatprep.subr.bf16.mxu0 0
    %3087 = vmatpush2.bf16.msra.mxu0 0
    %3088 = vmatprep.subr.bf16.mxu0 0
    %3089 = vmatpush2.bf16.msra.mxu0 0
    %3090 = vmatprep.subr.bf16.mxu0 0
    %3091 = vmatpush2.bf16.msra.mxu0 0
    %3092 = vmatprep.mubr.bf16.mxu0 0
    %3093 = vmatmul.mubr.bf16.gmra.mxu0 %v324
    %v3094 = vpop.f32.mrf.mxu0
    %v3095 = vadd.f32 %v310, %v3094
    %v3096 = vpop.f32.mrf.mxu0
    %v3097 = vpop.f32.mrf.mxu0
    %v3098 = vadd.f32 %v315, %v3097
    %v3099 = vpop.f32.mrf.mxu0
    %3100 = vdwg.mxu0
    %v3101 = vmax.f32 %v3095, 0.0
    %v3102 = vmax.f32 %v3098, 0.0
    %v3103 = vmin.f32 %v3101, 6.0
    %v3104 = vmin.f32 %v3102, 6.0
    %v3105 = vpack.c.bf16 %v3104, %v3103
    %3106 = vmatprep.subr.bf16.mxu0 0
    %3107 = vmatpush1.bf16.msra.mxu0 0
    %3108 = vmatprep.subr.bf16.mxu0 0
    %3109 = vmatpush1.bf16.msra.mxu0 0
    %3110 = vmatprep.subr.bf16.mxu0 0
    %3111 = vmatpush1.bf16.msra.mxu0 0
    %3112 = vmatprep.subr.bf16.mxu0 0
    %3113 = vmatpush1.bf16.msra.mxu0 0
    %3114 = vmatprep.subr.bf16.mxu0 0
    %3115 = vmatpush1.bf16.msra.mxu0 0
    %3116 = vmatprep.subr.bf16.mxu0 0
    %3117 = vmatpush1.bf16.msra.mxu0 0
    %3118 = vmatprep.subr.bf16.mxu0 0
    %3119 = vmatpush1.bf16.msra.mxu0 0
    %3120 = vmatprep.subr.bf16.mxu0 0
    %3121 = vmatpush1.bf16.msra.mxu0 %v3105
    %3122 = vmatprep.subr.bf16.mxu0 0
    %3123 = vmatpush2.bf16.msra.mxu0 0
    %3124 = vmatprep.subr.bf16.mxu0 0
    %3125 = vmatpush2.bf16.msra.mxu0 0
    %3126 = vmatprep.subr.bf16.mxu0 0
    %3127 = vmatpush2.bf16.msra.mxu0 0
    %3128 = vmatprep.subr.bf16.mxu0 0
    %3129 = vmatpush2.bf16.msra.mxu0 0
    %3130 = vmatprep.subr.bf16.mxu0 0
    %3131 = vmatpush2.bf16.msra.mxu0 0
    %3132 = vmatprep.subr.bf16.mxu0 0
    %3133 = vmatpush2.bf16.msra.mxu0 0
    %3134 = vmatprep.subr.bf16.mxu0 0
    %3135 = vmatpush2.bf16.msra.mxu0 0
    %3136 = vmatprep.subr.bf16.mxu0 0
    %3137 = vmatpush2.bf16.msra.mxu0 0
    %3138 = vmatprep.mubr.bf16.mxu0 0
    %3139 = vmatmul.mubr.bf16.gmra.mxu0 %v378
    %v3140 = vpop.f32.mrf.mxu0
    %v3141 = vadd.f32 %v375, %v3140
    %v3142 = vpop.f32.mrf.mxu0
    %v3143 = vpop.f32.mrf.mxu0
    %v3144 = vpop.f32.mrf.mxu0
    %3145 = vdwg.mxu0
    %v3146 = vmax.f32 %v3141, 0.0
    %v3147 = vmin.f32 %v3146, 6.0
    %v3148 = vpack.c.bf16 %v3147, %v3147
    %v3150 = vsel %vm96, %v3148, 0
    %3152 = vmatprep.subr.bf16.mxu0 0
    %3153 = vmatpush1.bf16.msra.mxu0 0
    %3154 = vmatprep.subr.bf16.mxu0 0
    %3155 = vmatpush1.bf16.msra.mxu0 0
    %3156 = vmatprep.subr.bf16.mxu0 0
    %3157 = vmatpush1.bf16.msra.mxu0 0
    %3158 = vmatprep.subr.bf16.mxu0 0
    %3159 = vmatpush1.bf16.msra.mxu0 0
    %3160 = vmatprep.subr.bf16.mxu0 0
    %3161 = vmatpush1.bf16.msra.mxu0 0
    %3162 = vmatprep.subr.bf16.mxu0 0
    %3163 = vmatpush1.bf16.msra.mxu0 0
    %3164 = vmatprep.subr.bf16.mxu0 0
    %3165 = vmatpush1.bf16.msra.mxu0 0
    %3166 = vmatprep.subr.bf16.mxu0 0
    %3167 = vmatpush1.bf16.msra.mxu0 %v3150
    %3168 = vmatprep.subr.bf16.mxu0 0
    %3169 = vmatpush2.bf16.msra.mxu0 0
    %3170 = vmatprep.subr.bf16.mxu0 0
    %3171 = vmatpush2.bf16.msra.mxu0 0
    %3172 = vmatprep.subr.bf16.mxu0 0
    %3173 = vmatpush2.bf16.msra.mxu0 0
    %3174 = vmatprep.subr.bf16.mxu0 0
    %3175 = vmatpush2.bf16.msra.mxu0 0
    %3176 = vmatprep.subr.bf16.mxu0 0
    %3177 = vmatpush2.bf16.msra.mxu0 0
    %3178 = vmatprep.subr.bf16.mxu0 0
    %3179 = vmatpush2.bf16.msra.mxu0 0
    %3180 = vmatprep.subr.bf16.mxu0 0
    %3181 = vmatpush2.bf16.msra.mxu0 0
    %3182 = vmatprep.subr.bf16.mxu0 0
    %3183 = vmatpush2.bf16.msra.mxu0 0
    %3184 = vmatprep.mubr.bf16.mxu0 0
    %3185 = vmatmul.mubr.bf16.gmra.mxu0 %v424
    %v3186 = vpop.f32.mrf.mxu0
    %v3187 = vadd.f32 0.0, %v3186
    %v3188 = vpop.f32.mrf.mxu0
    %v3189 = vpop.f32.mrf.mxu0
    %v3190 = vpop.f32.mrf.mxu0
    %3191 = vdwg.mxu0
    %v3192 = vadd.f32 %v2891, %v3187
    %v3193 = vadd.f32 %v3192, %v473
  $region58: #{worldnet_forward.1} parent=0 // loop_footer
    %s74 = sadd.s32 1, %s70
  $region59: #{worldnet_forward.1} parent=0 // loop_footer_branch
    %69 = sbr.rel target = $region55
  $region60: #{worldnet_forward.1} parent=0 // loop_exit
    _
  %v3194 = vld [vmem:[%s11] sm:$0xff]
  %v3195 = vld [vmem:[%s12] sm:$0xff]
  %s3196 = scalar_lea.vmem %s13, 8
  %v3197 = vld [vmem:[%s3196] sm:$0xff]
  %v3198 = vld [vmem:[%s3196 + $0x8] sm:$0xff]
  %v3199 = vld [vmem:[%s3196 + $0x10] sm:$0xff]
  %v3200 = vld [vmem:[%s3196 + $0x18] sm:$0xff]
  %v3201 = vld [vmem:[%s3196 + $0x20] sm:$0xff]
  %v3202 = vld [vmem:[%s3196 + $0x28] sm:$0xff]
  %v3203 = vld [vmem:[%s3196 + $0x30] sm:$0xff]
  %v3204 = vld [vmem:[%s3196 + $0x38] sm:$0xff]
  %v3205 = vld [vmem:[%s3196 + $0x40] sm:$0xff]
  %v3206 = vld [vmem:[%s3196 + $0x48] sm:$0xff]
  %v3207 = vld [vmem:[%s3196 + $0x50] sm:$0xff]
  %v3208 = vld [vmem:[%s3196 + $0x58] sm:$0xff]
  %v3209 = vld [vmem:[%s3196 + $0x60] sm:$0xff]
  %v3210 = vld [vmem:[%s3196 + $0x68] sm:$0xff]
  %v3211 = vld [vmem:[%s3196 + $0x70] sm:$0xff]
  %v3212 = vld [vmem:[%s3196 + $0x78] sm:$0xff]
  %v3213 = vld [vmem:[%s3196 + $0x80] sm:$0xff]
  %v3214 = vld [vmem:[%s3196 + $0x88] sm:$0xff]
  %v3215 = vld [vmem:[%s3196 + $0x90] sm:$0xff]
  %v3216 = vld [vmem:[%s3196 + $0x98] sm:$0xff]
  %v3217 = vld [vmem:[%s3196 + $0xa0] sm:$0xff]
  %v3218 = vld [vmem:[%s3196 + $0xa8] sm:$0xff]
  %v3219 = vld [vmem:[%s3196 + $0xb0] sm:$0xff]
  %v3220 = vld [vmem:[%s3196 + $0xb8] sm:$0xff]
  %v3221 = vld [vmem:[%s3196 + $0xc0] sm:$0xff]
  %v3222 = vld [vmem:[%s3196 + $0xc8] sm:$0xff]
  %v3223 = vld [vmem:[%s3196 + $0xd0] sm:$0xff]
  %v3224 = vld [vmem:[%s3196 + $0xd8] sm:$0xff]
  %v3225 = vld [vmem:[%s3196 + $0xe0] sm:$0xff]
  %v3226 = vld [vmem:[%s3196 + $0xe8] sm:$0xff]
  %v3227 = vld [vmem:[%s3196 + $0xf0] sm:$0xff]
  %v3228 = vld [vmem:[%s3196 + $0xf8] sm:$0xff]
  %v3229 = vld [vmem:[%s3196 + $0x100] sm:$0xff]
  %3231 = vset.pattern.permute.xlu0 0
  %3232 = vperm.xlu0 %3231, %v3194
  %v3233 = vpop.permute.xlu0 %3232
  %v3235 = vmul.f32 %v3197, %v3233
  %v3236 = vmul.f32 %v3198, %v3233
  %v3237 = vmul.f32 %v3199, %v3233
  %v3238 = vmul.f32 %v3200, %v3233
  %v3239 = vmul.f32 %v3201, %v3233
  %v3240 = vmul.f32 %v3202, %v3233
  %v3241 = vmul.f32 %v3203, %v3233
  %v3242 = vmul.f32 %v3204, %v3233
  %v3243 = vmul.f32 %v3205, %v3233
  %v3244 = vmul.f32 %v3206, %v3233
  %v3245 = vmul.f32 %v3207, %v3233
  %v3246 = vmul.f32 %v3208, %v3233
  %v3247 = vmul.f32 %v3209, %v3233
  %v3248 = vmul.f32 %v3210, %v3233
  %v3249 = vmul.f32 %v3211, %v3233
  %v3250 = vmul.f32 %v3212, %v3233
  %v3251 = vmul.f32 %v3213, %v3233
  %v3252 = vmul.f32 %v3214, %v3233
  %v3253 = vmul.f32 %v3215, %v3233
  %v3254 = vmul.f32 %v3216, %v3233
  %v3255 = vmul.f32 %v3217, %v3233
  %v3256 = vmul.f32 %v3218, %v3233
  %v3257 = vmul.f32 %v3219, %v3233
  %v3258 = vmul.f32 %v3220, %v3233
  %v3259 = vmul.f32 %v3221, %v3233
  %v3260 = vmul.f32 %v3222, %v3233
  %v3261 = vmul.f32 %v3223, %v3233
  %v3262 = vmul.f32 %v3224, %v3233
  %v3263 = vmul.f32 %v3225, %v3233
  %v3264 = vmul.f32 %v3226, %v3233
  %v3265 = vmul.f32 %v3227, %v3233
  %v3266 = vmul.f32 %v3228, %v3233
  %v3267 = vmul.f32 %v3229, %v3233
  %v3268 = vrot.slane %v3235, 4
  %v3269 = vadd.f32 %v3235, %v3268
  %v3270 = vrot.slane %v3269, 2
  %v3271 = vadd.f32 %v3269, %v3270
  %v3272 = vrot.slane %v3271, 1
  %v3273 = vadd.f32 %v3271, %v3272
  %v3274 = vrot.slane %v3236, 4
  %v3275 = vadd.f32 %v3236, %v3274
  %v3276 = vrot.slane %v3275, 2
  %v3277 = vadd.f32 %v3275, %v3276
  %v3278 = vrot.slane %v3277, 1
  %v3279 = vadd.f32 %v3277, %v3278
  %v3280 = vrot.slane %v3237, 4
  %v3281 = vadd.f32 %v3237, %v3280
  %v3282 = vrot.slane %v3281, 2
  %v3283 = vadd.f32 %v3281, %v3282
  %v3284 = vrot.slane %v3283, 1
  %v3285 = vadd.f32 %v3283, %v3284
  %v3286 = vrot.slane %v3238, 4
  %v3287 = vadd.f32 %v3238, %v3286
  %v3288 = vrot.slane %v3287, 2
  %v3289 = vadd.f32 %v3287, %v3288
  %v3290 = vrot.slane %v3289, 1
  %v3291 = vadd.f32 %v3289, %v3290
  %v3292 = vrot.slane %v3239, 4
  %v3293 = vadd.f32 %v3239, %v3292
  %v3294 = vrot.slane %v3293, 2
  %v3295 = vadd.f32 %v3293, %v3294
  %v3296 = vrot.slane %v3295, 1
  %v3297 = vadd.f32 %v3295, %v3296
  %v3298 = vrot.slane %v3240, 4
  %v3299 = vadd.f32 %v3240, %v3298
  %v3300 = vrot.slane %v3299, 2
  %v3301 = vadd.f32 %v3299, %v3300
  %v3302 = vrot.slane %v3301, 1
  %v3303 = vadd.f32 %v3301, %v3302
  %v3304 = vrot.slane %v3241, 4
  %v3305 = vadd.f32 %v3241, %v3304
  %v3306 = vrot.slane %v3305, 2
  %v3307 = vadd.f32 %v3305, %v3306
  %v3308 = vrot.slane %v3307, 1
  %v3309 = vadd.f32 %v3307, %v3308
  %v3310 = vrot.slane %v3242, 4
  %v3311 = vadd.f32 %v3242, %v3310
  %v3312 = vrot.slane %v3311, 2
  %v3313 = vadd.f32 %v3311, %v3312
  %v3314 = vrot.slane %v3313, 1
  %v3315 = vadd.f32 %v3313, %v3314
  %v3316 = vrot.slane %v3243, 4
  %v3317 = vadd.f32 %v3243, %v3316
  %v3318 = vrot.slane %v3317, 2
  %v3319 = vadd.f32 %v3317, %v3318
  %v3320 = vrot.slane %v3319, 1
  %v3321 = vadd.f32 %v3319, %v3320
  %v3322 = vrot.slane %v3244, 4
  %v3323 = vadd.f32 %v3244, %v3322
  %v3324 = vrot.slane %v3323, 2
  %v3325 = vadd.f32 %v3323, %v3324
  %v3326 = vrot.slane %v3325, 1
  %v3327 = vadd.f32 %v3325, %v3326
  %v3328 = vrot.slane %v3245, 4
  %v3329 = vadd.f32 %v3245, %v3328
  %v3330 = vrot.slane %v3329, 2
  %v3331 = vadd.f32 %v3329, %v3330
  %v3332 = vrot.slane %v3331, 1
  %v3333 = vadd.f32 %v3331, %v3332
  %v3334 = vrot.slane %v3246, 4
  %v3335 = vadd.f32 %v3246, %v3334
  %v3336 = vrot.slane %v3335, 2
  %v3337 = vadd.f32 %v3335, %v3336
  %v3338 = vrot.slane %v3337, 1
  %v3339 = vadd.f32 %v3337, %v3338
  %v3340 = vrot.slane %v3247, 4
  %v3341 = vadd.f32 %v3247, %v3340
  %v3342 = vrot.slane %v3341, 2
  %v3343 = vadd.f32 %v3341, %v3342
  %v3344 = vrot.slane %v3343, 1
  %v3345 = vadd.f32 %v3343, %v3344
  %v3346 = vrot.slane %v3248, 4
  %v3347 = vadd.f32 %v3248, %v3346
  %v3348 = vrot.slane %v3347, 2
  %v3349 = vadd.f32 %v3347, %v3348
  %v3350 = vrot.slane %v3349, 1
  %v3351 = vadd.f32 %v3349, %v3350
  %v3352 = vrot.slane %v3249, 4
  %v3353 = vadd.f32 %v3249, %v3352
  %v3354 = vrot.slane %v3353, 2
  %v3355 = vadd.f32 %v3353, %v3354
  %v3356 = vrot.slane %v3355, 1
  %v3357 = vadd.f32 %v3355, %v3356
  %v3358 = vrot.slane %v3250, 4
  %v3359 = vadd.f32 %v3250, %v3358
  %v3360 = vrot.slane %v3359, 2
  %v3361 = vadd.f32 %v3359, %v3360
  %v3362 = vrot.slane %v3361, 1
  %v3363 = vadd.f32 %v3361, %v3362
  %v3364 = vrot.slane %v3251, 4
  %v3365 = vadd.f32 %v3251, %v3364
  %v3366 = vrot.slane %v3365, 2
  %v3367 = vadd.f32 %v3365, %v3366
  %v3368 = vrot.slane %v3367, 1
  %v3369 = vadd.f32 %v3367, %v3368
  %v3370 = vrot.slane %v3252, 4
  %v3371 = vadd.f32 %v3252, %v3370
  %v3372 = vrot.slane %v3371, 2
  %v3373 = vadd.f32 %v3371, %v3372
  %v3374 = vrot.slane %v3373, 1
  %v3375 = vadd.f32 %v3373, %v3374
  %v3376 = vrot.slane %v3253, 4
  %v3377 = vadd.f32 %v3253, %v3376
  %v3378 = vrot.slane %v3377, 2
  %v3379 = vadd.f32 %v3377, %v3378
  %v3380 = vrot.slane %v3379, 1
  %v3381 = vadd.f32 %v3379, %v3380
  %v3382 = vrot.slane %v3254, 4
  %v3383 = vadd.f32 %v3254, %v3382
  %v3384 = vrot.slane %v3383, 2
  %v3385 = vadd.f32 %v3383, %v3384
  %v3386 = vrot.slane %v3385, 1
  %v3387 = vadd.f32 %v3385, %v3386
  %v3388 = vrot.slane %v3255, 4
  %v3389 = vadd.f32 %v3255, %v3388
  %v3390 = vrot.slane %v3389, 2
  %v3391 = vadd.f32 %v3389, %v3390
  %v3392 = vrot.slane %v3391, 1
  %v3393 = vadd.f32 %v3391, %v3392
  %v3394 = vrot.slane %v3256, 4
  %v3395 = vadd.f32 %v3256, %v3394
  %v3396 = vrot.slane %v3395, 2
  %v3397 = vadd.f32 %v3395, %v3396
  %v3398 = vrot.slane %v3397, 1
  %v3399 = vadd.f32 %v3397, %v3398
  %v3400 = vrot.slane %v3257, 4
  %v3401 = vadd.f32 %v3257, %v3400
  %v3402 = vrot.slane %v3401, 2
  %v3403 = vadd.f32 %v3401, %v3402
  %v3404 = vrot.slane %v3403, 1
  %v3405 = vadd.f32 %v3403, %v3404
  %v3406 = vrot.slane %v3258, 4
  %v3407 = vadd.f32 %v3258, %v3406
  %v3408 = vrot.slane %v3407, 2
  %v3409 = vadd.f32 %v3407, %v3408
  %v3410 = vrot.slane %v3409, 1
  %v3411 = vadd.f32 %v3409, %v3410
  %v3412 = vrot.slane %v3259, 4
  %v3413 = vadd.f32 %v3259, %v3412
  %v3414 = vrot.slane %v3413, 2
  %v3415 = vadd.f32 %v3413, %v3414
  %v3416 = vrot.slane %v3415, 1
  %v3417 = vadd.f32 %v3415, %v3416
  %v3418 = vrot.slane %v3260, 4
  %v3419 = vadd.f32 %v3260, %v3418
  %v3420 = vrot.slane %v3419, 2
  %v3421 = vadd.f32 %v3419, %v3420
  %v3422 = vrot.slane %v3421, 1
  %v3423 = vadd.f32 %v3421, %v3422
  %v3424 = vrot.slane %v3261, 4
  %v3425 = vadd.f32 %v3261, %v3424
  %v3426 = vrot.slane %v3425, 2
  %v3427 = vadd.f32 %v3425, %v3426
  %v3428 = vrot.slane %v3427, 1
  %v3429 = vadd.f32 %v3427, %v3428
  %v3430 = vrot.slane %v3262, 4
  %v3431 = vadd.f32 %v3262, %v3430
  %v3432 = vrot.slane %v3431, 2
  %v3433 = vadd.f32 %v3431, %v3432
  %v3434 = vrot.slane %v3433, 1
  %v3435 = vadd.f32 %v3433, %v3434
  %v3436 = vrot.slane %v3263, 4
  %v3437 = vadd.f32 %v3263, %v3436
  %v3438 = vrot.slane %v3437, 2
  %v3439 = vadd.f32 %v3437, %v3438
  %v3440 = vrot.slane %v3439, 1
  %v3441 = vadd.f32 %v3439, %v3440
  %v3442 = vrot.slane %v3264, 4
  %v3443 = vadd.f32 %v3264, %v3442
  %v3444 = vrot.slane %v3443, 2
  %v3445 = vadd.f32 %v3443, %v3444
  %v3446 = vrot.slane %v3445, 1
  %v3447 = vadd.f32 %v3445, %v3446
  %v3448 = vrot.slane %v3265, 4
  %v3449 = vadd.f32 %v3265, %v3448
  %v3450 = vrot.slane %v3449, 2
  %v3451 = vadd.f32 %v3449, %v3450
  %v3452 = vrot.slane %v3451, 1
  %v3453 = vadd.f32 %v3451, %v3452
  %v3454 = vrot.slane %v3266, 4
  %v3455 = vadd.f32 %v3266, %v3454
  %v3456 = vrot.slane %v3455, 2
  %v3457 = vadd.f32 %v3455, %v3456
  %v3458 = vrot.slane %v3457, 1
  %v3459 = vadd.f32 %v3457, %v3458
  %v3460 = vrot.slane %v3267, 4
  %v3461 = vadd.f32 %v3267, %v3460
  %v3462 = vrot.slane %v3461, 2
  %v3463 = vadd.f32 %v3461, %v3462
  %v3464 = vrot.slane %v3463, 1
  %v3465 = vadd.f32 %v3463, %v3464
  %3467 = vset.pattern.permute.xlu0 0
  %3468 = vperm.xlu0 %3467, %v3195
  %v3469 = vpop.permute.xlu0 %3468
  %v3471 = vmul.f32 %v3197, %v3469
  %v3472 = vmul.f32 %v3198, %v3469
  %v3473 = vmul.f32 %v3199, %v3469
  %v3474 = vmul.f32 %v3200, %v3469
  %v3475 = vmul.f32 %v3201, %v3469
  %v3476 = vmul.f32 %v3202, %v3469
  %v3477 = vmul.f32 %v3203, %v3469
  %v3478 = vmul.f32 %v3204, %v3469
  %v3479 = vmul.f32 %v3205, %v3469
  %v3480 = vmul.f32 %v3206, %v3469
  %v3481 = vmul.f32 %v3207, %v3469
  %v3482 = vmul.f32 %v3208, %v3469
  %v3483 = vmul.f32 %v3209, %v3469
  %v3484 = vmul.f32 %v3210, %v3469
  %v3485 = vmul.f32 %v3211, %v3469
  %v3486 = vmul.f32 %v3212, %v3469
  %v3487 = vmul.f32 %v3213, %v3469
  %v3488 = vmul.f32 %v3214, %v3469
  %v3489 = vmul.f32 %v3215, %v3469
  %v3490 = vmul.f32 %v3216, %v3469
  %v3491 = vmul.f32 %v3217, %v3469
  %v3492 = vmul.f32 %v3218, %v3469
  %v3493 = vmul.f32 %v3219, %v3469
  %v3494 = vmul.f32 %v3220, %v3469
  %v3495 = vmul.f32 %v3221, %v3469
  %v3496 = vmul.f32 %v3222, %v3469
  %v3497 = vmul.f32 %v3223, %v3469
  %v3498 = vmul.f32 %v3224, %v3469
  %v3499 = vmul.f32 %v3225, %v3469
  %v3500 = vmul.f32 %v3226, %v3469
  %v3501 = vmul.f32 %v3227, %v3469
  %v3502 = vmul.f32 %v3228, %v3469
  %v3503 = vmul.f32 %v3229, %v3469
  %v3504 = vrot.slane %v3471, 4
  %v3505 = vadd.f32 %v3471, %v3504
  %v3506 = vrot.slane %v3505, 2
  %v3507 = vadd.f32 %v3505, %v3506
  %v3508 = vrot.slane %v3507, 1
  %v3509 = vadd.f32 %v3507, %v3508
  %v3510 = vrot.slane %v3472, 4
  %v3511 = vadd.f32 %v3472, %v3510
  %v3512 = vrot.slane %v3511, 2
  %v3513 = vadd.f32 %v3511, %v3512
  %v3514 = vrot.slane %v3513, 1
  %v3515 = vadd.f32 %v3513, %v3514
  %v3516 = vrot.slane %v3473, 4
  %v3517 = vadd.f32 %v3473, %v3516
  %v3518 = vrot.slane %v3517, 2
  %v3519 = vadd.f32 %v3517, %v3518
  %v3520 = vrot.slane %v3519, 1
  %v3521 = vadd.f32 %v3519, %v3520
  %v3522 = vrot.slane %v3474, 4
  %v3523 = vadd.f32 %v3474, %v3522
  %v3524 = vrot.slane %v3523, 2
  %v3525 = vadd.f32 %v3523, %v3524
  %v3526 = vrot.slane %v3525, 1
  %v3527 = vadd.f32 %v3525, %v3526
  %v3528 = vrot.slane %v3475, 4
  %v3529 = vadd.f32 %v3475, %v3528
  %v3530 = vrot.slane %v3529, 2
  %v3531 = vadd.f32 %v3529, %v3530
  %v3532 = vrot.slane %v3531, 1
  %v3533 = vadd.f32 %v3531, %v3532
  %v3534 = vrot.slane %v3476, 4
  %v3535 = vadd.f32 %v3476, %v3534
  %v3536 = vrot.slane %v3535, 2
  %v3537 = vadd.f32 %v3535, %v3536
  %v3538 = vrot.slane %v3537, 1
  %v3539 = vadd.f32 %v3537, %v3538
  %v3540 = vrot.slane %v3477, 4
  %v3541 = vadd.f32 %v3477, %v3540
  %v3542 = vrot.slane %v3541, 2
  %v3543 = vadd.f32 %v3541, %v3542
  %v3544 = vrot.slane %v3543, 1
  %v3545 = vadd.f32 %v3543, %v3544
  %v3546 = vrot.slane %v3478, 4
  %v3547 = vadd.f32 %v3478, %v3546
  %v3548 = vrot.slane %v3547, 2
  %v3549 = vadd.f32 %v3547, %v3548
  %v3550 = vrot.slane %v3549, 1
  %v3551 = vadd.f32 %v3549, %v3550
  %v3552 = vrot.slane %v3479, 4
  %v3553 = vadd.f32 %v3479, %v3552
  %v3554 = vrot.slane %v3553, 2
  %v3555 = vadd.f32 %v3553, %v3554
  %v3556 = vrot.slane %v3555, 1
  %v3557 = vadd.f32 %v3555, %v3556
  %v3558 = vrot.slane %v3480, 4
  %v3559 = vadd.f32 %v3480, %v3558
  %v3560 = vrot.slane %v3559, 2
  %v3561 = vadd.f32 %v3559, %v3560
  %v3562 = vrot.slane %v3561, 1
  %v3563 = vadd.f32 %v3561, %v3562
  %v3564 = vrot.slane %v3481, 4
  %v3565 = vadd.f32 %v3481, %v3564
  %v3566 = vrot.slane %v3565, 2
  %v3567 = vadd.f32 %v3565, %v3566
  %v3568 = vrot.slane %v3567, 1
  %v3569 = vadd.f32 %v3567, %v3568
  %v3570 = vrot.slane %v3482, 4
  %v3571 = vadd.f32 %v3482, %v3570
  %v3572 = vrot.slane %v3571, 2
  %v3573 = vadd.f32 %v3571, %v3572
  %v3574 = vrot.slane %v3573, 1
  %v3575 = vadd.f32 %v3573, %v3574
  %v3576 = vrot.slane %v3483, 4
  %v3577 = vadd.f32 %v3483, %v3576
  %v3578 = vrot.slane %v3577, 2
  %v3579 = vadd.f32 %v3577, %v3578
  %v3580 = vrot.slane %v3579, 1
  %v3581 = vadd.f32 %v3579, %v3580
  %v3582 = vrot.slane %v3484, 4
  %v3583 = vadd.f32 %v3484, %v3582
  %v3584 = vrot.slane %v3583, 2
  %v3585 = vadd.f32 %v3583, %v3584
  %v3586 = vrot.slane %v3585, 1
  %v3587 = vadd.f32 %v3585, %v3586
  %v3588 = vrot.slane %v3485, 4
  %v3589 = vadd.f32 %v3485, %v3588
  %v3590 = vrot.slane %v3589, 2
  %v3591 = vadd.f32 %v3589, %v3590
  %v3592 = vrot.slane %v3591, 1
  %v3593 = vadd.f32 %v3591, %v3592
  %v3594 = vrot.slane %v3486, 4
  %v3595 = vadd.f32 %v3486, %v3594
  %v3596 = vrot.slane %v3595, 2
  %v3597 = vadd.f32 %v3595, %v3596
  %v3598 = vrot.slane %v3597, 1
  %v3599 = vadd.f32 %v3597, %v3598
  %v3600 = vrot.slane %v3487, 4
  %v3601 = vadd.f32 %v3487, %v3600
  %v3602 = vrot.slane %v3601, 2
  %v3603 = vadd.f32 %v3601, %v3602
  %v3604 = vrot.slane %v3603, 1
  %v3605 = vadd.f32 %v3603, %v3604
  %v3606 = vrot.slane %v3488, 4
  %v3607 = vadd.f32 %v3488, %v3606
  %v3608 = vrot.slane %v3607, 2
  %v3609 = vadd.f32 %v3607, %v3608
  %v3610 = vrot.slane %v3609, 1
  %v3611 = vadd.f32 %v3609, %v3610
  %v3612 = vrot.slane %v3489, 4
  %v3613 = vadd.f32 %v3489, %v3612
  %v3614 = vrot.slane %v3613, 2
  %v3615 = vadd.f32 %v3613, %v3614
  %v3616 = vrot.slane %v3615, 1
  %v3617 = vadd.f32 %v3615, %v3616
  %v3618 = vrot.slane %v3490, 4
  %v3619 = vadd.f32 %v3490, %v3618
  %v3620 = vrot.slane %v3619, 2
  %v3621 = vadd.f32 %v3619, %v3620
  %v3622 = vrot.slane %v3621, 1
  %v3623 = vadd.f32 %v3621, %v3622
  %v3624 = vrot.slane %v3491, 4
  %v3625 = vadd.f32 %v3491, %v3624
  %v3626 = vrot.slane %v3625, 2
  %v3627 = vadd.f32 %v3625, %v3626
  %v3628 = vrot.slane %v3627, 1
  %v3629 = vadd.f32 %v3627, %v3628
  %v3630 = vrot.slane %v3492, 4
  %v3631 = vadd.f32 %v3492, %v3630
  %v3632 = vrot.slane %v3631, 2
  %v3633 = vadd.f32 %v3631, %v3632
  %v3634 = vrot.slane %v3633, 1
  %v3635 = vadd.f32 %v3633, %v3634
  %v3636 = vrot.slane %v3493, 4
  %v3637 = vadd.f32 %v3493, %v3636
  %v3638 = vrot.slane %v3637, 2
  %v3639 = vadd.f32 %v3637, %v3638
  %v3640 = vrot.slane %v3639, 1
  %v3641 = vadd.f32 %v3639, %v3640
  %v3642 = vrot.slane %v3494, 4
  %v3643 = vadd.f32 %v3494, %v3642
  %v3644 = vrot.slane %v3643, 2
  %v3645 = vadd.f32 %v3643, %v3644
  %v3646 = vrot.slane %v3645, 1
  %v3647 = vadd.f32 %v3645, %v3646
  %v3648 = vrot.slane %v3495, 4
  %v3649 = vadd.f32 %v3495, %v3648
  %v3650 = vrot.slane %v3649, 2
  %v3651 = vadd.f32 %v3649, %v3650
  %v3652 = vrot.slane %v3651, 1
  %v3653 = vadd.f32 %v3651, %v3652
  %v3654 = vrot.slane %v3496, 4
  %v3655 = vadd.f32 %v3496, %v3654
  %v3656 = vrot.slane %v3655, 2
  %v3657 = vadd.f32 %v3655, %v3656
  %v3658 = vrot.slane %v3657, 1
  %v3659 = vadd.f32 %v3657, %v3658
  %v3660 = vrot.slane %v3497, 4
  %v3661 = vadd.f32 %v3497, %v3660
  %v3662 = vrot.slane %v3661, 2
  %v3663 = vadd.f32 %v3661, %v3662
  %v3664 = vrot.slane %v3663, 1
  %v3665 = vadd.f32 %v3663, %v3664
  %v3666 = vrot.slane %v3498, 4
  %v3667 = vadd.f32 %v3498, %v3666
  %v3668 = vrot.slane %v3667, 2
  %v3669 = vadd.f32 %v3667, %v3668
  %v3670 = vrot.slane %v3669, 1
  %v3671 = vadd.f32 %v3669, %v3670
  %v3672 = vrot.slane %v3499, 4
  %v3673 = vadd.f32 %v3499, %v3672
  %v3674 = vrot.slane %v3673, 2
  %v3675 = vadd.f32 %v3673, %v3674
  %v3676 = vrot.slane %v3675, 1
  %v3677 = vadd.f32 %v3675, %v3676
  %v3678 = vrot.slane %v3500, 4
  %v3679 = vadd.f32 %v3500, %v3678
  %v3680 = vrot.slane %v3679, 2
  %v3681 = vadd.f32 %v3679, %v3680
  %v3682 = vrot.slane %v3681, 1
  %v3683 = vadd.f32 %v3681, %v3682
  %v3684 = vrot.slane %v3501, 4
  %v3685 = vadd.f32 %v3501, %v3684
  %v3686 = vrot.slane %v3685, 2
  %v3687 = vadd.f32 %v3685, %v3686
  %v3688 = vrot.slane %v3687, 1
  %v3689 = vadd.f32 %v3687, %v3688
  %v3690 = vrot.slane %v3502, 4
  %v3691 = vadd.f32 %v3502, %v3690
  %v3692 = vrot.slane %v3691, 2
  %v3693 = vadd.f32 %v3691, %v3692
  %v3694 = vrot.slane %v3693, 1
  %v3695 = vadd.f32 %v3693, %v3694
  %v3696 = vrot.slane %v3503, 4
  %v3697 = vadd.f32 %v3503, %v3696
  %v3698 = vrot.slane %v3697, 2
  %v3699 = vadd.f32 %v3697, %v3698
  %v3700 = vrot.slane %v3699, 1
  %v3701 = vadd.f32 %v3699, %v3700
  %v3702 = vmul.f32 %v3273, %v3273
  %v3703 = vmul.f32 %v3279, %v3279
  %v3704 = vmul.f32 %v3285, %v3285
  %v3705 = vmul.f32 %v3291, %v3291
  %v3706 = vmul.f32 %v3297, %v3297
  %v3707 = vmul.f32 %v3303, %v3303
  %v3708 = vmul.f32 %v3309, %v3309
  %v3709 = vmul.f32 %v3315, %v3315
  %v3710 = vmul.f32 %v3321, %v3321
  %v3711 = vmul.f32 %v3327, %v3327
  %v3712 = vmul.f32 %v3333, %v3333
  %v3713 = vmul.f32 %v3339, %v3339
  %v3714 = vmul.f32 %v3345, %v3345
  %v3715 = vmul.f32 %v3351, %v3351
  %v3716 = vmul.f32 %v3357, %v3357
  %v3717 = vmul.f32 %v3363, %v3363
  %v3718 = vmul.f32 %v3369, %v3369
  %v3719 = vmul.f32 %v3375, %v3375
  %v3720 = vmul.f32 %v3381, %v3381
  %v3721 = vmul.f32 %v3387, %v3387
  %v3722 = vmul.f32 %v3393, %v3393
  %v3723 = vmul.f32 %v3399, %v3399
  %v3724 = vmul.f32 %v3405, %v3405
  %v3725 = vmul.f32 %v3411, %v3411
  %v3726 = vmul.f32 %v3417, %v3417
  %v3727 = vmul.f32 %v3423, %v3423
  %v3728 = vmul.f32 %v3429, %v3429
  %v3729 = vmul.f32 %v3435, %v3435
  %v3730 = vmul.f32 %v3441, %v3441
  %v3731 = vmul.f32 %v3447, %v3447
  %v3732 = vmul.f32 %v3453, %v3453
  %v3733 = vmul.f32 %v3459, %v3459
  %v3734 = vmul.f32 %v3465, %v3465
  %v3735 = vmul.f32 %v3509, %v3509
  %v3736 = vmul.f32 %v3515, %v3515
  %v3737 = vmul.f32 %v3521, %v3521
  %v3738 = vmul.f32 %v3527, %v3527
  %v3739 = vmul.f32 %v3533, %v3533
  %v3740 = vmul.f32 %v3539, %v3539
  %v3741 = vmul.f32 %v3545, %v3545
  %v3742 = vmul.f32 %v3551, %v3551
  %v3743 = vmul.f32 %v3557, %v3557
  %v3744 = vmul.f32 %v3563, %v3563
  %v3745 = vmul.f32 %v3569, %v3569
  %v3746 = vmul.f32 %v3575, %v3575
  %v3747 = vmul.f32 %v3581, %v3581
  %v3748 = vmul.f32 %v3587, %v3587
  %v3749 = vmul.f32 %v3593, %v3593
  %v3750 = vmul.f32 %v3599, %v3599
  %v3751 = vmul.f32 %v3605, %v3605
  %v3752 = vmul.f32 %v3611, %v3611
  %v3753 = vmul.f32 %v3617, %v3617
  %v3754 = vmul.f32 %v3623, %v3623
  %v3755 = vmul.f32 %v3629, %v3629
  %v3756 = vmul.f32 %v3635, %v3635
  %v3757 = vmul.f32 %v3641, %v3641
  %v3758 = vmul.f32 %v3647, %v3647
  %v3759 = vmul.f32 %v3653, %v3653
  %v3760 = vmul.f32 %v3659, %v3659
  %v3761 = vmul.f32 %v3665, %v3665
  %v3762 = vmul.f32 %v3671, %v3671
  %v3763 = vmul.f32 %v3677, %v3677
  %v3764 = vmul.f32 %v3683, %v3683
  %v3765 = vmul.f32 %v3689, %v3689
  %v3766 = vmul.f32 %v3695, %v3695
  %v3767 = vmul.f32 %v3701, %v3701
  %v3768 = vadd.f32 %v3702, %v3735
  %v3769 = vadd.f32 %v3703, %v3736
  %v3770 = vadd.f32 %v3704, %v3737
  %v3771 = vadd.f32 %v3705, %v3738
  %v3772 = vadd.f32 %v3706, %v3739
  %v3773 = vadd.f32 %v3707, %v3740
  %v3774 = vadd.f32 %v3708, %v3741
  %v3775 = vadd.f32 %v3709, %v3742
  %v3776 = vadd.f32 %v3710, %v3743
  %v3777 = vadd.f32 %v3711, %v3744
  %v3778 = vadd.f32 %v3712, %v3745
  %v3779 = vadd.f32 %v3713, %v3746
  %v3780 = vadd.f32 %v3714, %v3747
  %v3781 = vadd.f32 %v3715, %v3748
  %v3782 = vadd.f32 %v3716, %v3749
  %v3783 = vadd.f32 %v3717, %v3750
  %v3784 = vadd.f32 %v3718, %v3751
  %v3785 = vadd.f32 %v3719, %v3752
  %v3786 = vadd.f32 %v3720, %v3753
  %v3787 = vadd.f32 %v3721, %v3754
  %v3788 = vadd.f32 %v3722, %v3755
  %v3789 = vadd.f32 %v3723, %v3756
  %v3790 = vadd.f32 %v3724, %v3757
  %v3791 = vadd.f32 %v3725, %v3758
  %v3792 = vadd.f32 %v3726, %v3759
  %v3793 = vadd.f32 %v3727, %v3760
  %v3794 = vadd.f32 %v3728, %v3761
  %v3795 = vadd.f32 %v3729, %v3762
  %v3796 = vadd.f32 %v3730, %v3763
  %v3797 = vadd.f32 %v3731, %v3764
  %v3798 = vadd.f32 %v3732, %v3765
  %v3799 = vadd.f32 %v3733, %v3766
  %v3800 = vadd.f32 %v3734, %v3767
  %v3801 = vrsqrt.pop %v3768
  %v3802 = vmul.f32 %v3768, %v3801
  %vm3803 = vcmp.eq.f32.partialorder %v3768, inf
  %v3804 = vsel %vm3803, %v3768, %v3802
  %vm3805 = vcmp.eq.f32.partialorder %v3768, 0.0
  %v3806 = vand.u32 %v3768, 2147483648
  %v3807 = vsel %vm3805, %v3806, %v3804
  %v3808 = vrsqrt.pop %v3769
  %v3809 = vmul.f32 %v3769, %v3808
  %vm3810 = vcmp.eq.f32.partialorder %v3769, inf
  %v3811 = vsel %vm3810, %v3769, %v3809
  %vm3812 = vcmp.eq.f32.partialorder %v3769, 0.0
  %v3813 = vand.u32 %v3769, 2147483648
  %v3814 = vsel %vm3812, %v3813, %v3811
  %v3815 = vrsqrt.pop %v3770
  %v3816 = vmul.f32 %v3770, %v3815
  %vm3817 = vcmp.eq.f32.partialorder %v3770, inf
  %v3818 = vsel %vm3817, %v3770, %v3816
  %vm3819 = vcmp.eq.f32.partialorder %v3770, 0.0
  %v3820 = vand.u32 %v3770, 2147483648
  %v3821 = vsel %vm3819, %v3820, %v3818
  %v3822 = vrsqrt.pop %v3771
  %v3823 = vmul.f32 %v3771, %v3822
  %vm3824 = vcmp.eq.f32.partialorder %v3771, inf
  %v3825 = vsel %vm3824, %v3771, %v3823
  %vm3826 = vcmp.eq.f32.partialorder %v3771, 0.0
  %v3827 = vand.u32 %v3771, 2147483648
  %v3828 = vsel %vm3826, %v3827, %v3825
  %v3829 = vrsqrt.pop %v3772
  %v3830 = vmul.f32 %v3772, %v3829
  %vm3831 = vcmp.eq.f32.partialorder %v3772, inf
  %v3832 = vsel %vm3831, %v3772, %v3830
  %vm3833 = vcmp.eq.f32.partialorder %v3772, 0.0
  %v3834 = vand.u32 %v3772, 2147483648
  %v3835 = vsel %vm3833, %v3834, %v3832
  %v3836 = vrsqrt.pop %v3773
  %v3837 = vmul.f32 %v3773, %v3836
  %vm3838 = vcmp.eq.f32.partialorder %v3773, inf
  %v3839 = vsel %vm3838, %v3773, %v3837
  %vm3840 = vcmp.eq.f32.partialorder %v3773, 0.0
  %v3841 = vand.u32 %v3773, 2147483648
  %v3842 = vsel %vm3840, %v3841, %v3839
  %v3843 = vrsqrt.pop %v3774
  %v3844 = vmul.f32 %v3774, %v3843
  %vm3845 = vcmp.eq.f32.partialorder %v3774, inf
  %v3846 = vsel %vm3845, %v3774, %v3844
  %vm3847 = vcmp.eq.f32.partialorder %v3774, 0.0
  %v3848 = vand.u32 %v3774, 2147483648
  %v3849 = vsel %vm3847, %v3848, %v3846
  %v3850 = vrsqrt.pop %v3775
  %v3851 = vmul.f32 %v3775, %v3850
  %vm3852 = vcmp.eq.f32.partialorder %v3775, inf
  %v3853 = vsel %vm3852, %v3775, %v3851
  %vm3854 = vcmp.eq.f32.partialorder %v3775, 0.0
  %v3855 = vand.u32 %v3775, 2147483648
  %v3856 = vsel %vm3854, %v3855, %v3853
  %v3857 = vrsqrt.pop %v3776
  %v3858 = vmul.f32 %v3776, %v3857
  %vm3859 = vcmp.eq.f32.partialorder %v3776, inf
  %v3860 = vsel %vm3859, %v3776, %v3858
  %vm3861 = vcmp.eq.f32.partialorder %v3776, 0.0
  %v3862 = vand.u32 %v3776, 2147483648
  %v3863 = vsel %vm3861, %v3862, %v3860
  %v3864 = vrsqrt.pop %v3777
  %v3865 = vmul.f32 %v3777, %v3864
  %vm3866 = vcmp.eq.f32.partialorder %v3777, inf
  %v3867 = vsel %vm3866, %v3777, %v3865
  %vm3868 = vcmp.eq.f32.partialorder %v3777, 0.0
  %v3869 = vand.u32 %v3777, 2147483648
  %v3870 = vsel %vm3868, %v3869, %v3867
  %v3871 = vrsqrt.pop %v3778
  %v3872 = vmul.f32 %v3778, %v3871
  %vm3873 = vcmp.eq.f32.partialorder %v3778, inf
  %v3874 = vsel %vm3873, %v3778, %v3872
  %vm3875 = vcmp.eq.f32.partialorder %v3778, 0.0
  %v3876 = vand.u32 %v3778, 2147483648
  %v3877 = vsel %vm3875, %v3876, %v3874
  %v3878 = vrsqrt.pop %v3779
  %v3879 = vmul.f32 %v3779, %v3878
  %vm3880 = vcmp.eq.f32.partialorder %v3779, inf
  %v3881 = vsel %vm3880, %v3779, %v3879
  %vm3882 = vcmp.eq.f32.partialorder %v3779, 0.0
  %v3883 = vand.u32 %v3779, 2147483648
  %v3884 = vsel %vm3882, %v3883, %v3881
  %v3885 = vrsqrt.pop %v3780
  %v3886 = vmul.f32 %v3780, %v3885
  %vm3887 = vcmp.eq.f32.partialorder %v3780, inf
  %v3888 = vsel %vm3887, %v3780, %v3886
  %vm3889 = vcmp.eq.f32.partialorder %v3780, 0.0
  %v3890 = vand.u32 %v3780, 2147483648
  %v3891 = vsel %vm3889, %v3890, %v3888
  %v3892 = vrsqrt.pop %v3781
  %v3893 = vmul.f32 %v3781, %v3892
  %vm3894 = vcmp.eq.f32.partialorder %v3781, inf
  %v3895 = vsel %vm3894, %v3781, %v3893
  %vm3896 = vcmp.eq.f32.partialorder %v3781, 0.0
  %v3897 = vand.u32 %v3781, 2147483648
  %v3898 = vsel %vm3896, %v3897, %v3895
  %v3899 = vrsqrt.pop %v3782
  %v3900 = vmul.f32 %v3782, %v3899
  %vm3901 = vcmp.eq.f32.partialorder %v3782, inf
  %v3902 = vsel %vm3901, %v3782, %v3900
  %vm3903 = vcmp.eq.f32.partialorder %v3782, 0.0
  %v3904 = vand.u32 %v3782, 2147483648
  %v3905 = vsel %vm3903, %v3904, %v3902
  %v3906 = vrsqrt.pop %v3783
  %v3907 = vmul.f32 %v3783, %v3906
  %vm3908 = vcmp.eq.f32.partialorder %v3783, inf
  %v3909 = vsel %vm3908, %v3783, %v3907
  %vm3910 = vcmp.eq.f32.partialorder %v3783, 0.0
  %v3911 = vand.u32 %v3783, 2147483648
  %v3912 = vsel %vm3910, %v3911, %v3909
  %v3913 = vrsqrt.pop %v3784
  %v3914 = vmul.f32 %v3784, %v3913
  %vm3915 = vcmp.eq.f32.partialorder %v3784, inf
  %v3916 = vsel %vm3915, %v3784, %v3914
  %vm3917 = vcmp.eq.f32.partialorder %v3784, 0.0
  %v3918 = vand.u32 %v3784, 2147483648
  %v3919 = vsel %vm3917, %v3918, %v3916
  %v3920 = vrsqrt.pop %v3785
  %v3921 = vmul.f32 %v3785, %v3920
  %vm3922 = vcmp.eq.f32.partialorder %v3785, inf
  %v3923 = vsel %vm3922, %v3785, %v3921
  %vm3924 = vcmp.eq.f32.partialorder %v3785, 0.0
  %v3925 = vand.u32 %v3785, 2147483648
  %v3926 = vsel %vm3924, %v3925, %v3923
  %v3927 = vrsqrt.pop %v3786
  %v3928 = vmul.f32 %v3786, %v3927
  %vm3929 = vcmp.eq.f32.partialorder %v3786, inf
  %v3930 = vsel %vm3929, %v3786, %v3928
  %vm3931 = vcmp.eq.f32.partialorder %v3786, 0.0
  %v3932 = vand.u32 %v3786, 2147483648
  %v3933 = vsel %vm3931, %v3932, %v3930
  %v3934 = vrsqrt.pop %v3787
  %v3935 = vmul.f32 %v3787, %v3934
  %vm3936 = vcmp.eq.f32.partialorder %v3787, inf
  %v3937 = vsel %vm3936, %v3787, %v3935
  %vm3938 = vcmp.eq.f32.partialorder %v3787, 0.0
  %v3939 = vand.u32 %v3787, 2147483648
  %v3940 = vsel %vm3938, %v3939, %v3937
  %v3941 = vrsqrt.pop %v3788
  %v3942 = vmul.f32 %v3788, %v3941
  %vm3943 = vcmp.eq.f32.partialorder %v3788, inf
  %v3944 = vsel %vm3943, %v3788, %v3942
  %vm3945 = vcmp.eq.f32.partialorder %v3788, 0.0
  %v3946 = vand.u32 %v3788, 2147483648
  %v3947 = vsel %vm3945, %v3946, %v3944
  %v3948 = vrsqrt.pop %v3789
  %v3949 = vmul.f32 %v3789, %v3948
  %vm3950 = vcmp.eq.f32.partialorder %v3789, inf
  %v3951 = vsel %vm3950, %v3789, %v3949
  %vm3952 = vcmp.eq.f32.partialorder %v3789, 0.0
  %v3953 = vand.u32 %v3789, 2147483648
  %v3954 = vsel %vm3952, %v3953, %v3951
  %v3955 = vrsqrt.pop %v3790
  %v3956 = vmul.f32 %v3790, %v3955
  %vm3957 = vcmp.eq.f32.partialorder %v3790, inf
  %v3958 = vsel %vm3957, %v3790, %v3956
  %vm3959 = vcmp.eq.f32.partialorder %v3790, 0.0
  %v3960 = vand.u32 %v3790, 2147483648
  %v3961 = vsel %vm3959, %v3960, %v3958
  %v3962 = vrsqrt.pop %v3791
  %v3963 = vmul.f32 %v3791, %v3962
  %vm3964 = vcmp.eq.f32.partialorder %v3791, inf
  %v3965 = vsel %vm3964, %v3791, %v3963
  %vm3966 = vcmp.eq.f32.partialorder %v3791, 0.0
  %v3967 = vand.u32 %v3791, 2147483648
  %v3968 = vsel %vm3966, %v3967, %v3965
  %v3969 = vrsqrt.pop %v3792
  %v3970 = vmul.f32 %v3792, %v3969
  %vm3971 = vcmp.eq.f32.partialorder %v3792, inf
  %v3972 = vsel %vm3971, %v3792, %v3970
  %vm3973 = vcmp.eq.f32.partialorder %v3792, 0.0
  %v3974 = vand.u32 %v3792, 2147483648
  %v3975 = vsel %vm3973, %v3974, %v3972
  %v3976 = vrsqrt.pop %v3793
  %v3977 = vmul.f32 %v3793, %v3976
  %vm3978 = vcmp.eq.f32.partialorder %v3793, inf
  %v3979 = vsel %vm3978, %v3793, %v3977
  %vm3980 = vcmp.eq.f32.partialorder %v3793, 0.0
  %v3981 = vand.u32 %v3793, 2147483648
  %v3982 = vsel %vm3980, %v3981, %v3979
  %v3983 = vrsqrt.pop %v3794
  %v3984 = vmul.f32 %v3794, %v3983
  %vm3985 = vcmp.eq.f32.partialorder %v3794, inf
  %v3986 = vsel %vm3985, %v3794, %v3984
  %vm3987 = vcmp.eq.f32.partialorder %v3794, 0.0
  %v3988 = vand.u32 %v3794, 2147483648
  %v3989 = vsel %vm3987, %v3988, %v3986
  %v3990 = vrsqrt.pop %v3795
  %v3991 = vmul.f32 %v3795, %v3990
  %vm3992 = vcmp.eq.f32.partialorder %v3795, inf
  %v3993 = vsel %vm3992, %v3795, %v3991
  %vm3994 = vcmp.eq.f32.partialorder %v3795, 0.0
  %v3995 = vand.u32 %v3795, 2147483648
  %v3996 = vsel %vm3994, %v3995, %v3993
  %v3997 = vrsqrt.pop %v3796
  %v3998 = vmul.f32 %v3796, %v3997
  %vm3999 = vcmp.eq.f32.partialorder %v3796, inf
  %v4000 = vsel %vm3999, %v3796, %v3998
  %vm4001 = vcmp.eq.f32.partialorder %v3796, 0.0
  %v4002 = vand.u32 %v3796, 2147483648
  %v4003 = vsel %vm4001, %v4002, %v4000
  %v4004 = vrsqrt.pop %v3797
  %v4005 = vmul.f32 %v3797, %v4004
  %vm4006 = vcmp.eq.f32.partialorder %v3797, inf
  %v4007 = vsel %vm4006, %v3797, %v4005
  %vm4008 = vcmp.eq.f32.partialorder %v3797, 0.0
  %v4009 = vand.u32 %v3797, 2147483648
  %v4010 = vsel %vm4008, %v4009, %v4007
  %v4011 = vrsqrt.pop %v3798
  %v4012 = vmul.f32 %v3798, %v4011
  %vm4013 = vcmp.eq.f32.partialorder %v3798, inf
  %v4014 = vsel %vm4013, %v3798, %v4012
  %vm4015 = vcmp.eq.f32.partialorder %v3798, 0.0
  %v4016 = vand.u32 %v3798, 2147483648
  %v4017 = vsel %vm4015, %v4016, %v4014
  %v4018 = vrsqrt.pop %v3799
  %v4019 = vmul.f32 %v3799, %v4018
  %vm4020 = vcmp.eq.f32.partialorder %v3799, inf
  %v4021 = vsel %vm4020, %v3799, %v4019
  %vm4022 = vcmp.eq.f32.partialorder %v3799, 0.0
  %v4023 = vand.u32 %v3799, 2147483648
  %v4024 = vsel %vm4022, %v4023, %v4021
  %v4025 = vrsqrt.pop %v3800
  %v4026 = vmul.f32 %v3800, %v4025
  %vm4027 = vcmp.eq.f32.partialorder %v3800, inf
  %v4028 = vsel %vm4027, %v3800, %v4026
  %vm4029 = vcmp.eq.f32.partialorder %v3800, 0.0
  %v4030 = vand.u32 %v3800, 2147483648
  %v4031 = vsel %vm4029, %v4030, %v4028
  %v4032 = vsub.f32 0.0, %v3807
  %v4033 = vsub.f32 0.0, %v3814
  %v4034 = vsub.f32 0.0, %v3821
  %v4035 = vsub.f32 0.0, %v3828
  %v4036 = vsub.f32 0.0, %v3835
  %v4037 = vsub.f32 0.0, %v3842
  %v4038 = vsub.f32 0.0, %v3849
  %v4039 = vsub.f32 0.0, %v3856
  %v4040 = vsub.f32 0.0, %v3863
  %v4041 = vsub.f32 0.0, %v3870
  %v4042 = vsub.f32 0.0, %v3877
  %v4043 = vsub.f32 0.0, %v3884
  %v4044 = vsub.f32 0.0, %v3891
  %v4045 = vsub.f32 0.0, %v3898
  %v4046 = vsub.f32 0.0, %v3905
  %v4047 = vsub.f32 0.0, %v3912
  %v4048 = vsub.f32 0.0, %v3919
  %v4049 = vsub.f32 0.0, %v3926
  %v4050 = vsub.f32 0.0, %v3933
  %v4051 = vsub.f32 0.0, %v3940
  %v4052 = vsub.f32 0.0, %v3947
  %v4053 = vsub.f32 0.0, %v3954
  %v4054 = vsub.f32 0.0, %v3961
  %v4055 = vsub.f32 0.0, %v3968
  %v4056 = vsub.f32 0.0, %v3975
  %v4057 = vsub.f32 0.0, %v3982
  %v4058 = vsub.f32 0.0, %v3989
  %v4059 = vsub.f32 0.0, %v3996
  %v4060 = vsub.f32 0.0, %v4003
  %v4061 = vsub.f32 0.0, %v4010
  %v4062 = vsub.f32 0.0, %v4017
  %v4063 = vsub.f32 0.0, %v4024
  %v4064 = vsub.f32 0.0, %v4031
  %v4065 = vmul.f32 %v4032, 1.442695
  %v4066 = vpow.pop %v4065
  %v4067 = vmul.f32 %v4033, 1.442695
  %v4068 = vpow.pop %v4067
  %v4069 = vmul.f32 %v4034, 1.442695
  %v4070 = vpow.pop %v4069
  %v4071 = vmul.f32 %v4035, 1.442695
  %v4072 = vpow.pop %v4071
  %v4073 = vmul.f32 %v4036, 1.442695
  %v4074 = vpow.pop %v4073
  %v4075 = vmul.f32 %v4037, 1.442695
  %v4076 = vpow.pop %v4075
  %v4077 = vmul.f32 %v4038, 1.442695
  %v4078 = vpow.pop %v4077
  %v4079 = vmul.f32 %v4039, 1.442695
  %v4080 = vpow.pop %v4079
  %v4081 = vmul.f32 %v4040, 1.442695
  %v4082 = vpow.pop %v4081
  %v4083 = vmul.f32 %v4041, 1.442695
  %v4084 = vpow.pop %v4083
  %v4085 = vmul.f32 %v4042, 1.442695
  %v4086 = vpow.pop %v4085
  %v4087 = vmul.f32 %v4043, 1.442695
  %v4088 = vpow.pop %v4087
  %v4089 = vmul.f32 %v4044, 1.442695
  %v4090 = vpow.pop %v4089
  %v4091 = vmul.f32 %v4045, 1.442695
  %v4092 = vpow.pop %v4091
  %v4093 = vmul.f32 %v4046, 1.442695
  %v4094 = vpow.pop %v4093
  %v4095 = vmul.f32 %v4047, 1.442695
  %v4096 = vpow.pop %v4095
  %v4097 = vmul.f32 %v4048, 1.442695
  %v4098 = vpow.pop %v4097
  %v4099 = vmul.f32 %v4049, 1.442695
  %v4100 = vpow.pop %v4099
  %v4101 = vmul.f32 %v4050, 1.442695
  %v4102 = vpow.pop %v4101
  %v4103 = vmul.f32 %v4051, 1.442695
  %v4104 = vpow.pop %v4103
  %v4105 = vmul.f32 %v4052, 1.442695
  %v4106 = vpow.pop %v4105
  %v4107 = vmul.f32 %v4053, 1.442695
  %v4108 = vpow.pop %v4107
  %v4109 = vmul.f32 %v4054, 1.442695
  %v4110 = vpow.pop %v4109
  %v4111 = vmul.f32 %v4055, 1.442695
  %v4112 = vpow.pop %v4111
  %v4113 = vmul.f32 %v4056, 1.442695
  %v4114 = vpow.pop %v4113
  %v4115 = vmul.f32 %v4057, 1.442695
  %v4116 = vpow.pop %v4115
  %v4117 = vmul.f32 %v4058, 1.442695
  %v4118 = vpow.pop %v4117
  %v4119 = vmul.f32 %v4059, 1.442695
  %v4120 = vpow.pop %v4119
  %v4121 = vmul.f32 %v4060, 1.442695
  %v4122 = vpow.pop %v4121
  %v4123 = vmul.f32 %v4061, 1.442695
  %v4124 = vpow.pop %v4123
  %v4125 = vmul.f32 %v4062, 1.442695
  %v4126 = vpow.pop %v4125
  %v4127 = vmul.f32 %v4063, 1.442695
  %v4128 = vpow.pop %v4127
  %v4129 = vmul.f32 %v4064, 1.442695
  %v4130 = vpow.pop %v4129
  %vm4164 = vcmask 1041409
  %v4165 = vsel %vm4164, %v4068, %v4066
  %vm4166 = vcmask 1042434
  %v4167 = vsel %vm4166, %v4070, %v4165
  %vm4168 = vcmask 1043459
  %v4169 = vsel %vm4168, %v4072, %v4167
  %vm4170 = vcmask 1044484
  %v4171 = vsel %vm4170, %v4074, %v4169
  %vm4172 = vcmask 1045509
  %v4173 = vsel %vm4172, %v4076, %v4171
  %vm4174 = vcmask 1046534
  %v4175 = vsel %vm4174, %v4078, %v4173
  %vm4176 = vcmask 1047559
  %v4177 = vsel %vm4176, %v4080, %v4175
  %v4178 = vsel %vm4164, %v4084, %v4082
  %v4179 = vsel %vm4166, %v4086, %v4178
  %v4180 = vsel %vm4168, %v4088, %v4179
  %v4181 = vsel %vm4170, %v4090, %v4180
  %v4182 = vsel %vm4172, %v4092, %v4181
  %v4183 = vsel %vm4174, %v4094, %v4182
  %v4184 = vsel %vm4176, %v4096, %v4183
  %v4185 = vsel %vm4164, %v4100, %v4098
  %v4186 = vsel %vm4166, %v4102, %v4185
  %v4187 = vsel %vm4168, %v4104, %v4186
  %v4188 = vsel %vm4170, %v4106, %v4187
  %v4189 = vsel %vm4172, %v4108, %v4188
  %v4190 = vsel %vm4174, %v4110, %v4189
  %v4191 = vsel %vm4176, %v4112, %v4190
  %v4192 = vsel %vm4164, %v4116, %v4114
  %v4193 = vsel %vm4166, %v4118, %v4192
  %v4194 = vsel %vm4168, %v4120, %v4193
  %v4195 = vsel %vm4170, %v4122, %v4194
  %v4196 = vsel %vm4172, %v4124, %v4195
  %v4197 = vsel %vm4174, %v4126, %v4196
  %v4198 = vsel %vm4176, %v4128, %v4197
  %4204 = vst [vmem:[%s14] sm:$0xff] %v4177
  %4205 = vst [vmem:[%s14 + $0x8] sm:$0xff] %v4184
  %4206 = vst [vmem:[%s14 + $0x10] sm:$0xff] %v4191
  %4207 = vst [vmem:[%s14 + $0x18] sm:$0xff] %v4198
  %4208 = vst [vmem:[%s14 + $0x20] sm:$0x1] %v4130
  %s4209 = scalar_lea.vmem %s13, 272
  %v4210 = vld [vmem:[%s4209] sm:$0xff]
  %v4211 = vld [vmem:[%s4209 + $0x8] sm:$0xff]
  %v4212 = vld [vmem:[%s4209 + $0x10] sm:$0xff]
  %v4213 = vld [vmem:[%s4209 + $0x18] sm:$0xff]
  %v4214 = vld [vmem:[%s4209 + $0x20] sm:$0xff]
  %v4215 = vld [vmem:[%s4209 + $0x28] sm:$0xff]
  %v4216 = vld [vmem:[%s4209 + $0x30] sm:$0xff]
  %v4217 = vld [vmem:[%s4209 + $0x38] sm:$0xff]
  %v4218 = vld [vmem:[%s4209 + $0x40] sm:$0xff]
  %v4219 = vld [vmem:[%s4209 + $0x48] sm:$0xff]
  %v4220 = vld [vmem:[%s4209 + $0x50] sm:$0xff]
  %v4221 = vld [vmem:[%s4209 + $0x58] sm:$0xff]
  %v4222 = vld [vmem:[%s4209 + $0x60] sm:$0xff]
  %v4223 = vld [vmem:[%s4209 + $0x68] sm:$0xff]
  %v4224 = vld [vmem:[%s4209 + $0x70] sm:$0xff]
  %v4225 = vld [vmem:[%s4209 + $0x78] sm:$0xff]
  %v4226 = vld [vmem:[%s4209 + $0x80] sm:$0xff]
  %v4227 = vld [vmem:[%s4209 + $0x88] sm:$0xff]
  %v4228 = vld [vmem:[%s4209 + $0x90] sm:$0xff]
  %v4229 = vld [vmem:[%s4209 + $0x98] sm:$0xff]
  %v4230 = vld [vmem:[%s4209 + $0xa0] sm:$0xff]
  %v4231 = vld [vmem:[%s4209 + $0xa8] sm:$0xff]
  %v4232 = vld [vmem:[%s4209 + $0xb0] sm:$0xff]
  %v4233 = vld [vmem:[%s4209 + $0xb8] sm:$0xff]
  %v4234 = vld [vmem:[%s4209 + $0xc0] sm:$0xff]
  %v4235 = vld [vmem:[%s4209 + $0xc8] sm:$0xff]
  %v4236 = vld [vmem:[%s4209 + $0xd0] sm:$0xff]
  %v4237 = vld [vmem:[%s4209 + $0xd8] sm:$0xff]
  %v4238 = vld [vmem:[%s4209 + $0xe0] sm:$0xff]
  %v4239 = vld [vmem:[%s4209 + $0xe8] sm:$0xff]
  %v4240 = vld [vmem:[%s4209 + $0xf0] sm:$0xff]
  %v4241 = vld [vmem:[%s4209 + $0xf8] sm:$0xff]
  %v4242 = vld [vmem:[%s4209 + $0x100] sm:$0xff]
  %v4243 = vmul.f32 %v4210, %v3233
  %v4244 = vmul.f32 %v4211, %v3233
  %v4245 = vmul.f32 %v4212, %v3233
  %v4246 = vmul.f32 %v4213, %v3233
  %v4247 = vmul.f32 %v4214, %v3233
  %v4248 = vmul.f32 %v4215, %v3233
  %v4249 = vmul.f32 %v4216, %v3233
  %v4250 = vmul.f32 %v4217, %v3233
  %v4251 = vmul.f32 %v4218, %v3233
  %v4252 = vmul.f32 %v4219, %v3233
  %v4253 = vmul.f32 %v4220, %v3233
  %v4254 = vmul.f32 %v4221, %v3233
  %v4255 = vmul.f32 %v4222, %v3233
  %v4256 = vmul.f32 %v4223, %v3233
  %v4257 = vmul.f32 %v4224, %v3233
  %v4258 = vmul.f32 %v4225, %v3233
  %v4259 = vmul.f32 %v4226, %v3233
  %v4260 = vmul.f32 %v4227, %v3233
  %v4261 = vmul.f32 %v4228, %v3233
  %v4262 = vmul.f32 %v4229, %v3233
  %v4263 = vmul.f32 %v4230, %v3233
  %v4264 = vmul.f32 %v4231, %v3233
  %v4265 = vmul.f32 %v4232, %v3233
  %v4266 = vmul.f32 %v4233, %v3233
  %v4267 = vmul.f32 %v4234, %v3233
  %v4268 = vmul.f32 %v4235, %v3233
  %v4269 = vmul.f32 %v4236, %v3233
  %v4270 = vmul.f32 %v4237, %v3233
  %v4271 = vmul.f32 %v4238, %v3233
  %v4272 = vmul.f32 %v4239, %v3233
  %v4273 = vmul.f32 %v4240, %v3233
  %v4274 = vmul.f32 %v4241, %v3233
  %v4275 = vmul.f32 %v4242, %v3233
  %v4276 = vrot.slane %v4243, 4
  %v4277 = vadd.f32 %v4243, %v4276
  %v4278 = vrot.slane %v4277, 2
  %v4279 = vadd.f32 %v4277, %v4278
  %v4280 = vrot.slane %v4279, 1
  %v4281 = vadd.f32 %v4279, %v4280
  %v4282 = vrot.slane %v4244, 4
  %v4283 = vadd.f32 %v4244, %v4282
  %v4284 = vrot.slane %v4283, 2
  %v4285 = vadd.f32 %v4283, %v4284
  %v4286 = vrot.slane %v4285, 1
  %v4287 = vadd.f32 %v4285, %v4286
  %v4288 = vrot.slane %v4245, 4
  %v4289 = vadd.f32 %v4245, %v4288
  %v4290 = vrot.slane %v4289, 2
  %v4291 = vadd.f32 %v4289, %v4290
  %v4292 = vrot.slane %v4291, 1
  %v4293 = vadd.f32 %v4291, %v4292
  %v4294 = vrot.slane %v4246, 4
  %v4295 = vadd.f32 %v4246, %v4294
  %v4296 = vrot.slane %v4295, 2
  %v4297 = vadd.f32 %v4295, %v4296
  %v4298 = vrot.slane %v4297, 1
  %v4299 = vadd.f32 %v4297, %v4298
  %v4300 = vrot.slane %v4247, 4
  %v4301 = vadd.f32 %v4247, %v4300
  %v4302 = vrot.slane %v4301, 2
  %v4303 = vadd.f32 %v4301, %v4302
  %v4304 = vrot.slane %v4303, 1
  %v4305 = vadd.f32 %v4303, %v4304
  %v4306 = vrot.slane %v4248, 4
  %v4307 = vadd.f32 %v4248, %v4306
  %v4308 = vrot.slane %v4307, 2
  %v4309 = vadd.f32 %v4307, %v4308
  %v4310 = vrot.slane %v4309, 1
  %v4311 = vadd.f32 %v4309, %v4310
  %v4312 = vrot.slane %v4249, 4
  %v4313 = vadd.f32 %v4249, %v4312
  %v4314 = vrot.slane %v4313, 2
  %v4315 = vadd.f32 %v4313, %v4314
  %v4316 = vrot.slane %v4315, 1
  %v4317 = vadd.f32 %v4315, %v4316
  %v4318 = vrot.slane %v4250, 4
  %v4319 = vadd.f32 %v4250, %v4318
  %v4320 = vrot.slane %v4319, 2
  %v4321 = vadd.f32 %v4319, %v4320
  %v4322 = vrot.slane %v4321, 1
  %v4323 = vadd.f32 %v4321, %v4322
  %v4324 = vrot.slane %v4251, 4
  %v4325 = vadd.f32 %v4251, %v4324
  %v4326 = vrot.slane %v4325, 2
  %v4327 = vadd.f32 %v4325, %v4326
  %v4328 = vrot.slane %v4327, 1
  %v4329 = vadd.f32 %v4327, %v4328
  %v4330 = vrot.slane %v4252, 4
  %v4331 = vadd.f32 %v4252, %v4330
  %v4332 = vrot.slane %v4331, 2
  %v4333 = vadd.f32 %v4331, %v4332
  %v4334 = vrot.slane %v4333, 1
  %v4335 = vadd.f32 %v4333, %v4334
  %v4336 = vrot.slane %v4253, 4
  %v4337 = vadd.f32 %v4253, %v4336
  %v4338 = vrot.slane %v4337, 2
  %v4339 = vadd.f32 %v4337, %v4338
  %v4340 = vrot.slane %v4339, 1
  %v4341 = vadd.f32 %v4339, %v4340
  %v4342 = vrot.slane %v4254, 4
  %v4343 = vadd.f32 %v4254, %v4342
  %v4344 = vrot.slane %v4343, 2
  %v4345 = vadd.f32 %v4343, %v4344
  %v4346 = vrot.slane %v4345, 1
  %v4347 = vadd.f32 %v4345, %v4346
  %v4348 = vrot.slane %v4255, 4
  %v4349 = vadd.f32 %v4255, %v4348
  %v4350 = vrot.slane %v4349, 2
  %v4351 = vadd.f32 %v4349, %v4350
  %v4352 = vrot.slane %v4351, 1
  %v4353 = vadd.f32 %v4351, %v4352
  %v4354 = vrot.slane %v4256, 4
  %v4355 = vadd.f32 %v4256, %v4354
  %v4356 = vrot.slane %v4355, 2
  %v4357 = vadd.f32 %v4355, %v4356
  %v4358 = vrot.slane %v4357, 1
  %v4359 = vadd.f32 %v4357, %v4358
  %v4360 = vrot.slane %v4257, 4
  %v4361 = vadd.f32 %v4257, %v4360
  %v4362 = vrot.slane %v4361, 2
  %v4363 = vadd.f32 %v4361, %v4362
  %v4364 = vrot.slane %v4363, 1
  %v4365 = vadd.f32 %v4363, %v4364
  %v4366 = vrot.slane %v4258, 4
  %v4367 = vadd.f32 %v4258, %v4366
  %v4368 = vrot.slane %v4367, 2
  %v4369 = vadd.f32 %v4367, %v4368
  %v4370 = vrot.slane %v4369, 1
  %v4371 = vadd.f32 %v4369, %v4370
  %v4372 = vrot.slane %v4259, 4
  %v4373 = vadd.f32 %v4259, %v4372
  %v4374 = vrot.slane %v4373, 2
  %v4375 = vadd.f32 %v4373, %v4374
  %v4376 = vrot.slane %v4375, 1
  %v4377 = vadd.f32 %v4375, %v4376
  %v4378 = vrot.slane %v4260, 4
  %v4379 = vadd.f32 %v4260, %v4378
  %v4380 = vrot.slane %v4379, 2
  %v4381 = vadd.f32 %v4379, %v4380
  %v4382 = vrot.slane %v4381, 1
  %v4383 = vadd.f32 %v4381, %v4382
  %v4384 = vrot.slane %v4261, 4
  %v4385 = vadd.f32 %v4261, %v4384
  %v4386 = vrot.slane %v4385, 2
  %v4387 = vadd.f32 %v4385, %v4386
  %v4388 = vrot.slane %v4387, 1
  %v4389 = vadd.f32 %v4387, %v4388
  %v4390 = vrot.slane %v4262, 4
  %v4391 = vadd.f32 %v4262, %v4390
  %v4392 = vrot.slane %v4391, 2
  %v4393 = vadd.f32 %v4391, %v4392
  %v4394 = vrot.slane %v4393, 1
  %v4395 = vadd.f32 %v4393, %v4394
  %v4396 = vrot.slane %v4263, 4
  %v4397 = vadd.f32 %v4263, %v4396
  %v4398 = vrot.slane %v4397, 2
  %v4399 = vadd.f32 %v4397, %v4398
  %v4400 = vrot.slane %v4399, 1
  %v4401 = vadd.f32 %v4399, %v4400
  %v4402 = vrot.slane %v4264, 4
  %v4403 = vadd.f32 %v4264, %v4402
  %v4404 = vrot.slane %v4403, 2
  %v4405 = vadd.f32 %v4403, %v4404
  %v4406 = vrot.slane %v4405, 1
  %v4407 = vadd.f32 %v4405, %v4406
  %v4408 = vrot.slane %v4265, 4
  %v4409 = vadd.f32 %v4265, %v4408
  %v4410 = vrot.slane %v4409, 2
  %v4411 = vadd.f32 %v4409, %v4410
  %v4412 = vrot.slane %v4411, 1
  %v4413 = vadd.f32 %v4411, %v4412
  %v4414 = vrot.slane %v4266, 4
  %v4415 = vadd.f32 %v4266, %v4414
  %v4416 = vrot.slane %v4415, 2
  %v4417 = vadd.f32 %v4415, %v4416
  %v4418 = vrot.slane %v4417, 1
  %v4419 = vadd.f32 %v4417, %v4418
  %v4420 = vrot.slane %v4267, 4
  %v4421 = vadd.f32 %v4267, %v4420
  %v4422 = vrot.slane %v4421, 2
  %v4423 = vadd.f32 %v4421, %v4422
  %v4424 = vrot.slane %v4423, 1
  %v4425 = vadd.f32 %v4423, %v4424
  %v4426 = vrot.slane %v4268, 4
  %v4427 = vadd.f32 %v4268, %v4426
  %v4428 = vrot.slane %v4427, 2
  %v4429 = vadd.f32 %v4427, %v4428
  %v4430 = vrot.slane %v4429, 1
  %v4431 = vadd.f32 %v4429, %v4430
  %v4432 = vrot.slane %v4269, 4
  %v4433 = vadd.f32 %v4269, %v4432
  %v4434 = vrot.slane %v4433, 2
  %v4435 = vadd.f32 %v4433, %v4434
  %v4436 = vrot.slane %v4435, 1
  %v4437 = vadd.f32 %v4435, %v4436
  %v4438 = vrot.slane %v4270, 4
  %v4439 = vadd.f32 %v4270, %v4438
  %v4440 = vrot.slane %v4439, 2
  %v4441 = vadd.f32 %v4439, %v4440
  %v4442 = vrot.slane %v4441, 1
  %v4443 = vadd.f32 %v4441, %v4442
  %v4444 = vrot.slane %v4271, 4
  %v4445 = vadd.f32 %v4271, %v4444
  %v4446 = vrot.slane %v4445, 2
  %v4447 = vadd.f32 %v4445, %v4446
  %v4448 = vrot.slane %v4447, 1
  %v4449 = vadd.f32 %v4447, %v4448
  %v4450 = vrot.slane %v4272, 4
  %v4451 = vadd.f32 %v4272, %v4450
  %v4452 = vrot.slane %v4451, 2
  %v4453 = vadd.f32 %v4451, %v4452
  %v4454 = vrot.slane %v4453, 1
  %v4455 = vadd.f32 %v4453, %v4454
  %v4456 = vrot.slane %v4273, 4
  %v4457 = vadd.f32 %v4273, %v4456
  %v4458 = vrot.slane %v4457, 2
  %v4459 = vadd.f32 %v4457, %v4458
  %v4460 = vrot.slane %v4459, 1
  %v4461 = vadd.f32 %v4459, %v4460
  %v4462 = vrot.slane %v4274, 4
  %v4463 = vadd.f32 %v4274, %v4462
  %v4464 = vrot.slane %v4463, 2
  %v4465 = vadd.f32 %v4463, %v4464
  %v4466 = vrot.slane %v4465, 1
  %v4467 = vadd.f32 %v4465, %v4466
  %v4468 = vrot.slane %v4275, 4
  %v4469 = vadd.f32 %v4275, %v4468
  %v4470 = vrot.slane %v4469, 2
  %v4471 = vadd.f32 %v4469, %v4470
  %v4472 = vrot.slane %v4471, 1
  %v4473 = vadd.f32 %v4471, %v4472
  %v4474 = vmul.f32 %v4210, %v3469
  %v4475 = vmul.f32 %v4211, %v3469
  %v4476 = vmul.f32 %v4212, %v3469
  %v4477 = vmul.f32 %v4213, %v3469
  %v4478 = vmul.f32 %v4214, %v3469
  %v4479 = vmul.f32 %v4215, %v3469
  %v4480 = vmul.f32 %v4216, %v3469
  %v4481 = vmul.f32 %v4217, %v3469
  %v4482 = vmul.f32 %v4218, %v3469
  %v4483 = vmul.f32 %v4219, %v3469
  %v4484 = vmul.f32 %v4220, %v3469
  %v4485 = vmul.f32 %v4221, %v3469
  %v4486 = vmul.f32 %v4222, %v3469
  %v4487 = vmul.f32 %v4223, %v3469
  %v4488 = vmul.f32 %v4224, %v3469
  %v4489 = vmul.f32 %v4225, %v3469
  %v4490 = vmul.f32 %v4226, %v3469
  %v4491 = vmul.f32 %v4227, %v3469
  %v4492 = vmul.f32 %v4228, %v3469
  %v4493 = vmul.f32 %v4229, %v3469
  %v4494 = vmul.f32 %v4230, %v3469
  %v4495 = vmul.f32 %v4231, %v3469
  %v4496 = vmul.f32 %v4232, %v3469
  %v4497 = vmul.f32 %v4233, %v3469
  %v4498 = vmul.f32 %v4234, %v3469
  %v4499 = vmul.f32 %v4235, %v3469
  %v4500 = vmul.f32 %v4236, %v3469
  %v4501 = vmul.f32 %v4237, %v3469
  %v4502 = vmul.f32 %v4238, %v3469
  %v4503 = vmul.f32 %v4239, %v3469
  %v4504 = vmul.f32 %v4240, %v3469
  %v4505 = vmul.f32 %v4241, %v3469
  %v4506 = vmul.f32 %v4242, %v3469
  %v4507 = vrot.slane %v4474, 4
  %v4508 = vadd.f32 %v4474, %v4507
  %v4509 = vrot.slane %v4508, 2
  %v4510 = vadd.f32 %v4508, %v4509
  %v4511 = vrot.slane %v4510, 1
  %v4512 = vadd.f32 %v4510, %v4511
  %v4513 = vrot.slane %v4475, 4
  %v4514 = vadd.f32 %v4475, %v4513
  %v4515 = vrot.slane %v4514, 2
  %v4516 = vadd.f32 %v4514, %v4515
  %v4517 = vrot.slane %v4516, 1
  %v4518 = vadd.f32 %v4516, %v4517
  %v4519 = vrot.slane %v4476, 4
  %v4520 = vadd.f32 %v4476, %v4519
  %v4521 = vrot.slane %v4520, 2
  %v4522 = vadd.f32 %v4520, %v4521
  %v4523 = vrot.slane %v4522, 1
  %v4524 = vadd.f32 %v4522, %v4523
  %v4525 = vrot.slane %v4477, 4
  %v4526 = vadd.f32 %v4477, %v4525
  %v4527 = vrot.slane %v4526, 2
  %v4528 = vadd.f32 %v4526, %v4527
  %v4529 = vrot.slane %v4528, 1
  %v4530 = vadd.f32 %v4528, %v4529
  %v4531 = vrot.slane %v4478, 4
  %v4532 = vadd.f32 %v4478, %v4531
  %v4533 = vrot.slane %v4532, 2
  %v4534 = vadd.f32 %v4532, %v4533
  %v4535 = vrot.slane %v4534, 1
  %v4536 = vadd.f32 %v4534, %v4535
  %v4537 = vrot.slane %v4479, 4
  %v4538 = vadd.f32 %v4479, %v4537
  %v4539 = vrot.slane %v4538, 2
  %v4540 = vadd.f32 %v4538, %v4539
  %v4541 = vrot.slane %v4540, 1
  %v4542 = vadd.f32 %v4540, %v4541
  %v4543 = vrot.slane %v4480, 4
  %v4544 = vadd.f32 %v4480, %v4543
  %v4545 = vrot.slane %v4544, 2
  %v4546 = vadd.f32 %v4544, %v4545
  %v4547 = vrot.slane %v4546, 1
  %v4548 = vadd.f32 %v4546, %v4547
  %v4549 = vrot.slane %v4481, 4
  %v4550 = vadd.f32 %v4481, %v4549
  %v4551 = vrot.slane %v4550, 2
  %v4552 = vadd.f32 %v4550, %v4551
  %v4553 = vrot.slane %v4552, 1
  %v4554 = vadd.f32 %v4552, %v4553
  %v4555 = vrot.slane %v4482, 4
  %v4556 = vadd.f32 %v4482, %v4555
  %v4557 = vrot.slane %v4556, 2
  %v4558 = vadd.f32 %v4556, %v4557
  %v4559 = vrot.slane %v4558, 1
  %v4560 = vadd.f32 %v4558, %v4559
  %v4561 = vrot.slane %v4483, 4
  %v4562 = vadd.f32 %v4483, %v4561
  %v4563 = vrot.slane %v4562, 2
  %v4564 = vadd.f32 %v4562, %v4563
  %v4565 = vrot.slane %v4564, 1
  %v4566 = vadd.f32 %v4564, %v4565
  %v4567 = vrot.slane %v4484, 4
  %v4568 = vadd.f32 %v4484, %v4567
  %v4569 = vrot.slane %v4568, 2
  %v4570 = vadd.f32 %v4568, %v4569
  %v4571 = vrot.slane %v4570, 1
  %v4572 = vadd.f32 %v4570, %v4571
  %v4573 = vrot.slane %v4485, 4
  %v4574 = vadd.f32 %v4485, %v4573
  %v4575 = vrot.slane %v4574, 2
  %v4576 = vadd.f32 %v4574, %v4575
  %v4577 = vrot.slane %v4576, 1
  %v4578 = vadd.f32 %v4576, %v4577
  %v4579 = vrot.slane %v4486, 4
  %v4580 = vadd.f32 %v4486, %v4579
  %v4581 = vrot.slane %v4580, 2
  %v4582 = vadd.f32 %v4580, %v4581
  %v4583 = vrot.slane %v4582, 1
  %v4584 = vadd.f32 %v4582, %v4583
  %v4585 = vrot.slane %v4487, 4
  %v4586 = vadd.f32 %v4487, %v4585
  %v4587 = vrot.slane %v4586, 2
  %v4588 = vadd.f32 %v4586, %v4587
  %v4589 = vrot.slane %v4588, 1
  %v4590 = vadd.f32 %v4588, %v4589
  %v4591 = vrot.slane %v4488, 4
  %v4592 = vadd.f32 %v4488, %v4591
  %v4593 = vrot.slane %v4592, 2
  %v4594 = vadd.f32 %v4592, %v4593
  %v4595 = vrot.slane %v4594, 1
  %v4596 = vadd.f32 %v4594, %v4595
  %v4597 = vrot.slane %v4489, 4
  %v4598 = vadd.f32 %v4489, %v4597
  %v4599 = vrot.slane %v4598, 2
  %v4600 = vadd.f32 %v4598, %v4599
  %v4601 = vrot.slane %v4600, 1
  %v4602 = vadd.f32 %v4600, %v4601
  %v4603 = vrot.slane %v4490, 4
  %v4604 = vadd.f32 %v4490, %v4603
  %v4605 = vrot.slane %v4604, 2
  %v4606 = vadd.f32 %v4604, %v4605
  %v4607 = vrot.slane %v4606, 1
  %v4608 = vadd.f32 %v4606, %v4607
  %v4609 = vrot.slane %v4491, 4
  %v4610 = vadd.f32 %v4491, %v4609
  %v4611 = vrot.slane %v4610, 2
  %v4612 = vadd.f32 %v4610, %v4611
  %v4613 = vrot.slane %v4612, 1
  %v4614 = vadd.f32 %v4612, %v4613
  %v4615 = vrot.slane %v4492, 4
  %v4616 = vadd.f32 %v4492, %v4615
  %v4617 = vrot.slane %v4616, 2
  %v4618 = vadd.f32 %v4616, %v4617
  %v4619 = vrot.slane %v4618, 1
  %v4620 = vadd.f32 %v4618, %v4619
  %v4621 = vrot.slane %v4493, 4
  %v4622 = vadd.f32 %v4493, %v4621
  %v4623 = vrot.slane %v4622, 2
  %v4624 = vadd.f32 %v4622, %v4623
  %v4625 = vrot.slane %v4624, 1
  %v4626 = vadd.f32 %v4624, %v4625
  %v4627 = vrot.slane %v4494, 4
  %v4628 = vadd.f32 %v4494, %v4627
  %v4629 = vrot.slane %v4628, 2
  %v4630 = vadd.f32 %v4628, %v4629
  %v4631 = vrot.slane %v4630, 1
  %v4632 = vadd.f32 %v4630, %v4631
  %v4633 = vrot.slane %v4495, 4
  %v4634 = vadd.f32 %v4495, %v4633
  %v4635 = vrot.slane %v4634, 2
  %v4636 = vadd.f32 %v4634, %v4635
  %v4637 = vrot.slane %v4636, 1
  %v4638 = vadd.f32 %v4636, %v4637
  %v4639 = vrot.slane %v4496, 4
  %v4640 = vadd.f32 %v4496, %v4639
  %v4641 = vrot.slane %v4640, 2
  %v4642 = vadd.f32 %v4640, %v4641
  %v4643 = vrot.slane %v4642, 1
  %v4644 = vadd.f32 %v4642, %v4643
  %v4645 = vrot.slane %v4497, 4
  %v4646 = vadd.f32 %v4497, %v4645
  %v4647 = vrot.slane %v4646, 2
  %v4648 = vadd.f32 %v4646, %v4647
  %v4649 = vrot.slane %v4648, 1
  %v4650 = vadd.f32 %v4648, %v4649
  %v4651 = vrot.slane %v4498, 4
  %v4652 = vadd.f32 %v4498, %v4651
  %v4653 = vrot.slane %v4652, 2
  %v4654 = vadd.f32 %v4652, %v4653
  %v4655 = vrot.slane %v4654, 1
  %v4656 = vadd.f32 %v4654, %v4655
  %v4657 = vrot.slane %v4499, 4
  %v4658 = vadd.f32 %v4499, %v4657
  %v4659 = vrot.slane %v4658, 2
  %v4660 = vadd.f32 %v4658, %v4659
  %v4661 = vrot.slane %v4660, 1
  %v4662 = vadd.f32 %v4660, %v4661
  %v4663 = vrot.slane %v4500, 4
  %v4664 = vadd.f32 %v4500, %v4663
  %v4665 = vrot.slane %v4664, 2
  %v4666 = vadd.f32 %v4664, %v4665
  %v4667 = vrot.slane %v4666, 1
  %v4668 = vadd.f32 %v4666, %v4667
  %v4669 = vrot.slane %v4501, 4
  %v4670 = vadd.f32 %v4501, %v4669
  %v4671 = vrot.slane %v4670, 2
  %v4672 = vadd.f32 %v4670, %v4671
  %v4673 = vrot.slane %v4672, 1
  %v4674 = vadd.f32 %v4672, %v4673
  %v4675 = vrot.slane %v4502, 4
  %v4676 = vadd.f32 %v4502, %v4675
  %v4677 = vrot.slane %v4676, 2
  %v4678 = vadd.f32 %v4676, %v4677
  %v4679 = vrot.slane %v4678, 1
  %v4680 = vadd.f32 %v4678, %v4679
  %v4681 = vrot.slane %v4503, 4
  %v4682 = vadd.f32 %v4503, %v4681
  %v4683 = vrot.slane %v4682, 2
  %v4684 = vadd.f32 %v4682, %v4683
  %v4685 = vrot.slane %v4684, 1
  %v4686 = vadd.f32 %v4684, %v4685
  %v4687 = vrot.slane %v4504, 4
  %v4688 = vadd.f32 %v4504, %v4687
  %v4689 = vrot.slane %v4688, 2
  %v4690 = vadd.f32 %v4688, %v4689
  %v4691 = vrot.slane %v4690, 1
  %v4692 = vadd.f32 %v4690, %v4691
  %v4693 = vrot.slane %v4505, 4
  %v4694 = vadd.f32 %v4505, %v4693
  %v4695 = vrot.slane %v4694, 2
  %v4696 = vadd.f32 %v4694, %v4695
  %v4697 = vrot.slane %v4696, 1
  %v4698 = vadd.f32 %v4696, %v4697
  %v4699 = vrot.slane %v4506, 4
  %v4700 = vadd.f32 %v4506, %v4699
  %v4701 = vrot.slane %v4700, 2
  %v4702 = vadd.f32 %v4700, %v4701
  %v4703 = vrot.slane %v4702, 1
  %v4704 = vadd.f32 %v4702, %v4703
  %v4705 = vmul.f32 %v4281, %v4281
  %v4706 = vmul.f32 %v4287, %v4287
  %v4707 = vmul.f32 %v4293, %v4293
  %v4708 = vmul.f32 %v4299, %v4299
  %v4709 = vmul.f32 %v4305, %v4305
  %v4710 = vmul.f32 %v4311, %v4311
  %v4711 = vmul.f32 %v4317, %v4317
  %v4712 = vmul.f32 %v4323, %v4323
  %v4713 = vmul.f32 %v4329, %v4329
  %v4714 = vmul.f32 %v4335, %v4335
  %v4715 = vmul.f32 %v4341, %v4341
  %v4716 = vmul.f32 %v4347, %v4347
  %v4717 = vmul.f32 %v4353, %v4353
  %v4718 = vmul.f32 %v4359, %v4359
  %v4719 = vmul.f32 %v4365, %v4365
  %v4720 = vmul.f32 %v4371, %v4371
  %v4721 = vmul.f32 %v4377, %v4377
  %v4722 = vmul.f32 %v4383, %v4383
  %v4723 = vmul.f32 %v4389, %v4389
  %v4724 = vmul.f32 %v4395, %v4395
  %v4725 = vmul.f32 %v4401, %v4401
  %v4726 = vmul.f32 %v4407, %v4407
  %v4727 = vmul.f32 %v4413, %v4413
  %v4728 = vmul.f32 %v4419, %v4419
  %v4729 = vmul.f32 %v4425, %v4425
  %v4730 = vmul.f32 %v4431, %v4431
  %v4731 = vmul.f32 %v4437, %v4437
  %v4732 = vmul.f32 %v4443, %v4443
  %v4733 = vmul.f32 %v4449, %v4449
  %v4734 = vmul.f32 %v4455, %v4455
  %v4735 = vmul.f32 %v4461, %v4461
  %v4736 = vmul.f32 %v4467, %v4467
  %v4737 = vmul.f32 %v4473, %v4473
  %v4738 = vmul.f32 %v4512, %v4512
  %v4739 = vmul.f32 %v4518, %v4518
  %v4740 = vmul.f32 %v4524, %v4524
  %v4741 = vmul.f32 %v4530, %v4530
  %v4742 = vmul.f32 %v4536, %v4536
  %v4743 = vmul.f32 %v4542, %v4542
  %v4744 = vmul.f32 %v4548, %v4548
  %v4745 = vmul.f32 %v4554, %v4554
  %v4746 = vmul.f32 %v4560, %v4560
  %v4747 = vmul.f32 %v4566, %v4566
  %v4748 = vmul.f32 %v4572, %v4572
  %v4749 = vmul.f32 %v4578, %v4578
  %v4750 = vmul.f32 %v4584, %v4584
  %v4751 = vmul.f32 %v4590, %v4590
  %v4752 = vmul.f32 %v4596, %v4596
  %v4753 = vmul.f32 %v4602, %v4602
  %v4754 = vmul.f32 %v4608, %v4608
  %v4755 = vmul.f32 %v4614, %v4614
  %v4756 = vmul.f32 %v4620, %v4620
  %v4757 = vmul.f32 %v4626, %v4626
  %v4758 = vmul.f32 %v4632, %v4632
  %v4759 = vmul.f32 %v4638, %v4638
  %v4760 = vmul.f32 %v4644, %v4644
  %v4761 = vmul.f32 %v4650, %v4650
  %v4762 = vmul.f32 %v4656, %v4656
  %v4763 = vmul.f32 %v4662, %v4662
  %v4764 = vmul.f32 %v4668, %v4668
  %v4765 = vmul.f32 %v4674, %v4674
  %v4766 = vmul.f32 %v4680, %v4680
  %v4767 = vmul.f32 %v4686, %v4686
  %v4768 = vmul.f32 %v4692, %v4692
  %v4769 = vmul.f32 %v4698, %v4698
  %v4770 = vmul.f32 %v4704, %v4704
  %v4771 = vadd.f32 %v4705, %v4738
  %v4772 = vadd.f32 %v4706, %v4739
  %v4773 = vadd.f32 %v4707, %v4740
  %v4774 = vadd.f32 %v4708, %v4741
  %v4775 = vadd.f32 %v4709, %v4742
  %v4776 = vadd.f32 %v4710, %v4743
  %v4777 = vadd.f32 %v4711, %v4744
  %v4778 = vadd.f32 %v4712, %v4745
  %v4779 = vadd.f32 %v4713, %v4746
  %v4780 = vadd.f32 %v4714, %v4747
  %v4781 = vadd.f32 %v4715, %v4748
  %v4782 = vadd.f32 %v4716, %v4749
  %v4783 = vadd.f32 %v4717, %v4750
  %v4784 = vadd.f32 %v4718, %v4751
  %v4785 = vadd.f32 %v4719, %v4752
  %v4786 = vadd.f32 %v4720, %v4753
  %v4787 = vadd.f32 %v4721, %v4754
  %v4788 = vadd.f32 %v4722, %v4755
  %v4789 = vadd.f32 %v4723, %v4756
  %v4790 = vadd.f32 %v4724, %v4757
  %v4791 = vadd.f32 %v4725, %v4758
  %v4792 = vadd.f32 %v4726, %v4759
  %v4793 = vadd.f32 %v4727, %v4760
  %v4794 = vadd.f32 %v4728, %v4761
  %v4795 = vadd.f32 %v4729, %v4762
  %v4796 = vadd.f32 %v4730, %v4763
  %v4797 = vadd.f32 %v4731, %v4764
  %v4798 = vadd.f32 %v4732, %v4765
  %v4799 = vadd.f32 %v4733, %v4766
  %v4800 = vadd.f32 %v4734, %v4767
  %v4801 = vadd.f32 %v4735, %v4768
  %v4802 = vadd.f32 %v4736, %v4769
  %v4803 = vadd.f32 %v4737, %v4770
  %v4804 = vrsqrt.pop %v4771
  %v4805 = vmul.f32 %v4771, %v4804
  %vm4806 = vcmp.eq.f32.partialorder %v4771, inf
  %v4807 = vsel %vm4806, %v4771, %v4805
  %vm4808 = vcmp.eq.f32.partialorder %v4771, 0.0
  %v4809 = vand.u32 %v4771, 2147483648
  %v4810 = vsel %vm4808, %v4809, %v4807
  %v4811 = vrsqrt.pop %v4772
  %v4812 = vmul.f32 %v4772, %v4811
  %vm4813 = vcmp.eq.f32.partialorder %v4772, inf
  %v4814 = vsel %vm4813, %v4772, %v4812
  %vm4815 = vcmp.eq.f32.partialorder %v4772, 0.0
  %v4816 = vand.u32 %v4772, 2147483648
  %v4817 = vsel %vm4815, %v4816, %v4814
  %v4818 = vrsqrt.pop %v4773
  %v4819 = vmul.f32 %v4773, %v4818
  %vm4820 = vcmp.eq.f32.partialorder %v4773, inf
  %v4821 = vsel %vm4820, %v4773, %v4819
  %vm4822 = vcmp.eq.f32.partialorder %v4773, 0.0
  %v4823 = vand.u32 %v4773, 2147483648
  %v4824 = vsel %vm4822, %v4823, %v4821
  %v4825 = vrsqrt.pop %v4774
  %v4826 = vmul.f32 %v4774, %v4825
  %vm4827 = vcmp.eq.f32.partialorder %v4774, inf
  %v4828 = vsel %vm4827, %v4774, %v4826
  %vm4829 = vcmp.eq.f32.partialorder %v4774, 0.0
  %v4830 = vand.u32 %v4774, 2147483648
  %v4831 = vsel %vm4829, %v4830, %v4828
  %v4832 = vrsqrt.pop %v4775
  %v4833 = vmul.f32 %v4775, %v4832
  %vm4834 = vcmp.eq.f32.partialorder %v4775, inf
  %v4835 = vsel %vm4834, %v4775, %v4833
  %vm4836 = vcmp.eq.f32.partialorder %v4775, 0.0
  %v4837 = vand.u32 %v4775, 2147483648
  %v4838 = vsel %vm4836, %v4837, %v4835
  %v4839 = vrsqrt.pop %v4776
  %v4840 = vmul.f32 %v4776, %v4839
  %vm4841 = vcmp.eq.f32.partialorder %v4776, inf
  %v4842 = vsel %vm4841, %v4776, %v4840
  %vm4843 = vcmp.eq.f32.partialorder %v4776, 0.0
  %v4844 = vand.u32 %v4776, 2147483648
  %v4845 = vsel %vm4843, %v4844, %v4842
  %v4846 = vrsqrt.pop %v4777
  %v4847 = vmul.f32 %v4777, %v4846
  %vm4848 = vcmp.eq.f32.partialorder %v4777, inf
  %v4849 = vsel %vm4848, %v4777, %v4847
  %vm4850 = vcmp.eq.f32.partialorder %v4777, 0.0
  %v4851 = vand.u32 %v4777, 2147483648
  %v4852 = vsel %vm4850, %v4851, %v4849
  %v4853 = vrsqrt.pop %v4778
  %v4854 = vmul.f32 %v4778, %v4853
  %vm4855 = vcmp.eq.f32.partialorder %v4778, inf
  %v4856 = vsel %vm4855, %v4778, %v4854
  %vm4857 = vcmp.eq.f32.partialorder %v4778, 0.0
  %v4858 = vand.u32 %v4778, 2147483648
  %v4859 = vsel %vm4857, %v4858, %v4856
  %v4860 = vrsqrt.pop %v4779
  %v4861 = vmul.f32 %v4779, %v4860
  %vm4862 = vcmp.eq.f32.partialorder %v4779, inf
  %v4863 = vsel %vm4862, %v4779, %v4861
  %vm4864 = vcmp.eq.f32.partialorder %v4779, 0.0
  %v4865 = vand.u32 %v4779, 2147483648
  %v4866 = vsel %vm4864, %v4865, %v4863
  %v4867 = vrsqrt.pop %v4780
  %v4868 = vmul.f32 %v4780, %v4867
  %vm4869 = vcmp.eq.f32.partialorder %v4780, inf
  %v4870 = vsel %vm4869, %v4780, %v4868
  %vm4871 = vcmp.eq.f32.partialorder %v4780, 0.0
  %v4872 = vand.u32 %v4780, 2147483648
  %v4873 = vsel %vm4871, %v4872, %v4870
  %v4874 = vrsqrt.pop %v4781
  %v4875 = vmul.f32 %v4781, %v4874
  %vm4876 = vcmp.eq.f32.partialorder %v4781, inf
  %v4877 = vsel %vm4876, %v4781, %v4875
  %vm4878 = vcmp.eq.f32.partialorder %v4781, 0.0
  %v4879 = vand.u32 %v4781, 2147483648
  %v4880 = vsel %vm4878, %v4879, %v4877
  %v4881 = vrsqrt.pop %v4782
  %v4882 = vmul.f32 %v4782, %v4881
  %vm4883 = vcmp.eq.f32.partialorder %v4782, inf
  %v4884 = vsel %vm4883, %v4782, %v4882
  %vm4885 = vcmp.eq.f32.partialorder %v4782, 0.0
  %v4886 = vand.u32 %v4782, 2147483648
  %v4887 = vsel %vm4885, %v4886, %v4884
  %v4888 = vrsqrt.pop %v4783
  %v4889 = vmul.f32 %v4783, %v4888
  %vm4890 = vcmp.eq.f32.partialorder %v4783, inf
  %v4891 = vsel %vm4890, %v4783, %v4889
  %vm4892 = vcmp.eq.f32.partialorder %v4783, 0.0
  %v4893 = vand.u32 %v4783, 2147483648
  %v4894 = vsel %vm4892, %v4893, %v4891
  %v4895 = vrsqrt.pop %v4784
  %v4896 = vmul.f32 %v4784, %v4895
  %vm4897 = vcmp.eq.f32.partialorder %v4784, inf
  %v4898 = vsel %vm4897, %v4784, %v4896
  %vm4899 = vcmp.eq.f32.partialorder %v4784, 0.0
  %v4900 = vand.u32 %v4784, 2147483648
  %v4901 = vsel %vm4899, %v4900, %v4898
  %v4902 = vrsqrt.pop %v4785
  %v4903 = vmul.f32 %v4785, %v4902
  %vm4904 = vcmp.eq.f32.partialorder %v4785, inf
  %v4905 = vsel %vm4904, %v4785, %v4903
  %vm4906 = vcmp.eq.f32.partialorder %v4785, 0.0
  %v4907 = vand.u32 %v4785, 2147483648
  %v4908 = vsel %vm4906, %v4907, %v4905
  %v4909 = vrsqrt.pop %v4786
  %v4910 = vmul.f32 %v4786, %v4909
  %vm4911 = vcmp.eq.f32.partialorder %v4786, inf
  %v4912 = vsel %vm4911, %v4786, %v4910
  %vm4913 = vcmp.eq.f32.partialorder %v4786, 0.0
  %v4914 = vand.u32 %v4786, 2147483648
  %v4915 = vsel %vm4913, %v4914, %v4912
  %v4916 = vrsqrt.pop %v4787
  %v4917 = vmul.f32 %v4787, %v4916
  %vm4918 = vcmp.eq.f32.partialorder %v4787, inf
  %v4919 = vsel %vm4918, %v4787, %v4917
  %vm4920 = vcmp.eq.f32.partialorder %v4787, 0.0
  %v4921 = vand.u32 %v4787, 2147483648
  %v4922 = vsel %vm4920, %v4921, %v4919
  %v4923 = vrsqrt.pop %v4788
  %v4924 = vmul.f32 %v4788, %v4923
  %vm4925 = vcmp.eq.f32.partialorder %v4788, inf
  %v4926 = vsel %vm4925, %v4788, %v4924
  %vm4927 = vcmp.eq.f32.partialorder %v4788, 0.0
  %v4928 = vand.u32 %v4788, 2147483648
  %v4929 = vsel %vm4927, %v4928, %v4926
  %v4930 = vrsqrt.pop %v4789
  %v4931 = vmul.f32 %v4789, %v4930
  %vm4932 = vcmp.eq.f32.partialorder %v4789, inf
  %v4933 = vsel %vm4932, %v4789, %v4931
  %vm4934 = vcmp.eq.f32.partialorder %v4789, 0.0
  %v4935 = vand.u32 %v4789, 2147483648
  %v4936 = vsel %vm4934, %v4935, %v4933
  %v4937 = vrsqrt.pop %v4790
  %v4938 = vmul.f32 %v4790, %v4937
  %vm4939 = vcmp.eq.f32.partialorder %v4790, inf
  %v4940 = vsel %vm4939, %v4790, %v4938
  %vm4941 = vcmp.eq.f32.partialorder %v4790, 0.0
  %v4942 = vand.u32 %v4790, 2147483648
  %v4943 = vsel %vm4941, %v4942, %v4940
  %v4944 = vrsqrt.pop %v4791
  %v4945 = vmul.f32 %v4791, %v4944
  %vm4946 = vcmp.eq.f32.partialorder %v4791, inf
  %v4947 = vsel %vm4946, %v4791, %v4945
  %vm4948 = vcmp.eq.f32.partialorder %v4791, 0.0
  %v4949 = vand.u32 %v4791, 2147483648
  %v4950 = vsel %vm4948, %v4949, %v4947
  %v4951 = vrsqrt.pop %v4792
  %v4952 = vmul.f32 %v4792, %v4951
  %vm4953 = vcmp.eq.f32.partialorder %v4792, inf
  %v4954 = vsel %vm4953, %v4792, %v4952
  %vm4955 = vcmp.eq.f32.partialorder %v4792, 0.0
  %v4956 = vand.u32 %v4792, 2147483648
  %v4957 = vsel %vm4955, %v4956, %v4954
  %v4958 = vrsqrt.pop %v4793
  %v4959 = vmul.f32 %v4793, %v4958
  %vm4960 = vcmp.eq.f32.partialorder %v4793, inf
  %v4961 = vsel %vm4960, %v4793, %v4959
  %vm4962 = vcmp.eq.f32.partialorder %v4793, 0.0
  %v4963 = vand.u32 %v4793, 2147483648
  %v4964 = vsel %vm4962, %v4963, %v4961
  %v4965 = vrsqrt.pop %v4794
  %v4966 = vmul.f32 %v4794, %v4965
  %vm4967 = vcmp.eq.f32.partialorder %v4794, inf
  %v4968 = vsel %vm4967, %v4794, %v4966
  %vm4969 = vcmp.eq.f32.partialorder %v4794, 0.0
  %v4970 = vand.u32 %v4794, 2147483648
  %v4971 = vsel %vm4969, %v4970, %v4968
  %v4972 = vrsqrt.pop %v4795
  %v4973 = vmul.f32 %v4795, %v4972
  %vm4974 = vcmp.eq.f32.partialorder %v4795, inf
  %v4975 = vsel %vm4974, %v4795, %v4973
  %vm4976 = vcmp.eq.f32.partialorder %v4795, 0.0
  %v4977 = vand.u32 %v4795, 2147483648
  %v4978 = vsel %vm4976, %v4977, %v4975
  %v4979 = vrsqrt.pop %v4796
  %v4980 = vmul.f32 %v4796, %v4979
  %vm4981 = vcmp.eq.f32.partialorder %v4796, inf
  %v4982 = vsel %vm4981, %v4796, %v4980
  %vm4983 = vcmp.eq.f32.partialorder %v4796, 0.0
  %v4984 = vand.u32 %v4796, 2147483648
  %v4985 = vsel %vm4983, %v4984, %v4982
  %v4986 = vrsqrt.pop %v4797
  %v4987 = vmul.f32 %v4797, %v4986
  %vm4988 = vcmp.eq.f32.partialorder %v4797, inf
  %v4989 = vsel %vm4988, %v4797, %v4987
  %vm4990 = vcmp.eq.f32.partialorder %v4797, 0.0
  %v4991 = vand.u32 %v4797, 2147483648
  %v4992 = vsel %vm4990, %v4991, %v4989
  %v4993 = vrsqrt.pop %v4798
  %v4994 = vmul.f32 %v4798, %v4993
  %vm4995 = vcmp.eq.f32.partialorder %v4798, inf
  %v4996 = vsel %vm4995, %v4798, %v4994
  %vm4997 = vcmp.eq.f32.partialorder %v4798, 0.0
  %v4998 = vand.u32 %v4798, 2147483648
  %v4999 = vsel %vm4997, %v4998, %v4996
  %v5000 = vrsqrt.pop %v4799
  %v5001 = vmul.f32 %v4799, %v5000
  %vm5002 = vcmp.eq.f32.partialorder %v4799, inf
  %v5003 = vsel %vm5002, %v4799, %v5001
  %vm5004 = vcmp.eq.f32.partialorder %v4799, 0.0
  %v5005 = vand.u32 %v4799, 2147483648
  %v5006 = vsel %vm5004, %v5005, %v5003
  %v5007 = vrsqrt.pop %v4800
  %v5008 = vmul.f32 %v4800, %v5007
  %vm5009 = vcmp.eq.f32.partialorder %v4800, inf
  %v5010 = vsel %vm5009, %v4800, %v5008
  %vm5011 = vcmp.eq.f32.partialorder %v4800, 0.0
  %v5012 = vand.u32 %v4800, 2147483648
  %v5013 = vsel %vm5011, %v5012, %v5010
  %v5014 = vrsqrt.pop %v4801
  %v5015 = vmul.f32 %v4801, %v5014
  %vm5016 = vcmp.eq.f32.partialorder %v4801, inf
  %v5017 = vsel %vm5016, %v4801, %v5015
  %vm5018 = vcmp.eq.f32.partialorder %v4801, 0.0
  %v5019 = vand.u32 %v4801, 2147483648
  %v5020 = vsel %vm5018, %v5019, %v5017
  %v5021 = vrsqrt.pop %v4802
  %v5022 = vmul.f32 %v4802, %v5021
  %vm5023 = vcmp.eq.f32.partialorder %v4802, inf
  %v5024 = vsel %vm5023, %v4802, %v5022
  %vm5025 = vcmp.eq.f32.partialorder %v4802, 0.0
  %v5026 = vand.u32 %v4802, 2147483648
  %v5027 = vsel %vm5025, %v5026, %v5024
  %v5028 = vrsqrt.pop %v4803
  %v5029 = vmul.f32 %v4803, %v5028
  %vm5030 = vcmp.eq.f32.partialorder %v4803, inf
  %v5031 = vsel %vm5030, %v4803, %v5029
  %vm5032 = vcmp.eq.f32.partialorder %v4803, 0.0
  %v5033 = vand.u32 %v4803, 2147483648
  %v5034 = vsel %vm5032, %v5033, %v5031
  %v5035 = vsub.f32 0.0, %v4810
  %v5036 = vsub.f32 0.0, %v4817
  %v5037 = vsub.f32 0.0, %v4824
  %v5038 = vsub.f32 0.0, %v4831
  %v5039 = vsub.f32 0.0, %v4838
  %v5040 = vsub.f32 0.0, %v4845
  %v5041 = vsub.f32 0.0, %v4852
  %v5042 = vsub.f32 0.0, %v4859
  %v5043 = vsub.f32 0.0, %v4866
  %v5044 = vsub.f32 0.0, %v4873
  %v5045 = vsub.f32 0.0, %v4880
  %v5046 = vsub.f32 0.0, %v4887
  %v5047 = vsub.f32 0.0, %v4894
  %v5048 = vsub.f32 0.0, %v4901
  %v5049 = vsub.f32 0.0, %v4908
  %v5050 = vsub.f32 0.0, %v4915
  %v5051 = vsub.f32 0.0, %v4922
  %v5052 = vsub.f32 0.0, %v4929
  %v5053 = vsub.f32 0.0, %v4936
  %v5054 = vsub.f32 0.0, %v4943
  %v5055 = vsub.f32 0.0, %v4950
  %v5056 = vsub.f32 0.0, %v4957
  %v5057 = vsub.f32 0.0, %v4964
  %v5058 = vsub.f32 0.0, %v4971
  %v5059 = vsub.f32 0.0, %v4978
  %v5060 = vsub.f32 0.0, %v4985
  %v5061 = vsub.f32 0.0, %v4992
  %v5062 = vsub.f32 0.0, %v4999
  %v5063 = vsub.f32 0.0, %v5006
  %v5064 = vsub.f32 0.0, %v5013
  %v5065 = vsub.f32 0.0, %v5020
  %v5066 = vsub.f32 0.0, %v5027
  %v5067 = vsub.f32 0.0, %v5034
  %v5068 = vmul.f32 %v5035, 1.442695
  %v5069 = vpow.pop %v5068
  %v5070 = vmul.f32 %v5036, 1.442695
  %v5071 = vpow.pop %v5070
  %v5072 = vmul.f32 %v5037, 1.442695
  %v5073 = vpow.pop %v5072
  %v5074 = vmul.f32 %v5038, 1.442695
  %v5075 = vpow.pop %v5074
  %v5076 = vmul.f32 %v5039, 1.442695
  %v5077 = vpow.pop %v5076
  %v5078 = vmul.f32 %v5040, 1.442695
  %v5079 = vpow.pop %v5078
  %v5080 = vmul.f32 %v5041, 1.442695
  %v5081 = vpow.pop %v5080
  %v5082 = vmul.f32 %v5042, 1.442695
  %v5083 = vpow.pop %v5082
  %v5084 = vmul.f32 %v5043, 1.442695
  %v5085 = vpow.pop %v5084
  %v5086 = vmul.f32 %v5044, 1.442695
  %v5087 = vpow.pop %v5086
  %v5088 = vmul.f32 %v5045, 1.442695
  %v5089 = vpow.pop %v5088
  %v5090 = vmul.f32 %v5046, 1.442695
  %v5091 = vpow.pop %v5090
  %v5092 = vmul.f32 %v5047, 1.442695
  %v5093 = vpow.pop %v5092
  %v5094 = vmul.f32 %v5048, 1.442695
  %v5095 = vpow.pop %v5094
  %v5096 = vmul.f32 %v5049, 1.442695
  %v5097 = vpow.pop %v5096
  %v5098 = vmul.f32 %v5050, 1.442695
  %v5099 = vpow.pop %v5098
  %v5100 = vmul.f32 %v5051, 1.442695
  %v5101 = vpow.pop %v5100
  %v5102 = vmul.f32 %v5052, 1.442695
  %v5103 = vpow.pop %v5102
  %v5104 = vmul.f32 %v5053, 1.442695
  %v5105 = vpow.pop %v5104
  %v5106 = vmul.f32 %v5054, 1.442695
  %v5107 = vpow.pop %v5106
  %v5108 = vmul.f32 %v5055, 1.442695
  %v5109 = vpow.pop %v5108
  %v5110 = vmul.f32 %v5056, 1.442695
  %v5111 = vpow.pop %v5110
  %v5112 = vmul.f32 %v5057, 1.442695
  %v5113 = vpow.pop %v5112
  %v5114 = vmul.f32 %v5058, 1.442695
  %v5115 = vpow.pop %v5114
  %v5116 = vmul.f32 %v5059, 1.442695
  %v5117 = vpow.pop %v5116
  %v5118 = vmul.f32 %v5060, 1.442695
  %v5119 = vpow.pop %v5118
  %v5120 = vmul.f32 %v5061, 1.442695
  %v5121 = vpow.pop %v5120
  %v5122 = vmul.f32 %v5062, 1.442695
  %v5123 = vpow.pop %v5122
  %v5124 = vmul.f32 %v5063, 1.442695
  %v5125 = vpow.pop %v5124
  %v5126 = vmul.f32 %v5064, 1.442695
  %v5127 = vpow.pop %v5126
  %v5128 = vmul.f32 %v5065, 1.442695
  %v5129 = vpow.pop %v5128
  %v5130 = vmul.f32 %v5066, 1.442695
  %v5131 = vpow.pop %v5130
  %v5132 = vmul.f32 %v5067, 1.442695
  %v5133 = vpow.pop %v5132
  %v5167 = vsel %vm4164, %v5071, %v5069
  %v5168 = vsel %vm4166, %v5073, %v5167
  %v5169 = vsel %vm4168, %v5075, %v5168
  %v5170 = vsel %vm4170, %v5077, %v5169
  %v5171 = vsel %vm4172, %v5079, %v5170
  %v5172 = vsel %vm4174, %v5081, %v5171
  %v5173 = vsel %vm4176, %v5083, %v5172
  %v5174 = vsel %vm4164, %v5087, %v5085
  %v5175 = vsel %vm4166, %v5089, %v5174
  %v5176 = vsel %vm4168, %v5091, %v5175
  %v5177 = vsel %vm4170, %v5093, %v5176
  %v5178 = vsel %vm4172, %v5095, %v5177
  %v5179 = vsel %vm4174, %v5097, %v5178
  %v5180 = vsel %vm4176, %v5099, %v5179
  %v5181 = vsel %vm4164, %v5103, %v5101
  %v5182 = vsel %vm4166, %v5105, %v5181
  %v5183 = vsel %vm4168, %v5107, %v5182
  %v5184 = vsel %vm4170, %v5109, %v5183
  %v5185 = vsel %vm4172, %v5111, %v5184
  %v5186 = vsel %vm4174, %v5113, %v5185
  %v5187 = vsel %vm4176, %v5115, %v5186
  %v5188 = vsel %vm4164, %v5119, %v5117
  %v5189 = vsel %vm4166, %v5121, %v5188
  %v5190 = vsel %vm4168, %v5123, %v5189
  %v5191 = vsel %vm4170, %v5125, %v5190
  %v5192 = vsel %vm4172, %v5127, %v5191
  %v5193 = vsel %vm4174, %v5129, %v5192
  %v5194 = vsel %vm4176, %v5131, %v5193
  %5200 = vst [vmem:[%s14 + $0x21] sm:$0xff] %v5173
  %5201 = vst [vmem:[%s14 + $0x29] sm:$0xff] %v5180
  %5202 = vst [vmem:[%s14 + $0x31] sm:$0xff] %v5187
  %5203 = vst [vmem:[%s14 + $0x39] sm:$0xff] %v5194
  %5204 = vst [vmem:[%s14 + $0x41] sm:$0x1] %v5133
  %s5205 = scalar_lea.vmem %s13, 536
  %v5206 = vld [vmem:[%s5205] sm:$0xff]
  %v5207 = vld [vmem:[%s5205 + $0x8] sm:$0xff]
  %v5208 = vld [vmem:[%s5205 + $0x10] sm:$0xff]
  %v5209 = vld [vmem:[%s5205 + $0x18] sm:$0xff]
  %v5210 = vld [vmem:[%s5205 + $0x20] sm:$0xff]
  %v5211 = vld [vmem:[%s5205 + $0x28] sm:$0xff]
  %v5212 = vld [vmem:[%s5205 + $0x30] sm:$0xff]
  %v5213 = vld [vmem:[%s5205 + $0x38] sm:$0xff]
  %v5214 = vld [vmem:[%s5205 + $0x40] sm:$0xff]
  %v5215 = vld [vmem:[%s5205 + $0x48] sm:$0xff]
  %v5216 = vld [vmem:[%s5205 + $0x50] sm:$0xff]
  %v5217 = vld [vmem:[%s5205 + $0x58] sm:$0xff]
  %v5218 = vld [vmem:[%s5205 + $0x60] sm:$0xff]
  %v5219 = vld [vmem:[%s5205 + $0x68] sm:$0xff]
  %v5220 = vld [vmem:[%s5205 + $0x70] sm:$0xff]
  %v5221 = vld [vmem:[%s5205 + $0x78] sm:$0xff]
  %v5222 = vld [vmem:[%s5205 + $0x80] sm:$0xff]
  %v5223 = vld [vmem:[%s5205 + $0x88] sm:$0xff]
  %v5224 = vld [vmem:[%s5205 + $0x90] sm:$0xff]
  %v5225 = vld [vmem:[%s5205 + $0x98] sm:$0xff]
  %v5226 = vld [vmem:[%s5205 + $0xa0] sm:$0xff]
  %v5227 = vld [vmem:[%s5205 + $0xa8] sm:$0xff]
  %v5228 = vld [vmem:[%s5205 + $0xb0] sm:$0xff]
  %v5229 = vld [vmem:[%s5205 + $0xb8] sm:$0xff]
  %v5230 = vld [vmem:[%s5205 + $0xc0] sm:$0xff]
  %v5231 = vld [vmem:[%s5205 + $0xc8] sm:$0xff]
  %v5232 = vld [vmem:[%s5205 + $0xd0] sm:$0xff]
  %v5233 = vld [vmem:[%s5205 + $0xd8] sm:$0xff]
  %v5234 = vld [vmem:[%s5205 + $0xe0] sm:$0xff]
  %v5235 = vld [vmem:[%s5205 + $0xe8] sm:$0xff]
  %v5236 = vld [vmem:[%s5205 + $0xf0] sm:$0xff]
  %v5237 = vld [vmem:[%s5205 + $0xf8] sm:$0xff]
  %v5238 = vld [vmem:[%s5205 + $0x100] sm:$0xff]
  %v5239 = vmul.f32 %v5206, %v3233
  %v5240 = vmul.f32 %v5207, %v3233
  %v5241 = vmul.f32 %v5208, %v3233
  %v5242 = vmul.f32 %v5209, %v3233
  %v5243 = vmul.f32 %v5210, %v3233
  %v5244 = vmul.f32 %v5211, %v3233
  %v5245 = vmul.f32 %v5212, %v3233
  %v5246 = vmul.f32 %v5213, %v3233
  %v5247 = vmul.f32 %v5214, %v3233
  %v5248 = vmul.f32 %v5215, %v3233
  %v5249 = vmul.f32 %v5216, %v3233
  %v5250 = vmul.f32 %v5217, %v3233
  %v5251 = vmul.f32 %v5218, %v3233
  %v5252 = vmul.f32 %v5219, %v3233
  %v5253 = vmul.f32 %v5220, %v3233
  %v5254 = vmul.f32 %v5221, %v3233
  %v5255 = vmul.f32 %v5222, %v3233
  %v5256 = vmul.f32 %v5223, %v3233
  %v5257 = vmul.f32 %v5224, %v3233
  %v5258 = vmul.f32 %v5225, %v3233
  %v5259 = vmul.f32 %v5226, %v3233
  %v5260 = vmul.f32 %v5227, %v3233
  %v5261 = vmul.f32 %v5228, %v3233
  %v5262 = vmul.f32 %v5229, %v3233
  %v5263 = vmul.f32 %v5230, %v3233
  %v5264 = vmul.f32 %v5231, %v3233
  %v5265 = vmul.f32 %v5232, %v3233
  %v5266 = vmul.f32 %v5233, %v3233
  %v5267 = vmul.f32 %v5234, %v3233
  %v5268 = vmul.f32 %v5235, %v3233
  %v5269 = vmul.f32 %v5236, %v3233
  %v5270 = vmul.f32 %v5237, %v3233
  %v5271 = vmul.f32 %v5238, %v3233
  %v5272 = vrot.slane %v5239, 4
  %v5273 = vadd.f32 %v5239, %v5272
  %v5274 = vrot.slane %v5273, 2
  %v5275 = vadd.f32 %v5273, %v5274
  %v5276 = vrot.slane %v5275, 1
  %v5277 = vadd.f32 %v5275, %v5276
  %v5278 = vrot.slane %v5240, 4
  %v5279 = vadd.f32 %v5240, %v5278
  %v5280 = vrot.slane %v5279, 2
  %v5281 = vadd.f32 %v5279, %v5280
  %v5282 = vrot.slane %v5281, 1
  %v5283 = vadd.f32 %v5281, %v5282
  %v5284 = vrot.slane %v5241, 4
  %v5285 = vadd.f32 %v5241, %v5284
  %v5286 = vrot.slane %v5285, 2
  %v5287 = vadd.f32 %v5285, %v5286
  %v5288 = vrot.slane %v5287, 1
  %v5289 = vadd.f32 %v5287, %v5288
  %v5290 = vrot.slane %v5242, 4
  %v5291 = vadd.f32 %v5242, %v5290
  %v5292 = vrot.slane %v5291, 2
  %v5293 = vadd.f32 %v5291, %v5292
  %v5294 = vrot.slane %v5293, 1
  %v5295 = vadd.f32 %v5293, %v5294
  %v5296 = vrot.slane %v5243, 4
  %v5297 = vadd.f32 %v5243, %v5296
  %v5298 = vrot.slane %v5297, 2
  %v5299 = vadd.f32 %v5297, %v5298
  %v5300 = vrot.slane %v5299, 1
  %v5301 = vadd.f32 %v5299, %v5300
  %v5302 = vrot.slane %v5244, 4
  %v5303 = vadd.f32 %v5244, %v5302
  %v5304 = vrot.slane %v5303, 2
  %v5305 = vadd.f32 %v5303, %v5304
  %v5306 = vrot.slane %v5305, 1
  %v5307 = vadd.f32 %v5305, %v5306
  %v5308 = vrot.slane %v5245, 4
  %v5309 = vadd.f32 %v5245, %v5308
  %v5310 = vrot.slane %v5309, 2
  %v5311 = vadd.f32 %v5309, %v5310
  %v5312 = vrot.slane %v5311, 1
  %v5313 = vadd.f32 %v5311, %v5312
  %v5314 = vrot.slane %v5246, 4
  %v5315 = vadd.f32 %v5246, %v5314
  %v5316 = vrot.slane %v5315, 2
  %v5317 = vadd.f32 %v5315, %v5316
  %v5318 = vrot.slane %v5317, 1
  %v5319 = vadd.f32 %v5317, %v5318
  %v5320 = vrot.slane %v5247, 4
  %v5321 = vadd.f32 %v5247, %v5320
  %v5322 = vrot.slane %v5321, 2
  %v5323 = vadd.f32 %v5321, %v5322
  %v5324 = vrot.slane %v5323, 1
  %v5325 = vadd.f32 %v5323, %v5324
  %v5326 = vrot.slane %v5248, 4
  %v5327 = vadd.f32 %v5248, %v5326
  %v5328 = vrot.slane %v5327, 2
  %v5329 = vadd.f32 %v5327, %v5328
  %v5330 = vrot.slane %v5329, 1
  %v5331 = vadd.f32 %v5329, %v5330
  %v5332 = vrot.slane %v5249, 4
  %v5333 = vadd.f32 %v5249, %v5332
  %v5334 = vrot.slane %v5333, 2
  %v5335 = vadd.f32 %v5333, %v5334
  %v5336 = vrot.slane %v5335, 1
  %v5337 = vadd.f32 %v5335, %v5336
  %v5338 = vrot.slane %v5250, 4
  %v5339 = vadd.f32 %v5250, %v5338
  %v5340 = vrot.slane %v5339, 2
  %v5341 = vadd.f32 %v5339, %v5340
  %v5342 = vrot.slane %v5341, 1
  %v5343 = vadd.f32 %v5341, %v5342
  %v5344 = vrot.slane %v5251, 4
  %v5345 = vadd.f32 %v5251, %v5344
  %v5346 = vrot.slane %v5345, 2
  %v5347 = vadd.f32 %v5345, %v5346
  %v5348 = vrot.slane %v5347, 1
  %v5349 = vadd.f32 %v5347, %v5348
  %v5350 = vrot.slane %v5252, 4
  %v5351 = vadd.f32 %v5252, %v5350
  %v5352 = vrot.slane %v5351, 2
  %v5353 = vadd.f32 %v5351, %v5352
  %v5354 = vrot.slane %v5353, 1
  %v5355 = vadd.f32 %v5353, %v5354
  %v5356 = vrot.slane %v5253, 4
  %v5357 = vadd.f32 %v5253, %v5356
  %v5358 = vrot.slane %v5357, 2
  %v5359 = vadd.f32 %v5357, %v5358
  %v5360 = vrot.slane %v5359, 1
  %v5361 = vadd.f32 %v5359, %v5360
  %v5362 = vrot.slane %v5254, 4
  %v5363 = vadd.f32 %v5254, %v5362
  %v5364 = vrot.slane %v5363, 2
  %v5365 = vadd.f32 %v5363, %v5364
  %v5366 = vrot.slane %v5365, 1
  %v5367 = vadd.f32 %v5365, %v5366
  %v5368 = vrot.slane %v5255, 4
  %v5369 = vadd.f32 %v5255, %v5368
  %v5370 = vrot.slane %v5369, 2
  %v5371 = vadd.f32 %v5369, %v5370
  %v5372 = vrot.slane %v5371, 1
  %v5373 = vadd.f32 %v5371, %v5372
  %v5374 = vrot.slane %v5256, 4
  %v5375 = vadd.f32 %v5256, %v5374
  %v5376 = vrot.slane %v5375, 2
  %v5377 = vadd.f32 %v5375, %v5376
  %v5378 = vrot.slane %v5377, 1
  %v5379 = vadd.f32 %v5377, %v5378
  %v5380 = vrot.slane %v5257, 4
  %v5381 = vadd.f32 %v5257, %v5380
  %v5382 = vrot.slane %v5381, 2
  %v5383 = vadd.f32 %v5381, %v5382
  %v5384 = vrot.slane %v5383, 1
  %v5385 = vadd.f32 %v5383, %v5384
  %v5386 = vrot.slane %v5258, 4
  %v5387 = vadd.f32 %v5258, %v5386
  %v5388 = vrot.slane %v5387, 2
  %v5389 = vadd.f32 %v5387, %v5388
  %v5390 = vrot.slane %v5389, 1
  %v5391 = vadd.f32 %v5389, %v5390
  %v5392 = vrot.slane %v5259, 4
  %v5393 = vadd.f32 %v5259, %v5392
  %v5394 = vrot.slane %v5393, 2
  %v5395 = vadd.f32 %v5393, %v5394
  %v5396 = vrot.slane %v5395, 1
  %v5397 = vadd.f32 %v5395, %v5396
  %v5398 = vrot.slane %v5260, 4
  %v5399 = vadd.f32 %v5260, %v5398
  %v5400 = vrot.slane %v5399, 2
  %v5401 = vadd.f32 %v5399, %v5400
  %v5402 = vrot.slane %v5401, 1
  %v5403 = vadd.f32 %v5401, %v5402
  %v5404 = vrot.slane %v5261, 4
  %v5405 = vadd.f32 %v5261, %v5404
  %v5406 = vrot.slane %v5405, 2
  %v5407 = vadd.f32 %v5405, %v5406
  %v5408 = vrot.slane %v5407, 1
  %v5409 = vadd.f32 %v5407, %v5408
  %v5410 = vrot.slane %v5262, 4
  %v5411 = vadd.f32 %v5262, %v5410
  %v5412 = vrot.slane %v5411, 2
  %v5413 = vadd.f32 %v5411, %v5412
  %v5414 = vrot.slane %v5413, 1
  %v5415 = vadd.f32 %v5413, %v5414
  %v5416 = vrot.slane %v5263, 4
  %v5417 = vadd.f32 %v5263, %v5416
  %v5418 = vrot.slane %v5417, 2
  %v5419 = vadd.f32 %v5417, %v5418
  %v5420 = vrot.slane %v5419, 1
  %v5421 = vadd.f32 %v5419, %v5420
  %v5422 = vrot.slane %v5264, 4
  %v5423 = vadd.f32 %v5264, %v5422
  %v5424 = vrot.slane %v5423, 2
  %v5425 = vadd.f32 %v5423, %v5424
  %v5426 = vrot.slane %v5425, 1
  %v5427 = vadd.f32 %v5425, %v5426
  %v5428 = vrot.slane %v5265, 4
  %v5429 = vadd.f32 %v5265, %v5428
  %v5430 = vrot.slane %v5429, 2
  %v5431 = vadd.f32 %v5429, %v5430
  %v5432 = vrot.slane %v5431, 1
  %v5433 = vadd.f32 %v5431, %v5432
  %v5434 = vrot.slane %v5266, 4
  %v5435 = vadd.f32 %v5266, %v5434
  %v5436 = vrot.slane %v5435, 2
  %v5437 = vadd.f32 %v5435, %v5436
  %v5438 = vrot.slane %v5437, 1
  %v5439 = vadd.f32 %v5437, %v5438
  %v5440 = vrot.slane %v5267, 4
  %v5441 = vadd.f32 %v5267, %v5440
  %v5442 = vrot.slane %v5441, 2
  %v5443 = vadd.f32 %v5441, %v5442
  %v5444 = vrot.slane %v5443, 1
  %v5445 = vadd.f32 %v5443, %v5444
  %v5446 = vrot.slane %v5268, 4
  %v5447 = vadd.f32 %v5268, %v5446
  %v5448 = vrot.slane %v5447, 2
  %v5449 = vadd.f32 %v5447, %v5448
  %v5450 = vrot.slane %v5449, 1
  %v5451 = vadd.f32 %v5449, %v5450
  %v5452 = vrot.slane %v5269, 4
  %v5453 = vadd.f32 %v5269, %v5452
  %v5454 = vrot.slane %v5453, 2
  %v5455 = vadd.f32 %v5453, %v5454
  %v5456 = vrot.slane %v5455, 1
  %v5457 = vadd.f32 %v5455, %v5456
  %v5458 = vrot.slane %v5270, 4
  %v5459 = vadd.f32 %v5270, %v5458
  %v5460 = vrot.slane %v5459, 2
  %v5461 = vadd.f32 %v5459, %v5460
  %v5462 = vrot.slane %v5461, 1
  %v5463 = vadd.f32 %v5461, %v5462
  %v5464 = vrot.slane %v5271, 4
  %v5465 = vadd.f32 %v5271, %v5464
  %v5466 = vrot.slane %v5465, 2
  %v5467 = vadd.f32 %v5465, %v5466
  %v5468 = vrot.slane %v5467, 1
  %v5469 = vadd.f32 %v5467, %v5468
  %v5470 = vmul.f32 %v5206, %v3469
  %v5471 = vmul.f32 %v5207, %v3469
  %v5472 = vmul.f32 %v5208, %v3469
  %v5473 = vmul.f32 %v5209, %v3469
  %v5474 = vmul.f32 %v5210, %v3469
  %v5475 = vmul.f32 %v5211, %v3469
  %v5476 = vmul.f32 %v5212, %v3469
  %v5477 = vmul.f32 %v5213, %v3469
  %v5478 = vmul.f32 %v5214, %v3469
  %v5479 = vmul.f32 %v5215, %v3469
  %v5480 = vmul.f32 %v5216, %v3469
  %v5481 = vmul.f32 %v5217, %v3469
  %v5482 = vmul.f32 %v5218, %v3469
  %v5483 = vmul.f32 %v5219, %v3469
  %v5484 = vmul.f32 %v5220, %v3469
  %v5485 = vmul.f32 %v5221, %v3469
  %v5486 = vmul.f32 %v5222, %v3469
  %v5487 = vmul.f32 %v5223, %v3469
  %v5488 = vmul.f32 %v5224, %v3469
  %v5489 = vmul.f32 %v5225, %v3469
  %v5490 = vmul.f32 %v5226, %v3469
  %v5491 = vmul.f32 %v5227, %v3469
  %v5492 = vmul.f32 %v5228, %v3469
  %v5493 = vmul.f32 %v5229, %v3469
  %v5494 = vmul.f32 %v5230, %v3469
  %v5495 = vmul.f32 %v5231, %v3469
  %v5496 = vmul.f32 %v5232, %v3469
  %v5497 = vmul.f32 %v5233, %v3469
  %v5498 = vmul.f32 %v5234, %v3469
  %v5499 = vmul.f32 %v5235, %v3469
  %v5500 = vmul.f32 %v5236, %v3469
  %v5501 = vmul.f32 %v5237, %v3469
  %v5502 = vmul.f32 %v5238, %v3469
  %v5503 = vrot.slane %v5470, 4
  %v5504 = vadd.f32 %v5470, %v5503
  %v5505 = vrot.slane %v5504, 2
  %v5506 = vadd.f32 %v5504, %v5505
  %v5507 = vrot.slane %v5506, 1
  %v5508 = vadd.f32 %v5506, %v5507
  %v5509 = vrot.slane %v5471, 4
  %v5510 = vadd.f32 %v5471, %v5509
  %v5511 = vrot.slane %v5510, 2
  %v5512 = vadd.f32 %v5510, %v5511
  %v5513 = vrot.slane %v5512, 1
  %v5514 = vadd.f32 %v5512, %v5513
  %v5515 = vrot.slane %v5472, 4
  %v5516 = vadd.f32 %v5472, %v5515
  %v5517 = vrot.slane %v5516, 2
  %v5518 = vadd.f32 %v5516, %v5517
  %v5519 = vrot.slane %v5518, 1
  %v5520 = vadd.f32 %v5518, %v5519
  %v5521 = vrot.slane %v5473, 4
  %v5522 = vadd.f32 %v5473, %v5521
  %v5523 = vrot.slane %v5522, 2
  %v5524 = vadd.f32 %v5522, %v5523
  %v5525 = vrot.slane %v5524, 1
  %v5526 = vadd.f32 %v5524, %v5525
  %v5527 = vrot.slane %v5474, 4
  %v5528 = vadd.f32 %v5474, %v5527
  %v5529 = vrot.slane %v5528, 2
  %v5530 = vadd.f32 %v5528, %v5529
  %v5531 = vrot.slane %v5530, 1
  %v5532 = vadd.f32 %v5530, %v5531
  %v5533 = vrot.slane %v5475, 4
  %v5534 = vadd.f32 %v5475, %v5533
  %v5535 = vrot.slane %v5534, 2
  %v5536 = vadd.f32 %v5534, %v5535
  %v5537 = vrot.slane %v5536, 1
  %v5538 = vadd.f32 %v5536, %v5537
  %v5539 = vrot.slane %v5476, 4
  %v5540 = vadd.f32 %v5476, %v5539
  %v5541 = vrot.slane %v5540, 2
  %v5542 = vadd.f32 %v5540, %v5541
  %v5543 = vrot.slane %v5542, 1
  %v5544 = vadd.f32 %v5542, %v5543
  %v5545 = vrot.slane %v5477, 4
  %v5546 = vadd.f32 %v5477, %v5545
  %v5547 = vrot.slane %v5546, 2
  %v5548 = vadd.f32 %v5546, %v5547
  %v5549 = vrot.slane %v5548, 1
  %v5550 = vadd.f32 %v5548, %v5549
  %v5551 = vrot.slane %v5478, 4
  %v5552 = vadd.f32 %v5478, %v5551
  %v5553 = vrot.slane %v5552, 2
  %v5554 = vadd.f32 %v5552, %v5553
  %v5555 = vrot.slane %v5554, 1
  %v5556 = vadd.f32 %v5554, %v5555
  %v5557 = vrot.slane %v5479, 4
  %v5558 = vadd.f32 %v5479, %v5557
  %v5559 = vrot.slane %v5558, 2
  %v5560 = vadd.f32 %v5558, %v5559
  %v5561 = vrot.slane %v5560, 1
  %v5562 = vadd.f32 %v5560, %v5561
  %v5563 = vrot.slane %v5480, 4
  %v5564 = vadd.f32 %v5480, %v5563
  %v5565 = vrot.slane %v5564, 2
  %v5566 = vadd.f32 %v5564, %v5565
  %v5567 = vrot.slane %v5566, 1
  %v5568 = vadd.f32 %v5566, %v5567
  %v5569 = vrot.slane %v5481, 4
  %v5570 = vadd.f32 %v5481, %v5569
  %v5571 = vrot.slane %v5570, 2
  %v5572 = vadd.f32 %v5570, %v5571
  %v5573 = vrot.slane %v5572, 1
  %v5574 = vadd.f32 %v5572, %v5573
  %v5575 = vrot.slane %v5482, 4
  %v5576 = vadd.f32 %v5482, %v5575
  %v5577 = vrot.slane %v5576, 2
  %v5578 = vadd.f32 %v5576, %v5577
  %v5579 = vrot.slane %v5578, 1
  %v5580 = vadd.f32 %v5578, %v5579
  %v5581 = vrot.slane %v5483, 4
  %v5582 = vadd.f32 %v5483, %v5581
  %v5583 = vrot.slane %v5582, 2
  %v5584 = vadd.f32 %v5582, %v5583
  %v5585 = vrot.slane %v5584, 1
  %v5586 = vadd.f32 %v5584, %v5585
  %v5587 = vrot.slane %v5484, 4
  %v5588 = vadd.f32 %v5484, %v5587
  %v5589 = vrot.slane %v5588, 2
  %v5590 = vadd.f32 %v5588, %v5589
  %v5591 = vrot.slane %v5590, 1
  %v5592 = vadd.f32 %v5590, %v5591
  %v5593 = vrot.slane %v5485, 4
  %v5594 = vadd.f32 %v5485, %v5593
  %v5595 = vrot.slane %v5594, 2
  %v5596 = vadd.f32 %v5594, %v5595
  %v5597 = vrot.slane %v5596, 1
  %v5598 = vadd.f32 %v5596, %v5597
  %v5599 = vrot.slane %v5486, 4
  %v5600 = vadd.f32 %v5486, %v5599
  %v5601 = vrot.slane %v5600, 2
  %v5602 = vadd.f32 %v5600, %v5601
  %v5603 = vrot.slane %v5602, 1
  %v5604 = vadd.f32 %v5602, %v5603
  %v5605 = vrot.slane %v5487, 4
  %v5606 = vadd.f32 %v5487, %v5605
  %v5607 = vrot.slane %v5606, 2
  %v5608 = vadd.f32 %v5606, %v5607
  %v5609 = vrot.slane %v5608, 1
  %v5610 = vadd.f32 %v5608, %v5609
  %v5611 = vrot.slane %v5488, 4
  %v5612 = vadd.f32 %v5488, %v5611
  %v5613 = vrot.slane %v5612, 2
  %v5614 = vadd.f32 %v5612, %v5613
  %v5615 = vrot.slane %v5614, 1
  %v5616 = vadd.f32 %v5614, %v5615
  %v5617 = vrot.slane %v5489, 4
  %v5618 = vadd.f32 %v5489, %v5617
  %v5619 = vrot.slane %v5618, 2
  %v5620 = vadd.f32 %v5618, %v5619
  %v5621 = vrot.slane %v5620, 1
  %v5622 = vadd.f32 %v5620, %v5621
  %v5623 = vrot.slane %v5490, 4
  %v5624 = vadd.f32 %v5490, %v5623
  %v5625 = vrot.slane %v5624, 2
  %v5626 = vadd.f32 %v5624, %v5625
  %v5627 = vrot.slane %v5626, 1
  %v5628 = vadd.f32 %v5626, %v5627
  %v5629 = vrot.slane %v5491, 4
  %v5630 = vadd.f32 %v5491, %v5629
  %v5631 = vrot.slane %v5630, 2
  %v5632 = vadd.f32 %v5630, %v5631
  %v5633 = vrot.slane %v5632, 1
  %v5634 = vadd.f32 %v5632, %v5633
  %v5635 = vrot.slane %v5492, 4
  %v5636 = vadd.f32 %v5492, %v5635
  %v5637 = vrot.slane %v5636, 2
  %v5638 = vadd.f32 %v5636, %v5637
  %v5639 = vrot.slane %v5638, 1
  %v5640 = vadd.f32 %v5638, %v5639
  %v5641 = vrot.slane %v5493, 4
  %v5642 = vadd.f32 %v5493, %v5641
  %v5643 = vrot.slane %v5642, 2
  %v5644 = vadd.f32 %v5642, %v5643
  %v5645 = vrot.slane %v5644, 1
  %v5646 = vadd.f32 %v5644, %v5645
  %v5647 = vrot.slane %v5494, 4
  %v5648 = vadd.f32 %v5494, %v5647
  %v5649 = vrot.slane %v5648, 2
  %v5650 = vadd.f32 %v5648, %v5649
  %v5651 = vrot.slane %v5650, 1
  %v5652 = vadd.f32 %v5650, %v5651
  %v5653 = vrot.slane %v5495, 4
  %v5654 = vadd.f32 %v5495, %v5653
  %v5655 = vrot.slane %v5654, 2
  %v5656 = vadd.f32 %v5654, %v5655
  %v5657 = vrot.slane %v5656, 1
  %v5658 = vadd.f32 %v5656, %v5657
  %v5659 = vrot.slane %v5496, 4
  %v5660 = vadd.f32 %v5496, %v5659
  %v5661 = vrot.slane %v5660, 2
  %v5662 = vadd.f32 %v5660, %v5661
  %v5663 = vrot.slane %v5662, 1
  %v5664 = vadd.f32 %v5662, %v5663
  %v5665 = vrot.slane %v5497, 4
  %v5666 = vadd.f32 %v5497, %v5665
  %v5667 = vrot.slane %v5666, 2
  %v5668 = vadd.f32 %v5666, %v5667
  %v5669 = vrot.slane %v5668, 1
  %v5670 = vadd.f32 %v5668, %v5669
  %v5671 = vrot.slane %v5498, 4
  %v5672 = vadd.f32 %v5498, %v5671
  %v5673 = vrot.slane %v5672, 2
  %v5674 = vadd.f32 %v5672, %v5673
  %v5675 = vrot.slane %v5674, 1
  %v5676 = vadd.f32 %v5674, %v5675
  %v5677 = vrot.slane %v5499, 4
  %v5678 = vadd.f32 %v5499, %v5677
  %v5679 = vrot.slane %v5678, 2
  %v5680 = vadd.f32 %v5678, %v5679
  %v5681 = vrot.slane %v5680, 1
  %v5682 = vadd.f32 %v5680, %v5681
  %v5683 = vrot.slane %v5500, 4
  %v5684 = vadd.f32 %v5500, %v5683
  %v5685 = vrot.slane %v5684, 2
  %v5686 = vadd.f32 %v5684, %v5685
  %v5687 = vrot.slane %v5686, 1
  %v5688 = vadd.f32 %v5686, %v5687
  %v5689 = vrot.slane %v5501, 4
  %v5690 = vadd.f32 %v5501, %v5689
  %v5691 = vrot.slane %v5690, 2
  %v5692 = vadd.f32 %v5690, %v5691
  %v5693 = vrot.slane %v5692, 1
  %v5694 = vadd.f32 %v5692, %v5693
  %v5695 = vrot.slane %v5502, 4
  %v5696 = vadd.f32 %v5502, %v5695
  %v5697 = vrot.slane %v5696, 2
  %v5698 = vadd.f32 %v5696, %v5697
  %v5699 = vrot.slane %v5698, 1
  %v5700 = vadd.f32 %v5698, %v5699
  %v5701 = vmul.f32 %v5277, %v5277
  %v5702 = vmul.f32 %v5283, %v5283
  %v5703 = vmul.f32 %v5289, %v5289
  %v5704 = vmul.f32 %v5295, %v5295
  %v5705 = vmul.f32 %v5301, %v5301
  %v5706 = vmul.f32 %v5307, %v5307
  %v5707 = vmul.f32 %v5313, %v5313
  %v5708 = vmul.f32 %v5319, %v5319
  %v5709 = vmul.f32 %v5325, %v5325
  %v5710 = vmul.f32 %v5331, %v5331
  %v5711 = vmul.f32 %v5337, %v5337
  %v5712 = vmul.f32 %v5343, %v5343
  %v5713 = vmul.f32 %v5349, %v5349
  %v5714 = vmul.f32 %v5355, %v5355
  %v5715 = vmul.f32 %v5361, %v5361
  %v5716 = vmul.f32 %v5367, %v5367
  %v5717 = vmul.f32 %v5373, %v5373
  %v5718 = vmul.f32 %v5379, %v5379
  %v5719 = vmul.f32 %v5385, %v5385
  %v5720 = vmul.f32 %v5391, %v5391
  %v5721 = vmul.f32 %v5397, %v5397
  %v5722 = vmul.f32 %v5403, %v5403
  %v5723 = vmul.f32 %v5409, %v5409
  %v5724 = vmul.f32 %v5415, %v5415
  %v5725 = vmul.f32 %v5421, %v5421
  %v5726 = vmul.f32 %v5427, %v5427
  %v5727 = vmul.f32 %v5433, %v5433
  %v5728 = vmul.f32 %v5439, %v5439
  %v5729 = vmul.f32 %v5445, %v5445
  %v5730 = vmul.f32 %v5451, %v5451
  %v5731 = vmul.f32 %v5457, %v5457
  %v5732 = vmul.f32 %v5463, %v5463
  %v5733 = vmul.f32 %v5469, %v5469
  %v5734 = vmul.f32 %v5508, %v5508
  %v5735 = vmul.f32 %v5514, %v5514
  %v5736 = vmul.f32 %v5520, %v5520
  %v5737 = vmul.f32 %v5526, %v5526
  %v5738 = vmul.f32 %v5532, %v5532
  %v5739 = vmul.f32 %v5538, %v5538
  %v5740 = vmul.f32 %v5544, %v5544
  %v5741 = vmul.f32 %v5550, %v5550
  %v5742 = vmul.f32 %v5556, %v5556
  %v5743 = vmul.f32 %v5562, %v5562
  %v5744 = vmul.f32 %v5568, %v5568
  %v5745 = vmul.f32 %v5574, %v5574
  %v5746 = vmul.f32 %v5580, %v5580
  %v5747 = vmul.f32 %v5586, %v5586
  %v5748 = vmul.f32 %v5592, %v5592
  %v5749 = vmul.f32 %v5598, %v5598
  %v5750 = vmul.f32 %v5604, %v5604
  %v5751 = vmul.f32 %v5610, %v5610
  %v5752 = vmul.f32 %v5616, %v5616
  %v5753 = vmul.f32 %v5622, %v5622
  %v5754 = vmul.f32 %v5628, %v5628
  %v5755 = vmul.f32 %v5634, %v5634
  %v5756 = vmul.f32 %v5640, %v5640
  %v5757 = vmul.f32 %v5646, %v5646
  %v5758 = vmul.f32 %v5652, %v5652
  %v5759 = vmul.f32 %v5658, %v5658
  %v5760 = vmul.f32 %v5664, %v5664
  %v5761 = vmul.f32 %v5670, %v5670
  %v5762 = vmul.f32 %v5676, %v5676
  %v5763 = vmul.f32 %v5682, %v5682
  %v5764 = vmul.f32 %v5688, %v5688
  %v5765 = vmul.f32 %v5694, %v5694
  %v5766 = vmul.f32 %v5700, %v5700
  %v5767 = vadd.f32 %v5701, %v5734
  %v5768 = vadd.f32 %v5702, %v5735
  %v5769 = vadd.f32 %v5703, %v5736
  %v5770 = vadd.f32 %v5704, %v5737
  %v5771 = vadd.f32 %v5705, %v5738
  %v5772 = vadd.f32 %v5706, %v5739
  %v5773 = vadd.f32 %v5707, %v5740
  %v5774 = vadd.f32 %v5708, %v5741
  %v5775 = vadd.f32 %v5709, %v5742
  %v5776 = vadd.f32 %v5710, %v5743
  %v5777 = vadd.f32 %v5711, %v5744
  %v5778 = vadd.f32 %v5712, %v5745
  %v5779 = vadd.f32 %v5713, %v5746
  %v5780 = vadd.f32 %v5714, %v5747
  %v5781 = vadd.f32 %v5715, %v5748
  %v5782 = vadd.f32 %v5716, %v5749
  %v5783 = vadd.f32 %v5717, %v5750
  %v5784 = vadd.f32 %v5718, %v5751
  %v5785 = vadd.f32 %v5719, %v5752
  %v5786 = vadd.f32 %v5720, %v5753
  %v5787 = vadd.f32 %v5721, %v5754
  %v5788 = vadd.f32 %v5722, %v5755
  %v5789 = vadd.f32 %v5723, %v5756
  %v5790 = vadd.f32 %v5724, %v5757
  %v5791 = vadd.f32 %v5725, %v5758
  %v5792 = vadd.f32 %v5726, %v5759
  %v5793 = vadd.f32 %v5727, %v5760
  %v5794 = vadd.f32 %v5728, %v5761
  %v5795 = vadd.f32 %v5729, %v5762
  %v5796 = vadd.f32 %v5730, %v5763
  %v5797 = vadd.f32 %v5731, %v5764
  %v5798 = vadd.f32 %v5732, %v5765
  %v5799 = vadd.f32 %v5733, %v5766
  %v5800 = vrsqrt.pop %v5767
  %v5801 = vmul.f32 %v5767, %v5800
  %vm5802 = vcmp.eq.f32.partialorder %v5767, inf
  %v5803 = vsel %vm5802, %v5767, %v5801
  %vm5804 = vcmp.eq.f32.partialorder %v5767, 0.0
  %v5805 = vand.u32 %v5767, 2147483648
  %v5806 = vsel %vm5804, %v5805, %v5803
  %v5807 = vrsqrt.pop %v5768
  %v5808 = vmul.f32 %v5768, %v5807
  %vm5809 = vcmp.eq.f32.partialorder %v5768, inf
  %v5810 = vsel %vm5809, %v5768, %v5808
  %vm5811 = vcmp.eq.f32.partialorder %v5768, 0.0
  %v5812 = vand.u32 %v5768, 2147483648
  %v5813 = vsel %vm5811, %v5812, %v5810
  %v5814 = vrsqrt.pop %v5769
  %v5815 = vmul.f32 %v5769, %v5814
  %vm5816 = vcmp.eq.f32.partialorder %v5769, inf
  %v5817 = vsel %vm5816, %v5769, %v5815
  %vm5818 = vcmp.eq.f32.partialorder %v5769, 0.0
  %v5819 = vand.u32 %v5769, 2147483648
  %v5820 = vsel %vm5818, %v5819, %v5817
  %v5821 = vrsqrt.pop %v5770
  %v5822 = vmul.f32 %v5770, %v5821
  %vm5823 = vcmp.eq.f32.partialorder %v5770, inf
  %v5824 = vsel %vm5823, %v5770, %v5822
  %vm5825 = vcmp.eq.f32.partialorder %v5770, 0.0
  %v5826 = vand.u32 %v5770, 2147483648
  %v5827 = vsel %vm5825, %v5826, %v5824
  %v5828 = vrsqrt.pop %v5771
  %v5829 = vmul.f32 %v5771, %v5828
  %vm5830 = vcmp.eq.f32.partialorder %v5771, inf
  %v5831 = vsel %vm5830, %v5771, %v5829
  %vm5832 = vcmp.eq.f32.partialorder %v5771, 0.0
  %v5833 = vand.u32 %v5771, 2147483648
  %v5834 = vsel %vm5832, %v5833, %v5831
  %v5835 = vrsqrt.pop %v5772
  %v5836 = vmul.f32 %v5772, %v5835
  %vm5837 = vcmp.eq.f32.partialorder %v5772, inf
  %v5838 = vsel %vm5837, %v5772, %v5836
  %vm5839 = vcmp.eq.f32.partialorder %v5772, 0.0
  %v5840 = vand.u32 %v5772, 2147483648
  %v5841 = vsel %vm5839, %v5840, %v5838
  %v5842 = vrsqrt.pop %v5773
  %v5843 = vmul.f32 %v5773, %v5842
  %vm5844 = vcmp.eq.f32.partialorder %v5773, inf
  %v5845 = vsel %vm5844, %v5773, %v5843
  %vm5846 = vcmp.eq.f32.partialorder %v5773, 0.0
  %v5847 = vand.u32 %v5773, 2147483648
  %v5848 = vsel %vm5846, %v5847, %v5845
  %v5849 = vrsqrt.pop %v5774
  %v5850 = vmul.f32 %v5774, %v5849
  %vm5851 = vcmp.eq.f32.partialorder %v5774, inf
  %v5852 = vsel %vm5851, %v5774, %v5850
  %vm5853 = vcmp.eq.f32.partialorder %v5774, 0.0
  %v5854 = vand.u32 %v5774, 2147483648
  %v5855 = vsel %vm5853, %v5854, %v5852
  %v5856 = vrsqrt.pop %v5775
  %v5857 = vmul.f32 %v5775, %v5856
  %vm5858 = vcmp.eq.f32.partialorder %v5775, inf
  %v5859 = vsel %vm5858, %v5775, %v5857
  %vm5860 = vcmp.eq.f32.partialorder %v5775, 0.0
  %v5861 = vand.u32 %v5775, 2147483648
  %v5862 = vsel %vm5860, %v5861, %v5859
  %v5863 = vrsqrt.pop %v5776
  %v5864 = vmul.f32 %v5776, %v5863
  %vm5865 = vcmp.eq.f32.partialorder %v5776, inf
  %v5866 = vsel %vm5865, %v5776, %v5864
  %vm5867 = vcmp.eq.f32.partialorder %v5776, 0.0
  %v5868 = vand.u32 %v5776, 2147483648
  %v5869 = vsel %vm5867, %v5868, %v5866
  %v5870 = vrsqrt.pop %v5777
  %v5871 = vmul.f32 %v5777, %v5870
  %vm5872 = vcmp.eq.f32.partialorder %v5777, inf
  %v5873 = vsel %vm5872, %v5777, %v5871
  %vm5874 = vcmp.eq.f32.partialorder %v5777, 0.0
  %v5875 = vand.u32 %v5777, 2147483648
  %v5876 = vsel %vm5874, %v5875, %v5873
  %v5877 = vrsqrt.pop %v5778
  %v5878 = vmul.f32 %v5778, %v5877
  %vm5879 = vcmp.eq.f32.partialorder %v5778, inf
  %v5880 = vsel %vm5879, %v5778, %v5878
  %vm5881 = vcmp.eq.f32.partialorder %v5778, 0.0
  %v5882 = vand.u32 %v5778, 2147483648
  %v5883 = vsel %vm5881, %v5882, %v5880
  %v5884 = vrsqrt.pop %v5779
  %v5885 = vmul.f32 %v5779, %v5884
  %vm5886 = vcmp.eq.f32.partialorder %v5779, inf
  %v5887 = vsel %vm5886, %v5779, %v5885
  %vm5888 = vcmp.eq.f32.partialorder %v5779, 0.0
  %v5889 = vand.u32 %v5779, 2147483648
  %v5890 = vsel %vm5888, %v5889, %v5887
  %v5891 = vrsqrt.pop %v5780
  %v5892 = vmul.f32 %v5780, %v5891
  %vm5893 = vcmp.eq.f32.partialorder %v5780, inf
  %v5894 = vsel %vm5893, %v5780, %v5892
  %vm5895 = vcmp.eq.f32.partialorder %v5780, 0.0
  %v5896 = vand.u32 %v5780, 2147483648
  %v5897 = vsel %vm5895, %v5896, %v5894
  %v5898 = vrsqrt.pop %v5781
  %v5899 = vmul.f32 %v5781, %v5898
  %vm5900 = vcmp.eq.f32.partialorder %v5781, inf
  %v5901 = vsel %vm5900, %v5781, %v5899
  %vm5902 = vcmp.eq.f32.partialorder %v5781, 0.0
  %v5903 = vand.u32 %v5781, 2147483648
  %v5904 = vsel %vm5902, %v5903, %v5901
  %v5905 = vrsqrt.pop %v5782
  %v5906 = vmul.f32 %v5782, %v5905
  %vm5907 = vcmp.eq.f32.partialorder %v5782, inf
  %v5908 = vsel %vm5907, %v5782, %v5906
  %vm5909 = vcmp.eq.f32.partialorder %v5782, 0.0
  %v5910 = vand.u32 %v5782, 2147483648
  %v5911 = vsel %vm5909, %v5910, %v5908
  %v5912 = vrsqrt.pop %v5783
  %v5913 = vmul.f32 %v5783, %v5912
  %vm5914 = vcmp.eq.f32.partialorder %v5783, inf
  %v5915 = vsel %vm5914, %v5783, %v5913
  %vm5916 = vcmp.eq.f32.partialorder %v5783, 0.0
  %v5917 = vand.u32 %v5783, 2147483648
  %v5918 = vsel %vm5916, %v5917, %v5915
  %v5919 = vrsqrt.pop %v5784
  %v5920 = vmul.f32 %v5784, %v5919
  %vm5921 = vcmp.eq.f32.partialorder %v5784, inf
  %v5922 = vsel %vm5921, %v5784, %v5920
  %vm5923 = vcmp.eq.f32.partialorder %v5784, 0.0
  %v5924 = vand.u32 %v5784, 2147483648
  %v5925 = vsel %vm5923, %v5924, %v5922
  %v5926 = vrsqrt.pop %v5785
  %v5927 = vmul.f32 %v5785, %v5926
  %vm5928 = vcmp.eq.f32.partialorder %v5785, inf
  %v5929 = vsel %vm5928, %v5785, %v5927
  %vm5930 = vcmp.eq.f32.partialorder %v5785, 0.0
  %v5931 = vand.u32 %v5785, 2147483648
  %v5932 = vsel %vm5930, %v5931, %v5929
  %v5933 = vrsqrt.pop %v5786
  %v5934 = vmul.f32 %v5786, %v5933
  %vm5935 = vcmp.eq.f32.partialorder %v5786, inf
  %v5936 = vsel %vm5935, %v5786, %v5934
  %vm5937 = vcmp.eq.f32.partialorder %v5786, 0.0
  %v5938 = vand.u32 %v5786, 2147483648
  %v5939 = vsel %vm5937, %v5938, %v5936
  %v5940 = vrsqrt.pop %v5787
  %v5941 = vmul.f32 %v5787, %v5940
  %vm5942 = vcmp.eq.f32.partialorder %v5787, inf
  %v5943 = vsel %vm5942, %v5787, %v5941
  %vm5944 = vcmp.eq.f32.partialorder %v5787, 0.0
  %v5945 = vand.u32 %v5787, 2147483648
  %v5946 = vsel %vm5944, %v5945, %v5943
  %v5947 = vrsqrt.pop %v5788
  %v5948 = vmul.f32 %v5788, %v5947
  %vm5949 = vcmp.eq.f32.partialorder %v5788, inf
  %v5950 = vsel %vm5949, %v5788, %v5948
  %vm5951 = vcmp.eq.f32.partialorder %v5788, 0.0
  %v5952 = vand.u32 %v5788, 2147483648
  %v5953 = vsel %vm5951, %v5952, %v5950
  %v5954 = vrsqrt.pop %v5789
  %v5955 = vmul.f32 %v5789, %v5954
  %vm5956 = vcmp.eq.f32.partialorder %v5789, inf
  %v5957 = vsel %vm5956, %v5789, %v5955
  %vm5958 = vcmp.eq.f32.partialorder %v5789, 0.0
  %v5959 = vand.u32 %v5789, 2147483648
  %v5960 = vsel %vm5958, %v5959, %v5957
  %v5961 = vrsqrt.pop %v5790
  %v5962 = vmul.f32 %v5790, %v5961
  %vm5963 = vcmp.eq.f32.partialorder %v5790, inf
  %v5964 = vsel %vm5963, %v5790, %v5962
  %vm5965 = vcmp.eq.f32.partialorder %v5790, 0.0
  %v5966 = vand.u32 %v5790, 2147483648
  %v5967 = vsel %vm5965, %v5966, %v5964
  %v5968 = vrsqrt.pop %v5791
  %v5969 = vmul.f32 %v5791, %v5968
  %vm5970 = vcmp.eq.f32.partialorder %v5791, inf
  %v5971 = vsel %vm5970, %v5791, %v5969
  %vm5972 = vcmp.eq.f32.partialorder %v5791, 0.0
  %v5973 = vand.u32 %v5791, 2147483648
  %v5974 = vsel %vm5972, %v5973, %v5971
  %v5975 = vrsqrt.pop %v5792
  %v5976 = vmul.f32 %v5792, %v5975
  %vm5977 = vcmp.eq.f32.partialorder %v5792, inf
  %v5978 = vsel %vm5977, %v5792, %v5976
  %vm5979 = vcmp.eq.f32.partialorder %v5792, 0.0
  %v5980 = vand.u32 %v5792, 2147483648
  %v5981 = vsel %vm5979, %v5980, %v5978
  %v5982 = vrsqrt.pop %v5793
  %v5983 = vmul.f32 %v5793, %v5982
  %vm5984 = vcmp.eq.f32.partialorder %v5793, inf
  %v5985 = vsel %vm5984, %v5793, %v5983
  %vm5986 = vcmp.eq.f32.partialorder %v5793, 0.0
  %v5987 = vand.u32 %v5793, 2147483648
  %v5988 = vsel %vm5986, %v5987, %v5985
  %v5989 = vrsqrt.pop %v5794
  %v5990 = vmul.f32 %v5794, %v5989
  %vm5991 = vcmp.eq.f32.partialorder %v5794, inf
  %v5992 = vsel %vm5991, %v5794, %v5990
  %vm5993 = vcmp.eq.f32.partialorder %v5794, 0.0
  %v5994 = vand.u32 %v5794, 2147483648
  %v5995 = vsel %vm5993, %v5994, %v5992
  %v5996 = vrsqrt.pop %v5795
  %v5997 = vmul.f32 %v5795, %v5996
  %vm5998 = vcmp.eq.f32.partialorder %v5795, inf
  %v5999 = vsel %vm5998, %v5795, %v5997
  %vm6000 = vcmp.eq.f32.partialorder %v5795, 0.0
  %v6001 = vand.u32 %v5795, 2147483648
  %v6002 = vsel %vm6000, %v6001, %v5999
  %v6003 = vrsqrt.pop %v5796
  %v6004 = vmul.f32 %v5796, %v6003
  %vm6005 = vcmp.eq.f32.partialorder %v5796, inf
  %v6006 = vsel %vm6005, %v5796, %v6004
  %vm6007 = vcmp.eq.f32.partialorder %v5796, 0.0
  %v6008 = vand.u32 %v5796, 2147483648
  %v6009 = vsel %vm6007, %v6008, %v6006
  %v6010 = vrsqrt.pop %v5797
  %v6011 = vmul.f32 %v5797, %v6010
  %vm6012 = vcmp.eq.f32.partialorder %v5797, inf
  %v6013 = vsel %vm6012, %v5797, %v6011
  %vm6014 = vcmp.eq.f32.partialorder %v5797, 0.0
  %v6015 = vand.u32 %v5797, 2147483648
  %v6016 = vsel %vm6014, %v6015, %v6013
  %v6017 = vrsqrt.pop %v5798
  %v6018 = vmul.f32 %v5798, %v6017
  %vm6019 = vcmp.eq.f32.partialorder %v5798, inf
  %v6020 = vsel %vm6019, %v5798, %v6018
  %vm6021 = vcmp.eq.f32.partialorder %v5798, 0.0
  %v6022 = vand.u32 %v5798, 2147483648
  %v6023 = vsel %vm6021, %v6022, %v6020
  %v6024 = vrsqrt.pop %v5799
  %v6025 = vmul.f32 %v5799, %v6024
  %vm6026 = vcmp.eq.f32.partialorder %v5799, inf
  %v6027 = vsel %vm6026, %v5799, %v6025
  %vm6028 = vcmp.eq.f32.partialorder %v5799, 0.0
  %v6029 = vand.u32 %v5799, 2147483648
  %v6030 = vsel %vm6028, %v6029, %v6027
  %v6031 = vsub.f32 0.0, %v5806
  %v6032 = vsub.f32 0.0, %v5813
  %v6033 = vsub.f32 0.0, %v5820
  %v6034 = vsub.f32 0.0, %v5827
  %v6035 = vsub.f32 0.0, %v5834
  %v6036 = vsub.f32 0.0, %v5841
  %v6037 = vsub.f32 0.0, %v5848
  %v6038 = vsub.f32 0.0, %v5855
  %v6039 = vsub.f32 0.0, %v5862
  %v6040 = vsub.f32 0.0, %v5869
  %v6041 = vsub.f32 0.0, %v5876
  %v6042 = vsub.f32 0.0, %v5883
  %v6043 = vsub.f32 0.0, %v5890
  %v6044 = vsub.f32 0.0, %v5897
  %v6045 = vsub.f32 0.0, %v5904
  %v6046 = vsub.f32 0.0, %v5911
  %v6047 = vsub.f32 0.0, %v5918
  %v6048 = vsub.f32 0.0, %v5925
  %v6049 = vsub.f32 0.0, %v5932
  %v6050 = vsub.f32 0.0, %v5939
  %v6051 = vsub.f32 0.0, %v5946
  %v6052 = vsub.f32 0.0, %v5953
  %v6053 = vsub.f32 0.0, %v5960
  %v6054 = vsub.f32 0.0, %v5967
  %v6055 = vsub.f32 0.0, %v5974
  %v6056 = vsub.f32 0.0, %v5981
  %v6057 = vsub.f32 0.0, %v5988
  %v6058 = vsub.f32 0.0, %v5995
  %v6059 = vsub.f32 0.0, %v6002
  %v6060 = vsub.f32 0.0, %v6009
  %v6061 = vsub.f32 0.0, %v6016
  %v6062 = vsub.f32 0.0, %v6023
  %v6063 = vsub.f32 0.0, %v6030
  %v6064 = vmul.f32 %v6031, 1.442695
  %v6065 = vpow.pop %v6064
  %v6066 = vmul.f32 %v6032, 1.442695
  %v6067 = vpow.pop %v6066
  %v6068 = vmul.f32 %v6033, 1.442695
  %v6069 = vpow.pop %v6068
  %v6070 = vmul.f32 %v6034, 1.442695
  %v6071 = vpow.pop %v6070
  %v6072 = vmul.f32 %v6035, 1.442695
  %v6073 = vpow.pop %v6072
  %v6074 = vmul.f32 %v6036, 1.442695
  %v6075 = vpow.pop %v6074
  %v6076 = vmul.f32 %v6037, 1.442695
  %v6077 = vpow.pop %v6076
  %v6078 = vmul.f32 %v6038, 1.442695
  %v6079 = vpow.pop %v6078
  %v6080 = vmul.f32 %v6039, 1.442695
  %v6081 = vpow.pop %v6080
  %v6082 = vmul.f32 %v6040, 1.442695
  %v6083 = vpow.pop %v6082
  %v6084 = vmul.f32 %v6041, 1.442695
  %v6085 = vpow.pop %v6084
  %v6086 = vmul.f32 %v6042, 1.442695
  %v6087 = vpow.pop %v6086
  %v6088 = vmul.f32 %v6043, 1.442695
  %v6089 = vpow.pop %v6088
  %v6090 = vmul.f32 %v6044, 1.442695
  %v6091 = vpow.pop %v6090
  %v6092 = vmul.f32 %v6045, 1.442695
  %v6093 = vpow.pop %v6092
  %v6094 = vmul.f32 %v6046, 1.442695
  %v6095 = vpow.pop %v6094
  %v6096 = vmul.f32 %v6047, 1.442695
  %v6097 = vpow.pop %v6096
  %v6098 = vmul.f32 %v6048, 1.442695
  %v6099 = vpow.pop %v6098
  %v6100 = vmul.f32 %v6049, 1.442695
  %v6101 = vpow.pop %v6100
  %v6102 = vmul.f32 %v6050, 1.442695
  %v6103 = vpow.pop %v6102
  %v6104 = vmul.f32 %v6051, 1.442695
  %v6105 = vpow.pop %v6104
  %v6106 = vmul.f32 %v6052, 1.442695
  %v6107 = vpow.pop %v6106
  %v6108 = vmul.f32 %v6053, 1.442695
  %v6109 = vpow.pop %v6108
  %v6110 = vmul.f32 %v6054, 1.442695
  %v6111 = vpow.pop %v6110
  %v6112 = vmul.f32 %v6055, 1.442695
  %v6113 = vpow.pop %v6112
  %v6114 = vmul.f32 %v6056, 1.442695
  %v6115 = vpow.pop %v6114
  %v6116 = vmul.f32 %v6057, 1.442695
  %v6117 = vpow.pop %v6116
  %v6118 = vmul.f32 %v6058, 1.442695
  %v6119 = vpow.pop %v6118
  %v6120 = vmul.f32 %v6059, 1.442695
  %v6121 = vpow.pop %v6120
  %v6122 = vmul.f32 %v6060, 1.442695
  %v6123 = vpow.pop %v6122
  %v6124 = vmul.f32 %v6061, 1.442695
  %v6125 = vpow.pop %v6124
  %v6126 = vmul.f32 %v6062, 1.442695
  %v6127 = vpow.pop %v6126
  %v6128 = vmul.f32 %v6063, 1.442695
  %v6129 = vpow.pop %v6128
  %v6163 = vsel %vm4164, %v6067, %v6065
  %v6164 = vsel %vm4166, %v6069, %v6163
  %v6165 = vsel %vm4168, %v6071, %v6164
  %v6166 = vsel %vm4170, %v6073, %v6165
  %v6167 = vsel %vm4172, %v6075, %v6166
  %v6168 = vsel %vm4174, %v6077, %v6167
  %v6169 = vsel %vm4176, %v6079, %v6168
  %v6170 = vsel %vm4164, %v6083, %v6081
  %v6171 = vsel %vm4166, %v6085, %v6170
  %v6172 = vsel %vm4168, %v6087, %v6171
  %v6173 = vsel %vm4170, %v6089, %v6172
  %v6174 = vsel %vm4172, %v6091, %v6173
  %v6175 = vsel %vm4174, %v6093, %v6174
  %v6176 = vsel %vm4176, %v6095, %v6175
  %v6177 = vsel %vm4164, %v6099, %v6097
  %v6178 = vsel %vm4166, %v6101, %v6177
  %v6179 = vsel %vm4168, %v6103, %v6178
  %v6180 = vsel %vm4170, %v6105, %v6179
  %v6181 = vsel %vm4172, %v6107, %v6180
  %v6182 = vsel %vm4174, %v6109, %v6181
  %v6183 = vsel %vm4176, %v6111, %v6182
  %v6184 = vsel %vm4164, %v6115, %v6113
  %v6185 = vsel %vm4166, %v6117, %v6184
  %v6186 = vsel %vm4168, %v6119, %v6185
  %v6187 = vsel %vm4170, %v6121, %v6186
  %v6188 = vsel %vm4172, %v6123, %v6187
  %v6189 = vsel %vm4174, %v6125, %v6188
  %v6190 = vsel %vm4176, %v6127, %v6189
  %6196 = vst [vmem:[%s14 + $0x42] sm:$0xff] %v6169
  %6197 = vst [vmem:[%s14 + $0x4a] sm:$0xff] %v6176
  %6198 = vst [vmem:[%s14 + $0x52] sm:$0xff] %v6183
  %6199 = vst [vmem:[%s14 + $0x5a] sm:$0xff] %v6190
  %6200 = vst [vmem:[%s14 + $0x62] sm:$0x1] %v6129
  %v6201 = vmul.f32 %v75, %v3233
  %v6202 = vrot.slane %v6201, 4
  %v6203 = vadd.f32 %v6201, %v6202
  %v6204 = vrot.slane %v6203, 2
  %v6205 = vadd.f32 %v6203, %v6204
  %v6206 = vrot.slane %v6205, 1
  %v6207 = vadd.f32 %v6205, %v6206
  %v6208 = vmul.f32 %v75, %v3469
  %v6209 = vrot.slane %v6208, 4
  %v6210 = vadd.f32 %v6208, %v6209
  %v6211 = vrot.slane %v6210, 2
  %v6212 = vadd.f32 %v6210, %v6211
  %v6213 = vrot.slane %v6212, 1
  %v6214 = vadd.f32 %v6212, %v6213
  %v6215 = vmul.f32 %v6207, %v6207
  %v6216 = vmul.f32 %v6214, %v6214
  %v6217 = vadd.f32 %v6215, %v6216
  %v6218 = vrsqrt.pop %v6217
  %v6219 = vmul.f32 %v6217, %v6218
  %vm6220 = vcmp.eq.f32.partialorder %v6217, inf
  %v6221 = vsel %vm6220, %v6217, %v6219
  %vm6222 = vcmp.eq.f32.partialorder %v6217, 0.0
  %v6223 = vand.u32 %v6217, 2147483648
  %v6224 = vsel %vm6222, %v6223, %v6221
  %v6225 = vsub.f32 0.0, %v6224
  %v6226 = vmul.f32 %v6225, 1.442695
  %v6227 = vpow.pop %v6226
  %6228 = vst [vmem:[%s14 + $0x63] sm:$0x1] %v6227
  // Predicated region
  $region61: #{worldnet_forward.1} parent=0 // pred_check
    _
  $region62: #{worldnet_forward.1} parent=0 // pred_check_branch
    %6230 = sbr.rel (0) target = $region64
  $region63: #{worldnet_forward.1} parent=0 // pred_region
    _
  $region64: #{worldnet_forward.1} parent=0 // pred_fallthru
    _
  // Predicated region
  $region65: #{worldnet_forward.1} parent=0 // pred_check
    _
  $region66: #{worldnet_forward.1} parent=0 // pred_check_branch
    %6232 = sbr.rel (0) target = $region68
  $region67: #{worldnet_forward.1} parent=0 // pred_region
    _
  $region68: #{worldnet_forward.1} parent=0 // pred_fallthru
    _
  // Predicated region
  $region69: #{worldnet_forward.1} parent=0 // pred_check
    _
  $region70: #{worldnet_forward.1} parent=0 // pred_check_branch
    %6234 = sbr.rel (0) target = $region72
  $region71: #{worldnet_forward.1} parent=0 // pred_region
    _
  $region72: #{worldnet_forward.1} parent=0 // pred_fallthru
    _
  // Predicated region
  $region73: #{worldnet_forward.1} parent=0 // pred_check
    _
  $region74: #{worldnet_forward.1} parent=0 // pred_check_branch
    %6236 = sbr.rel (0) target = $region76
  $region75: #{worldnet_forward.1} parent=0 // pred_region
    _
  $region76: #{worldnet_forward.1} parent=0 // pred_fallthru
    _

</llo_original>
